<compile_context>
chip_gen: v7x
topology: tpu7x:2x2x1
jax: 0.10.0
libtpu: 0.0.40
codegen_flags: <defaults>
</compile_context>

<pallas_src>
import functools

import jax
import jax.numpy as jnp
from jax.experimental import pallas as pl
from jax.experimental.pallas import tpu as pltpu


_VMEM_LIMIT = 48 * 1024 * 1024  # explicit budget; safe on v5e/v6e/v7x


def _round_up(x, m):
    return ((x + m - 1) // m) * m


# ----------------------------------------------------------------------------
# Kernel 1: Resnet50FCN stand-in — global average pool + linear projection.
# Spatial axis is tiled (two-stage reduce into an f32 accumulator) so the
# image block never has to be fully VMEM-resident at realistic sizes.
# ----------------------------------------------------------------------------
def feature_kernel(x_ref, w_ref, b_ref, f_ref, acc_ref, *, inv_hw):
    s = pl.program_id(0)

    @pl.when(s == 0)
    def _():
        acc_ref[...] = jnp.zeros_like(acc_ref)

    # x_ref: (B, C, S_chunk) — lane-axis partial sum into (B, C).
    acc_ref[...] += jnp.sum(x_ref[...], axis=-1)

    @pl.when(s == pl.num_programs(0) - 1)
    def _():
        pooled = acc_ref[...] * inv_hw                       # (B, C) f32
        f_ref[...] = (
            jnp.dot(pooled.astype(w_ref.dtype), w_ref[...],
                    preferred_element_type=jnp.float32)
            + b_ref[...]
        )


def extract_features(x_nchw, w_cf, b_f):
    B, C, Hh, Ww = x_nchw.shape
    F = w_cf.shape[1]
    HW = Hh * Ww
    x_r = x_nchw.reshape(B, C, HW)
    s_chunk = 128 if HW % 128 == 0 else HW
    grid = (HW // s_chunk,)
    return pl.pallas_call(
        functools.partial(feature_kernel, inv_hw=1.0 / float(HW)),
        out_shape=jax.ShapeDtypeStruct((B, F), jnp.float32),
        grid_spec=pltpu.PrefetchScalarGridSpec(
            num_scalar_prefetch=0,
            grid=grid,
            in_specs=[
                pl.BlockSpec((B, C, s_chunk), lambda s: (0, 0, s)),
                pl.BlockSpec((C, F), lambda s: (0, 0)),
                pl.BlockSpec((1, F), lambda s: (0, 0)),
            ],
            out_specs=pl.BlockSpec((B, F), lambda s: (0, 0)),
            scratch_shapes=[pltpu.VMEM((B, C), jnp.float32)],
        ),
        compiler_params=pltpu.CompilerParams(
            dimension_semantics=("arbitrary",),
            vmem_limit_bytes=_VMEM_LIMIT),
    )(x_r, w_cf, b_f)


# ----------------------------------------------------------------------------
# Kernel 2: hoisted LSTM layer-0 input projection.
# One big parallel matmul over all (time, batch) rows:
#   gx0 = emb_flat @ W_ih_emb + b0, written in a per-gate (4, M, H) layout.
# ----------------------------------------------------------------------------
def input_proj_kernel(e_ref, w_ref, b_ref, gx_ref, *, hidden):
    g_all = (
        jnp.dot(e_ref[...].astype(w_ref.dtype), w_ref[...],
                preferred_element_type=jnp.float32)
        + b_ref[...]
    )  # (Mt, 4H) f32
    for g in range(4):  # one-shot parallel kernel; lane slices are fine here
        gx_ref[g] = g_all[:, g * hidden:(g + 1) * hidden]


def run_input_proj(emb_flat, wih_emb, b0, hidden, mt):
    M, E = emb_flat.shape
    assert M % mt == 0
    grid = (M // mt,)
    return pl.pallas_call(
        functools.partial(input_proj_kernel, hidden=hidden),
        out_shape=jax.ShapeDtypeStruct((4, M, hidden), jnp.float32),
        grid_spec=pltpu.PrefetchScalarGridSpec(
            num_scalar_prefetch=0,
            grid=grid,
            in_specs=[
                pl.BlockSpec((mt, E), lambda m: (m, 0)),
                pl.BlockSpec((E, 4 * hidden), lambda m: (0, 0)),
                pl.BlockSpec((1, 4 * hidden), lambda m: (0, 0)),
            ],
            out_specs=pl.BlockSpec((4, mt, hidden), lambda m: (0, m, 0)),
        ),
        compiler_params=pltpu.CompilerParams(
            dimension_semantics=("parallel",),
            vmem_limit_bytes=_VMEM_LIMIT),
    )(emb_flat, wih_emb, b0)


# ----------------------------------------------------------------------------
# Kernel 3: 2-layer LSTM recurrence (PyTorch gate order i, f, g, o).
# Grid iterates over chunks of K time steps; per-step work is only the
# recurrent h @ W_hh (+ layer-1 input proj h0 @ W_ih1) plus elementwise gates.
# The time-invariant feat @ W_ih_feat term is computed once at chunk 0 and
# kept resident in VMEM scratch.  All weights / pre-activations use a
# per-gate layout so no sub-vreg lane slicing happens in the serial loop.
# ----------------------------------------------------------------------------
def lstm2_kernel(gx0_ref, feat_ref, wihf_ref, whh0_ref, wih1_ref, whh1_ref,
                 b1_ref, y_ref, h0, c0, h1, c1, gxf, *, K, B, H):
    c = pl.program_id(0)

    @pl.when(c == 0)
    def _():
        h0[...] = jnp.zeros_like(h0)
        c0[...] = jnp.zeros_like(c0)
        h1[...] = jnp.zeros_like(h1)
        c1[...] = jnp.zeros_like(c1)
        featb = feat_ref[...].astype(wihf_ref.dtype)          # (B, F) bf16
        for g in range(4):                                    # time-invariant term
            gxf[g] = jnp.dot(featb, wihf_ref[g],
                             preferred_element_type=jnp.float32)

    def step(s, carry):
        row = pl.multiple_of(s * B, B)

        # ---- layer 0 ----
        h0v = h0[...]
        c0v = c0[...]
        h0b = h0v.astype(whh0_ref.dtype)

        def pre0(g):
            return (gx0_ref[g, pl.ds(row, B), :]              # hoisted x@W_ih + b0
                    + gxf[g]                                  # feat@W_ih_feat
                    + jnp.dot(h0b, whh0_ref[g],
                              preferred_element_type=jnp.float32))

        i0 = jax.nn.sigmoid(pre0(0))
        f0 = jax.nn.sigmoid(pre0(1))
        g0 = jnp.tanh(pre0(2))
        o0 = jax.nn.sigmoid(pre0(3))
        c0n = f0 * c0v + i0 * g0
        h0n = o0 * jnp.tanh(c0n)
        c0[...] = c0n
        h0[...] = h0n

        # ---- layer 1 ----
        h1v = h1[...]
        c1v = c1[...]
        h0nb = h0n.astype(wih1_ref.dtype)
        h1b = h1v.astype(whh1_ref.dtype)

        def pre1(g):
            return (jnp.dot(h0nb, wih1_ref[g],
                            preferred_element_type=jnp.float32)
                    + jnp.dot(h1b, whh1_ref[g],
                              preferred_element_type=jnp.float32)
                    + b1_ref[g])

        i1 = jax.nn.sigmoid(pre1(0))
        f1 = jax.nn.sigmoid(pre1(1))
        g1 = jnp.tanh(pre1(2))
        o1 = jax.nn.sigmoid(pre1(3))
        c1n = f1 * c1v + i1 * g1
        h1n = o1 * jnp.tanh(c1n)
        c1[...] = c1n
        h1[...] = h1n

        y_ref[s] = h1n
        return carry

    jax.lax.fori_loop(0, K, step, 0, unroll=True)


def run_lstm2(gx0, feat, wih_feat, whh0, wih1, whh1, b1, *, K, B, H, Lp):
    F = feat.shape[1]
    n_chunks = Lp // K
    grid_spec = pltpu.PrefetchScalarGridSpec(
        num_scalar_prefetch=0,
        grid=(n_chunks,),
        in_specs=[
            pl.BlockSpec((4, K * B, H), lambda c: (0, c, 0)),   # gx0 (per chunk)
            pl.BlockSpec((B, F), lambda c: (0, 0)),             # feat (resident)
            pl.BlockSpec((4, F, H), lambda c: (0, 0, 0)),       # W_ih_feat
            pl.BlockSpec((4, H, H), lambda c: (0, 0, 0)),       # W_hh layer 0
            pl.BlockSpec((4, H, H), lambda c: (0, 0, 0)),       # W_ih layer 1
            pl.BlockSpec((4, H, H), lambda c: (0, 0, 0)),       # W_hh layer 1
            pl.BlockSpec((4, 1, H), lambda c: (0, 0, 0)),       # b1
        ],
        out_specs=pl.BlockSpec((K, B, H), lambda c: (c, 0, 0)),
        scratch_shapes=[pltpu.VMEM((B, H), jnp.float32) for _ in range(4)]
                      + [pltpu.VMEM((4, B, H), jnp.float32)],
    )
    return pl.pallas_call(
        functools.partial(lstm2_kernel, K=K, B=B, H=H),
        out_shape=jax.ShapeDtypeStruct((Lp, B, H), jnp.float32),
        grid_spec=grid_spec,
        compiler_params=pltpu.CompilerParams(
            dimension_semantics=("arbitrary",),
            vmem_limit_bytes=_VMEM_LIMIT),
    )(gx0, feat, wih_feat, whh0, wih1, whh1, b1)


# ----------------------------------------------------------------------------
# Kernel 4: output Linear(hidden -> vocab) as ONE matmul over all time steps,
# vocab zero-padded to a multiple of 128 for lane-dense stores.
# ----------------------------------------------------------------------------
def out_proj_kernel(y_ref, w_ref, b_ref, o_ref):
    o_ref[...] = (
        jnp.dot(y_ref[...].astype(w_ref.dtype), w_ref[...],
                preferred_element_type=jnp.float32)
        + b_ref[...]
    )


def run_out_proj(y_mh, w_hv, b_v):
    M, H = y_mh.shape
    Vp = w_hv.shape[1]
    mt = M if M <= 256 else 256
    Mp = _round_up(M, mt)
    if Mp != M:
        y_mh = jnp.zeros((Mp, H), y_mh.dtype).at[:M].set(y_mh)
    vt = 128 if Vp % 128 == 0 else Vp
    grid = (Mp // mt, Vp // vt)
    out = pl.pallas_call(
        out_proj_kernel,
        out_shape=jax.ShapeDtypeStruct((Mp, Vp), jnp.float32),
        grid_spec=pltpu.PrefetchScalarGridSpec(
            num_scalar_prefetch=0,
            grid=grid,
            in_specs=[
                pl.BlockSpec((mt, H), lambda m, v: (m, 0)),
                pl.BlockSpec((H, vt), lambda m, v: (0, v)),
                pl.BlockSpec((1, vt), lambda m, v: (0, v)),
            ],
            out_specs=pl.BlockSpec((mt, vt), lambda m, v: (m, v)),
        ),
        compiler_params=pltpu.CompilerParams(
            dimension_semantics=("parallel", "parallel"),
            vmem_limit_bytes=_VMEM_LIMIT),
    )(y_mh, w_hv, b_v)
    return out[:M]


# ----------------------------------------------------------------------------
# Full forward, matching CaptionsLSTM2.forward.
# ----------------------------------------------------------------------------
@functools.partial(jax.jit, static_argnames=("hidden_size", "pad_idx", "chunk"))
def captions_lstm2_forward(params, x, yt, *, hidden_size, pad_idx, chunk=4):
    B = x.shape[0]
    H = hidden_size
    V = params["embed"].shape[0]

    # ptext = pad * ones((bs, 1)); yt = cat((ptext, yt), 1)
    ptext = jnp.full((B, 1), pad_idx, dtype=jnp.int32)
    yt_full = jnp.concatenate([ptext, yt.astype(jnp.int32)], axis=1)   # (B, L)
    L = yt_full.shape[1]
    T = L - 1

    Bp = _round_up(B, 8)          # pad batch to the f32 sublane quantum
    K = min(chunk, L)             # time steps per recurrent grid iteration
    Lp = _round_up(L, K)

    # x = resnet50(x)  (stand-in FCN kernel); keep it once per batch row only.
    feat = extract_features(x, params["fcn_w"], params["fcn_b"])       # (B, F)
    feat_p = jnp.zeros((Bp, feat.shape[1]), jnp.float32).at[:B].set(feat)

    # e = embed(yt)  (gather is XLA glue); time-major, zero-padded.
    emb = params["embed"][yt_full]                                     # (B, L, E)
    emb_t = jnp.transpose(emb, (1, 0, 2))                              # (L, B, E)
    E = emb_t.shape[-1]
    emb_pad = jnp.zeros((Lp, Bp, E), jnp.float32).at[:L, :B].set(emb_t)
    emb_flat = emb_pad.reshape(Lp * Bp, E)

    # Hoisted layer-0 input projection over all (time, batch) rows.
    gx0 = run_input_proj(emb_flat, params["wih_emb"], params["b0"],
                         H, K * Bp)                                    # (4, Lp*Bp, H)

    # y, _ = lstm(xt)  — recurrence only; feat term handled inside.
    y = run_lstm2(gx0, feat_p, params["wih_feat"], params["whh0"],
                  params["wih1"], params["whh1"], params["b1"],
                  K=K, B=Bp, H=H, Lp=Lp)                               # (Lp, Bp, H)

    # y = out(y[:, :-1, :]) as one big matmul; then y.permute(0, 2, 1).
    y_used = y[:T].reshape(T * Bp, H)
    logits_p = run_out_proj(y_used, params["out_w"], params["out_b"])  # (T*Bp, Vp)
    logits = logits_p.reshape(T, Bp, -1)[:, :B, :V]                    # (T, B, V)
    return jnp.transpose(logits, (1, 2, 0))                            # (B, V, T)


# ----------------------------------------------------------------------------
# Deterministic parameter construction (bf16 matmul weights, f32 biases).
# Gate order along the leading gate axis / fused 4H columns is (i, f, g, o).
# ----------------------------------------------------------------------------
def init_params(key, *, in_channels, feature_size, vocab_size,
                embedding_size, hidden_size):
    H, F, E, V = hidden_size, feature_size, embedding_size, vocab_size
    Vp = _round_up(V, 128)
    ks = jax.random.split(key, 12)
    s = 0.1

    def rnd(k, shape, dtype=jnp.float32):
        return (s * jax.random.normal(k, shape, jnp.float32)).astype(dtype)

    out_w = rnd(ks[9], (H, V), jnp.float32)
    out_w_p = jnp.zeros((H, Vp), jnp.float32).at[:, :V].set(out_w)
    out_b = rnd(ks[10], (1, V), jnp.float32)
    out_b_p = jnp.zeros((1, Vp), jnp.float32).at[:, :V].set(out_b)

    return {
        # Resnet50FCN stand-in (GAP + Linear C->F)
        "fcn_w": rnd(ks[0], (in_channels, F), jnp.bfloat16),
        "fcn_b": rnd(ks[1], (1, F)),
        # nn.Embedding(len(vocab), embedding_size)
        "embed": rnd(ks[2], (V, E)),
        # LSTM layer 0: input weights split into embedding part (fused (E,4H),
        # used by the hoisted projection) and feature part (per-gate (4,F,H)).
        "wih_emb": rnd(ks[3], (E, 4 * H), jnp.bfloat16),
        "wih_feat": rnd(ks[4], (4, F, H), jnp.bfloat16),
        "b0": rnd(ks[5], (1, 4 * H)),              # b_ih0 + b_hh0 pre-summed
        "whh0": rnd(ks[6], (4, H, H), jnp.bfloat16),
        # LSTM layer 1 (per-gate layout)
        "wih1": rnd(ks[7], (4, H, H), jnp.bfloat16),
        "whh1": rnd(ks[8], (4, H, H), jnp.bfloat16),
        "b1": rnd(ks[11], (4, 1, H)),              # b_ih1 + b_hh1 pre-summed
        # nn.Linear(hidden_size, len(vocab)) — vocab zero-padded to 128-mult.
        "out_w": out_w_p.astype(jnp.bfloat16),
        "out_b": out_b_p,
    }


if __name__ == "__main__":
    # Small, module-consistent shapes.
    B, C, S_IMG = 2, 4, 16        # image: (B, C, 16, 16)  NCHW
    T_CAP = 8                     # caption length (before <pad> prepend)
    HIDDEN = 32
    EMBED = 32
    FEATURE = 32                  # feature_size (300 in the module; small here)
    VOCAB = 50
    PAD_IDX = 0                   # vocab.word2idx['<pad>']

    key = jax.random.PRNGKey(0)
    k_params, k_x, k_y = jax.random.split(key, 3)

    params = init_params(
        k_params,
        in_channels=C,
        feature_size=FEATURE,
        vocab_size=VOCAB,
        embedding_size=EMBED,
        hidden_size=HIDDEN,
    )

    x = jax.random.normal(k_x, (B, C, S_IMG, S_IMG), jnp.float32)
    yt = jax.random.randint(k_y, (B, T_CAP), 0, VOCAB, dtype=jnp.int32)

    out = captions_lstm2_forward(params, x, yt, hidden_size=HIDDEN,
                                 pad_idx=PAD_IDX)
    out = jax.block_until_ready(out)

    assert out.shape == (B, VOCAB, T_CAP), out.shape
    assert bool(jnp.all(jnp.isfinite(out)))
    print("KERNEL_OK")
</pallas_src>

<mosaic_0001>
module attributes {stable_mosaic.version = 11 : i64} {
  func.func @feature_kernel(%arg0: i32, %arg1: memref<2x4x128xf32, #tpu.memory_space<vmem>>, %arg2: memref<4x32xbf16, #tpu.memory_space<vmem>>, %arg3: memref<1x32xf32, #tpu.memory_space<vmem>>, %arg4: memref<2x32xf32, #tpu.memory_space<vmem>>, %arg5: memref<2x4xf32, #tpu.memory_space<vmem>>) attributes {dimension_semantics = [#tpu.dimension_semantics<arbitrary>], iteration_bounds = array<i64: 2>, scalar_prefetch = 0 : i64, scratch_operands = 1 : i64, tpu.core_type = #tpu.core_type<tc>, window_params = [{transform_indices = @transform_0, window_bounds = array<i64: 2, 4, 128>}, {pipeline_mode = #tpu.pipeline_mode<synchronous>, transform_indices = @transform_1, window_bounds = array<i64: 4, 32>}, {pipeline_mode = #tpu.pipeline_mode<synchronous>, transform_indices = @transform_2, window_bounds = array<i64: 1, 32>}, {pipeline_mode = #tpu.pipeline_mode<synchronous>, transform_indices = @transform_3, window_bounds = array<i64: 2, 32>}]} {
    %c0_i32 = arith.constant 0 : i32
    %0 = arith.cmpi eq, %arg0, %c0_i32 : i32
    %1 = arith.extui %0 : i1 to i32
    %c0_i32_0 = arith.constant 0 : i32
    %2 = arith.cmpi ne, %1, %c0_i32_0 : i32
    scf.if %2 {
      %cst_8 = arith.constant 0.000000e+00 : f32
      %11 = vector.broadcast %cst_8 : f32 to vector<2x4xf32>
      %c0_9 = arith.constant 0 : index
      %c0_10 = arith.constant 0 : index
      %12 = vector.load %arg5[%c0_9, %c0_10] : memref<2x4xf32, #tpu.memory_space<vmem>>, vector<2x4xf32>
      tpu.vector_store %arg5[%c0_9, %c0_10], %11 {strides = array<i32>} : memref<2x4xf32, #tpu.memory_space<vmem>>, vector<2x4xf32>,
    } else {
    }
    %c0 = arith.constant 0 : index
    %c0_1 = arith.constant 0 : index
    %3 = vector.load %arg5[%c0, %c0_1] : memref<2x4xf32, #tpu.memory_space<vmem>>, vector<2x4xf32>
    %c0_2 = arith.constant 0 : index
    %c0_3 = arith.constant 0 : index
    %c0_4 = arith.constant 0 : index
    %4 = vector.load %arg1[%c0_2, %c0_3, %c0_4] : memref<2x4x128xf32, #tpu.memory_space<vmem>>, vector<2x4x128xf32>
    %cst = arith.constant dense<0.000000e+00> : vector<2x4xf32>
    %5 = vector.multi_reduction <add>, %4, %cst [2] : vector<2x4x128xf32> to vector<2x4xf32>
    %6 = arith.addf %3, %5 : vector<2x4xf32>
    %c0_5 = arith.constant 0 : index
    %c0_6 = arith.constant 0 : index
    %7 = vector.load %arg5[%c0_5, %c0_6] : memref<2x4xf32, #tpu.memory_space<vmem>>, vector<2x4xf32>
    tpu.vector_store %arg5[%c0_5, %c0_6], %6 {strides = array<i32>} : memref<2x4xf32, #tpu.memory_space<vmem>>, vector<2x4xf32>,
    %c1_i32 = arith.constant 1 : i32
    %8 = arith.cmpi eq, %arg0, %c1_i32 : i32
    %9 = arith.extui %8 : i1 to i32
    %c0_i32_7 = arith.constant 0 : i32
    %10 = arith.cmpi ne, %9, %c0_i32_7 : i32
    scf.if %10 {
      %c0_8 = arith.constant 0 : index
      %c0_9 = arith.constant 0 : index
      %11 = vector.load %arg5[%c0_8, %c0_9] : memref<2x4xf32, #tpu.memory_space<vmem>>, vector<2x4xf32>
      %cst_10 = arith.constant 3.906250e-03 : f32
      %12 = vector.broadcast %cst_10 : f32 to vector<2x4xf32>
      %13 = arith.mulf %11, %12 : vector<2x4xf32>
      %14 = arith.truncf %13 : vector<2x4xf32> to vector<2x4xbf16>
      %c0_11 = arith.constant 0 : index
      %c0_12 = arith.constant 0 : index
      %15 = vector.load %arg2[%c0_11, %c0_12] : memref<4x32xbf16, #tpu.memory_space<vmem>>, vector<4x32xbf16>
      %cst_13 = arith.constant dense<0.000000e+00> : vector<2x32xf32>
      %16 = tpu.matmul %14, %15, %cst_13 {dimension_numbers = #tpu.dot_dimension_numbers<[1], [0], [0], [1], [0, 0, 1, 1], [], []>} : vector<2x4xbf16>, vector<4x32xbf16>, vector<2x32xf32> -> vector<2x32xf32>
      %c0_14 = arith.constant 0 : index
      %c0_15 = arith.constant 0 : index
      %17 = vector.load %arg3[%c0_14, %c0_15] : memref<1x32xf32, #tpu.memory_space<vmem>>, vector<1x32xf32>
      %18 = vector.broadcast %17 : vector<1x32xf32> to vector<2x32xf32>
      %19 = arith.addf %16, %18 : vector<2x32xf32>
      %c0_16 = arith.constant 0 : index
      %c0_17 = arith.constant 0 : index
      %20 = vector.load %arg4[%c0_16, %c0_17] : memref<2x32xf32, #tpu.memory_space<vmem>>, vector<2x32xf32>
      tpu.vector_store %arg4[%c0_16, %c0_17], %19 {strides = array<i32>} : memref<2x32xf32, #tpu.memory_space<vmem>>, vector<2x32xf32>,
    } else {
    }
    return
  }
  func.func @transform_0(%arg0: i32) -> (i32, i32, i32) {
    %c0_i32 = arith.constant 0 : i32
    %c0_i32_0 = arith.constant 0 : i32
    %c0_i32_1 = arith.constant 0 : i32
    return %c0_i32, %c0_i32_0, %arg0 : i32, i32, i32
  }
  func.func @transform_1(%arg0: i32) -> (i32, i32) {
    %c0_i32 = arith.constant 0 : i32
    %c0_i32_0 = arith.constant 0 : i32
    %c0_i32_1 = arith.constant 0 : i32
    return %c0_i32, %c0_i32_0 : i32, i32
  }
  func.func @transform_2(%arg0: i32) -> (i32, i32) {
    %c0_i32 = arith.constant 0 : i32
    %c0_i32_0 = arith.constant 0 : i32
    %c0_i32_1 = arith.constant 0 : i32
    return %c0_i32, %c0_i32_0 : i32, i32
  }
  func.func @transform_3(%arg0: i32) -> (i32, i32) {
    %c0_i32 = arith.constant 0 : i32
    %c0_i32_0 = arith.constant 0 : i32
    %c0_i32_1 = arith.constant 0 : i32
    return %c0_i32, %c0_i32_0 : i32, i32
  }
}

module attributes {stable_mosaic.version = 11 : i64} {
  func.func @input_proj_kernel(%arg0: i32, %arg1: memref<32x32xf32, #tpu.memory_space<vmem>>, %arg2: memref<32x128xbf16, #tpu.memory_space<vmem>>, %arg3: memref<1x128xf32, #tpu.memory_space<vmem>>, %arg4: memref<4x32x32xf32, #tpu.memory_space<vmem>>) attributes {dimension_semantics = [#tpu.dimension_semantics<parallel>], iteration_bounds = array<i64: 3>, scalar_prefetch = 0 : i64, scratch_operands = 0 : i64, tpu.core_type = #tpu.core_type<tc>, window_params = [{transform_indices = @transform_0, window_bounds = array<i64: 32, 32>}, {pipeline_mode = #tpu.pipeline_mode<synchronous>, transform_indices = @transform_1, window_bounds = array<i64: 32, 128>}, {pipeline_mode = #tpu.pipeline_mode<synchronous>, transform_indices = @transform_2, window_bounds = array<i64: 1, 128>}, {transform_indices = @transform_3, window_bounds = array<i64: 4, 32, 32>}]} {
    %c0 = arith.constant 0 : index
    %c0_0 = arith.constant 0 : index
    %0 = vector.load %arg1[%c0, %c0_0] : memref<32x32xf32, #tpu.memory_space<vmem>>, vector<32x32xf32>
    %1 = arith.truncf %0 : vector<32x32xf32> to vector<32x32xbf16>
    %c0_1 = arith.constant 0 : index
    %c0_2 = arith.constant 0 : index
    %2 = vector.load %arg2[%c0_1, %c0_2] : memref<32x128xbf16, #tpu.memory_space<vmem>>, vector<32x128xbf16>
    %cst = arith.constant dense<0.000000e+00> : vector<32x128xf32>
    %3 = tpu.matmul %1, %2, %cst {dimension_numbers = #tpu.dot_dimension_numbers<[1], [0], [0], [1], [0, 0, 1, 1], [], []>} : vector<32x32xbf16>, vector<32x128xbf16>, vector<32x128xf32> -> vector<32x128xf32>
    %c0_3 = arith.constant 0 : index
    %c0_4 = arith.constant 0 : index
    %4 = vector.load %arg3[%c0_3, %c0_4] : memref<1x128xf32, #tpu.memory_space<vmem>>, vector<1x128xf32>
    %5 = vector.broadcast %4 : vector<1x128xf32> to vector<32x128xf32>
    %6 = arith.addf %3, %5 : vector<32x128xf32>
    %7 = vector.extract_strided_slice %6 {offsets = [0, 0], sizes = [32, 32], strides = [1, 1]} : vector<32x128xf32> to vector<32x32xf32>
    %c0_5 = arith.constant 0 : index
    %c0_6 = arith.constant 0 : index
    %c0_7 = arith.constant 0 : index
    %8 = vector.load %arg4[%c0_5, %c0_6, %c0_7] : memref<4x32x32xf32, #tpu.memory_space<vmem>>, vector<1x32x32xf32>
    %9 = vector.shape_cast %8 : vector<1x32x32xf32> to vector<32x32xf32>
    %10 = vector.shape_cast %7 : vector<32x32xf32> to vector<1x32x32xf32>
    tpu.vector_store %arg4[%c0_5, %c0_6, %c0_7], %10 {strides = array<i32>} : memref<4x32x32xf32, #tpu.memory_space<vmem>>, vector<1x32x32xf32>,
    %11 = vector.extract_strided_slice %6 {offsets = [0, 32], sizes = [32, 32], strides = [1, 1]} : vector<32x128xf32> to vector<32x32xf32>
    %c1 = arith.constant 1 : index
    %c0_8 = arith.constant 0 : index
    %c0_9 = arith.constant 0 : index
    %12 = vector.load %arg4[%c1, %c0_8, %c0_9] : memref<4x32x32xf32, #tpu.memory_space<vmem>>, vector<1x32x32xf32>
    %13 = vector.shape_cast %12 : vector<1x32x32xf32> to vector<32x32xf32>
    %14 = vector.shape_cast %11 : vector<32x32xf32> to vector<1x32x32xf32>
    tpu.vector_store %arg4[%c1, %c0_8, %c0_9], %14 {strides = array<i32>} : memref<4x32x32xf32, #tpu.memory_space<vmem>>, vector<1x32x32xf32>,
    %15 = vector.extract_strided_slice %6 {offsets = [0, 64], sizes = [32, 32], strides = [1, 1]} : vector<32x128xf32> to vector<32x32xf32>
    %c2 = arith.constant 2 : index
    %c0_10 = arith.constant 0 : index
    %c0_11 = arith.constant 0 : index
    %16 = vector.load %arg4[%c2, %c0_10, %c0_11] : memref<4x32x32xf32, #tpu.memory_space<vmem>>, vector<1x32x32xf32>
    %17 = vector.shape_cast %16 : vector<1x32x32xf32> to vector<32x32xf32>
    %18 = vector.shape_cast %15 : vector<32x32xf32> to vector<1x32x32xf32>
    tpu.vector_store %arg4[%c2, %c0_10, %c0_11], %18 {strides = array<i32>} : memref<4x32x32xf32, #tpu.memory_space<vmem>>, vector<1x32x32xf32>,
    %19 = vector.extract_strided_slice %6 {offsets = [0, 96], sizes = [32, 32], strides = [1, 1]} : vector<32x128xf32> to vector<32x32xf32>
    %c3 = arith.constant 3 : index
    %c0_12 = arith.constant 0 : index
    %c0_13 = arith.constant 0 : index
    %20 = vector.load %arg4[%c3, %c0_12, %c0_13] : memref<4x32x32xf32, #tpu.memory_space<vmem>>, vector<1x32x32xf32>
    %21 = vector.shape_cast %20 : vector<1x32x32xf32> to vector<32x32xf32>
    %22 = vector.shape_cast %19 : vector<32x32xf32> to vector<1x32x32xf32>
    tpu.vector_store %arg4[%c3, %c0_12, %c0_13], %22 {strides = array<i32>} : memref<4x32x32xf32, #tpu.memory_space<vmem>>, vector<1x32x32xf32>,
    return
  }
  func.func @transform_0(%arg0: i32) -> (i32, i32) {
    %c0_i32 = arith.constant 0 : i32
    %c0_i32_0 = arith.constant 0 : i32
    return %arg0, %c0_i32 : i32, i32
  }
  func.func @transform_1(%arg0: i32) -> (i32, i32) {
    %c0_i32 = arith.constant 0 : i32
    %c0_i32_0 = arith.constant 0 : i32
    %c0_i32_1 = arith.constant 0 : i32
    return %c0_i32, %c0_i32_0 : i32, i32
  }
  func.func @transform_2(%arg0: i32) -> (i32, i32) {
    %c0_i32 = arith.constant 0 : i32
    %c0_i32_0 = arith.constant 0 : i32
    %c0_i32_1 = arith.constant 0 : i32
    return %c0_i32, %c0_i32_0 : i32, i32
  }
  func.func @transform_3(%arg0: i32) -> (i32, i32, i32) {
    %c0_i32 = arith.constant 0 : i32
    %c0_i32_0 = arith.constant 0 : i32
    %c0_i32_1 = arith.constant 0 : i32
    return %c0_i32, %arg0, %c0_i32_0 : i32, i32, i32
  }
}

module attributes {stable_mosaic.version = 11 : i64} {
  func.func @out_proj_kernel(%arg0: i32, %arg1: i32, %arg2: memref<64x32xf32, #tpu.memory_space<vmem>>, %arg3: memref<32x128xbf16, #tpu.memory_space<vmem>>, %arg4: memref<1x128xf32, #tpu.memory_space<vmem>>, %arg5: memref<64x128xf32, #tpu.memory_space<vmem>>) attributes {dimension_semantics = [#tpu.dimension_semantics<parallel>, #tpu.dimension_semantics<parallel>], iteration_bounds = array<i64: 1, 1>, scalar_prefetch = 0 : i64, scratch_operands = 0 : i64, tpu.core_type = #tpu.core_type<tc>, window_params = [{transform_indices = @transform_0, window_bounds = array<i64: 64, 32>}, {transform_indices = @transform_1, window_bounds = array<i64: 32, 128>}, {transform_indices = @transform_2, window_bounds = array<i64: 1, 128>}, {transform_indices = @transform_3, window_bounds = array<i64: 64, 128>}]} {
    %c0 = arith.constant 0 : index
    %c0_0 = arith.constant 0 : index
    %0 = vector.load %arg2[%c0, %c0_0] : memref<64x32xf32, #tpu.memory_space<vmem>>, vector<64x32xf32>
    %1 = arith.truncf %0 : vector<64x32xf32> to vector<64x32xbf16>
    %c0_1 = arith.constant 0 : index
    %c0_2 = arith.constant 0 : index
    %2 = vector.load %arg3[%c0_1, %c0_2] : memref<32x128xbf16, #tpu.memory_space<vmem>>, vector<32x128xbf16>
    %cst = arith.constant dense<0.000000e+00> : vector<64x128xf32>
    %3 = tpu.matmul %1, %2, %cst {dimension_numbers = #tpu.dot_dimension_numbers<[1], [0], [0], [1], [0, 0, 1, 1], [], []>} : vector<64x32xbf16>, vector<32x128xbf16>, vector<64x128xf32> -> vector<64x128xf32>
    %c0_3 = arith.constant 0 : index
    %c0_4 = arith.constant 0 : index
    %4 = vector.load %arg4[%c0_3, %c0_4] : memref<1x128xf32, #tpu.memory_space<vmem>>, vector<1x128xf32>
    %5 = vector.broadcast %4 : vector<1x128xf32> to vector<64x128xf32>
    %6 = arith.addf %3, %5 : vector<64x128xf32>
    %c0_5 = arith.constant 0 : index
    %c0_6 = arith.constant 0 : index
    %7 = vector.load %arg5[%c0_5, %c0_6] : memref<64x128xf32, #tpu.memory_space<vmem>>, vector<64x128xf32>
    tpu.vector_store %arg5[%c0_5, %c0_6], %6 {strides = array<i32>} : memref<64x128xf32, #tpu.memory_space<vmem>>, vector<64x128xf32>,
    return
  }
  func.func @transform_0(%arg0: i32, %arg1: i32) -> (i32, i32) {
    %c0_i32 = arith.constant 0 : i32
    %c0_i32_0 = arith.constant 0 : i32
    return %arg0, %c0_i32 : i32, i32
  }
  func.func @transform_1(%arg0: i32, %arg1: i32) -> (i32, i32) {
    %c0_i32 = arith.constant 0 : i32
    %c0_i32_0 = arith.constant 0 : i32
    return %c0_i32, %arg1 : i32, i32
  }
  func.func @transform_2(%arg0: i32, %arg1: i32) -> (i32, i32) {
    %c0_i32 = arith.constant 0 : i32
    %c0_i32_0 = arith.constant 0 : i32
    return %c0_i32, %arg1 : i32, i32
  }
  func.func @transform_3(%arg0: i32, %arg1: i32) -> (i32, i32) {
    %c0_i32 = arith.constant 0 : i32
    return %arg0, %arg1 : i32, i32
  }
}

module attributes {stable_mosaic.version = 11 : i64} {
  func.func @lstm2_kernel(%arg0: i32, %arg1: memref<4x32x32xf32, #tpu.memory_space<vmem>>, %arg2: memref<8x32xf32, #tpu.memory_space<vmem>>, %arg3: memref<4x32x32xbf16, #tpu.memory_space<vmem>>, %arg4: memref<4x32x32xbf16, #tpu.memory_space<vmem>>, %arg5: memref<4x32x32xbf16, #tpu.memory_space<vmem>>, %arg6: memref<4x32x32xbf16, #tpu.memory_space<vmem>>, %arg7: memref<4x1x32xf32, #tpu.memory_space<vmem>>, %arg8: memref<4x8x32xf32, #tpu.memory_space<vmem>>, %arg9: memref<8x32xf32, #tpu.memory_space<vmem>>, %arg10: memref<8x32xf32, #tpu.memory_space<vmem>>, %arg11: memref<8x32xf32, #tpu.memory_space<vmem>>, %arg12: memref<8x32xf32, #tpu.memory_space<vmem>>, %arg13: memref<4x8x32xf32, #tpu.memory_space<vmem>>) attributes {dimension_semantics = [#tpu.dimension_semantics<arbitrary>], iteration_bounds = array<i64: 3>, scalar_prefetch = 0 : i64, scratch_operands = 5 : i64, tpu.core_type = #tpu.core_type<tc>, window_params = [{transform_indices = @transform_0, window_bounds = array<i64: 4, 32, 32>}, {pipeline_mode = #tpu.pipeline_mode<synchronous>, transform_indices = @transform_1, window_bounds = array<i64: 8, 32>}, {pipeline_mode = #tpu.pipeline_mode<synchronous>, transform_indices = @transform_2, window_bounds = array<i64: 4, 32, 32>}, {pipeline_mode = #tpu.pipeline_mode<synchronous>, transform_indices = @transform_3, window_bounds = array<i64: 4, 32, 32>}, {pipeline_mode = #tpu.pipeline_mode<synchronous>, transform_indices = @transform_4, window_bounds = array<i64: 4, 32, 32>}, {pipeline_mode = #tpu.pipeline_mode<synchronous>, transform_indices = @transform_5, window_bounds = array<i64: 4, 32, 32>}, {pipeline_mode = #tpu.pipeline_mode<synchronous>, transform_indices = @transform_6, window_bounds = array<i64: 4, 1, 32>}, {transform_indices = @transform_7, window_bounds = array<i64: 4, 8, 32>}]} {
    %c0_i32 = arith.constant 0 : i32
    %0 = arith.cmpi eq, %arg0, %c0_i32 : i32
    %1 = arith.extui %0 : i1 to i32
    %c0_i32_0 = arith.constant 0 : i32
    %2 = arith.cmpi ne, %1, %c0_i32_0 : i32
    scf.if %2 {
      %cst_416 = arith.constant 0.000000e+00 : f32
      %575 = vector.broadcast %cst_416 : f32 to vector<8x32xf32>
      %c0_417 = arith.constant 0 : index
      %c0_418 = arith.constant 0 : index
      %576 = vector.load %arg9[%c0_417, %c0_418] : memref<8x32xf32, #tpu.memory_space<vmem>>, vector<8x32xf32>
      tpu.vector_store %arg9[%c0_417, %c0_418], %575 {strides = array<i32>} : memref<8x32xf32, #tpu.memory_space<vmem>>, vector<8x32xf32>,
      %cst_419 = arith.constant 0.000000e+00 : f32
      %577 = vector.broadcast %cst_419 : f32 to vector<8x32xf32>
      %c0_420 = arith.constant 0 : index
      %c0_421 = arith.constant 0 : index
      %578 = vector.load %arg10[%c0_420, %c0_421] : memref<8x32xf32, #tpu.memory_space<vmem>>, vector<8x32xf32>
      tpu.vector_store %arg10[%c0_420, %c0_421], %577 {strides = array<i32>} : memref<8x32xf32, #tpu.memory_space<vmem>>, vector<8x32xf32>,
      %cst_422 = arith.constant 0.000000e+00 : f32
      %579 = vector.broadcast %cst_422 : f32 to vector<8x32xf32>
      %c0_423 = arith.constant 0 : index
      %c0_424 = arith.constant 0 : index
      %580 = vector.load %arg11[%c0_423, %c0_424] : memref<8x32xf32, #tpu.memory_space<vmem>>, vector<8x32xf32>
      tpu.vector_store %arg11[%c0_423, %c0_424], %579 {strides = array<i32>} : memref<8x32xf32, #tpu.memory_space<vmem>>, vector<8x32xf32>,
      %cst_425 = arith.constant 0.000000e+00 : f32
      %581 = vector.broadcast %cst_425 : f32 to vector<8x32xf32>
      %c0_426 = arith.constant 0 : index
      %c0_427 = arith.constant 0 : index
      %582 = vector.load %arg12[%c0_426, %c0_427] : memref<8x32xf32, #tpu.memory_space<vmem>>, vector<8x32xf32>
      tpu.vector_store %arg12[%c0_426, %c0_427], %581 {strides = array<i32>} : memref<8x32xf32, #tpu.memory_space<vmem>>, vector<8x32xf32>,
      %c0_428 = arith.constant 0 : index
      %c0_429 = arith.constant 0 : index
      %583 = vector.load %arg2[%c0_428, %c0_429] : memref<8x32xf32, #tpu.memory_space<vmem>>, vector<8x32xf32>
      %584 = arith.truncf %583 : vector<8x32xf32> to vector<8x32xbf16>
      %c0_430 = arith.constant 0 : index
      %c0_431 = arith.constant 0 : index
      %c0_432 = arith.constant 0 : index
      %585 = vector.load %arg3[%c0_430, %c0_431, %c0_432] : memref<4x32x32xbf16, #tpu.memory_space<vmem>>, vector<1x32x32xbf16>
      %586 = vector.shape_cast %585 : vector<1x32x32xbf16> to vector<32x32xbf16>
      %cst_433 = arith.constant dense<0.000000e+00> : vector<8x32xf32>
      %587 = tpu.matmul %584, %586, %cst_433 {dimension_numbers = #tpu.dot_dimension_numbers<[1], [0], [0], [1], [0, 0, 1, 1], [], []>} : vector<8x32xbf16>, vector<32x32xbf16>, vector<8x32xf32> -> vector<8x32xf32>
      %c0_434 = arith.constant 0 : index
      %c0_435 = arith.constant 0 : index
      %c0_436 = arith.constant 0 : index
      %588 = vector.load %arg13[%c0_434, %c0_435, %c0_436] : memref<4x8x32xf32, #tpu.memory_space<vmem>>, vector<1x8x32xf32>
      %589 = vector.shape_cast %588 : vector<1x8x32xf32> to vector<8x32xf32>
      %590 = vector.shape_cast %587 : vector<8x32xf32> to vector<1x8x32xf32>
      tpu.vector_store %arg13[%c0_434, %c0_435, %c0_436], %590 {strides = array<i32>} : memref<4x8x32xf32, #tpu.memory_space<vmem>>, vector<1x8x32xf32>,
      %c1_437 = arith.constant 1 : index
      %c0_438 = arith.constant 0 : index
      %c0_439 = arith.constant 0 : index
      %591 = vector.load %arg3[%c1_437, %c0_438, %c0_439] : memref<4x32x32xbf16, #tpu.memory_space<vmem>>, vector<1x32x32xbf16>
      %592 = vector.shape_cast %591 : vector<1x32x32xbf16> to vector<32x32xbf16>
      %cst_440 = arith.constant dense<0.000000e+00> : vector<8x32xf32>
      %593 = tpu.matmul %584, %592, %cst_440 {dimension_numbers = #tpu.dot_dimension_numbers<[1], [0], [0], [1], [0, 0, 1, 1], [], []>} : vector<8x32xbf16>, vector<32x32xbf16>, vector<8x32xf32> -> vector<8x32xf32>
      %c1_441 = arith.constant 1 : index
      %c0_442 = arith.constant 0 : index
      %c0_443 = arith.constant 0 : index
      %594 = vector.load %arg13[%c1_441, %c0_442, %c0_443] : memref<4x8x32xf32, #tpu.memory_space<vmem>>, vector<1x8x32xf32>
      %595 = vector.shape_cast %594 : vector<1x8x32xf32> to vector<8x32xf32>
      %596 = vector.shape_cast %593 : vector<8x32xf32> to vector<1x8x32xf32>
      tpu.vector_store %arg13[%c1_441, %c0_442, %c0_443], %596 {strides = array<i32>} : memref<4x8x32xf32, #tpu.memory_space<vmem>>, vector<1x8x32xf32>,
      %c2_444 = arith.constant 2 : index
      %c0_445 = arith.constant 0 : index
      %c0_446 = arith.constant 0 : index
      %597 = vector.load %arg3[%c2_444, %c0_445, %c0_446] : memref<4x32x32xbf16, #tpu.memory_space<vmem>>, vector<1x32x32xbf16>
      %598 = vector.shape_cast %597 : vector<1x32x32xbf16> to vector<32x32xbf16>
      %cst_447 = arith.constant dense<0.000000e+00> : vector<8x32xf32>
      %599 = tpu.matmul %584, %598, %cst_447 {dimension_numbers = #tpu.dot_dimension_numbers<[1], [0], [0], [1], [0, 0, 1, 1], [], []>} : vector<8x32xbf16>, vector<32x32xbf16>, vector<8x32xf32> -> vector<8x32xf32>
      %c2_448 = arith.constant 2 : index
      %c0_449 = arith.constant 0 : index
      %c0_450 = arith.constant 0 : index
      %600 = vector.load %arg13[%c2_448, %c0_449, %c0_450] : memref<4x8x32xf32, #tpu.memory_space<vmem>>, vector<1x8x32xf32>
      %601 = vector.shape_cast %600 : vector<1x8x32xf32> to vector<8x32xf32>
      %602 = vector.shape_cast %599 : vector<8x32xf32> to vector<1x8x32xf32>
      tpu.vector_store %arg13[%c2_448, %c0_449, %c0_450], %602 {strides = array<i32>} : memref<4x8x32xf32, #tpu.memory_space<vmem>>, vector<1x8x32xf32>,
      %c3_451 = arith.constant 3 : index
      %c0_452 = arith.constant 0 : index
      %c0_453 = arith.constant 0 : index
      %603 = vector.load %arg3[%c3_451, %c0_452, %c0_453] : memref<4x32x32xbf16, #tpu.memory_space<vmem>>, vector<1x32x32xbf16>
      %604 = vector.shape_cast %603 : vector<1x32x32xbf16> to vector<32x32xbf16>
      %cst_454 = arith.constant dense<0.000000e+00> : vector<8x32xf32>
      %605 = tpu.matmul %584, %604, %cst_454 {dimension_numbers = #tpu.dot_dimension_numbers<[1], [0], [0], [1], [0, 0, 1, 1], [], []>} : vector<8x32xbf16>, vector<32x32xbf16>, vector<8x32xf32> -> vector<8x32xf32>
      %c3_455 = arith.constant 3 : index
      %c0_456 = arith.constant 0 : index
      %c0_457 = arith.constant 0 : index
      %606 = vector.load %arg13[%c3_455, %c0_456, %c0_457] : memref<4x8x32xf32, #tpu.memory_space<vmem>>, vector<1x8x32xf32>
      %607 = vector.shape_cast %606 : vector<1x8x32xf32> to vector<8x32xf32>
      %608 = vector.shape_cast %605 : vector<8x32xf32> to vector<1x8x32xf32>
      tpu.vector_store %arg13[%c3_455, %c0_456, %c0_457], %608 {strides = array<i32>} : memref<4x8x32xf32, #tpu.memory_space<vmem>>, vector<1x8x32xf32>,
    } else {
    }
    %c0_i32_1 = arith.constant 0 : i32
    %c8_i32 = arith.constant 8 : i32
    %3 = arith.muli %c0_i32_1, %c8_i32 : i32
    %4 = tpu.assume_multiple %3, 8 : i32
    %c0 = arith.constant 0 : index
    %c0_2 = arith.constant 0 : index
    %5 = vector.load %arg9[%c0, %c0_2] : memref<8x32xf32, #tpu.memory_space<vmem>>, vector<8x32xf32>
    %c0_3 = arith.constant 0 : index
    %c0_4 = arith.constant 0 : index
    %6 = vector.load %arg10[%c0_3, %c0_4] : memref<8x32xf32, #tpu.memory_space<vmem>>, vector<8x32xf32>
    %7 = arith.truncf %5 : vector<8x32xf32> to vector<8x32xbf16>
    %c0_5 = arith.constant 0 : index
    %8 = arith.index_cast %4 : i32 to index
    %c0_6 = arith.constant 0 : index
    %9 = vector.load %arg1[%c0_5, %8, %c0_6] : memref<4x32x32xf32, #tpu.memory_space<vmem>>, vector<1x8x32xf32>
    %10 = vector.shape_cast %9 : vector<1x8x32xf32> to vector<8x32xf32>
    %c0_7 = arith.constant 0 : index
    %c0_8 = arith.constant 0 : index
    %c0_9 = arith.constant 0 : index
    %11 = vector.load %arg13[%c0_7, %c0_8, %c0_9] : memref<4x8x32xf32, #tpu.memory_space<vmem>>, vector<1x8x32xf32>
    %12 = vector.shape_cast %11 : vector<1x8x32xf32> to vector<8x32xf32>
    %13 = arith.addf %10, %12 : vector<8x32xf32>
    %c0_10 = arith.constant 0 : index
    %c0_11 = arith.constant 0 : index
    %c0_12 = arith.constant 0 : index
    %14 = vector.load %arg4[%c0_10, %c0_11, %c0_12] : memref<4x32x32xbf16, #tpu.memory_space<vmem>>, vector<1x32x32xbf16>
    %15 = vector.shape_cast %14 : vector<1x32x32xbf16> to vector<32x32xbf16>
    %cst = arith.constant dense<0.000000e+00> : vector<8x32xf32>
    %16 = tpu.matmul %7, %15, %cst {dimension_numbers = #tpu.dot_dimension_numbers<[1], [0], [0], [1], [0, 0, 1, 1], [], []>} : vector<8x32xbf16>, vector<32x32xbf16>, vector<8x32xf32> -> vector<8x32xf32>
    %17 = arith.addf %13, %16 : vector<8x32xf32>
    %18 = arith.negf %17 : vector<8x32xf32>
    %19 = math.exp %18 : vector<8x32xf32>
    %cst_13 = arith.constant 1.000000e+00 : f32
    %20 = vector.broadcast %cst_13 : f32 to vector<8x32xf32>
    %21 = arith.addf %20, %19 : vector<8x32xf32>
    %22 = arith.divf %20, %21 : vector<8x32xf32>
    %c1 = arith.constant 1 : index
    %23 = arith.index_cast %4 : i32 to index
    %c0_14 = arith.constant 0 : index
    %24 = vector.load %arg1[%c1, %23, %c0_14] : memref<4x32x32xf32, #tpu.memory_space<vmem>>, vector<1x8x32xf32>
    %25 = vector.shape_cast %24 : vector<1x8x32xf32> to vector<8x32xf32>
    %c1_15 = arith.constant 1 : index
    %c0_16 = arith.constant 0 : index
    %c0_17 = arith.constant 0 : index
    %26 = vector.load %arg13[%c1_15, %c0_16, %c0_17] : memref<4x8x32xf32, #tpu.memory_space<vmem>>, vector<1x8x32xf32>
    %27 = vector.shape_cast %26 : vector<1x8x32xf32> to vector<8x32xf32>
    %28 = arith.addf %25, %27 : vector<8x32xf32>
    %c1_18 = arith.constant 1 : index
    %c0_19 = arith.constant 0 : index
    %c0_20 = arith.constant 0 : index
    %29 = vector.load %arg4[%c1_18, %c0_19, %c0_20] : memref<4x32x32xbf16, #tpu.memory_space<vmem>>, vector<1x32x32xbf16>
    %30 = vector.shape_cast %29 : vector<1x32x32xbf16> to vector<32x32xbf16>
    %cst_21 = arith.constant dense<0.000000e+00> : vector<8x32xf32>
    %31 = tpu.matmul %7, %30, %cst_21 {dimension_numbers = #tpu.dot_dimension_numbers<[1], [0], [0], [1], [0, 0, 1, 1], [], []>} : vector<8x32xbf16>, vector<32x32xbf16>, vector<8x32xf32> -> vector<8x32xf32>
    %32 = arith.addf %28, %31 : vector<8x32xf32>
    %33 = arith.negf %32 : vector<8x32xf32>
    %34 = math.exp %33 : vector<8x32xf32>
    %cst_22 = arith.constant 1.000000e+00 : f32
    %35 = vector.broadcast %cst_22 : f32 to vector<8x32xf32>
    %36 = arith.addf %35, %34 : vector<8x32xf32>
    %37 = arith.divf %35, %36 : vector<8x32xf32>
    %c2 = arith.constant 2 : index
    %38 = arith.index_cast %4 : i32 to index
    %c0_23 = arith.constant 0 : index
    %39 = vector.load %arg1[%c2, %38, %c0_23] : memref<4x32x32xf32, #tpu.memory_space<vmem>>, vector<1x8x32xf32>
    %40 = vector.shape_cast %39 : vector<1x8x32xf32> to vector<8x32xf32>
    %c2_24 = arith.constant 2 : index
    %c0_25 = arith.constant 0 : index
    %c0_26 = arith.constant 0 : index
    %41 = vector.load %arg13[%c2_24, %c0_25, %c0_26] : memref<4x8x32xf32, #tpu.memory_space<vmem>>, vector<1x8x32xf32>
    %42 = vector.shape_cast %41 : vector<1x8x32xf32> to vector<8x32xf32>
    %43 = arith.addf %40, %42 : vector<8x32xf32>
    %c2_27 = arith.constant 2 : index
    %c0_28 = arith.constant 0 : index
    %c0_29 = arith.constant 0 : index
    %44 = vector.load %arg4[%c2_27, %c0_28, %c0_29] : memref<4x32x32xbf16, #tpu.memory_space<vmem>>, vector<1x32x32xbf16>
    %45 = vector.shape_cast %44 : vector<1x32x32xbf16> to vector<32x32xbf16>
    %cst_30 = arith.constant dense<0.000000e+00> : vector<8x32xf32>
    %46 = tpu.matmul %7, %45, %cst_30 {dimension_numbers = #tpu.dot_dimension_numbers<[1], [0], [0], [1], [0, 0, 1, 1], [], []>} : vector<8x32xbf16>, vector<32x32xbf16>, vector<8x32xf32> -> vector<8x32xf32>
    %47 = arith.addf %43, %46 : vector<8x32xf32>
    %48 = math.tanh %47 : vector<8x32xf32>
    %c3 = arith.constant 3 : index
    %49 = arith.index_cast %4 : i32 to index
    %c0_31 = arith.constant 0 : index
    %50 = vector.load %arg1[%c3, %49, %c0_31] : memref<4x32x32xf32, #tpu.memory_space<vmem>>, vector<1x8x32xf32>
    %51 = vector.shape_cast %50 : vector<1x8x32xf32> to vector<8x32xf32>
    %c3_32 = arith.constant 3 : index
    %c0_33 = arith.constant 0 : index
    %c0_34 = arith.constant 0 : index
    %52 = vector.load %arg13[%c3_32, %c0_33, %c0_34] : memref<4x8x32xf32, #tpu.memory_space<vmem>>, vector<1x8x32xf32>
    %53 = vector.shape_cast %52 : vector<1x8x32xf32> to vector<8x32xf32>
    %54 = arith.addf %51, %53 : vector<8x32xf32>
    %c3_35 = arith.constant 3 : index
    %c0_36 = arith.constant 0 : index
    %c0_37 = arith.constant 0 : index
    %55 = vector.load %arg4[%c3_35, %c0_36, %c0_37] : memref<4x32x32xbf16, #tpu.memory_space<vmem>>, vector<1x32x32xbf16>
    %56 = vector.shape_cast %55 : vector<1x32x32xbf16> to vector<32x32xbf16>
    %cst_38 = arith.constant dense<0.000000e+00> : vector<8x32xf32>
    %57 = tpu.matmul %7, %56, %cst_38 {dimension_numbers = #tpu.dot_dimension_numbers<[1], [0], [0], [1], [0, 0, 1, 1], [], []>} : vector<8x32xbf16>, vector<32x32xbf16>, vector<8x32xf32> -> vector<8x32xf32>
    %58 = arith.addf %54, %57 : vector<8x32xf32>
    %59 = arith.negf %58 : vector<8x32xf32>
    %60 = math.exp %59 : vector<8x32xf32>
    %cst_39 = arith.constant 1.000000e+00 : f32
    %61 = vector.broadcast %cst_39 : f32 to vector<8x32xf32>
    %62 = arith.addf %61, %60 : vector<8x32xf32>
    %63 = arith.divf %61, %62 : vector<8x32xf32>
    %64 = arith.mulf %37, %6 : vector<8x32xf32>
    %65 = arith.mulf %22, %48 : vector<8x32xf32>
    %66 = arith.addf %64, %65 : vector<8x32xf32>
    %67 = math.tanh %66 : vector<8x32xf32>
    %68 = arith.mulf %63, %67 : vector<8x32xf32>
    %c0_40 = arith.constant 0 : index
    %c0_41 = arith.constant 0 : index
    %69 = vector.load %arg10[%c0_40, %c0_41] : memref<8x32xf32, #tpu.memory_space<vmem>>, vector<8x32xf32>
    tpu.vector_store %arg10[%c0_40, %c0_41], %66 {strides = array<i32>} : memref<8x32xf32, #tpu.memory_space<vmem>>, vector<8x32xf32>,
    %c0_42 = arith.constant 0 : index
    %c0_43 = arith.constant 0 : index
    %70 = vector.load %arg9[%c0_42, %c0_43] : memref<8x32xf32, #tpu.memory_space<vmem>>, vector<8x32xf32>
    tpu.vector_store %arg9[%c0_42, %c0_43], %68 {strides = array<i32>} : memref<8x32xf32, #tpu.memory_space<vmem>>, vector<8x32xf32>,
    %c0_44 = arith.constant 0 : index
    %c0_45 = arith.constant 0 : index
    %71 = vector.load %arg11[%c0_44, %c0_45] : memref<8x32xf32, #tpu.memory_space<vmem>>, vector<8x32xf32>
    %c0_46 = arith.constant 0 : index
    %c0_47 = arith.constant 0 : index
    %72 = vector.load %arg12[%c0_46, %c0_47] : memref<8x32xf32, #tpu.memory_space<vmem>>, vector<8x32xf32>
    %73 = arith.truncf %68 : vector<8x32xf32> to vector<8x32xbf16>
    %74 = arith.truncf %71 : vector<8x32xf32> to vector<8x32xbf16>
    %c0_48 = arith.constant 0 : index
    %c0_49 = arith.constant 0 : index
    %c0_50 = arith.constant 0 : index
    %75 = vector.load %arg5[%c0_48, %c0_49, %c0_50] : memref<4x32x32xbf16, #tpu.memory_space<vmem>>, vector<1x32x32xbf16>
    %76 = vector.shape_cast %75 : vector<1x32x32xbf16> to vector<32x32xbf16>
    %cst_51 = arith.constant dense<0.000000e+00> : vector<8x32xf32>
    %77 = tpu.matmul %73, %76, %cst_51 {dimension_numbers = #tpu.dot_dimension_numbers<[1], [0], [0], [1], [0, 0, 1, 1], [], []>} : vector<8x32xbf16>, vector<32x32xbf16>, vector<8x32xf32> -> vector<8x32xf32>
    %c0_52 = arith.constant 0 : index
    %c0_53 = arith.constant 0 : index
    %c0_54 = arith.constant 0 : index
    %78 = vector.load %arg6[%c0_52, %c0_53, %c0_54] : memref<4x32x32xbf16, #tpu.memory_space<vmem>>, vector<1x32x32xbf16>
    %79 = vector.shape_cast %78 : vector<1x32x32xbf16> to vector<32x32xbf16>
    %cst_55 = arith.constant dense<0.000000e+00> : vector<8x32xf32>
    %80 = tpu.matmul %74, %79, %cst_55 {dimension_numbers = #tpu.dot_dimension_numbers<[1], [0], [0], [1], [0, 0, 1, 1], [], []>} : vector<8x32xbf16>, vector<32x32xbf16>, vector<8x32xf32> -> vector<8x32xf32>
    %81 = arith.addf %77, %80 : vector<8x32xf32>
    %c0_56 = arith.constant 0 : index
    %c0_57 = arith.constant 0 : index
    %c0_58 = arith.constant 0 : index
    %82 = vector.load %arg7[%c0_56, %c0_57, %c0_58] : memref<4x1x32xf32, #tpu.memory_space<vmem>>, vector<1x1x32xf32>
    %83 = vector.shape_cast %82 : vector<1x1x32xf32> to vector<1x32xf32>
    %84 = vector.broadcast %83 : vector<1x32xf32> to vector<8x32xf32>
    %85 = arith.addf %81, %84 : vector<8x32xf32>
    %86 = arith.negf %85 : vector<8x32xf32>
    %87 = math.exp %86 : vector<8x32xf32>
    %cst_59 = arith.constant 1.000000e+00 : f32
    %88 = vector.broadcast %cst_59 : f32 to vector<8x32xf32>
    %89 = arith.addf %88, %87 : vector<8x32xf32>
    %90 = arith.divf %88, %89 : vector<8x32xf32>
    %c1_60 = arith.constant 1 : index
    %c0_61 = arith.constant 0 : index
    %c0_62 = arith.constant 0 : index
    %91 = vector.load %arg5[%c1_60, %c0_61, %c0_62] : memref<4x32x32xbf16, #tpu.memory_space<vmem>>, vector<1x32x32xbf16>
    %92 = vector.shape_cast %91 : vector<1x32x32xbf16> to vector<32x32xbf16>
    %cst_63 = arith.constant dense<0.000000e+00> : vector<8x32xf32>
    %93 = tpu.matmul %73, %92, %cst_63 {dimension_numbers = #tpu.dot_dimension_numbers<[1], [0], [0], [1], [0, 0, 1, 1], [], []>} : vector<8x32xbf16>, vector<32x32xbf16>, vector<8x32xf32> -> vector<8x32xf32>
    %c1_64 = arith.constant 1 : index
    %c0_65 = arith.constant 0 : index
    %c0_66 = arith.constant 0 : index
    %94 = vector.load %arg6[%c1_64, %c0_65, %c0_66] : memref<4x32x32xbf16, #tpu.memory_space<vmem>>, vector<1x32x32xbf16>
    %95 = vector.shape_cast %94 : vector<1x32x32xbf16> to vector<32x32xbf16>
    %cst_67 = arith.constant dense<0.000000e+00> : vector<8x32xf32>
    %96 = tpu.matmul %74, %95, %cst_67 {dimension_numbers = #tpu.dot_dimension_numbers<[1], [0], [0], [1], [0, 0, 1, 1], [], []>} : vector<8x32xbf16>, vector<32x32xbf16>, vector<8x32xf32> -> vector<8x32xf32>
    %97 = arith.addf %93, %96 : vector<8x32xf32>
    %c1_68 = arith.constant 1 : index
    %c0_69 = arith.constant 0 : index
    %c0_70 = arith.constant 0 : index
    %98 = vector.load %arg7[%c1_68, %c0_69, %c0_70] : memref<4x1x32xf32, #tpu.memory_space<vmem>>, vector<1x1x32xf32>
    %99 = vector.shape_cast %98 : vector<1x1x32xf32> to vector<1x32xf32>
    %100 = vector.broadcast %99 : vector<1x32xf32> to vector<8x32xf32>
    %101 = arith.addf %97, %100 : vector<8x32xf32>
    %102 = arith.negf %101 : vector<8x32xf32>
    %103 = math.exp %102 : vector<8x32xf32>
    %cst_71 = arith.constant 1.000000e+00 : f32
    %104 = vector.broadcast %cst_71 : f32 to vector<8x32xf32>
    %105 = arith.addf %104, %103 : vector<8x32xf32>
    %106 = arith.divf %104, %105 : vector<8x32xf32>
    %c2_72 = arith.constant 2 : index
    %c0_73 = arith.constant 0 : index
    %c0_74 = arith.constant 0 : index
    %107 = vector.load %arg5[%c2_72, %c0_73, %c0_74] : memref<4x32x32xbf16, #tpu.memory_space<vmem>>, vector<1x32x32xbf16>
    %108 = vector.shape_cast %107 : vector<1x32x32xbf16> to vector<32x32xbf16>
    %cst_75 = arith.constant dense<0.000000e+00> : vector<8x32xf32>
    %109 = tpu.matmul %73, %108, %cst_75 {dimension_numbers = #tpu.dot_dimension_numbers<[1], [0], [0], [1], [0, 0, 1, 1], [], []>} : vector<8x32xbf16>, vector<32x32xbf16>, vector<8x32xf32> -> vector<8x32xf32>
    %c2_76 = arith.constant 2 : index
    %c0_77 = arith.constant 0 : index
    %c0_78 = arith.constant 0 : index
    %110 = vector.load %arg6[%c2_76, %c0_77, %c0_78] : memref<4x32x32xbf16, #tpu.memory_space<vmem>>, vector<1x32x32xbf16>
    %111 = vector.shape_cast %110 : vector<1x32x32xbf16> to vector<32x32xbf16>
    %cst_79 = arith.constant dense<0.000000e+00> : vector<8x32xf32>
    %112 = tpu.matmul %74, %111, %cst_79 {dimension_numbers = #tpu.dot_dimension_numbers<[1], [0], [0], [1], [0, 0, 1, 1], [], []>} : vector<8x32xbf16>, vector<32x32xbf16>, vector<8x32xf32> -> vector<8x32xf32>
    %113 = arith.addf %109, %112 : vector<8x32xf32>
    %c2_80 = arith.constant 2 : index
    %c0_81 = arith.constant 0 : index
    %c0_82 = arith.constant 0 : index
    %114 = vector.load %arg7[%c2_80, %c0_81, %c0_82] : memref<4x1x32xf32, #tpu.memory_space<vmem>>, vector<1x1x32xf32>
    %115 = vector.shape_cast %114 : vector<1x1x32xf32> to vector<1x32xf32>
    %116 = vector.broadcast %115 : vector<1x32xf32> to vector<8x32xf32>
    %117 = arith.addf %113, %116 : vector<8x32xf32>
    %118 = math.tanh %117 : vector<8x32xf32>
    %c3_83 = arith.constant 3 : index
    %c0_84 = arith.constant 0 : index
    %c0_85 = arith.constant 0 : index
    %119 = vector.load %arg5[%c3_83, %c0_84, %c0_85] : memref<4x32x32xbf16, #tpu.memory_space<vmem>>, vector<1x32x32xbf16>
    %120 = vector.shape_cast %119 : vector<1x32x32xbf16> to vector<32x32xbf16>
    %cst_86 = arith.constant dense<0.000000e+00> : vector<8x32xf32>
    %121 = tpu.matmul %73, %120, %cst_86 {dimension_numbers = #tpu.dot_dimension_numbers<[1], [0], [0], [1], [0, 0, 1, 1], [], []>} : vector<8x32xbf16>, vector<32x32xbf16>, vector<8x32xf32> -> vector<8x32xf32>
    %c3_87 = arith.constant 3 : index
    %c0_88 = arith.constant 0 : index
    %c0_89 = arith.constant 0 : index
    %122 = vector.load %arg6[%c3_87, %c0_88, %c0_89] : memref<4x32x32xbf16, #tpu.memory_space<vmem>>, vector<1x32x32xbf16>
    %123 = vector.shape_cast %122 : vector<1x32x32xbf16> to vector<32x32xbf16>
    %cst_90 = arith.constant dense<0.000000e+00> : vector<8x32xf32>
    %124 = tpu.matmul %74, %123, %cst_90 {dimension_numbers = #tpu.dot_dimension_numbers<[1], [0], [0], [1], [0, 0, 1, 1], [], []>} : vector<8x32xbf16>, vector<32x32xbf16>, vector<8x32xf32> -> vector<8x32xf32>
    %125 = arith.addf %121, %124 : vector<8x32xf32>
    %c3_91 = arith.constant 3 : index
    %c0_92 = arith.constant 0 : index
    %c0_93 = arith.constant 0 : index
    %126 = vector.load %arg7[%c3_91, %c0_92, %c0_93] : memref<4x1x32xf32, #tpu.memory_space<vmem>>, vector<1x1x32xf32>
    %127 = vector.shape_cast %126 : vector<1x1x32xf32> to vector<1x32xf32>
    %128 = vector.broadcast %127 : vector<1x32xf32> to vector<8x32xf32>
    %129 = arith.addf %125, %128 : vector<8x32xf32>
    %130 = arith.negf %129 : vector<8x32xf32>
    %131 = math.exp %130 : vector<8x32xf32>
    %cst_94 = arith.constant 1.000000e+00 : f32
    %132 = vector.broadcast %cst_94 : f32 to vector<8x32xf32>
    %133 = arith.addf %132, %131 : vector<8x32xf32>
    %134 = arith.divf %132, %133 : vector<8x32xf32>
    %135 = arith.mulf %106, %72 : vector<8x32xf32>
    %136 = arith.mulf %90, %118 : vector<8x32xf32>
    %137 = arith.addf %135, %136 : vector<8x32xf32>
    %138 = math.tanh %137 : vector<8x32xf32>
    %139 = arith.mulf %134, %138 : vector<8x32xf32>
    %c0_95 = arith.constant 0 : index
    %c0_96 = arith.constant 0 : index
    %140 = vector.load %arg12[%c0_95, %c0_96] : memref<8x32xf32, #tpu.memory_space<vmem>>, vector<8x32xf32>
    tpu.vector_store %arg12[%c0_95, %c0_96], %137 {strides = array<i32>} : memref<8x32xf32, #tpu.memory_space<vmem>>, vector<8x32xf32>,
    %c0_97 = arith.constant 0 : index
    %c0_98 = arith.constant 0 : index
    %141 = vector.load %arg11[%c0_97, %c0_98] : memref<8x32xf32, #tpu.memory_space<vmem>>, vector<8x32xf32>
    tpu.vector_store %arg11[%c0_97, %c0_98], %139 {strides = array<i32>} : memref<8x32xf32, #tpu.memory_space<vmem>>, vector<8x32xf32>,
    %142 = arith.index_cast %c0_i32_1 : i32 to index
    %c0_99 = arith.constant 0 : index
    %c0_100 = arith.constant 0 : index
    %143 = vector.load %arg8[%142, %c0_99, %c0_100] : memref<4x8x32xf32, #tpu.memory_space<vmem>>, vector<1x8x32xf32>
    %144 = vector.shape_cast %143 : vector<1x8x32xf32> to vector<8x32xf32>
    %145 = vector.shape_cast %139 : vector<8x32xf32> to vector<1x8x32xf32>
    tpu.vector_store %arg8[%142, %c0_99, %c0_100], %145 {strides = array<i32>} : memref<4x8x32xf32, #tpu.memory_space<vmem>>, vector<1x8x32xf32>,
    %c1_i32 = arith.constant 1 : i32
    %c8_i32_101 = arith.constant 8 : i32
    %146 = arith.muli %c1_i32, %c8_i32_101 : i32
    %147 = tpu.assume_multiple %146, 8 : i32
    %c0_102 = arith.constant 0 : index
    %c0_103 = arith.constant 0 : index
    %148 = vector.load %arg9[%c0_102, %c0_103] : memref<8x32xf32, #tpu.memory_space<vmem>>, vector<8x32xf32>
    %c0_104 = arith.constant 0 : index
    %c0_105 = arith.constant 0 : index
    %149 = vector.load %arg10[%c0_104, %c0_105] : memref<8x32xf32, #tpu.memory_space<vmem>>, vector<8x32xf32>
    %150 = arith.truncf %148 : vector<8x32xf32> to vector<8x32xbf16>
    %c0_106 = arith.constant 0 : index
    %151 = arith.index_cast %147 : i32 to index
    %c0_107 = arith.constant 0 : index
    %152 = vector.load %arg1[%c0_106, %151, %c0_107] : memref<4x32x32xf32, #tpu.memory_space<vmem>>, vector<1x8x32xf32>
    %153 = vector.shape_cast %152 : vector<1x8x32xf32> to vector<8x32xf32>
    %c0_108 = arith.constant 0 : index
    %c0_109 = arith.constant 0 : index
    %c0_110 = arith.constant 0 : index
    %154 = vector.load %arg13[%c0_108, %c0_109, %c0_110] : memref<4x8x32xf32, #tpu.memory_space<vmem>>, vector<1x8x32xf32>
    %155 = vector.shape_cast %154 : vector<1x8x32xf32> to vector<8x32xf32>
    %156 = arith.addf %153, %155 : vector<8x32xf32>
    %c0_111 = arith.constant 0 : index
    %c0_112 = arith.constant 0 : index
    %c0_113 = arith.constant 0 : index
    %157 = vector.load %arg4[%c0_111, %c0_112, %c0_113] : memref<4x32x32xbf16, #tpu.memory_space<vmem>>, vector<1x32x32xbf16>
    %158 = vector.shape_cast %157 : vector<1x32x32xbf16> to vector<32x32xbf16>
    %cst_114 = arith.constant dense<0.000000e+00> : vector<8x32xf32>
    %159 = tpu.matmul %150, %158, %cst_114 {dimension_numbers = #tpu.dot_dimension_numbers<[1], [0], [0], [1], [0, 0, 1, 1], [], []>} : vector<8x32xbf16>, vector<32x32xbf16>, vector<8x32xf32> -> vector<8x32xf32>
    %160 = arith.addf %156, %159 : vector<8x32xf32>
    %161 = arith.negf %160 : vector<8x32xf32>
    %162 = math.exp %161 : vector<8x32xf32>
    %cst_115 = arith.constant 1.000000e+00 : f32
    %163 = vector.broadcast %cst_115 : f32 to vector<8x32xf32>
    %164 = arith.addf %163, %162 : vector<8x32xf32>
    %165 = arith.divf %163, %164 : vector<8x32xf32>
    %c1_116 = arith.constant 1 : index
    %166 = arith.index_cast %147 : i32 to index
    %c0_117 = arith.constant 0 : index
    %167 = vector.load %arg1[%c1_116, %166, %c0_117] : memref<4x32x32xf32, #tpu.memory_space<vmem>>, vector<1x8x32xf32>
    %168 = vector.shape_cast %167 : vector<1x8x32xf32> to vector<8x32xf32>
    %c1_118 = arith.constant 1 : index
    %c0_119 = arith.constant 0 : index
    %c0_120 = arith.constant 0 : index
    %169 = vector.load %arg13[%c1_118, %c0_119, %c0_120] : memref<4x8x32xf32, #tpu.memory_space<vmem>>, vector<1x8x32xf32>
    %170 = vector.shape_cast %169 : vector<1x8x32xf32> to vector<8x32xf32>
    %171 = arith.addf %168, %170 : vector<8x32xf32>
    %c1_121 = arith.constant 1 : index
    %c0_122 = arith.constant 0 : index
    %c0_123 = arith.constant 0 : index
    %172 = vector.load %arg4[%c1_121, %c0_122, %c0_123] : memref<4x32x32xbf16, #tpu.memory_space<vmem>>, vector<1x32x32xbf16>
    %173 = vector.shape_cast %172 : vector<1x32x32xbf16> to vector<32x32xbf16>
    %cst_124 = arith.constant dense<0.000000e+00> : vector<8x32xf32>
    %174 = tpu.matmul %150, %173, %cst_124 {dimension_numbers = #tpu.dot_dimension_numbers<[1], [0], [0], [1], [0, 0, 1, 1], [], []>} : vector<8x32xbf16>, vector<32x32xbf16>, vector<8x32xf32> -> vector<8x32xf32>
    %175 = arith.addf %171, %174 : vector<8x32xf32>
    %176 = arith.negf %175 : vector<8x32xf32>
    %177 = math.exp %176 : vector<8x32xf32>
    %cst_125 = arith.constant 1.000000e+00 : f32
    %178 = vector.broadcast %cst_125 : f32 to vector<8x32xf32>
    %179 = arith.addf %178, %177 : vector<8x32xf32>
    %180 = arith.divf %178, %179 : vector<8x32xf32>
    %c2_126 = arith.constant 2 : index
    %181 = arith.index_cast %147 : i32 to index
    %c0_127 = arith.constant 0 : index
    %182 = vector.load %arg1[%c2_126, %181, %c0_127] : memref<4x32x32xf32, #tpu.memory_space<vmem>>, vector<1x8x32xf32>
    %183 = vector.shape_cast %182 : vector<1x8x32xf32> to vector<8x32xf32>
    %c2_128 = arith.constant 2 : index
    %c0_129 = arith.constant 0 : index
    %c0_130 = arith.constant 0 : index
    %184 = vector.load %arg13[%c2_128, %c0_129, %c0_130] : memref<4x8x32xf32, #tpu.memory_space<vmem>>, vector<1x8x32xf32>
    %185 = vector.shape_cast %184 : vector<1x8x32xf32> to vector<8x32xf32>
    %186 = arith.addf %183, %185 : vector<8x32xf32>
    %c2_131 = arith.constant 2 : index
    %c0_132 = arith.constant 0 : index
    %c0_133 = arith.constant 0 : index
    %187 = vector.load %arg4[%c2_131, %c0_132, %c0_133] : memref<4x32x32xbf16, #tpu.memory_space<vmem>>, vector<1x32x32xbf16>
    %188 = vector.shape_cast %187 : vector<1x32x32xbf16> to vector<32x32xbf16>
    %cst_134 = arith.constant dense<0.000000e+00> : vector<8x32xf32>
    %189 = tpu.matmul %150, %188, %cst_134 {dimension_numbers = #tpu.dot_dimension_numbers<[1], [0], [0], [1], [0, 0, 1, 1], [], []>} : vector<8x32xbf16>, vector<32x32xbf16>, vector<8x32xf32> -> vector<8x32xf32>
    %190 = arith.addf %186, %189 : vector<8x32xf32>
    %191 = math.tanh %190 : vector<8x32xf32>
    %c3_135 = arith.constant 3 : index
    %192 = arith.index_cast %147 : i32 to index
    %c0_136 = arith.constant 0 : index
    %193 = vector.load %arg1[%c3_135, %192, %c0_136] : memref<4x32x32xf32, #tpu.memory_space<vmem>>, vector<1x8x32xf32>
    %194 = vector.shape_cast %193 : vector<1x8x32xf32> to vector<8x32xf32>
    %c3_137 = arith.constant 3 : index
    %c0_138 = arith.constant 0 : index
    %c0_139 = arith.constant 0 : index
    %195 = vector.load %arg13[%c3_137, %c0_138, %c0_139] : memref<4x8x32xf32, #tpu.memory_space<vmem>>, vector<1x8x32xf32>
    %196 = vector.shape_cast %195 : vector<1x8x32xf32> to vector<8x32xf32>
    %197 = arith.addf %194, %196 : vector<8x32xf32>
    %c3_140 = arith.constant 3 : index
    %c0_141 = arith.constant 0 : index
    %c0_142 = arith.constant 0 : index
    %198 = vector.load %arg4[%c3_140, %c0_141, %c0_142] : memref<4x32x32xbf16, #tpu.memory_space<vmem>>, vector<1x32x32xbf16>
    %199 = vector.shape_cast %198 : vector<1x32x32xbf16> to vector<32x32xbf16>
    %cst_143 = arith.constant dense<0.000000e+00> : vector<8x32xf32>
    %200 = tpu.matmul %150, %199, %cst_143 {dimension_numbers = #tpu.dot_dimension_numbers<[1], [0], [0], [1], [0, 0, 1, 1], [], []>} : vector<8x32xbf16>, vector<32x32xbf16>, vector<8x32xf32> -> vector<8x32xf32>
    %201 = arith.addf %197, %200 : vector<8x32xf32>
    %202 = arith.negf %201 : vector<8x32xf32>
    %203 = math.exp %202 : vector<8x32xf32>
    %cst_144 = arith.constant 1.000000e+00 : f32
    %204 = vector.broadcast %cst_144 : f32 to vector<8x32xf32>
    %205 = arith.addf %204, %203 : vector<8x32xf32>
    %206 = arith.divf %204, %205 : vector<8x32xf32>
    %207 = arith.mulf %180, %149 : vector<8x32xf32>
    %208 = arith.mulf %165, %191 : vector<8x32xf32>
    %209 = arith.addf %207, %208 : vector<8x32xf32>
    %210 = math.tanh %209 : vector<8x32xf32>
    %211 = arith.mulf %206, %210 : vector<8x32xf32>
    %c0_145 = arith.constant 0 : index
    %c0_146 = arith.constant 0 : index
    %212 = vector.load %arg10[%c0_145, %c0_146] : memref<8x32xf32, #tpu.memory_space<vmem>>, vector<8x32xf32>
    tpu.vector_store %arg10[%c0_145, %c0_146], %209 {strides = array<i32>} : memref<8x32xf32, #tpu.memory_space<vmem>>, vector<8x32xf32>,
    %c0_147 = arith.constant 0 : index
    %c0_148 = arith.constant 0 : index
    %213 = vector.load %arg9[%c0_147, %c0_148] : memref<8x32xf32, #tpu.memory_space<vmem>>, vector<8x32xf32>
    tpu.vector_store %arg9[%c0_147, %c0_148], %211 {strides = array<i32>} : memref<8x32xf32, #tpu.memory_space<vmem>>, vector<8x32xf32>,
    %c0_149 = arith.constant 0 : index
    %c0_150 = arith.constant 0 : index
    %214 = vector.load %arg11[%c0_149, %c0_150] : memref<8x32xf32, #tpu.memory_space<vmem>>, vector<8x32xf32>
    %c0_151 = arith.constant 0 : index
    %c0_152 = arith.constant 0 : index
    %215 = vector.load %arg12[%c0_151, %c0_152] : memref<8x32xf32, #tpu.memory_space<vmem>>, vector<8x32xf32>
    %216 = arith.truncf %211 : vector<8x32xf32> to vector<8x32xbf16>
    %217 = arith.truncf %214 : vector<8x32xf32> to vector<8x32xbf16>
    %c0_153 = arith.constant 0 : index
    %c0_154 = arith.constant 0 : index
    %c0_155 = arith.constant 0 : index
    %218 = vector.load %arg5[%c0_153, %c0_154, %c0_155] : memref<4x32x32xbf16, #tpu.memory_space<vmem>>, vector<1x32x32xbf16>
    %219 = vector.shape_cast %218 : vector<1x32x32xbf16> to vector<32x32xbf16>
    %cst_156 = arith.constant dense<0.000000e+00> : vector<8x32xf32>
    %220 = tpu.matmul %216, %219, %cst_156 {dimension_numbers = #tpu.dot_dimension_numbers<[1], [0], [0], [1], [0, 0, 1, 1], [], []>} : vector<8x32xbf16>, vector<32x32xbf16>, vector<8x32xf32> -> vector<8x32xf32>
    %c0_157 = arith.constant 0 : index
    %c0_158 = arith.constant 0 : index
    %c0_159 = arith.constant 0 : index
    %221 = vector.load %arg6[%c0_157, %c0_158, %c0_159] : memref<4x32x32xbf16, #tpu.memory_space<vmem>>, vector<1x32x32xbf16>
    %222 = vector.shape_cast %221 : vector<1x32x32xbf16> to vector<32x32xbf16>
    %cst_160 = arith.constant dense<0.000000e+00> : vector<8x32xf32>
    %223 = tpu.matmul %217, %222, %cst_160 {dimension_numbers = #tpu.dot_dimension_numbers<[1], [0], [0], [1], [0, 0, 1, 1], [], []>} : vector<8x32xbf16>, vector<32x32xbf16>, vector<8x32xf32> -> vector<8x32xf32>
    %224 = arith.addf %220, %223 : vector<8x32xf32>
    %c0_161 = arith.constant 0 : index
    %c0_162 = arith.constant 0 : index
    %c0_163 = arith.constant 0 : index
    %225 = vector.load %arg7[%c0_161, %c0_162, %c0_163] : memref<4x1x32xf32, #tpu.memory_space<vmem>>, vector<1x1x32xf32>
    %226 = vector.shape_cast %225 : vector<1x1x32xf32> to vector<1x32xf32>
    %227 = vector.broadcast %226 : vector<1x32xf32> to vector<8x32xf32>
    %228 = arith.addf %224, %227 : vector<8x32xf32>
    %229 = arith.negf %228 : vector<8x32xf32>
    %230 = math.exp %229 : vector<8x32xf32>
    %cst_164 = arith.constant 1.000000e+00 : f32
    %231 = vector.broadcast %cst_164 : f32 to vector<8x32xf32>
    %232 = arith.addf %231, %230 : vector<8x32xf32>
    %233 = arith.divf %231, %232 : vector<8x32xf32>
    %c1_165 = arith.constant 1 : index
    %c0_166 = arith.constant 0 : index
    %c0_167 = arith.constant 0 : index
    %234 = vector.load %arg5[%c1_165, %c0_166, %c0_167] : memref<4x32x32xbf16, #tpu.memory_space<vmem>>, vector<1x32x32xbf16>
    %235 = vector.shape_cast %234 : vector<1x32x32xbf16> to vector<32x32xbf16>
    %cst_168 = arith.constant dense<0.000000e+00> : vector<8x32xf32>
    %236 = tpu.matmul %216, %235, %cst_168 {dimension_numbers = #tpu.dot_dimension_numbers<[1], [0], [0], [1], [0, 0, 1, 1], [], []>} : vector<8x32xbf16>, vector<32x32xbf16>, vector<8x32xf32> -> vector<8x32xf32>
    %c1_169 = arith.constant 1 : index
    %c0_170 = arith.constant 0 : index
    %c0_171 = arith.constant 0 : index
    %237 = vector.load %arg6[%c1_169, %c0_170, %c0_171] : memref<4x32x32xbf16, #tpu.memory_space<vmem>>, vector<1x32x32xbf16>
    %238 = vector.shape_cast %237 : vector<1x32x32xbf16> to vector<32x32xbf16>
    %cst_172 = arith.constant dense<0.000000e+00> : vector<8x32xf32>
    %239 = tpu.matmul %217, %238, %cst_172 {dimension_numbers = #tpu.dot_dimension_numbers<[1], [0], [0], [1], [0, 0, 1, 1], [], []>} : vector<8x32xbf16>, vector<32x32xbf16>, vector<8x32xf32> -> vector<8x32xf32>
    %240 = arith.addf %236, %239 : vector<8x32xf32>
    %c1_173 = arith.constant 1 : index
    %c0_174 = arith.constant 0 : index
    %c0_175 = arith.constant 0 : index
    %241 = vector.load %arg7[%c1_173, %c0_174, %c0_175] : memref<4x1x32xf32, #tpu.memory_space<vmem>>, vector<1x1x32xf32>
    %242 = vector.shape_cast %241 : vector<1x1x32xf32> to vector<1x32xf32>
    %243 = vector.broadcast %242 : vector<1x32xf32> to vector<8x32xf32>
    %244 = arith.addf %240, %243 : vector<8x32xf32>
    %245 = arith.negf %244 : vector<8x32xf32>
    %246 = math.exp %245 : vector<8x32xf32>
    %cst_176 = arith.constant 1.000000e+00 : f32
    %247 = vector.broadcast %cst_176 : f32 to vector<8x32xf32>
    %248 = arith.addf %247, %246 : vector<8x32xf32>
    %249 = arith.divf %247, %248 : vector<8x32xf32>
    %c2_177 = arith.constant 2 : index
    %c0_178 = arith.constant 0 : index
    %c0_179 = arith.constant 0 : index
    %250 = vector.load %arg5[%c2_177, %c0_178, %c0_179] : memref<4x32x32xbf16, #tpu.memory_space<vmem>>, vector<1x32x32xbf16>
    %251 = vector.shape_cast %250 : vector<1x32x32xbf16> to vector<32x32xbf16>
    %cst_180 = arith.constant dense<0.000000e+00> : vector<8x32xf32>
    %252 = tpu.matmul %216, %251, %cst_180 {dimension_numbers = #tpu.dot_dimension_numbers<[1], [0], [0], [1], [0, 0, 1, 1], [], []>} : vector<8x32xbf16>, vector<32x32xbf16>, vector<8x32xf32> -> vector<8x32xf32>
    %c2_181 = arith.constant 2 : index
    %c0_182 = arith.constant 0 : index
    %c0_183 = arith.constant 0 : index
    %253 = vector.load %arg6[%c2_181, %c0_182, %c0_183] : memref<4x32x32xbf16, #tpu.memory_space<vmem>>, vector<1x32x32xbf16>
    %254 = vector.shape_cast %253 : vector<1x32x32xbf16> to vector<32x32xbf16>
    %cst_184 = arith.constant dense<0.000000e+00> : vector<8x32xf32>
    %255 = tpu.matmul %217, %254, %cst_184 {dimension_numbers = #tpu.dot_dimension_numbers<[1], [0], [0], [1], [0, 0, 1, 1], [], []>} : vector<8x32xbf16>, vector<32x32xbf16>, vector<8x32xf32> -> vector<8x32xf32>
    %256 = arith.addf %252, %255 : vector<8x32xf32>
    %c2_185 = arith.constant 2 : index
    %c0_186 = arith.constant 0 : index
    %c0_187 = arith.constant 0 : index
    %257 = vector.load %arg7[%c2_185, %c0_186, %c0_187] : memref<4x1x32xf32, #tpu.memory_space<vmem>>, vector<1x1x32xf32>
    %258 = vector.shape_cast %257 : vector<1x1x32xf32> to vector<1x32xf32>
    %259 = vector.broadcast %258 : vector<1x32xf32> to vector<8x32xf32>
    %260 = arith.addf %256, %259 : vector<8x32xf32>
    %261 = math.tanh %260 : vector<8x32xf32>
    %c3_188 = arith.constant 3 : index
    %c0_189 = arith.constant 0 : index
    %c0_190 = arith.constant 0 : index
    %262 = vector.load %arg5[%c3_188, %c0_189, %c0_190] : memref<4x32x32xbf16, #tpu.memory_space<vmem>>, vector<1x32x32xbf16>
    %263 = vector.shape_cast %262 : vector<1x32x32xbf16> to vector<32x32xbf16>
    %cst_191 = arith.constant dense<0.000000e+00> : vector<8x32xf32>
    %264 = tpu.matmul %216, %263, %cst_191 {dimension_numbers = #tpu.dot_dimension_numbers<[1], [0], [0], [1], [0, 0, 1, 1], [], []>} : vector<8x32xbf16>, vector<32x32xbf16>, vector<8x32xf32> -> vector<8x32xf32>
    %c3_192 = arith.constant 3 : index
    %c0_193 = arith.constant 0 : index
    %c0_194 = arith.constant 0 : index
    %265 = vector.load %arg6[%c3_192, %c0_193, %c0_194] : memref<4x32x32xbf16, #tpu.memory_space<vmem>>, vector<1x32x32xbf16>
    %266 = vector.shape_cast %265 : vector<1x32x32xbf16> to vector<32x32xbf16>
    %cst_195 = arith.constant dense<0.000000e+00> : vector<8x32xf32>
    %267 = tpu.matmul %217, %266, %cst_195 {dimension_numbers = #tpu.dot_dimension_numbers<[1], [0], [0], [1], [0, 0, 1, 1], [], []>} : vector<8x32xbf16>, vector<32x32xbf16>, vector<8x32xf32> -> vector<8x32xf32>
    %268 = arith.addf %264, %267 : vector<8x32xf32>
    %c3_196 = arith.constant 3 : index
    %c0_197 = arith.constant 0 : index
    %c0_198 = arith.constant 0 : index
    %269 = vector.load %arg7[%c3_196, %c0_197, %c0_198] : memref<4x1x32xf32, #tpu.memory_space<vmem>>, vector<1x1x32xf32>
    %270 = vector.shape_cast %269 : vector<1x1x32xf32> to vector<1x32xf32>
    %271 = vector.broadcast %270 : vector<1x32xf32> to vector<8x32xf32>
    %272 = arith.addf %268, %271 : vector<8x32xf32>
    %273 = arith.negf %272 : vector<8x32xf32>
    %274 = math.exp %273 : vector<8x32xf32>
    %cst_199 = arith.constant 1.000000e+00 : f32
    %275 = vector.broadcast %cst_199 : f32 to vector<8x32xf32>
    %276 = arith.addf %275, %274 : vector<8x32xf32>
    %277 = arith.divf %275, %276 : vector<8x32xf32>
    %278 = arith.mulf %249, %215 : vector<8x32xf32>
    %279 = arith.mulf %233, %261 : vector<8x32xf32>
    %280 = arith.addf %278, %279 : vector<8x32xf32>
    %281 = math.tanh %280 : vector<8x32xf32>
    %282 = arith.mulf %277, %281 : vector<8x32xf32>
    %c0_200 = arith.constant 0 : index
    %c0_201 = arith.constant 0 : index
    %283 = vector.load %arg12[%c0_200, %c0_201] : memref<8x32xf32, #tpu.memory_space<vmem>>, vector<8x32xf32>
    tpu.vector_store %arg12[%c0_200, %c0_201], %280 {strides = array<i32>} : memref<8x32xf32, #tpu.memory_space<vmem>>, vector<8x32xf32>,
    %c0_202 = arith.constant 0 : index
    %c0_203 = arith.constant 0 : index
    %284 = vector.load %arg11[%c0_202, %c0_203] : memref<8x32xf32, #tpu.memory_space<vmem>>, vector<8x32xf32>
    tpu.vector_store %arg11[%c0_202, %c0_203], %282 {strides = array<i32>} : memref<8x32xf32, #tpu.memory_space<vmem>>, vector<8x32xf32>,
    %285 = arith.index_cast %c1_i32 : i32 to index
    %c0_204 = arith.constant 0 : index
    %c0_205 = arith.constant 0 : index
    %286 = vector.load %arg8[%285, %c0_204, %c0_205] : memref<4x8x32xf32, #tpu.memory_space<vmem>>, vector<1x8x32xf32>
    %287 = vector.shape_cast %286 : vector<1x8x32xf32> to vector<8x32xf32>
    %288 = vector.shape_cast %282 : vector<8x32xf32> to vector<1x8x32xf32>
    tpu.vector_store %arg8[%285, %c0_204, %c0_205], %288 {strides = array<i32>} : memref<4x8x32xf32, #tpu.memory_space<vmem>>, vector<1x8x32xf32>,
    %c2_i32 = arith.constant 2 : i32
    %c8_i32_206 = arith.constant 8 : i32
    %289 = arith.muli %c2_i32, %c8_i32_206 : i32
    %290 = tpu.assume_multiple %289, 8 : i32
    %c0_207 = arith.constant 0 : index
    %c0_208 = arith.constant 0 : index
    %291 = vector.load %arg9[%c0_207, %c0_208] : memref<8x32xf32, #tpu.memory_space<vmem>>, vector<8x32xf32>
    %c0_209 = arith.constant 0 : index
    %c0_210 = arith.constant 0 : index
    %292 = vector.load %arg10[%c0_209, %c0_210] : memref<8x32xf32, #tpu.memory_space<vmem>>, vector<8x32xf32>
    %293 = arith.truncf %291 : vector<8x32xf32> to vector<8x32xbf16>
    %c0_211 = arith.constant 0 : index
    %294 = arith.index_cast %290 : i32 to index
    %c0_212 = arith.constant 0 : index
    %295 = vector.load %arg1[%c0_211, %294, %c0_212] : memref<4x32x32xf32, #tpu.memory_space<vmem>>, vector<1x8x32xf32>
    %296 = vector.shape_cast %295 : vector<1x8x32xf32> to vector<8x32xf32>
    %c0_213 = arith.constant 0 : index
    %c0_214 = arith.constant 0 : index
    %c0_215 = arith.constant 0 : index
    %297 = vector.load %arg13[%c0_213, %c0_214, %c0_215] : memref<4x8x32xf32, #tpu.memory_space<vmem>>, vector<1x8x32xf32>
    %298 = vector.shape_cast %297 : vector<1x8x32xf32> to vector<8x32xf32>
    %299 = arith.addf %296, %298 : vector<8x32xf32>
    %c0_216 = arith.constant 0 : index
    %c0_217 = arith.constant 0 : index
    %c0_218 = arith.constant 0 : index
    %300 = vector.load %arg4[%c0_216, %c0_217, %c0_218] : memref<4x32x32xbf16, #tpu.memory_space<vmem>>, vector<1x32x32xbf16>
    %301 = vector.shape_cast %300 : vector<1x32x32xbf16> to vector<32x32xbf16>
    %cst_219 = arith.constant dense<0.000000e+00> : vector<8x32xf32>
    %302 = tpu.matmul %293, %301, %cst_219 {dimension_numbers = #tpu.dot_dimension_numbers<[1], [0], [0], [1], [0, 0, 1, 1], [], []>} : vector<8x32xbf16>, vector<32x32xbf16>, vector<8x32xf32> -> vector<8x32xf32>
    %303 = arith.addf %299, %302 : vector<8x32xf32>
    %304 = arith.negf %303 : vector<8x32xf32>
    %305 = math.exp %304 : vector<8x32xf32>
    %cst_220 = arith.constant 1.000000e+00 : f32
    %306 = vector.broadcast %cst_220 : f32 to vector<8x32xf32>
    %307 = arith.addf %306, %305 : vector<8x32xf32>
    %308 = arith.divf %306, %307 : vector<8x32xf32>
    %c1_221 = arith.constant 1 : index
    %309 = arith.index_cast %290 : i32 to index
    %c0_222 = arith.constant 0 : index
    %310 = vector.load %arg1[%c1_221, %309, %c0_222] : memref<4x32x32xf32, #tpu.memory_space<vmem>>, vector<1x8x32xf32>
    %311 = vector.shape_cast %310 : vector<1x8x32xf32> to vector<8x32xf32>
    %c1_223 = arith.constant 1 : index
    %c0_224 = arith.constant 0 : index
    %c0_225 = arith.constant 0 : index
    %312 = vector.load %arg13[%c1_223, %c0_224, %c0_225] : memref<4x8x32xf32, #tpu.memory_space<vmem>>, vector<1x8x32xf32>
    %313 = vector.shape_cast %312 : vector<1x8x32xf32> to vector<8x32xf32>
    %314 = arith.addf %311, %313 : vector<8x32xf32>
    %c1_226 = arith.constant 1 : index
    %c0_227 = arith.constant 0 : index
    %c0_228 = arith.constant 0 : index
    %315 = vector.load %arg4[%c1_226, %c0_227, %c0_228] : memref<4x32x32xbf16, #tpu.memory_space<vmem>>, vector<1x32x32xbf16>
    %316 = vector.shape_cast %315 : vector<1x32x32xbf16> to vector<32x32xbf16>
    %cst_229 = arith.constant dense<0.000000e+00> : vector<8x32xf32>
    %317 = tpu.matmul %293, %316, %cst_229 {dimension_numbers = #tpu.dot_dimension_numbers<[1], [0], [0], [1], [0, 0, 1, 1], [], []>} : vector<8x32xbf16>, vector<32x32xbf16>, vector<8x32xf32> -> vector<8x32xf32>
    %318 = arith.addf %314, %317 : vector<8x32xf32>
    %319 = arith.negf %318 : vector<8x32xf32>
    %320 = math.exp %319 : vector<8x32xf32>
    %cst_230 = arith.constant 1.000000e+00 : f32
    %321 = vector.broadcast %cst_230 : f32 to vector<8x32xf32>
    %322 = arith.addf %321, %320 : vector<8x32xf32>
    %323 = arith.divf %321, %322 : vector<8x32xf32>
    %c2_231 = arith.constant 2 : index
    %324 = arith.index_cast %290 : i32 to index
    %c0_232 = arith.constant 0 : index
    %325 = vector.load %arg1[%c2_231, %324, %c0_232] : memref<4x32x32xf32, #tpu.memory_space<vmem>>, vector<1x8x32xf32>
    %326 = vector.shape_cast %325 : vector<1x8x32xf32> to vector<8x32xf32>
    %c2_233 = arith.constant 2 : index
    %c0_234 = arith.constant 0 : index
    %c0_235 = arith.constant 0 : index
    %327 = vector.load %arg13[%c2_233, %c0_234, %c0_235] : memref<4x8x32xf32, #tpu.memory_space<vmem>>, vector<1x8x32xf32>
    %328 = vector.shape_cast %327 : vector<1x8x32xf32> to vector<8x32xf32>
    %329 = arith.addf %326, %328 : vector<8x32xf32>
    %c2_236 = arith.constant 2 : index
    %c0_237 = arith.constant 0 : index
    %c0_238 = arith.constant 0 : index
    %330 = vector.load %arg4[%c2_236, %c0_237, %c0_238] : memref<4x32x32xbf16, #tpu.memory_space<vmem>>, vector<1x32x32xbf16>
    %331 = vector.shape_cast %330 : vector<1x32x32xbf16> to vector<32x32xbf16>
    %cst_239 = arith.constant dense<0.000000e+00> : vector<8x32xf32>
    %332 = tpu.matmul %293, %331, %cst_239 {dimension_numbers = #tpu.dot_dimension_numbers<[1], [0], [0], [1], [0, 0, 1, 1], [], []>} : vector<8x32xbf16>, vector<32x32xbf16>, vector<8x32xf32> -> vector<8x32xf32>
    %333 = arith.addf %329, %332 : vector<8x32xf32>
    %334 = math.tanh %333 : vector<8x32xf32>
    %c3_240 = arith.constant 3 : index
    %335 = arith.index_cast %290 : i32 to index
    %c0_241 = arith.constant 0 : index
    %336 = vector.load %arg1[%c3_240, %335, %c0_241] : memref<4x32x32xf32, #tpu.memory_space<vmem>>, vector<1x8x32xf32>
    %337 = vector.shape_cast %336 : vector<1x8x32xf32> to vector<8x32xf32>
    %c3_242 = arith.constant 3 : index
    %c0_243 = arith.constant 0 : index
    %c0_244 = arith.constant 0 : index
    %338 = vector.load %arg13[%c3_242, %c0_243, %c0_244] : memref<4x8x32xf32, #tpu.memory_space<vmem>>, vector<1x8x32xf32>
    %339 = vector.shape_cast %338 : vector<1x8x32xf32> to vector<8x32xf32>
    %340 = arith.addf %337, %339 : vector<8x32xf32>
    %c3_245 = arith.constant 3 : index
    %c0_246 = arith.constant 0 : index
    %c0_247 = arith.constant 0 : index
    %341 = vector.load %arg4[%c3_245, %c0_246, %c0_247] : memref<4x32x32xbf16, #tpu.memory_space<vmem>>, vector<1x32x32xbf16>
    %342 = vector.shape_cast %341 : vector<1x32x32xbf16> to vector<32x32xbf16>
    %cst_248 = arith.constant dense<0.000000e+00> : vector<8x32xf32>
    %343 = tpu.matmul %293, %342, %cst_248 {dimension_numbers = #tpu.dot_dimension_numbers<[1], [0], [0], [1], [0, 0, 1, 1], [], []>} : vector<8x32xbf16>, vector<32x32xbf16>, vector<8x32xf32> -> vector<8x32xf32>
    %344 = arith.addf %340, %343 : vector<8x32xf32>
    %345 = arith.negf %344 : vector<8x32xf32>
    %346 = math.exp %345 : vector<8x32xf32>
    %cst_249 = arith.constant 1.000000e+00 : f32
    %347 = vector.broadcast %cst_249 : f32 to vector<8x32xf32>
    %348 = arith.addf %347, %346 : vector<8x32xf32>
    %349 = arith.divf %347, %348 : vector<8x32xf32>
    %350 = arith.mulf %323, %292 : vector<8x32xf32>
    %351 = arith.mulf %308, %334 : vector<8x32xf32>
    %352 = arith.addf %350, %351 : vector<8x32xf32>
    %353 = math.tanh %352 : vector<8x32xf32>
    %354 = arith.mulf %349, %353 : vector<8x32xf32>
    %c0_250 = arith.constant 0 : index
    %c0_251 = arith.constant 0 : index
    %355 = vector.load %arg10[%c0_250, %c0_251] : memref<8x32xf32, #tpu.memory_space<vmem>>, vector<8x32xf32>
    tpu.vector_store %arg10[%c0_250, %c0_251], %352 {strides = array<i32>} : memref<8x32xf32, #tpu.memory_space<vmem>>, vector<8x32xf32>,
    %c0_252 = arith.constant 0 : index
    %c0_253 = arith.constant 0 : index
    %356 = vector.load %arg9[%c0_252, %c0_253] : memref<8x32xf32, #tpu.memory_space<vmem>>, vector<8x32xf32>
    tpu.vector_store %arg9[%c0_252, %c0_253], %354 {strides = array<i32>} : memref<8x32xf32, #tpu.memory_space<vmem>>, vector<8x32xf32>,
    %c0_254 = arith.constant 0 : index
    %c0_255 = arith.constant 0 : index
    %357 = vector.load %arg11[%c0_254, %c0_255] : memref<8x32xf32, #tpu.memory_space<vmem>>, vector<8x32xf32>
    %c0_256 = arith.constant 0 : index
    %c0_257 = arith.constant 0 : index
    %358 = vector.load %arg12[%c0_256, %c0_257] : memref<8x32xf32, #tpu.memory_space<vmem>>, vector<8x32xf32>
    %359 = arith.truncf %354 : vector<8x32xf32> to vector<8x32xbf16>
    %360 = arith.truncf %357 : vector<8x32xf32> to vector<8x32xbf16>
    %c0_258 = arith.constant 0 : index
    %c0_259 = arith.constant 0 : index
    %c0_260 = arith.constant 0 : index
    %361 = vector.load %arg5[%c0_258, %c0_259, %c0_260] : memref<4x32x32xbf16, #tpu.memory_space<vmem>>, vector<1x32x32xbf16>
    %362 = vector.shape_cast %361 : vector<1x32x32xbf16> to vector<32x32xbf16>
    %cst_261 = arith.constant dense<0.000000e+00> : vector<8x32xf32>
    %363 = tpu.matmul %359, %362, %cst_261 {dimension_numbers = #tpu.dot_dimension_numbers<[1], [0], [0], [1], [0, 0, 1, 1], [], []>} : vector<8x32xbf16>, vector<32x32xbf16>, vector<8x32xf32> -> vector<8x32xf32>
    %c0_262 = arith.constant 0 : index
    %c0_263 = arith.constant 0 : index
    %c0_264 = arith.constant 0 : index
    %364 = vector.load %arg6[%c0_262, %c0_263, %c0_264] : memref<4x32x32xbf16, #tpu.memory_space<vmem>>, vector<1x32x32xbf16>
    %365 = vector.shape_cast %364 : vector<1x32x32xbf16> to vector<32x32xbf16>
    %cst_265 = arith.constant dense<0.000000e+00> : vector<8x32xf32>
    %366 = tpu.matmul %360, %365, %cst_265 {dimension_numbers = #tpu.dot_dimension_numbers<[1], [0], [0], [1], [0, 0, 1, 1], [], []>} : vector<8x32xbf16>, vector<32x32xbf16>, vector<8x32xf32> -> vector<8x32xf32>
    %367 = arith.addf %363, %366 : vector<8x32xf32>
    %c0_266 = arith.constant 0 : index
    %c0_267 = arith.constant 0 : index
    %c0_268 = arith.constant 0 : index
    %368 = vector.load %arg7[%c0_266, %c0_267, %c0_268] : memref<4x1x32xf32, #tpu.memory_space<vmem>>, vector<1x1x32xf32>
    %369 = vector.shape_cast %368 : vector<1x1x32xf32> to vector<1x32xf32>
    %370 = vector.broadcast %369 : vector<1x32xf32> to vector<8x32xf32>
    %371 = arith.addf %367, %370 : vector<8x32xf32>
    %372 = arith.negf %371 : vector<8x32xf32>
    %373 = math.exp %372 : vector<8x32xf32>
    %cst_269 = arith.constant 1.000000e+00 : f32
    %374 = vector.broadcast %cst_269 : f32 to vector<8x32xf32>
    %375 = arith.addf %374, %373 : vector<8x32xf32>
    %376 = arith.divf %374, %375 : vector<8x32xf32>
    %c1_270 = arith.constant 1 : index
    %c0_271 = arith.constant 0 : index
    %c0_272 = arith.constant 0 : index
    %377 = vector.load %arg5[%c1_270, %c0_271, %c0_272] : memref<4x32x32xbf16, #tpu.memory_space<vmem>>, vector<1x32x32xbf16>
    %378 = vector.shape_cast %377 : vector<1x32x32xbf16> to vector<32x32xbf16>
    %cst_273 = arith.constant dense<0.000000e+00> : vector<8x32xf32>
    %379 = tpu.matmul %359, %378, %cst_273 {dimension_numbers = #tpu.dot_dimension_numbers<[1], [0], [0], [1], [0, 0, 1, 1], [], []>} : vector<8x32xbf16>, vector<32x32xbf16>, vector<8x32xf32> -> vector<8x32xf32>
    %c1_274 = arith.constant 1 : index
    %c0_275 = arith.constant 0 : index
    %c0_276 = arith.constant 0 : index
    %380 = vector.load %arg6[%c1_274, %c0_275, %c0_276] : memref<4x32x32xbf16, #tpu.memory_space<vmem>>, vector<1x32x32xbf16>
    %381 = vector.shape_cast %380 : vector<1x32x32xbf16> to vector<32x32xbf16>
    %cst_277 = arith.constant dense<0.000000e+00> : vector<8x32xf32>
    %382 = tpu.matmul %360, %381, %cst_277 {dimension_numbers = #tpu.dot_dimension_numbers<[1], [0], [0], [1], [0, 0, 1, 1], [], []>} : vector<8x32xbf16>, vector<32x32xbf16>, vector<8x32xf32> -> vector<8x32xf32>
    %383 = arith.addf %379, %382 : vector<8x32xf32>
    %c1_278 = arith.constant 1 : index
    %c0_279 = arith.constant 0 : index
    %c0_280 = arith.constant 0 : index
    %384 = vector.load %arg7[%c1_278, %c0_279, %c0_280] : memref<4x1x32xf32, #tpu.memory_space<vmem>>, vector<1x1x32xf32>
    %385 = vector.shape_cast %384 : vector<1x1x32xf32> to vector<1x32xf32>
    %386 = vector.broadcast %385 : vector<1x32xf32> to vector<8x32xf32>
    %387 = arith.addf %383, %386 : vector<8x32xf32>
    %388 = arith.negf %387 : vector<8x32xf32>
    %389 = math.exp %388 : vector<8x32xf32>
    %cst_281 = arith.constant 1.000000e+00 : f32
    %390 = vector.broadcast %cst_281 : f32 to vector<8x32xf32>
    %391 = arith.addf %390, %389 : vector<8x32xf32>
    %392 = arith.divf %390, %391 : vector<8x32xf32>
    %c2_282 = arith.constant 2 : index
    %c0_283 = arith.constant 0 : index
    %c0_284 = arith.constant 0 : index
    %393 = vector.load %arg5[%c2_282, %c0_283, %c0_284] : memref<4x32x32xbf16, #tpu.memory_space<vmem>>, vector<1x32x32xbf16>
    %394 = vector.shape_cast %393 : vector<1x32x32xbf16> to vector<32x32xbf16>
    %cst_285 = arith.constant dense<0.000000e+00> : vector<8x32xf32>
    %395 = tpu.matmul %359, %394, %cst_285 {dimension_numbers = #tpu.dot_dimension_numbers<[1], [0], [0], [1], [0, 0, 1, 1], [], []>} : vector<8x32xbf16>, vector<32x32xbf16>, vector<8x32xf32> -> vector<8x32xf32>
    %c2_286 = arith.constant 2 : index
    %c0_287 = arith.constant 0 : index
    %c0_288 = arith.constant 0 : index
    %396 = vector.load %arg6[%c2_286, %c0_287, %c0_288] : memref<4x32x32xbf16, #tpu.memory_space<vmem>>, vector<1x32x32xbf16>
    %397 = vector.shape_cast %396 : vector<1x32x32xbf16> to vector<32x32xbf16>
    %cst_289 = arith.constant dense<0.000000e+00> : vector<8x32xf32>
    %398 = tpu.matmul %360, %397, %cst_289 {dimension_numbers = #tpu.dot_dimension_numbers<[1], [0], [0], [1], [0, 0, 1, 1], [], []>} : vector<8x32xbf16>, vector<32x32xbf16>, vector<8x32xf32> -> vector<8x32xf32>
    %399 = arith.addf %395, %398 : vector<8x32xf32>
    %c2_290 = arith.constant 2 : index
    %c0_291 = arith.constant 0 : index
    %c0_292 = arith.constant 0 : index
    %400 = vector.load %arg7[%c2_290, %c0_291, %c0_292] : memref<4x1x32xf32, #tpu.memory_space<vmem>>, vector<1x1x32xf32>
    %401 = vector.shape_cast %400 : vector<1x1x32xf32> to vector<1x32xf32>
    %402 = vector.broadcast %401 : vector<1x32xf32> to vector<8x32xf32>
    %403 = arith.addf %399, %402 : vector<8x32xf32>
    %404 = math.tanh %403 : vector<8x32xf32>
    %c3_293 = arith.constant 3 : index
    %c0_294 = arith.constant 0 : index
    %c0_295 = arith.constant 0 : index
    %405 = vector.load %arg5[%c3_293, %c0_294, %c0_295] : memref<4x32x32xbf16, #tpu.memory_space<vmem>>, vector<1x32x32xbf16>
    %406 = vector.shape_cast %405 : vector<1x32x32xbf16> to vector<32x32xbf16>
    %cst_296 = arith.constant dense<0.000000e+00> : vector<8x32xf32>
    %407 = tpu.matmul %359, %406, %cst_296 {dimension_numbers = #tpu.dot_dimension_numbers<[1], [0], [0], [1], [0, 0, 1, 1], [], []>} : vector<8x32xbf16>, vector<32x32xbf16>, vector<8x32xf32> -> vector<8x32xf32>
    %c3_297 = arith.constant 3 : index
    %c0_298 = arith.constant 0 : index
    %c0_299 = arith.constant 0 : index
    %408 = vector.load %arg6[%c3_297, %c0_298, %c0_299] : memref<4x32x32xbf16, #tpu.memory_space<vmem>>, vector<1x32x32xbf16>
    %409 = vector.shape_cast %408 : vector<1x32x32xbf16> to vector<32x32xbf16>
    %cst_300 = arith.constant dense<0.000000e+00> : vector<8x32xf32>
    %410 = tpu.matmul %360, %409, %cst_300 {dimension_numbers = #tpu.dot_dimension_numbers<[1], [0], [0], [1], [0, 0, 1, 1], [], []>} : vector<8x32xbf16>, vector<32x32xbf16>, vector<8x32xf32> -> vector<8x32xf32>
    %411 = arith.addf %407, %410 : vector<8x32xf32>
    %c3_301 = arith.constant 3 : index
    %c0_302 = arith.constant 0 : index
    %c0_303 = arith.constant 0 : index
    %412 = vector.load %arg7[%c3_301, %c0_302, %c0_303] : memref<4x1x32xf32, #tpu.memory_space<vmem>>, vector<1x1x32xf32>
    %413 = vector.shape_cast %412 : vector<1x1x32xf32> to vector<1x32xf32>
    %414 = vector.broadcast %413 : vector<1x32xf32> to vector<8x32xf32>
    %415 = arith.addf %411, %414 : vector<8x32xf32>
    %416 = arith.negf %415 : vector<8x32xf32>
    %417 = math.exp %416 : vector<8x32xf32>
    %cst_304 = arith.constant 1.000000e+00 : f32
    %418 = vector.broadcast %cst_304 : f32 to vector<8x32xf32>
    %419 = arith.addf %418, %417 : vector<8x32xf32>
    %420 = arith.divf %418, %419 : vector<8x32xf32>
    %421 = arith.mulf %392, %358 : vector<8x32xf32>
    %422 = arith.mulf %376, %404 : vector<8x32xf32>
    %423 = arith.addf %421, %422 : vector<8x32xf32>
    %424 = math.tanh %423 : vector<8x32xf32>
    %425 = arith.mulf %420, %424 : vector<8x32xf32>
    %c0_305 = arith.constant 0 : index
    %c0_306 = arith.constant 0 : index
    %426 = vector.load %arg12[%c0_305, %c0_306] : memref<8x32xf32, #tpu.memory_space<vmem>>, vector<8x32xf32>
    tpu.vector_store %arg12[%c0_305, %c0_306], %423 {strides = array<i32>} : memref<8x32xf32, #tpu.memory_space<vmem>>, vector<8x32xf32>,
    %c0_307 = arith.constant 0 : index
    %c0_308 = arith.constant 0 : index
    %427 = vector.load %arg11[%c0_307, %c0_308] : memref<8x32xf32, #tpu.memory_space<vmem>>, vector<8x32xf32>
    tpu.vector_store %arg11[%c0_307, %c0_308], %425 {strides = array<i32>} : memref<8x32xf32, #tpu.memory_space<vmem>>, vector<8x32xf32>,
    %428 = arith.index_cast %c2_i32 : i32 to index
    %c0_309 = arith.constant 0 : index
    %c0_310 = arith.constant 0 : index
    %429 = vector.load %arg8[%428, %c0_309, %c0_310] : memref<4x8x32xf32, #tpu.memory_space<vmem>>, vector<1x8x32xf32>
    %430 = vector.shape_cast %429 : vector<1x8x32xf32> to vector<8x32xf32>
    %431 = vector.shape_cast %425 : vector<8x32xf32> to vector<1x8x32xf32>
    tpu.vector_store %arg8[%428, %c0_309, %c0_310], %431 {strides = array<i32>} : memref<4x8x32xf32, #tpu.memory_space<vmem>>, vector<1x8x32xf32>,
    %c3_i32 = arith.constant 3 : i32
    %c8_i32_311 = arith.constant 8 : i32
    %432 = arith.muli %c3_i32, %c8_i32_311 : i32
    %433 = tpu.assume_multiple %432, 8 : i32
    %c0_312 = arith.constant 0 : index
    %c0_313 = arith.constant 0 : index
    %434 = vector.load %arg9[%c0_312, %c0_313] : memref<8x32xf32, #tpu.memory_space<vmem>>, vector<8x32xf32>
    %c0_314 = arith.constant 0 : index
    %c0_315 = arith.constant 0 : index
    %435 = vector.load %arg10[%c0_314, %c0_315] : memref<8x32xf32, #tpu.memory_space<vmem>>, vector<8x32xf32>
    %436 = arith.truncf %434 : vector<8x32xf32> to vector<8x32xbf16>
    %c0_316 = arith.constant 0 : index
    %437 = arith.index_cast %433 : i32 to index
    %c0_317 = arith.constant 0 : index
    %438 = vector.load %arg1[%c0_316, %437, %c0_317] : memref<4x32x32xf32, #tpu.memory_space<vmem>>, vector<1x8x32xf32>
    %439 = vector.shape_cast %438 : vector<1x8x32xf32> to vector<8x32xf32>
    %c0_318 = arith.constant 0 : index
    %c0_319 = arith.constant 0 : index
    %c0_320 = arith.constant 0 : index
    %440 = vector.load %arg13[%c0_318, %c0_319, %c0_320] : memref<4x8x32xf32, #tpu.memory_space<vmem>>, vector<1x8x32xf32>
    %441 = vector.shape_cast %440 : vector<1x8x32xf32> to vector<8x32xf32>
    %442 = arith.addf %439, %441 : vector<8x32xf32>
    %c0_321 = arith.constant 0 : index
    %c0_322 = arith.constant 0 : index
    %c0_323 = arith.constant 0 : index
    %443 = vector.load %arg4[%c0_321, %c0_322, %c0_323] : memref<4x32x32xbf16, #tpu.memory_space<vmem>>, vector<1x32x32xbf16>
    %444 = vector.shape_cast %443 : vector<1x32x32xbf16> to vector<32x32xbf16>
    %cst_324 = arith.constant dense<0.000000e+00> : vector<8x32xf32>
    %445 = tpu.matmul %436, %444, %cst_324 {dimension_numbers = #tpu.dot_dimension_numbers<[1], [0], [0], [1], [0, 0, 1, 1], [], []>} : vector<8x32xbf16>, vector<32x32xbf16>, vector<8x32xf32> -> vector<8x32xf32>
    %446 = arith.addf %442, %445 : vector<8x32xf32>
    %447 = arith.negf %446 : vector<8x32xf32>
    %448 = math.exp %447 : vector<8x32xf32>
    %cst_325 = arith.constant 1.000000e+00 : f32
    %449 = vector.broadcast %cst_325 : f32 to vector<8x32xf32>
    %450 = arith.addf %449, %448 : vector<8x32xf32>
    %451 = arith.divf %449, %450 : vector<8x32xf32>
    %c1_326 = arith.constant 1 : index
    %452 = arith.index_cast %433 : i32 to index
    %c0_327 = arith.constant 0 : index
    %453 = vector.load %arg1[%c1_326, %452, %c0_327] : memref<4x32x32xf32, #tpu.memory_space<vmem>>, vector<1x8x32xf32>
    %454 = vector.shape_cast %453 : vector<1x8x32xf32> to vector<8x32xf32>
    %c1_328 = arith.constant 1 : index
    %c0_329 = arith.constant 0 : index
    %c0_330 = arith.constant 0 : index
    %455 = vector.load %arg13[%c1_328, %c0_329, %c0_330] : memref<4x8x32xf32, #tpu.memory_space<vmem>>, vector<1x8x32xf32>
    %456 = vector.shape_cast %455 : vector<1x8x32xf32> to vector<8x32xf32>
    %457 = arith.addf %454, %456 : vector<8x32xf32>
    %c1_331 = arith.constant 1 : index
    %c0_332 = arith.constant 0 : index
    %c0_333 = arith.constant 0 : index
    %458 = vector.load %arg4[%c1_331, %c0_332, %c0_333] : memref<4x32x32xbf16, #tpu.memory_space<vmem>>, vector<1x32x32xbf16>
    %459 = vector.shape_cast %458 : vector<1x32x32xbf16> to vector<32x32xbf16>
    %cst_334 = arith.constant dense<0.000000e+00> : vector<8x32xf32>
    %460 = tpu.matmul %436, %459, %cst_334 {dimension_numbers = #tpu.dot_dimension_numbers<[1], [0], [0], [1], [0, 0, 1, 1], [], []>} : vector<8x32xbf16>, vector<32x32xbf16>, vector<8x32xf32> -> vector<8x32xf32>
    %461 = arith.addf %457, %460 : vector<8x32xf32>
    %462 = arith.negf %461 : vector<8x32xf32>
    %463 = math.exp %462 : vector<8x32xf32>
    %cst_335 = arith.constant 1.000000e+00 : f32
    %464 = vector.broadcast %cst_335 : f32 to vector<8x32xf32>
    %465 = arith.addf %464, %463 : vector<8x32xf32>
    %466 = arith.divf %464, %465 : vector<8x32xf32>
    %c2_336 = arith.constant 2 : index
    %467 = arith.index_cast %433 : i32 to index
    %c0_337 = arith.constant 0 : index
    %468 = vector.load %arg1[%c2_336, %467, %c0_337] : memref<4x32x32xf32, #tpu.memory_space<vmem>>, vector<1x8x32xf32>
    %469 = vector.shape_cast %468 : vector<1x8x32xf32> to vector<8x32xf32>
    %c2_338 = arith.constant 2 : index
    %c0_339 = arith.constant 0 : index
    %c0_340 = arith.constant 0 : index
    %470 = vector.load %arg13[%c2_338, %c0_339, %c0_340] : memref<4x8x32xf32, #tpu.memory_space<vmem>>, vector<1x8x32xf32>
    %471 = vector.shape_cast %470 : vector<1x8x32xf32> to vector<8x32xf32>
    %472 = arith.addf %469, %471 : vector<8x32xf32>
    %c2_341 = arith.constant 2 : index
    %c0_342 = arith.constant 0 : index
    %c0_343 = arith.constant 0 : index
    %473 = vector.load %arg4[%c2_341, %c0_342, %c0_343] : memref<4x32x32xbf16, #tpu.memory_space<vmem>>, vector<1x32x32xbf16>
    %474 = vector.shape_cast %473 : vector<1x32x32xbf16> to vector<32x32xbf16>
    %cst_344 = arith.constant dense<0.000000e+00> : vector<8x32xf32>
    %475 = tpu.matmul %436, %474, %cst_344 {dimension_numbers = #tpu.dot_dimension_numbers<[1], [0], [0], [1], [0, 0, 1, 1], [], []>} : vector<8x32xbf16>, vector<32x32xbf16>, vector<8x32xf32> -> vector<8x32xf32>
    %476 = arith.addf %472, %475 : vector<8x32xf32>
    %477 = math.tanh %476 : vector<8x32xf32>
    %c3_345 = arith.constant 3 : index
    %478 = arith.index_cast %433 : i32 to index
    %c0_346 = arith.constant 0 : index
    %479 = vector.load %arg1[%c3_345, %478, %c0_346] : memref<4x32x32xf32, #tpu.memory_space<vmem>>, vector<1x8x32xf32>
    %480 = vector.shape_cast %479 : vector<1x8x32xf32> to vector<8x32xf32>
    %c3_347 = arith.constant 3 : index
    %c0_348 = arith.constant 0 : index
    %c0_349 = arith.constant 0 : index
    %481 = vector.load %arg13[%c3_347, %c0_348, %c0_349] : memref<4x8x32xf32, #tpu.memory_space<vmem>>, vector<1x8x32xf32>
    %482 = vector.shape_cast %481 : vector<1x8x32xf32> to vector<8x32xf32>
    %483 = arith.addf %480, %482 : vector<8x32xf32>
    %c3_350 = arith.constant 3 : index
    %c0_351 = arith.constant 0 : index
    %c0_352 = arith.constant 0 : index
    %484 = vector.load %arg4[%c3_350, %c0_351, %c0_352] : memref<4x32x32xbf16, #tpu.memory_space<vmem>>, vector<1x32x32xbf16>
    %485 = vector.shape_cast %484 : vector<1x32x32xbf16> to vector<32x32xbf16>
    %cst_353 = arith.constant dense<0.000000e+00> : vector<8x32xf32>
    %486 = tpu.matmul %436, %485, %cst_353 {dimension_numbers = #tpu.dot_dimension_numbers<[1], [0], [0], [1], [0, 0, 1, 1], [], []>} : vector<8x32xbf16>, vector<32x32xbf16>, vector<8x32xf32> -> vector<8x32xf32>
    %487 = arith.addf %483, %486 : vector<8x32xf32>
    %488 = arith.negf %487 : vector<8x32xf32>
    %489 = math.exp %488 : vector<8x32xf32>
    %cst_354 = arith.constant 1.000000e+00 : f32
    %490 = vector.broadcast %cst_354 : f32 to vector<8x32xf32>
    %491 = arith.addf %490, %489 : vector<8x32xf32>
    %492 = arith.divf %490, %491 : vector<8x32xf32>
    %493 = arith.mulf %466, %435 : vector<8x32xf32>
    %494 = arith.mulf %451, %477 : vector<8x32xf32>
    %495 = arith.addf %493, %494 : vector<8x32xf32>
    %496 = math.tanh %495 : vector<8x32xf32>
    %497 = arith.mulf %492, %496 : vector<8x32xf32>
    %c0_355 = arith.constant 0 : index
    %c0_356 = arith.constant 0 : index
    %498 = vector.load %arg10[%c0_355, %c0_356] : memref<8x32xf32, #tpu.memory_space<vmem>>, vector<8x32xf32>
    tpu.vector_store %arg10[%c0_355, %c0_356], %495 {strides = array<i32>} : memref<8x32xf32, #tpu.memory_space<vmem>>, vector<8x32xf32>,
    %c0_357 = arith.constant 0 : index
    %c0_358 = arith.constant 0 : index
    %499 = vector.load %arg9[%c0_357, %c0_358] : memref<8x32xf32, #tpu.memory_space<vmem>>, vector<8x32xf32>
    tpu.vector_store %arg9[%c0_357, %c0_358], %497 {strides = array<i32>} : memref<8x32xf32, #tpu.memory_space<vmem>>, vector<8x32xf32>,
    %c0_359 = arith.constant 0 : index
    %c0_360 = arith.constant 0 : index
    %500 = vector.load %arg11[%c0_359, %c0_360] : memref<8x32xf32, #tpu.memory_space<vmem>>, vector<8x32xf32>
    %c0_361 = arith.constant 0 : index
    %c0_362 = arith.constant 0 : index
    %501 = vector.load %arg12[%c0_361, %c0_362] : memref<8x32xf32, #tpu.memory_space<vmem>>, vector<8x32xf32>
    %502 = arith.truncf %497 : vector<8x32xf32> to vector<8x32xbf16>
    %503 = arith.truncf %500 : vector<8x32xf32> to vector<8x32xbf16>
    %c0_363 = arith.constant 0 : index
    %c0_364 = arith.constant 0 : index
    %c0_365 = arith.constant 0 : index
    %504 = vector.load %arg5[%c0_363, %c0_364, %c0_365] : memref<4x32x32xbf16, #tpu.memory_space<vmem>>, vector<1x32x32xbf16>
    %505 = vector.shape_cast %504 : vector<1x32x32xbf16> to vector<32x32xbf16>
    %cst_366 = arith.constant dense<0.000000e+00> : vector<8x32xf32>
    %506 = tpu.matmul %502, %505, %cst_366 {dimension_numbers = #tpu.dot_dimension_numbers<[1], [0], [0], [1], [0, 0, 1, 1], [], []>} : vector<8x32xbf16>, vector<32x32xbf16>, vector<8x32xf32> -> vector<8x32xf32>
    %c0_367 = arith.constant 0 : index
    %c0_368 = arith.constant 0 : index
    %c0_369 = arith.constant 0 : index
    %507 = vector.load %arg6[%c0_367, %c0_368, %c0_369] : memref<4x32x32xbf16, #tpu.memory_space<vmem>>, vector<1x32x32xbf16>
    %508 = vector.shape_cast %507 : vector<1x32x32xbf16> to vector<32x32xbf16>
    %cst_370 = arith.constant dense<0.000000e+00> : vector<8x32xf32>
    %509 = tpu.matmul %503, %508, %cst_370 {dimension_numbers = #tpu.dot_dimension_numbers<[1], [0], [0], [1], [0, 0, 1, 1], [], []>} : vector<8x32xbf16>, vector<32x32xbf16>, vector<8x32xf32> -> vector<8x32xf32>
    %510 = arith.addf %506, %509 : vector<8x32xf32>
    %c0_371 = arith.constant 0 : index
    %c0_372 = arith.constant 0 : index
    %c0_373 = arith.constant 0 : index
    %511 = vector.load %arg7[%c0_371, %c0_372, %c0_373] : memref<4x1x32xf32, #tpu.memory_space<vmem>>, vector<1x1x32xf32>
    %512 = vector.shape_cast %511 : vector<1x1x32xf32> to vector<1x32xf32>
    %513 = vector.broadcast %512 : vector<1x32xf32> to vector<8x32xf32>
    %514 = arith.addf %510, %513 : vector<8x32xf32>
    %515 = arith.negf %514 : vector<8x32xf32>
    %516 = math.exp %515 : vector<8x32xf32>
    %cst_374 = arith.constant 1.000000e+00 : f32
    %517 = vector.broadcast %cst_374 : f32 to vector<8x32xf32>
    %518 = arith.addf %517, %516 : vector<8x32xf32>
    %519 = arith.divf %517, %518 : vector<8x32xf32>
    %c1_375 = arith.constant 1 : index
    %c0_376 = arith.constant 0 : index
    %c0_377 = arith.constant 0 : index
    %520 = vector.load %arg5[%c1_375, %c0_376, %c0_377] : memref<4x32x32xbf16, #tpu.memory_space<vmem>>, vector<1x32x32xbf16>
    %521 = vector.shape_cast %520 : vector<1x32x32xbf16> to vector<32x32xbf16>
    %cst_378 = arith.constant dense<0.000000e+00> : vector<8x32xf32>
    %522 = tpu.matmul %502, %521, %cst_378 {dimension_numbers = #tpu.dot_dimension_numbers<[1], [0], [0], [1], [0, 0, 1, 1], [], []>} : vector<8x32xbf16>, vector<32x32xbf16>, vector<8x32xf32> -> vector<8x32xf32>
    %c1_379 = arith.constant 1 : index
    %c0_380 = arith.constant 0 : index
    %c0_381 = arith.constant 0 : index
    %523 = vector.load %arg6[%c1_379, %c0_380, %c0_381] : memref<4x32x32xbf16, #tpu.memory_space<vmem>>, vector<1x32x32xbf16>
    %524 = vector.shape_cast %523 : vector<1x32x32xbf16> to vector<32x32xbf16>
    %cst_382 = arith.constant dense<0.000000e+00> : vector<8x32xf32>
    %525 = tpu.matmul %503, %524, %cst_382 {dimension_numbers = #tpu.dot_dimension_numbers<[1], [0], [0], [1], [0, 0, 1, 1], [], []>} : vector<8x32xbf16>, vector<32x32xbf16>, vector<8x32xf32> -> vector<8x32xf32>
    %526 = arith.addf %522, %525 : vector<8x32xf32>
    %c1_383 = arith.constant 1 : index
    %c0_384 = arith.constant 0 : index
    %c0_385 = arith.constant 0 : index
    %527 = vector.load %arg7[%c1_383, %c0_384, %c0_385] : memref<4x1x32xf32, #tpu.memory_space<vmem>>, vector<1x1x32xf32>
    %528 = vector.shape_cast %527 : vector<1x1x32xf32> to vector<1x32xf32>
    %529 = vector.broadcast %528 : vector<1x32xf32> to vector<8x32xf32>
    %530 = arith.addf %526, %529 : vector<8x32xf32>
    %531 = arith.negf %530 : vector<8x32xf32>
    %532 = math.exp %531 : vector<8x32xf32>
    %cst_386 = arith.constant 1.000000e+00 : f32
    %533 = vector.broadcast %cst_386 : f32 to vector<8x32xf32>
    %534 = arith.addf %533, %532 : vector<8x32xf32>
    %535 = arith.divf %533, %534 : vector<8x32xf32>
    %c2_387 = arith.constant 2 : index
    %c0_388 = arith.constant 0 : index
    %c0_389 = arith.constant 0 : index
    %536 = vector.load %arg5[%c2_387, %c0_388, %c0_389] : memref<4x32x32xbf16, #tpu.memory_space<vmem>>, vector<1x32x32xbf16>
    %537 = vector.shape_cast %536 : vector<1x32x32xbf16> to vector<32x32xbf16>
    %cst_390 = arith.constant dense<0.000000e+00> : vector<8x32xf32>
    %538 = tpu.matmul %502, %537, %cst_390 {dimension_numbers = #tpu.dot_dimension_numbers<[1], [0], [0], [1], [0, 0, 1, 1], [], []>} : vector<8x32xbf16>, vector<32x32xbf16>, vector<8x32xf32> -> vector<8x32xf32>
    %c2_391 = arith.constant 2 : index
    %c0_392 = arith.constant 0 : index
    %c0_393 = arith.constant 0 : index
    %539 = vector.load %arg6[%c2_391, %c0_392, %c0_393] : memref<4x32x32xbf16, #tpu.memory_space<vmem>>, vector<1x32x32xbf16>
    %540 = vector.shape_cast %539 : vector<1x32x32xbf16> to vector<32x32xbf16>
    %cst_394 = arith.constant dense<0.000000e+00> : vector<8x32xf32>
    %541 = tpu.matmul %503, %540, %cst_394 {dimension_numbers = #tpu.dot_dimension_numbers<[1], [0], [0], [1], [0, 0, 1, 1], [], []>} : vector<8x32xbf16>, vector<32x32xbf16>, vector<8x32xf32> -> vector<8x32xf32>
    %542 = arith.addf %538, %541 : vector<8x32xf32>
    %c2_395 = arith.constant 2 : index
    %c0_396 = arith.constant 0 : index
    %c0_397 = arith.constant 0 : index
    %543 = vector.load %arg7[%c2_395, %c0_396, %c0_397] : memref<4x1x32xf32, #tpu.memory_space<vmem>>, vector<1x1x32xf32>
    %544 = vector.shape_cast %543 : vector<1x1x32xf32> to vector<1x32xf32>
    %545 = vector.broadcast %544 : vector<1x32xf32> to vector<8x32xf32>
    %546 = arith.addf %542, %545 : vector<8x32xf32>
    %547 = math.tanh %546 : vector<8x32xf32>
    %c3_398 = arith.constant 3 : index
    %c0_399 = arith.constant 0 : index
    %c0_400 = arith.constant 0 : index
    %548 = vector.load %arg5[%c3_398, %c0_399, %c0_400] : memref<4x32x32xbf16, #tpu.memory_space<vmem>>, vector<1x32x32xbf16>
    %549 = vector.shape_cast %548 : vector<1x32x32xbf16> to vector<32x32xbf16>
    %cst_401 = arith.constant dense<0.000000e+00> : vector<8x32xf32>
    %550 = tpu.matmul %502, %549, %cst_401 {dimension_numbers = #tpu.dot_dimension_numbers<[1], [0], [0], [1], [0, 0, 1, 1], [], []>} : vector<8x32xbf16>, vector<32x32xbf16>, vector<8x32xf32> -> vector<8x32xf32>
    %c3_402 = arith.constant 3 : index
    %c0_403 = arith.constant 0 : index
    %c0_404 = arith.constant 0 : index
    %551 = vector.load %arg6[%c3_402, %c0_403, %c0_404] : memref<4x32x32xbf16, #tpu.memory_space<vmem>>, vector<1x32x32xbf16>
    %552 = vector.shape_cast %551 : vector<1x32x32xbf16> to vector<32x32xbf16>
    %cst_405 = arith.constant dense<0.000000e+00> : vector<8x32xf32>
    %553 = tpu.matmul %503, %552, %cst_405 {dimension_numbers = #tpu.dot_dimension_numbers<[1], [0], [0], [1], [0, 0, 1, 1], [], []>} : vector<8x32xbf16>, vector<32x32xbf16>, vector<8x32xf32> -> vector<8x32xf32>
    %554 = arith.addf %550, %553 : vector<8x32xf32>
    %c3_406 = arith.constant 3 : index
    %c0_407 = arith.constant 0 : index
    %c0_408 = arith.constant 0 : index
    %555 = vector.load %arg7[%c3_406, %c0_407, %c0_408] : memref<4x1x32xf32, #tpu.memory_space<vmem>>, vector<1x1x32xf32>
    %556 = vector.shape_cast %555 : vector<1x1x32xf32> to vector<1x32xf32>
    %557 = vector.broadcast %556 : vector<1x32xf32> to vector<8x32xf32>
    %558 = arith.addf %554, %557 : vector<8x32xf32>
    %559 = arith.negf %558 : vector<8x32xf32>
    %560 = math.exp %559 : vector<8x32xf32>
    %cst_409 = arith.constant 1.000000e+00 : f32
    %561 = vector.broadcast %cst_409 : f32 to vector<8x32xf32>
    %562 = arith.addf %561, %560 : vector<8x32xf32>
    %563 = arith.divf %561, %562 : vector<8x32xf32>
    %564 = arith.mulf %535, %501 : vector<8x32xf32>
    %565 = arith.mulf %519, %547 : vector<8x32xf32>
    %566 = arith.addf %564, %565 : vector<8x32xf32>
    %567 = math.tanh %566 : vector<8x32xf32>
    %568 = arith.mulf %563, %567 : vector<8x32xf32>
    %c0_410 = arith.constant 0 : index
    %c0_411 = arith.constant 0 : index
    %569 = vector.load %arg12[%c0_410, %c0_411] : memref<8x32xf32, #tpu.memory_space<vmem>>, vector<8x32xf32>
    tpu.vector_store %arg12[%c0_410, %c0_411], %566 {strides = array<i32>} : memref<8x32xf32, #tpu.memory_space<vmem>>, vector<8x32xf32>,
    %c0_412 = arith.constant 0 : index
    %c0_413 = arith.constant 0 : index
    %570 = vector.load %arg11[%c0_412, %c0_413] : memref<8x32xf32, #tpu.memory_space<vmem>>, vector<8x32xf32>
    tpu.vector_store %arg11[%c0_412, %c0_413], %568 {strides = array<i32>} : memref<8x32xf32, #tpu.memory_space<vmem>>, vector<8x32xf32>,
    %571 = arith.index_cast %c3_i32 : i32 to index
    %c0_414 = arith.constant 0 : index
    %c0_415 = arith.constant 0 : index
    %572 = vector.load %arg8[%571, %c0_414, %c0_415] : memref<4x8x32xf32, #tpu.memory_space<vmem>>, vector<1x8x32xf32>
    %573 = vector.shape_cast %572 : vector<1x8x32xf32> to vector<8x32xf32>
    %574 = vector.shape_cast %568 : vector<8x32xf32> to vector<1x8x32xf32>
    tpu.vector_store %arg8[%571, %c0_414, %c0_415], %574 {strides = array<i32>} : memref<4x8x32xf32, #tpu.memory_space<vmem>>, vector<1x8x32xf32>,
    %c4_i32 = arith.constant 4 : i32
    return
  }
  func.func @transform_0(%arg0: i32) -> (i32, i32, i32) {
    %c0_i32 = arith.constant 0 : i32
    %c0_i32_0 = arith.constant 0 : i32
    %c0_i32_1 = arith.constant 0 : i32
    return %c0_i32, %arg0, %c0_i32_0 : i32, i32, i32
  }
  func.func @transform_1(%arg0: i32) -> (i32, i32) {
    %c0_i32 = arith.constant 0 : i32
    %c0_i32_0 = arith.constant 0 : i32
    %c0_i32_1 = arith.constant 0 : i32
    return %c0_i32, %c0_i32_0 : i32, i32
  }
  func.func @transform_2(%arg0: i32) -> (i32, i32, i32) {
    %c0_i32 = arith.constant 0 : i32
    %c0_i32_0 = arith.constant 0 : i32
    %c0_i32_1 = arith.constant 0 : i32
    %c0_i32_2 = arith.constant 0 : i32
    return %c0_i32, %c0_i32_0, %c0_i32_1 : i32, i32, i32
  }
  func.func @transform_3(%arg0: i32) -> (i32, i32, i32) {
    %c0_i32 = arith.constant 0 : i32
    %c0_i32_0 = arith.constant 0 : i32
    %c0_i32_1 = arith.constant 0 : i32
    %c0_i32_2 = arith.constant 0 : i32
    return %c0_i32, %c0_i32_0, %c0_i32_1 : i32, i32, i32
  }
  func.func @transform_4(%arg0: i32) -> (i32, i32, i32) {
    %c0_i32 = arith.constant 0 : i32
    %c0_i32_0 = arith.constant 0 : i32
    %c0_i32_1 = arith.constant 0 : i32
    %c0_i32_2 = arith.constant 0 : i32
    return %c0_i32, %c0_i32_0, %c0_i32_1 : i32, i32, i32
  }
  func.func @transform_5(%arg0: i32) -> (i32, i32, i32) {
    %c0_i32 = arith.constant 0 : i32
    %c0_i32_0 = arith.constant 0 : i32
    %c0_i32_1 = arith.constant 0 : i32
    %c0_i32_2 = arith.constant 0 : i32
    return %c0_i32, %c0_i32_0, %c0_i32_1 : i32, i32, i32
  }
  func.func @transform_6(%arg0: i32) -> (i32, i32, i32) {
    %c0_i32 = arith.constant 0 : i32
    %c0_i32_0 = arith.constant 0 : i32
    %c0_i32_1 = arith.constant 0 : i32
    %c0_i32_2 = arith.constant 0 : i32
    return %c0_i32, %c0_i32_0, %c0_i32_1 : i32, i32, i32
  }
  func.func @transform_7(%arg0: i32) -> (i32, i32, i32) {
    %c0_i32 = arith.constant 0 : i32
    %c0_i32_0 = arith.constant 0 : i32
    %c0_i32_1 = arith.constant 0 : i32
    return %arg0, %c0_i32, %c0_i32_0 : i32, i32, i32
  }
}

</mosaic_0001>

<llo_original>
// kernel: captions_lstm2_forward.7
$region0: #{captions_lstm2_forward.7}
  #allocation0 [shape = 'u32[]', space=smem, size = 0x4, offset = 0x4, fixed_abs, tag = 'smem constant byte address 0x4 - core index']
  #allocation1 [shape = 'u32[144,128]{1,0:T(1,128)}', space=vmem, size = 0x12000, scoped, tag = 'internal scratch']
  %s0 = inlined_call_operand.vmem [shape: f32[64,32], index: 0, kind: input, shape index: {}]
  %s1 = inlined_call_operand.vmem [shape: bf16[32,128], index: 1, kind: input, shape index: {}]
  %s2 = inlined_call_operand.vmem [shape: f32[1,128], index: 2, kind: input, shape index: {}]
  %s3 = inlined_call_operand.vmem [shape: f32[64,128], index: 3, kind: output, shape index: {}]
  %s4 = sld [smem:[#allocation0]]
  $region22: #{captions_lstm2_forward.7} parent=0
    _
  %s6 = ssub.s32 1, %s4
  %s7 = scalar_select 0, %s6, %s4
  // Predicated region
  $region2: #{captions_lstm2_forward.7} parent=0 // pred_check
    _
  $region3: #{captions_lstm2_forward.7} parent=0 // pred_check_branch
    %9 = sbr.rel (0) target = $region5
  $region4: #{captions_lstm2_forward.7} parent=0 // pred_region
    _
  $region5: #{captions_lstm2_forward.7} parent=0 // pred_fallthru
    _
  // Predicated region
  $region6: #{captions_lstm2_forward.7} parent=0 // pred_check
    _
  $region7: #{captions_lstm2_forward.7} parent=0 // pred_check_branch
    %11 = sbr.rel (0) target = $region9
  $region8: #{captions_lstm2_forward.7} parent=0 // pred_region
    _
  $region9: #{captions_lstm2_forward.7} parent=0 // pred_fallthru
    _
  // Predicated region
  $region10: #{captions_lstm2_forward.7} parent=0 // pred_check
    _
  $region11: #{captions_lstm2_forward.7} parent=0 // pred_check_branch
    %13 = sbr.rel (0) target = $region13
  $region12: #{captions_lstm2_forward.7} parent=0 // pred_region
    _
  $region13: #{captions_lstm2_forward.7} parent=0 // pred_fallthru
    _
  %v15 = vld [vmem:[%s0] sm:$0xff]
  %v16 = vld [vmem:[%s0 + $0x8] sm:$0xff]
  %v17 = vld [vmem:[%s0 + $0x10] sm:$0xff]
  %v18 = vld [vmem:[%s0 + $0x18] sm:$0xff]
  %v19 = vld [vmem:[%s0 + $0x20] sm:$0xff]
  %v20 = vld [vmem:[%s0 + $0x28] sm:$0xff]
  %v21 = vld [vmem:[%s0 + $0x30] sm:$0xff]
  %v22 = vld [vmem:[%s0 + $0x38] sm:$0xff]
  %v23 = vpack.c.bf16 %v16, %v15
  %v24 = vpack.c.bf16 %v18, %v17
  %v25 = vpack.c.bf16 %v20, %v19
  %v26 = vpack.c.bf16 %v22, %v21
  %v27 = vld [vmem:[%s1] sm:$0xf]
  %v28 = vld [vmem:[%s1 + $0x4] sm:$0xf]
  %v29 = vld [vmem:[%s1 + $0x8] sm:$0xf]
  %v30 = vld [vmem:[%s1 + $0xc] sm:$0xf]
  %v31 = vld [vmem:[%s2] sm:$0x1]
  %v33 = vlaneseq
  %v34 = vshrl.u32 %v33, 7
  %v35 = vsub.s32 0, %v34
  %v36 = vrot.slane %v31, %v35
  %v42 = vunpack.c.l.b16 %v27
  %v43 = vunpack.c.l.b16 %v28
  %v44 = vunpack.c.l.b16 %v29
  %v45 = vunpack.c.l.b16 %v30
  %v46 = vpack.c.b16 %v43, %v42
  %v47 = vpack.c.b16 %v45, %v44
  %vm50 = vcmask 261120
  %v52 = vsel %vm50, %v23, 0
  %v55 = vsel %vm50, %v24, 0
  %v58 = vsel %vm50, %v25, 0
  %v61 = vsel %vm50, %v26, 0
  %63 = vmatprep.subr.bf16.mxu0 0
  %64 = vmatpush1.bf16.msra.mxu0 %v46
  %65 = vmatprep.subr.bf16.mxu0 0
  %66 = vmatpush1.bf16.msra.mxu0 %v47
  %67 = vmatprep.subr.bf16.mxu0 0
  %68 = vmatpush1.bf16.msra.mxu0 0
  %69 = vmatprep.subr.bf16.mxu0 0
  %70 = vmatpush1.bf16.msra.mxu0 0
  %71 = vmatprep.subr.bf16.mxu0 0
  %72 = vmatpush1.bf16.msra.mxu0 0
  %73 = vmatprep.subr.bf16.mxu0 0
  %74 = vmatpush1.bf16.msra.mxu0 0
  %75 = vmatprep.subr.bf16.mxu0 0
  %76 = vmatpush1.bf16.msra.mxu0 0
  %77 = vmatprep.subr.bf16.mxu0 0
  %78 = vmatpush1.bf16.msra.mxu0 0
  %79 = vmatprep.subr.bf16.mxu0 0
  %80 = vmatpush1.bf16.msra.mxu0 0
  %81 = vmatprep.subr.bf16.mxu0 0
  %82 = vmatpush1.bf16.msra.mxu0 0
  %83 = vmatprep.subr.bf16.mxu0 0
  %84 = vmatpush1.bf16.msra.mxu0 0
  %85 = vmatprep.subr.bf16.mxu0 0
  %86 = vmatpush1.bf16.msra.mxu0 0
  %87 = vmatprep.subr.bf16.mxu0 0
  %88 = vmatpush1.bf16.msra.mxu0 0
  %89 = vmatprep.subr.bf16.mxu0 0
  %90 = vmatpush1.bf16.msra.mxu0 0
  %91 = vmatprep.subr.bf16.mxu0 0
  %92 = vmatpush1.bf16.msra.mxu0 0
  %93 = vmatprep.subr.bf16.mxu0 0
  %94 = vmatpush1.bf16.msra.mxu0 0
  %95 = vmatprep.mubr.bf16.mxu0 0
  %96 = vmatmul.mubr.bf16.gmra.mrb[0].mxu0 %v52
  %v97 = vpop.f32.mrb[0].mxu0
  %v98 = vadd.f32 %v36, %v97
  %v99 = vpop.f32.mrb[0].mxu0
  %v100 = vpop.f32.mrb[0].mxu0
  %v101 = vadd.f32 %v36, %v100
  %v102 = vpop.f32.mrb[0].mxu0
  %103 = vmatprep.mubr.bf16.mxu0 0
  %104 = vmatmul.mubr.bf16.gmra.mrb[0].mxu0 %v55
  %v105 = vpop.f32.mrb[0].mxu0
  %v106 = vadd.f32 %v36, %v105
  %v107 = vpop.f32.mrb[0].mxu0
  %v108 = vpop.f32.mrb[0].mxu0
  %v109 = vadd.f32 %v36, %v108
  %v110 = vpop.f32.mrb[0].mxu0
  %111 = vmatprep.mubr.bf16.mxu0 0
  %112 = vmatmul.mubr.bf16.gmra.mrb[0].mxu0 %v58
  %v113 = vpop.f32.mrb[0].mxu0
  %v114 = vadd.f32 %v36, %v113
  %v115 = vpop.f32.mrb[0].mxu0
  %v116 = vpop.f32.mrb[0].mxu0
  %v117 = vadd.f32 %v36, %v116
  %v118 = vpop.f32.mrb[0].mxu0
  %119 = vmatprep.mubr.bf16.mxu0 0
  %120 = vmatmul.mubr.bf16.gmra.mrb[0].mxu0 %v61
  %v121 = vpop.f32.mrb[0].mxu0
  %v122 = vadd.f32 %v36, %v121
  %v123 = vpop.f32.mrb[0].mxu0
  %v124 = vpop.f32.mrb[0].mxu0
  %v125 = vadd.f32 %v36, %v124
  %v126 = vpop.f32.mrb[0].mxu0
  %127 = vdwg.mxu0
  %128 = vst [vmem:[%s3] sm:$0xff] %v98
  %129 = vst [vmem:[%s3 + $0x8] sm:$0xff] %v101
  %130 = vst [vmem:[%s3 + $0x10] sm:$0xff] %v106
  %131 = vst [vmem:[%s3 + $0x18] sm:$0xff] %v109
  %132 = vst [vmem:[%s3 + $0x20] sm:$0xff] %v114
  %133 = vst [vmem:[%s3 + $0x28] sm:$0xff] %v117
  %134 = vst [vmem:[%s3 + $0x30] sm:$0xff] %v122
  %135 = vst [vmem:[%s3 + $0x38] sm:$0xff] %v125
  // Predicated region
  $region14: #{captions_lstm2_forward.7} parent=0 // pred_check
    _
  $region15: #{captions_lstm2_forward.7} parent=0 // pred_check_branch
    %137 = sbr.rel (0) target = $region17
  $region16: #{captions_lstm2_forward.7} parent=0 // pred_region
    _
  $region17: #{captions_lstm2_forward.7} parent=0 // pred_fallthru
    _
  // Predicated region
  $region18: #{captions_lstm2_forward.7} parent=0 // pred_check
    _
  $region19: #{captions_lstm2_forward.7} parent=0 // pred_check_branch
    %139 = sbr.rel (0) target = $region21
  $region20: #{captions_lstm2_forward.7} parent=0 // pred_region
    _
  $region21: #{captions_lstm2_forward.7} parent=0 // pred_fallthru
    _

// kernel: captions_lstm2_forward.5
$region0: #{captions_lstm2_forward.5}
  #allocation0 [shape = 'u32[]', space=smem, size = 0x4, offset = 0x4, fixed_abs, tag = 'smem constant byte address 0x4 - core index']
  #allocation1 [shape = 'u32[144,128]{1,0:T(1,128)}', space=vmem, size = 0x12000, scoped, tag = 'internal scratch']
  %s0 = inlined_call_operand.vmem [shape: f32[96,32], index: 0, kind: input, shape index: {}]
  %s1 = inlined_call_operand.vmem [shape: bf16[32,128], index: 1, kind: input, shape index: {}]
  %s2 = inlined_call_operand.vmem [shape: f32[1,128], index: 2, kind: input, shape index: {}]
  %s3 = inlined_call_operand.vmem [shape: f32[4,96,32], index: 3, kind: output, shape index: {}]
  %s4 = sld [smem:[#allocation0]]
  $region79: #{captions_lstm2_forward.5} parent=0
    _
  %s6 = ssub.s32 1, %s4
  %s7 = scalar_select 0, %s6, %s4
  $region1: #{captions_lstm2_forward.5} parent=0
    #allocation2 [shape = 'u8[131072]{0}', space=vmem, size = 0x20000, scoped, tag = 'output window, operand 0']
    loop: start=0, step=1, limit=5
    $region2: #{captions_lstm2_forward.5} parent=1 // loop_pre_header
      _
    $region3: #{captions_lstm2_forward.5} parent=1 // loop_header
      %s9 = sphi 0, %s13
      %p10 = scmp.ge.s32.totalorder %s9, 5
      %s19 = sphi 0, %s21
      %s22 = sphi 0, %s19
      %s23 = sphi 0, %s22
      %s39 = sphi 0, %s23
      %s43 = sphi 0, %s43
      %s45 = sphi 0, %s43
      %s46 = sphi 0, %s45
      %s60 = sphi 0, %s46
      %s64 = sphi 0, %s64
      %s66 = sphi 0, %s64
      %s67 = sphi 0, %s66
      %s81 = sphi 0, %s67
      %s87 = sphi 0, %s89
      %s90 = sphi 0, %s87
      %s91 = sphi 0, %s90
      %s107 = sphi 0, %s91
    $region4: #{captions_lstm2_forward.5} parent=1 // loop_header_branch
      %12 = sbr.rel (%p10) target = $region8
    $region5: #{captions_lstm2_forward.5} parent=1 // loop_body
      %s14 = ssub.s32 %s9, 1
      %s15 = ssub.s32 %s9, 2
      %s16 = sadd.s32 %s9, 1
      %s17 = ssub.s32 %s9, %s16
      %p18 = scmp.eq.s32.totalorder %s17, 0
      %s20 = sadd.s32 %s19, 1
      %s21 = scalar_select %p18, %s19, %s20
      %p24 = pneg %p18
      %p25 = scmp.eq.s32.totalorder %s9, 2
      %p26 = por %p24, %p25
      %p27 = scmp.ne.s32.totalorder %s19, %s22
      %p28 = scmp.eq.s32.totalorder %s9, 0
      %p29 = por %p27, %p28
      %p30 = scmp.ne.s32.totalorder %s19, %s22
      %p31 = scmp.eq.s32.totalorder %s14, 2
      %p32 = por %p30, %p31
      %p33 = scmp.ne.s32.totalorder %s22, %s23
      %p34 = scmp.eq.s32.totalorder %s14, 0
      %p35 = por %p33, %p34
      %p36 = scmp.ne.s32.totalorder %s22, %s23
      %p37 = scmp.eq.s32.totalorder %s15, 2
      %p38 = por %p36, %p37
      %p40 = scmp.ne.s32.totalorder %s23, %s39
      %p41 = scmp.eq.s32.totalorder %s15, 0
      %p42 = por %p40, %p41
      %s44 = sadd.s32 %s43, 1
      %p47 = scmp.eq.s32.totalorder %s9, 2
      %p48 = scmp.ne.s32.totalorder %s43, %s45
      %p49 = scmp.eq.s32.totalorder %s9, 0
      %p50 = por %p48, %p49
      %p51 = scmp.ne.s32.totalorder %s43, %s45
      %p52 = scmp.eq.s32.totalorder %s14, 2
      %p53 = por %p51, %p52
      %p54 = scmp.ne.s32.totalorder %s45, %s46
      %p55 = scmp.eq.s32.totalorder %s14, 0
      %p56 = por %p54, %p55
      %p57 = scmp.ne.s32.totalorder %s45, %s46
      %p58 = scmp.eq.s32.totalorder %s15, 2
      %p59 = por %p57, %p58
      %p61 = scmp.ne.s32.totalorder %s46, %s60
      %p62 = scmp.eq.s32.totalorder %s15, 0
      %p63 = por %p61, %p62
      %s65 = sadd.s32 %s64, 1
      %p68 = scmp.eq.s32.totalorder %s9, 2
      %p69 = scmp.ne.s32.totalorder %s64, %s66
      %p70 = scmp.eq.s32.totalorder %s9, 0
      %p71 = por %p69, %p70
      %p72 = scmp.ne.s32.totalorder %s64, %s66
      %p73 = scmp.eq.s32.totalorder %s14, 2
      %p74 = por %p72, %p73
      %p75 = scmp.ne.s32.totalorder %s66, %s67
      %p76 = scmp.eq.s32.totalorder %s14, 0
      %p77 = por %p75, %p76
      %p78 = scmp.ne.s32.totalorder %s66, %s67
      %p79 = scmp.eq.s32.totalorder %s15, 2
      %p80 = por %p78, %p79
      %p82 = scmp.ne.s32.totalorder %s67, %s81
      %p83 = scmp.eq.s32.totalorder %s15, 0
      %p84 = por %p82, %p83
      %s85 = ssub.s32 %s9, %s16
      %p86 = scmp.eq.s32.totalorder %s85, 0
      %s88 = sadd.s32 %s87, 1
      %s89 = scalar_select %p86, %s87, %s88
      %p92 = pneg %p86
      %p93 = scmp.eq.s32.totalorder %s9, 2
      %p94 = por %p92, %p93
      %p95 = scmp.ne.s32.totalorder %s87, %s90
      %p96 = scmp.eq.s32.totalorder %s9, 0
      %p97 = por %p95, %p96
      %p98 = scmp.ne.s32.totalorder %s87, %s90
      %p99 = scmp.eq.s32.totalorder %s14, 2
      %p100 = por %p98, %p99
      %p101 = scmp.ne.s32.totalorder %s90, %s91
      %p102 = scmp.eq.s32.totalorder %s14, 0
      %p103 = por %p101, %p102
      %p104 = scmp.ne.s32.totalorder %s90, %s91
      %p105 = scmp.eq.s32.totalorder %s15, 2
      %p106 = por %p104, %p105
      %p108 = scmp.ne.s32.totalorder %s91, %s107
      %p109 = scmp.eq.s32.totalorder %s15, 0
      %p110 = por %p108, %p109
      %p111 = scmp.le.s32.totalorder 1, %s9
      %p112 = scmp.lt.s32.totalorder %s9, 4
      %p113 = pnand %p111, %p112
      %p114 = pneg %p113
      // Predicated region
      $region9: #{captions_lstm2_forward.5} parent=5 // pred_check
        _
      $region10: #{captions_lstm2_forward.5} parent=5 // pred_check_branch
        %116 = sbr.rel (%p113) target = $region12
      $region11: #{captions_lstm2_forward.5} parent=5 // pred_region
        %s117 = ssub.s32 %s9, 1
        // Predicated region
        $region13: #{captions_lstm2_forward.5} parent=11 // pred_check
          %p118 = pneg %p56
        $region14: #{captions_lstm2_forward.5} parent=11 // pred_check_branch
          %120 = sbr.rel (%p118) target = $region16
        $region15: #{captions_lstm2_forward.5} parent=11 // pred_region
          _
        $region16: #{captions_lstm2_forward.5} parent=11 // pred_fallthru
          _
        // Predicated region
        $region17: #{captions_lstm2_forward.5} parent=11 // pred_check
          %p121 = pneg %p77
        $region18: #{captions_lstm2_forward.5} parent=11 // pred_check_branch
          %123 = sbr.rel (%p121) target = $region20
        $region19: #{captions_lstm2_forward.5} parent=11 // pred_region
          _
        $region20: #{captions_lstm2_forward.5} parent=11 // pred_fallthru
          _
      $region12: #{captions_lstm2_forward.5} parent=5 // pred_fallthru
        _
      %p124 = scmp.lt.s32.totalorder %s9, 3
      // Predicated region
      $region21: #{captions_lstm2_forward.5} parent=5 // pred_check
        %p125 = pneg %p124
      $region22: #{captions_lstm2_forward.5} parent=5 // pred_check_branch
        %127 = sbr.rel (%p125) target = $region24
      $region23: #{captions_lstm2_forward.5} parent=5 // pred_region
        // Predicated region
        $region25: #{captions_lstm2_forward.5} parent=23 // pred_check
          %p128 = pneg %p29
        $region26: #{captions_lstm2_forward.5} parent=23 // pred_check_branch
          %130 = sbr.rel (%p128) target = $region28
        $region27: #{captions_lstm2_forward.5} parent=23 // pred_region
          %s131 = smul.u32 4, %s9
          %p132 = scmp.lt.s32.totalorder %s131, 11
          %s133 = scalar_select %p132, %s131, 11
          %s134 = smul.addr %s133, 8
          %s135 = scalar_lea.vmem %s0, %s134
          %s136 = smul.u32 4, %s9
        $region28: #{captions_lstm2_forward.5} parent=23 // pred_fallthru
          _
      $region24: #{captions_lstm2_forward.5} parent=5 // pred_fallthru
        _
      %p137 = scmp.le.s32.totalorder 1, %s9
      %p138 = scmp.lt.s32.totalorder %s9, 4
      %p139 = pnand %p137, %p138
      %p140 = pneg %p139
      // Predicated region
      $region29: #{captions_lstm2_forward.5} parent=5 // pred_check
        _
      $region30: #{captions_lstm2_forward.5} parent=5 // pred_check_branch
        %142 = sbr.rel (%p139) target = $region32
      $region31: #{captions_lstm2_forward.5} parent=5 // pred_region
        %s143 = ssub.s32 %s9, 1
        %s144 = smul.u32 4, %s14
        %p145 = scmp.lt.s32.totalorder %s144, 11
        %s146 = scalar_select %p145, %s144, 11
        %s147 = smul.addr %s146, 8
        %s148 = scalar_lea.vmem %s0, %s147
        %p149 = pneg %p35
        %p150 = pneg %p32
        %p151 = pneg %p56
        %p152 = pneg %p53
        %p153 = pneg %p77
        %p154 = pneg %p74
        %p155 = pneg %p103
        %p156 = pneg %p100
        %s157 = sand.u32 %s90, 1
        %s158 = sand.u32 %s90, 1
        %s159 = smul.addr %s158, 128
        %s160 = scalar_lea.vmem [#allocation2], %s159
        %s161 = smul.u32 4, %s14
        %p162 = scmp.lt.s32.totalorder %s161, 11
        %s163 = scalar_select %p162, %s161, 11
        %s164 = smul.addr %s163, 8
        %s165 = scalar_lea.vmem %s0, %s164
        %s166 = smul.u32 4, %s14
        %s167 = smul.u32 4, %s14
        %v169 = vld [vmem:[%s165] sm:$0xff]
        %v170 = vld [vmem:[%s165 + $0x8] sm:$0xff]
        %v171 = vld [vmem:[%s165 + $0x10] sm:$0xff]
        %v172 = vld [vmem:[%s165 + $0x18] sm:$0xff]
        %v173 = vpack.c.bf16 %v170, %v169
        %v174 = vpack.c.bf16 %v172, %v171
        %v175 = vld [vmem:[%s1] sm:$0xf]
        %v176 = vld [vmem:[%s1 + $0x4] sm:$0xf]
        %v177 = vld [vmem:[%s1 + $0x8] sm:$0xf]
        %v178 = vld [vmem:[%s1 + $0xc] sm:$0xf]
        %v179 = vld [vmem:[%s2] sm:$0x1]
        %v181 = vlaneseq
        %v182 = vshrl.u32 %v181, 7
        %v183 = vsub.s32 0, %v182
        %v184 = vrot.slane %v179, %v183
        %v190 = vunpack.c.l.b16 %v175
        %v191 = vunpack.c.l.b16 %v176
        %v192 = vunpack.c.l.b16 %v177
        %v193 = vunpack.c.l.b16 %v178
        %v194 = vpack.c.b16 %v191, %v190
        %v195 = vpack.c.b16 %v193, %v192
        %vm198 = vcmask 261120
        %v200 = vsel %vm198, %v173, 0
        %v203 = vsel %vm198, %v174, 0
        %205 = vmatprep.subr.bf16.mxu0 0
        %206 = vmatpush1.bf16.msra.mxu0 %v194
        %207 = vmatprep.subr.bf16.mxu0 0
        %208 = vmatpush1.bf16.msra.mxu0 %v195
        %209 = vmatprep.subr.bf16.mxu0 0
        %210 = vmatpush1.bf16.msra.mxu0 0
        %211 = vmatprep.subr.bf16.mxu0 0
        %212 = vmatpush1.bf16.msra.mxu0 0
        %213 = vmatprep.subr.bf16.mxu0 0
        %214 = vmatpush1.bf16.msra.mxu0 0
        %215 = vmatprep.subr.bf16.mxu0 0
        %216 = vmatpush1.bf16.msra.mxu0 0
        %217 = vmatprep.subr.bf16.mxu0 0
        %218 = vmatpush1.bf16.msra.mxu0 0
        %219 = vmatprep.subr.bf16.mxu0 0
        %220 = vmatpush1.bf16.msra.mxu0 0
        %221 = vmatprep.subr.bf16.mxu0 0
        %222 = vmatpush1.bf16.msra.mxu0 0
        %223 = vmatprep.subr.bf16.mxu0 0
        %224 = vmatpush1.bf16.msra.mxu0 0
        %225 = vmatprep.subr.bf16.mxu0 0
        %226 = vmatpush1.bf16.msra.mxu0 0
        %227 = vmatprep.subr.bf16.mxu0 0
        %228 = vmatpush1.bf16.msra.mxu0 0
        %229 = vmatprep.subr.bf16.mxu0 0
        %230 = vmatpush1.bf16.msra.mxu0 0
        %231 = vmatprep.subr.bf16.mxu0 0
        %232 = vmatpush1.bf16.msra.mxu0 0
        %233 = vmatprep.subr.bf16.mxu0 0
        %234 = vmatpush1.bf16.msra.mxu0 0
        %235 = vmatprep.subr.bf16.mxu0 0
        %236 = vmatpush1.bf16.msra.mxu0 0
        %237 = vmatprep.mubr.bf16.mxu0 0
        %238 = vmatmul.mubr.bf16.gmra.mrb[0].mxu0 %v200
        %v239 = vpop.f32.mrb[0].mxu0
        %v240 = vadd.f32 %v184, %v239
        %v241 = vpop.f32.mrb[0].mxu0
        %v242 = vpop.f32.mrb[0].mxu0
        %v243 = vadd.f32 %v184, %v242
        %v244 = vpop.f32.mrb[0].mxu0
        %245 = vmatprep.mubr.bf16.mxu0 0
        %246 = vmatmul.mubr.bf16.gmra.mrb[0].mxu0 %v203
        %v247 = vpop.f32.mrb[0].mxu0
        %v248 = vadd.f32 %v184, %v247
        %v249 = vpop.f32.mrb[0].mxu0
        %v250 = vpop.f32.mrb[0].mxu0
        %v251 = vadd.f32 %v184, %v250
        %v252 = vpop.f32.mrb[0].mxu0
        %253 = vdwg.mxu0
        %254 = vst.msk [vmem:[%s160] sm:$0xff] %vm198, %v240
        %255 = vst.msk [vmem:[%s160 + $0x8] sm:$0xff] %vm198, %v243
        %256 = vst.msk [vmem:[%s160 + $0x10] sm:$0xff] %vm198, %v248
        %257 = vst.msk [vmem:[%s160 + $0x18] sm:$0xff] %vm198, %v251
        %262 = vrot.lane.b32.xlu0 %v240, 96
        %v263 = vpop.permute.xlu0 %262
        %264 = vrot.lane.b32.xlu0 %v243, 96
        %v265 = vpop.permute.xlu0 %264
        %266 = vrot.lane.b32.xlu0 %v248, 96
        %v267 = vpop.permute.xlu0 %266
        %268 = vrot.lane.b32.xlu0 %v251, 96
        %v269 = vpop.permute.xlu0 %268
        %s274 = scalar_lea.vmem %s160, 32 [#allocation2]
        %275 = vst.msk [vmem:[%s274] sm:$0xff] %vm198, %v263
        %276 = vst.msk [vmem:[%s274 + $0x8] sm:$0xff] %vm198, %v265
        %277 = vst.msk [vmem:[%s274 + $0x10] sm:$0xff] %vm198, %v267
        %278 = vst.msk [vmem:[%s274 + $0x18] sm:$0xff] %vm198, %v269
        %279 = vrot.lane.b32.xlu0 %v240, 64
        %v280 = vpop.permute.xlu0 %279
        %281 = vrot.lane.b32.xlu0 %v243, 64
        %v282 = vpop.permute.xlu0 %281
        %283 = vrot.lane.b32.xlu0 %v248, 64
        %v284 = vpop.permute.xlu0 %283
        %285 = vrot.lane.b32.xlu0 %v251, 64
        %v286 = vpop.permute.xlu0 %285
        %s291 = scalar_lea.vmem %s160, 64 [#allocation2]
        %292 = vst.msk [vmem:[%s291] sm:$0xff] %vm198, %v280
        %293 = vst.msk [vmem:[%s291 + $0x8] sm:$0xff] %vm198, %v282
        %294 = vst.msk [vmem:[%s291 + $0x10] sm:$0xff] %vm198, %v284
        %295 = vst.msk [vmem:[%s291 + $0x18] sm:$0xff] %vm198, %v286
        %296 = vrot.lane.b32.xlu0 %v240, 32
        %v297 = vpop.permute.xlu0 %296
        %298 = vrot.lane.b32.xlu0 %v243, 32
        %v299 = vpop.permute.xlu0 %298
        %300 = vrot.lane.b32.xlu0 %v248, 32
        %v301 = vpop.permute.xlu0 %300
        %302 = vrot.lane.b32.xlu0 %v251, 32
        %v303 = vpop.permute.xlu0 %302
        %s308 = scalar_lea.vmem %s160, 96 [#allocation2]
        %309 = vst.msk [vmem:[%s308] sm:$0xff] %vm198, %v297
        %310 = vst.msk [vmem:[%s308 + $0x8] sm:$0xff] %vm198, %v299
        %311 = vst.msk [vmem:[%s308 + $0x10] sm:$0xff] %vm198, %v301
        %312 = vst.msk [vmem:[%s308 + $0x18] sm:$0xff] %vm198, %v303
        %s313 = sand.u32 %s90, 1
        %s314 = sand.u32 %s90, 1
        %s315 = smul.addr %s314, 128
        %s316 = scalar_lea.vmem [#allocation2], %s315
        // Predicated region
        $region33: #{captions_lstm2_forward.5} parent=31 // pred_check
          %p317 = pneg %p100
        $region34: #{captions_lstm2_forward.5} parent=31 // pred_check_branch
          %319 = sbr.rel (%p317) target = $region36
        $region35: #{captions_lstm2_forward.5} parent=31 // pred_region
          %s320 = smul.u32 4, %s14
          %s321 = smul.addr %s320, 8
          %s322 = scalar_lea.vmem %s3, %s321
          // Predicated region
          $region37: #{captions_lstm2_forward.5} parent=35 // pred_check
            _
          $region38: #{captions_lstm2_forward.5} parent=35 // pred_check_branch
            %324 = sbr.rel (0) target = $region40
          $region39: #{captions_lstm2_forward.5} parent=35 // pred_region
            // Predicated region
            $region41: #{captions_lstm2_forward.5} parent=39 // pred_check
              _
            $region42: #{captions_lstm2_forward.5} parent=39 // pred_check_branch
              %326 = sbr.rel (0) target = $region44
            $region43: #{captions_lstm2_forward.5} parent=39 // pred_region
              // Predicated region
              $region56: #{captions_lstm2_forward.5} parent=43 // pred_check
                _
              $region57: #{captions_lstm2_forward.5} parent=43 // pred_check_branch
                %371 = sbr.rel (0) target = $region59
              $region58: #{captions_lstm2_forward.5} parent=43 // pred_region
                loop: start=0, step=1, limit=1
                $region60: #{captions_lstm2_forward.5} parent=58 // loop_pre_header
                  _
                $region61: #{captions_lstm2_forward.5} parent=58 // loop_header
                  %s373 = sphi 0, %s377
                  %p374 = scmp.ge.s32.totalorder %s373, 1
                  %s378 = sphi %s316, %s316
                  %s379 = sphi %s322, %s322
                $region62: #{captions_lstm2_forward.5} parent=58 // loop_header_branch
                  %376 = sbr.rel (%p374) target = $region66
                $region63: #{captions_lstm2_forward.5} parent=58 // loop_body
                  %v380 = vld [vmem:[%s378] sm:$0xff]
                  %381 = vst [vmem:[%s379] sm:$0xff] %v380
                  %v382 = vld [vmem:[%s378 + $0x8] sm:$0xff]
                  %383 = vst [vmem:[%s379 + $0x8] sm:$0xff] %v382
                  %v384 = vld [vmem:[%s378 + $0x10] sm:$0xff]
                  %385 = vst [vmem:[%s379 + $0x10] sm:$0xff] %v384
                  %v386 = vld [vmem:[%s378 + $0x18] sm:$0xff]
                  %387 = vst [vmem:[%s379 + $0x18] sm:$0xff] %v386
                  %v388 = vld [vmem:[%s378 + $0x20] sm:$0xff]
                  %389 = vst [vmem:[%s379 + $0x60] sm:$0xff] %v388
                  %v390 = vld [vmem:[%s378 + $0x28] sm:$0xff]
                  %391 = vst [vmem:[%s379 + $0x68] sm:$0xff] %v390
                  %v392 = vld [vmem:[%s378 + $0x30] sm:$0xff]
                  %393 = vst [vmem:[%s379 + $0x70] sm:$0xff] %v392
                  %v394 = vld [vmem:[%s378 + $0x38] sm:$0xff]
                  %395 = vst [vmem:[%s379 + $0x78] sm:$0xff] %v394
                  %v396 = vld [vmem:[%s378 + $0x40] sm:$0xff]
                  %397 = vst [vmem:[%s379 + $0xc0] sm:$0xff] %v396
                  %v398 = vld [vmem:[%s378 + $0x48] sm:$0xff]
                  %399 = vst [vmem:[%s379 + $0xc8] sm:$0xff] %v398
                  %v400 = vld [vmem:[%s378 + $0x50] sm:$0xff]
                  %401 = vst [vmem:[%s379 + $0xd0] sm:$0xff] %v400
                  %v402 = vld [vmem:[%s378 + $0x58] sm:$0xff]
                  %403 = vst [vmem:[%s379 + $0xd8] sm:$0xff] %v402
                  %v404 = vld [vmem:[%s378 + $0x60] sm:$0xff]
                  %405 = vst [vmem:[%s379 + $0x120] sm:$0xff] %v404
                  %v406 = vld [vmem:[%s378 + $0x68] sm:$0xff]
                  %407 = vst [vmem:[%s379 + $0x128] sm:$0xff] %v406
                  %v408 = vld [vmem:[%s378 + $0x70] sm:$0xff]
                  %409 = vst [vmem:[%s379 + $0x130] sm:$0xff] %v408
                  %v410 = vld [vmem:[%s378 + $0x78] sm:$0xff]
                  %411 = vst [vmem:[%s379 + $0x138] sm:$0xff] %v410
                $region64: #{captions_lstm2_forward.5} parent=58 // loop_footer
                  %s377 = sadd.s32 1, %s373
                $region65: #{captions_lstm2_forward.5} parent=58 // loop_footer_branch
                  %372 = sbr.rel target = $region61
                $region66: #{captions_lstm2_forward.5} parent=58 // loop_exit
                  _
              $region59: #{captions_lstm2_forward.5} parent=43 // pred_fallthru
                _
              // Predicated region
              $region67: #{captions_lstm2_forward.5} parent=43 // pred_check
                _
              $region68: #{captions_lstm2_forward.5} parent=43 // pred_check_branch
                %413 = sbr.rel target = $region70
              $region69: #{captions_lstm2_forward.5} parent=43 // pred_region
                _
              $region70: #{captions_lstm2_forward.5} parent=43 // pred_fallthru
                _
            $region44: #{captions_lstm2_forward.5} parent=39 // pred_fallthru
              _
            // Predicated region
            $region45: #{captions_lstm2_forward.5} parent=39 // pred_check
              _
            $region46: #{captions_lstm2_forward.5} parent=39 // pred_check_branch
              %328 = sbr.rel target = $region48
            $region47: #{captions_lstm2_forward.5} parent=39 // pred_region
              loop: start=0, step=1, limit=1
              $region49: #{captions_lstm2_forward.5} parent=47 // loop_pre_header
                _
              $region50: #{captions_lstm2_forward.5} parent=47 // loop_header
                %s331 = sphi 0, %s335
                %p332 = scmp.ge.s32.totalorder %s331, 1
                %s336 = sphi %s316, %s316
                %s337 = sphi %s322, %s322
              $region51: #{captions_lstm2_forward.5} parent=47 // loop_header_branch
                %334 = sbr.rel (%p332) target = $region55
              $region52: #{captions_lstm2_forward.5} parent=47 // loop_body
                %v338 = vld [vmem:[%s336] sm:$0xff]
                %339 = vst [vmem:[%s337] sm:$0xff] %v338
                %v340 = vld [vmem:[%s336 + $0x8] sm:$0xff]
                %341 = vst [vmem:[%s337 + $0x8] sm:$0xff] %v340
                %v342 = vld [vmem:[%s336 + $0x10] sm:$0xff]
                %343 = vst [vmem:[%s337 + $0x10] sm:$0xff] %v342
                %v344 = vld [vmem:[%s336 + $0x18] sm:$0xff]
                %345 = vst [vmem:[%s337 + $0x18] sm:$0xff] %v344
                %v346 = vld [vmem:[%s336 + $0x20] sm:$0xff]
                %347 = vst [vmem:[%s337 + $0x60] sm:$0xff] %v346
                %v348 = vld [vmem:[%s336 + $0x28] sm:$0xff]
                %349 = vst [vmem:[%s337 + $0x68] sm:$0xff] %v348
                %v350 = vld [vmem:[%s336 + $0x30] sm:$0xff]
                %351 = vst [vmem:[%s337 + $0x70] sm:$0xff] %v350
                %v352 = vld [vmem:[%s336 + $0x38] sm:$0xff]
                %353 = vst [vmem:[%s337 + $0x78] sm:$0xff] %v352
                %v354 = vld [vmem:[%s336 + $0x40] sm:$0xff]
                %355 = vst [vmem:[%s337 + $0xc0] sm:$0xff] %v354
                %v356 = vld [vmem:[%s336 + $0x48] sm:$0xff]
                %357 = vst [vmem:[%s337 + $0xc8] sm:$0xff] %v356
                %v358 = vld [vmem:[%s336 + $0x50] sm:$0xff]
                %359 = vst [vmem:[%s337 + $0xd0] sm:$0xff] %v358
                %v360 = vld [vmem:[%s336 + $0x58] sm:$0xff]
                %361 = vst [vmem:[%s337 + $0xd8] sm:$0xff] %v360
                %v362 = vld [vmem:[%s336 + $0x60] sm:$0xff]
                %363 = vst [vmem:[%s337 + $0x120] sm:$0xff] %v362
                %v364 = vld [vmem:[%s336 + $0x68] sm:$0xff]
                %365 = vst [vmem:[%s337 + $0x128] sm:$0xff] %v364
                %v366 = vld [vmem:[%s336 + $0x70] sm:$0xff]
                %367 = vst [vmem:[%s337 + $0x130] sm:$0xff] %v366
                %v368 = vld [vmem:[%s336 + $0x78] sm:$0xff]
                %369 = vst [vmem:[%s337 + $0x138] sm:$0xff] %v368
              $region53: #{captions_lstm2_forward.5} parent=47 // loop_footer
                %s335 = sadd.s32 1, %s331
              $region54: #{captions_lstm2_forward.5} parent=47 // loop_footer_branch
                %330 = sbr.rel target = $region50
              $region55: #{captions_lstm2_forward.5} parent=47 // loop_exit
                _
            $region48: #{captions_lstm2_forward.5} parent=39 // pred_fallthru
              _
          $region40: #{captions_lstm2_forward.5} parent=35 // pred_fallthru
            _
          %414 = vnop
        $region36: #{captions_lstm2_forward.5} parent=31 // pred_fallthru
          _
      $region32: #{captions_lstm2_forward.5} parent=5 // pred_fallthru
        _
      %p415 = scmp.le.s32.totalorder 2, %s9
      // Predicated region
      $region71: #{captions_lstm2_forward.5} parent=5 // pred_check
        %p416 = pneg %p415
      $region72: #{captions_lstm2_forward.5} parent=5 // pred_check_branch
        %418 = sbr.rel (%p416) target = $region74
      $region73: #{captions_lstm2_forward.5} parent=5 // pred_region
        %s419 = ssub.s32 %s9, 2
        // Predicated region
        $region75: #{captions_lstm2_forward.5} parent=73 // pred_check
          %p420 = pneg %p106
        $region76: #{captions_lstm2_forward.5} parent=73 // pred_check_branch
          %422 = sbr.rel (%p420) target = $region78
        $region77: #{captions_lstm2_forward.5} parent=73 // pred_region
          %s423 = sand.u32 %s91, 1
          %s424 = sand.u32 %s91, 1
          %s425 = smul.addr %s424, 128
          %s426 = scalar_lea.vmem [#allocation2], %s425
        $region78: #{captions_lstm2_forward.5} parent=73 // pred_fallthru
          _
      $region74: #{captions_lstm2_forward.5} parent=5 // pred_fallthru
        _
    $region6: #{captions_lstm2_forward.5} parent=1 // loop_footer
      %s13 = sadd.s32 1, %s9
    $region7: #{captions_lstm2_forward.5} parent=1 // loop_footer_branch
      %8 = sbr.rel target = $region3
    $region8: #{captions_lstm2_forward.5} parent=1 // loop_exit
      _

// kernel: captions_lstm2_forward.4
$region0: #{captions_lstm2_forward.4}
  #allocation0 [shape = 'u32[]', space=smem, size = 0x4, offset = 0x4, fixed_abs, tag = 'smem constant byte address 0x4 - core index']
  #allocation1 [shape = 'u32[144,128]{1,0:T(1,128)}', space=vmem, size = 0x12000, scoped, tag = 'internal scratch']
  #allocation2 [shape = 'f32[2,4]{1,0:T(2,128)}', space=vmem, size = 0x400, scoped, tag = 'scratch operand']
  %s0 = inlined_call_operand.vmem [shape: f32[2,4,256], index: 0, kind: input, shape index: {}]
  %s1 = inlined_call_operand.vmem [shape: bf16[4,32], index: 1, kind: input, shape index: {}]
  %s2 = inlined_call_operand.vmem [shape: f32[1,32], index: 2, kind: input, shape index: {}]
  %s3 = inlined_call_operand.vmem [shape: f32[2,32], index: 3, kind: output, shape index: {}]
  %s4 = sld [smem:[#allocation0]]
  $region94: #{captions_lstm2_forward.4} parent=0
    _
  %s6 = ssub.s32 1, %s4
  %s7 = scalar_select 0, %s6, %s4
  $region1: #{captions_lstm2_forward.4} parent=0
    #allocation3 [shape = 'u8[8192]{0}', space=vmem, size = 0x2000, scoped, tag = 'input window, operand 0']
    loop: start=0, step=1, limit=4
    $region2: #{captions_lstm2_forward.4} parent=1 // loop_pre_header
      _
    $region3: #{captions_lstm2_forward.4} parent=1 // loop_header
      %s9 = sphi 0, %s13
      %p10 = scmp.ge.s32.totalorder %s9, 4
      %s19 = sphi 0, %s21
      %s22 = sphi 0, %s19
      %s23 = sphi 0, %s22
      %s39 = sphi 0, %s23
      %s43 = sphi 0, %s43
      %s45 = sphi 0, %s43
      %s46 = sphi 0, %s45
      %s60 = sphi 0, %s46
      %s64 = sphi 0, %s64
      %s66 = sphi 0, %s64
      %s67 = sphi 0, %s66
      %s81 = sphi 0, %s67
      %s85 = sphi 0, %s85
      %s87 = sphi 0, %s85
      %s88 = sphi 0, %s87
      %s102 = sphi 0, %s88
    $region4: #{captions_lstm2_forward.4} parent=1 // loop_header_branch
      %12 = sbr.rel (%p10) target = $region8
    $region5: #{captions_lstm2_forward.4} parent=1 // loop_body
      %s14 = ssub.s32 %s9, 1
      %s15 = ssub.s32 %s9, 2
      %s16 = sadd.s32 %s9, 1
      %s17 = ssub.s32 %s9, %s16
      %p18 = scmp.eq.s32.totalorder %s17, 0
      %s20 = sadd.s32 %s19, 1
      %s21 = scalar_select %p18, %s19, %s20
      %p24 = pneg %p18
      %p25 = scmp.eq.s32.totalorder %s9, 1
      %p26 = por %p24, %p25
      %p27 = scmp.ne.s32.totalorder %s19, %s22
      %p28 = scmp.eq.s32.totalorder %s9, 0
      %p29 = por %p27, %p28
      %p30 = scmp.ne.s32.totalorder %s19, %s22
      %p31 = scmp.eq.s32.totalorder %s14, 1
      %p32 = por %p30, %p31
      %p33 = scmp.ne.s32.totalorder %s22, %s23
      %p34 = scmp.eq.s32.totalorder %s14, 0
      %p35 = por %p33, %p34
      %p36 = scmp.ne.s32.totalorder %s22, %s23
      %p37 = scmp.eq.s32.totalorder %s15, 1
      %p38 = por %p36, %p37
      %p40 = scmp.ne.s32.totalorder %s23, %s39
      %p41 = scmp.eq.s32.totalorder %s15, 0
      %p42 = por %p40, %p41
      %s44 = sadd.s32 %s43, 1
      %p47 = scmp.eq.s32.totalorder %s9, 1
      %p48 = scmp.ne.s32.totalorder %s43, %s45
      %p49 = scmp.eq.s32.totalorder %s9, 0
      %p50 = por %p48, %p49
      %p51 = scmp.ne.s32.totalorder %s43, %s45
      %p52 = scmp.eq.s32.totalorder %s14, 1
      %p53 = por %p51, %p52
      %p54 = scmp.ne.s32.totalorder %s45, %s46
      %p55 = scmp.eq.s32.totalorder %s14, 0
      %p56 = por %p54, %p55
      %p57 = scmp.ne.s32.totalorder %s45, %s46
      %p58 = scmp.eq.s32.totalorder %s15, 1
      %p59 = por %p57, %p58
      %p61 = scmp.ne.s32.totalorder %s46, %s60
      %p62 = scmp.eq.s32.totalorder %s15, 0
      %p63 = por %p61, %p62
      %s65 = sadd.s32 %s64, 1
      %p68 = scmp.eq.s32.totalorder %s9, 1
      %p69 = scmp.ne.s32.totalorder %s64, %s66
      %p70 = scmp.eq.s32.totalorder %s9, 0
      %p71 = por %p69, %p70
      %p72 = scmp.ne.s32.totalorder %s64, %s66
      %p73 = scmp.eq.s32.totalorder %s14, 1
      %p74 = por %p72, %p73
      %p75 = scmp.ne.s32.totalorder %s66, %s67
      %p76 = scmp.eq.s32.totalorder %s14, 0
      %p77 = por %p75, %p76
      %p78 = scmp.ne.s32.totalorder %s66, %s67
      %p79 = scmp.eq.s32.totalorder %s15, 1
      %p80 = por %p78, %p79
      %p82 = scmp.ne.s32.totalorder %s67, %s81
      %p83 = scmp.eq.s32.totalorder %s15, 0
      %p84 = por %p82, %p83
      %s86 = sadd.s32 %s85, 1
      %p89 = scmp.eq.s32.totalorder %s9, 1
      %p90 = scmp.ne.s32.totalorder %s85, %s87
      %p91 = scmp.eq.s32.totalorder %s9, 0
      %p92 = por %p90, %p91
      %p93 = scmp.ne.s32.totalorder %s85, %s87
      %p94 = scmp.eq.s32.totalorder %s14, 1
      %p95 = por %p93, %p94
      %p96 = scmp.ne.s32.totalorder %s87, %s88
      %p97 = scmp.eq.s32.totalorder %s14, 0
      %p98 = por %p96, %p97
      %p99 = scmp.ne.s32.totalorder %s87, %s88
      %p100 = scmp.eq.s32.totalorder %s15, 1
      %p101 = por %p99, %p100
      %p103 = scmp.ne.s32.totalorder %s88, %s102
      %p104 = scmp.eq.s32.totalorder %s15, 0
      %p105 = por %p103, %p104
      %p106 = scmp.le.s32.totalorder 1, %s9
      %p107 = scmp.lt.s32.totalorder %s9, 3
      %p108 = pnand %p106, %p107
      %p109 = pneg %p108
      // Predicated region
      $region9: #{captions_lstm2_forward.4} parent=5 // pred_check
        _
      $region10: #{captions_lstm2_forward.4} parent=5 // pred_check_branch
        %111 = sbr.rel (%p108) target = $region12
      $region11: #{captions_lstm2_forward.4} parent=5 // pred_region
        %s112 = ssub.s32 %s9, 1
        // Predicated region
        $region13: #{captions_lstm2_forward.4} parent=11 // pred_check
          %p113 = pneg %p56
        $region14: #{captions_lstm2_forward.4} parent=11 // pred_check_branch
          %115 = sbr.rel (%p113) target = $region16
        $region15: #{captions_lstm2_forward.4} parent=11 // pred_region
          _
        $region16: #{captions_lstm2_forward.4} parent=11 // pred_fallthru
          _
        // Predicated region
        $region17: #{captions_lstm2_forward.4} parent=11 // pred_check
          %p116 = pneg %p77
        $region18: #{captions_lstm2_forward.4} parent=11 // pred_check_branch
          %118 = sbr.rel (%p116) target = $region20
        $region19: #{captions_lstm2_forward.4} parent=11 // pred_region
          _
        $region20: #{captions_lstm2_forward.4} parent=11 // pred_fallthru
          _
      $region12: #{captions_lstm2_forward.4} parent=5 // pred_fallthru
        _
      %p119 = scmp.lt.s32.totalorder %s9, 2
      // Predicated region
      $region21: #{captions_lstm2_forward.4} parent=5 // pred_check
        %p120 = pneg %p119
      $region22: #{captions_lstm2_forward.4} parent=5 // pred_check_branch
        %122 = sbr.rel (%p120) target = $region24
      $region23: #{captions_lstm2_forward.4} parent=5 // pred_region
        // Predicated region
        $region25: #{captions_lstm2_forward.4} parent=23 // pred_check
          %p123 = pneg %p29
        $region26: #{captions_lstm2_forward.4} parent=23 // pred_check_branch
          %125 = sbr.rel (%p123) target = $region28
        $region27: #{captions_lstm2_forward.4} parent=23 // pred_region
          %s126 = sand.u32 %s19, 1
          %s127 = sand.u32 %s19, 1
          %s128 = smul.addr %s127, 8
          %s129 = scalar_lea.vmem [#allocation3], %s128
          %s130 = smul.addr %s9, 4
          %s131 = scalar_lea.vmem %s0, %s130
          // Predicated region
          $region29: #{captions_lstm2_forward.4} parent=27 // pred_check
            _
          $region30: #{captions_lstm2_forward.4} parent=27 // pred_check_branch
            %133 = sbr.rel (0) target = $region32
          $region31: #{captions_lstm2_forward.4} parent=27 // pred_region
            // Predicated region
            $region33: #{captions_lstm2_forward.4} parent=31 // pred_check
              _
            $region34: #{captions_lstm2_forward.4} parent=31 // pred_check_branch
              %135 = sbr.rel target = $region36
            $region35: #{captions_lstm2_forward.4} parent=31 // pred_region
              // Predicated region
              $region48: #{captions_lstm2_forward.4} parent=35 // pred_check
                _
              $region49: #{captions_lstm2_forward.4} parent=35 // pred_check_branch
                %152 = sbr.rel (0) target = $region51
              $region50: #{captions_lstm2_forward.4} parent=35 // pred_region
                loop: start=0, step=1, limit=1
                $region52: #{captions_lstm2_forward.4} parent=50 // loop_pre_header
                  _
                $region53: #{captions_lstm2_forward.4} parent=50 // loop_header
                  %s154 = sphi 0, %s158
                  %p155 = scmp.ge.s32.totalorder %s154, 1
                  %s159 = sphi %s131, %s131
                  %s160 = sphi %s129, %s129
                $region54: #{captions_lstm2_forward.4} parent=50 // loop_header_branch
                  %157 = sbr.rel (%p155) target = $region58
                $region55: #{captions_lstm2_forward.4} parent=50 // loop_body
                  _
                $region56: #{captions_lstm2_forward.4} parent=50 // loop_footer
                  %s158 = sadd.s32 1, %s154
                $region57: #{captions_lstm2_forward.4} parent=50 // loop_footer_branch
                  %153 = sbr.rel target = $region53
                $region58: #{captions_lstm2_forward.4} parent=50 // loop_exit
                  _
                loop: start=0, step=1, limit=1
                $region59: #{captions_lstm2_forward.4} parent=50 // loop_pre_header
                  _
                $region60: #{captions_lstm2_forward.4} parent=50 // loop_header
                  %s163 = sphi 0, %s167
                  %p164 = scmp.ge.s32.totalorder %s163, 1
                  %s168 = sphi %s131, %s131
                  %s169 = sphi %s129, %s129
                $region61: #{captions_lstm2_forward.4} parent=50 // loop_header_branch
                  %166 = sbr.rel (%p164) target = $region65
                $region62: #{captions_lstm2_forward.4} parent=50 // loop_body
                  %v170 = vld [vmem:[%s168] sm:$0xf]
                  %171 = vst [vmem:[%s169] sm:$0xf] %v170
                  %v172 = vld [vmem:[%s168 + $0x8] sm:$0xf]
                  %173 = vst [vmem:[%s169 + $0x4] sm:$0xf] %v172
                $region63: #{captions_lstm2_forward.4} parent=50 // loop_footer
                  %s167 = sadd.s32 1, %s163
                $region64: #{captions_lstm2_forward.4} parent=50 // loop_footer_branch
                  %162 = sbr.rel target = $region60
                $region65: #{captions_lstm2_forward.4} parent=50 // loop_exit
                  _
              $region51: #{captions_lstm2_forward.4} parent=35 // pred_fallthru
                _
            $region36: #{captions_lstm2_forward.4} parent=31 // pred_fallthru
              _
            // Predicated region
            $region37: #{captions_lstm2_forward.4} parent=31 // pred_check
              _
            $region38: #{captions_lstm2_forward.4} parent=31 // pred_check_branch
              %137 = sbr.rel (0) target = $region40
            $region39: #{captions_lstm2_forward.4} parent=31 // pred_region
              loop: start=0, step=1, limit=1
              $region41: #{captions_lstm2_forward.4} parent=39 // loop_pre_header
                _
              $region42: #{captions_lstm2_forward.4} parent=39 // loop_header
                %s140 = sphi 0, %s144
                %p141 = scmp.ge.s32.totalorder %s140, 1
                %s145 = sphi %s131, %s131
                %s146 = sphi %s129, %s129
              $region43: #{captions_lstm2_forward.4} parent=39 // loop_header_branch
                %143 = sbr.rel (%p141) target = $region47
              $region44: #{captions_lstm2_forward.4} parent=39 // loop_body
                %v147 = vld [vmem:[%s145] sm:$0xf]
                %148 = vst [vmem:[%s146] sm:$0xf] %v147
                %v149 = vld [vmem:[%s145 + $0x8] sm:$0xf]
                %150 = vst [vmem:[%s146 + $0x4] sm:$0xf] %v149
              $region45: #{captions_lstm2_forward.4} parent=39 // loop_footer
                %s144 = sadd.s32 1, %s140
              $region46: #{captions_lstm2_forward.4} parent=39 // loop_footer_branch
                %139 = sbr.rel target = $region42
              $region47: #{captions_lstm2_forward.4} parent=39 // loop_exit
                _
            $region40: #{captions_lstm2_forward.4} parent=31 // pred_fallthru
              _
          $region32: #{captions_lstm2_forward.4} parent=27 // pred_fallthru
            _
          %174 = vnop
        $region28: #{captions_lstm2_forward.4} parent=23 // pred_fallthru
          _
      $region24: #{captions_lstm2_forward.4} parent=5 // pred_fallthru
        _
      %p175 = scmp.le.s32.totalorder 1, %s9
      %p176 = scmp.lt.s32.totalorder %s9, 3
      %p177 = pnand %p175, %p176
      %p178 = pneg %p177
      // Predicated region
      $region66: #{captions_lstm2_forward.4} parent=5 // pred_check
        _
      $region67: #{captions_lstm2_forward.4} parent=5 // pred_check_branch
        %180 = sbr.rel (%p177) target = $region69
      $region68: #{captions_lstm2_forward.4} parent=5 // pred_region
        %s181 = ssub.s32 %s9, 1
        %s182 = sand.u32 %s22, 1
        %s183 = sand.u32 %s22, 1
        %s184 = smul.addr %s183, 8
        %s185 = scalar_lea.vmem [#allocation3], %s184
        // Predicated region
        $region70: #{captions_lstm2_forward.4} parent=68 // pred_check
          %p186 = pneg %p35
        $region71: #{captions_lstm2_forward.4} parent=68 // pred_check_branch
          %188 = sbr.rel (%p186) target = $region73
        $region72: #{captions_lstm2_forward.4} parent=68 // pred_region
          _
        $region73: #{captions_lstm2_forward.4} parent=68 // pred_fallthru
          _
        %s189 = sand.u32 %s22, 1
        %s190 = sand.u32 %s22, 1
        %s191 = smul.addr %s190, 8
        %s192 = scalar_lea.vmem [#allocation3], %s191
        %p193 = pneg %p35
        %p194 = pneg %p32
        %p195 = pneg %p56
        %p196 = pneg %p53
        %p197 = pneg %p77
        %p198 = pneg %p74
        %p199 = pneg %p98
        %p200 = pneg %p95
        %p202 = scmp.eq.s32.totalorder %s14, 0
        // Predicated region
        $region74: #{captions_lstm2_forward.4} parent=68 // pred_check
          %p203 = pneg %p202
        $region75: #{captions_lstm2_forward.4} parent=68 // pred_check_branch
          %205 = sbr.rel (%p203) target = $region77
        $region76: #{captions_lstm2_forward.4} parent=68 // pred_region
          %vm206 = vcmask 25600
          %207 = vst.msk [vmem:[#allocation2] sm:$0x3] %vm206, 0.0
        $region77: #{captions_lstm2_forward.4} parent=68 // pred_fallthru
          _
        %v208 = vld [vmem:[#allocation2] sm:$0x3]
        %v209 = vld [vmem:[%s185] sm:$0xf]
        %v210 = vld [vmem:[%s185 + $0x4] sm:$0xf]
        %vm211 = vcmask 1043456
        %v212 = vsel %vm211, %v209, 0.0
        %213 = vadd.xlane.f32.xlu0 %v212
        %v214 = vpop.xlane.xlu0 %213
        %v215 = vsel %vm211, %v210, 0.0
        %216 = vadd.xlane.f32.xlu0 %v215
        %v217 = vpop.xlane.xlu0 %216
        %v220 = vlaneseq
        %v221 = vand.u32 %v220, 127
        %v222 = vlaneseq
        %v223 = vshrl.u32 %v222, 7
        %v224 = vsub.s32 %v221, %v223
        %v225 = vrot.slane %v214, %v224
        %v226 = vlaneseq
        %v227 = vshrl.u32 %v226, 7
        %v228 = vsub.s32 %v221, %v227
        %v229 = vrot.slane %v217, %v228
        %vm230 = vcmask 1041409
        %v231 = vsel %vm230, %v229, %v225
        %v233 = vadd.f32 %v208, %v231
        %vm234 = vcmask 25600
        %235 = vst.msk [vmem:[#allocation2] sm:$0x3] %vm234, %v233
        %p236 = scmp.eq.s32.totalorder %s14, 1
        // Predicated region
        $region78: #{captions_lstm2_forward.4} parent=68 // pred_check
          %p237 = pneg %p236
        $region79: #{captions_lstm2_forward.4} parent=68 // pred_check_branch
          %239 = sbr.rel (%p237) target = $region81
        $region80: #{captions_lstm2_forward.4} parent=68 // pred_region
          %v240 = vld [vmem:[#allocation2] sm:$0x3]
          %v241 = vmul.f32 %v240, 0.00390625
          %v242 = vpack.c.bf16 %v241, %v241
          %v243 = vld [vmem:[%s1] sm:$0x3]
          %v244 = vld [vmem:[%s2] sm:$0x1]
          %v246 = vlaneseq
          %v247 = vshrl.u32 %v246, 7
          %v248 = vsub.s32 0, %v247
          %v249 = vrot.slane %v244, %v248
          %vm251 = vcmask 31744
          %v253 = vsel %vm251, %v242, 0
          %vm255 = vcmask 1041408
          %v257 = vsel %vm255, %v243, 0
          %259 = vmatprep.subr.bf16.mxu0 0
          %260 = vmatpush1.bf16.msra.mxu0 %v257
          %261 = vmatprep.subr.bf16.mxu0 0
          %262 = vmatpush1.bf16.msra.mxu0 0
          %263 = vmatprep.subr.bf16.mxu0 0
          %264 = vmatpush1.bf16.msra.mxu0 0
          %265 = vmatprep.subr.bf16.mxu0 0
          %266 = vmatpush1.bf16.msra.mxu0 0
          %267 = vmatprep.subr.bf16.mxu0 0
          %268 = vmatpush1.bf16.msra.mxu0 0
          %269 = vmatprep.subr.bf16.mxu0 0
          %270 = vmatpush1.bf16.msra.mxu0 0
          %271 = vmatprep.subr.bf16.mxu0 0
          %272 = vmatpush1.bf16.msra.mxu0 0
          %273 = vmatprep.subr.bf16.mxu0 0
          %274 = vmatpush1.bf16.msra.mxu0 0
          %275 = vmatprep.subr.bf16.mxu0 0
          %276 = vmatpush1.bf16.msra.mxu0 0
          %277 = vmatprep.subr.bf16.mxu0 0
          %278 = vmatpush1.bf16.msra.mxu0 0
          %279 = vmatprep.subr.bf16.mxu0 0
          %280 = vmatpush1.bf16.msra.mxu0 0
          %281 = vmatprep.subr.bf16.mxu0 0
          %282 = vmatpush1.bf16.msra.mxu0 0
          %283 = vmatprep.subr.bf16.mxu0 0
          %284 = vmatpush1.bf16.msra.mxu0 0
          %285 = vmatprep.subr.bf16.mxu0 0
          %286 = vmatpush1.bf16.msra.mxu0 0
          %287 = vmatprep.subr.bf16.mxu0 0
          %288 = vmatpush1.bf16.msra.mxu0 0
          %289 = vmatprep.subr.bf16.mxu0 0
          %290 = vmatpush1.bf16.msra.mxu0 0
          %291 = vmatprep.mubr.bf16.mxu0 0
          %292 = vmatmul.mubr.bf16.gmra.mrb[0].mxu0 %v253
          %v293 = vpop.f32.mrb[0].mxu0
          %v294 = vadd.f32 %v249, %v293
          %v295 = vpop.f32.mrb[0].mxu0
          %v296 = vpop.f32.mrb[0].mxu0
          %v297 = vpop.f32.mrb[0].mxu0
          %298 = vdwg.mxu0
          %vm299 = vcmask 254976
          %300 = vst.msk [vmem:[%s3] sm:$0x3] %vm299, %v294
        $region81: #{captions_lstm2_forward.4} parent=68 // pred_fallthru
          _
        // Predicated region
        $region82: #{captions_lstm2_forward.4} parent=68 // pred_check
          %p301 = pneg %p95
        $region83: #{captions_lstm2_forward.4} parent=68 // pred_check_branch
          %303 = sbr.rel (%p301) target = $region85
        $region84: #{captions_lstm2_forward.4} parent=68 // pred_region
          _
        $region85: #{captions_lstm2_forward.4} parent=68 // pred_fallthru
          _
        // Predicated region
        $region86: #{captions_lstm2_forward.4} parent=68 // pred_check
          %p304 = pneg %p95
        $region87: #{captions_lstm2_forward.4} parent=68 // pred_check_branch
          %306 = sbr.rel (%p304) target = $region89
        $region88: #{captions_lstm2_forward.4} parent=68 // pred_region
          _
        $region89: #{captions_lstm2_forward.4} parent=68 // pred_fallthru
          _
      $region69: #{captions_lstm2_forward.4} parent=5 // pred_fallthru
        _
      %p307 = scmp.le.s32.totalorder 2, %s9
      // Predicated region
      $region90: #{captions_lstm2_forward.4} parent=5 // pred_check
        %p308 = pneg %p307
      $region91: #{captions_lstm2_forward.4} parent=5 // pred_check_branch
        %310 = sbr.rel (%p308) target = $region93
      $region92: #{captions_lstm2_forward.4} parent=5 // pred_region
        %s311 = ssub.s32 %s9, 2
      $region93: #{captions_lstm2_forward.4} parent=5 // pred_fallthru
        _
    $region6: #{captions_lstm2_forward.4} parent=1 // loop_footer
      %s13 = sadd.s32 1, %s9
    $region7: #{captions_lstm2_forward.4} parent=1 // loop_footer_branch
      %8 = sbr.rel target = $region3
    $region8: #{captions_lstm2_forward.4} parent=1 // loop_exit
      _

// kernel: captions_lstm2_forward.6
$region0: #{captions_lstm2_forward.6}
  #allocation0 [shape = 'u32[]', space=smem, size = 0x4, offset = 0x4, fixed_abs, tag = 'smem constant byte address 0x4 - core index']
  #allocation1 [shape = 'u32[144,128]{1,0:T(1,128)}', space=vmem, size = 0x12000, scoped, tag = 'internal scratch']
  #allocation2 [shape = 'f32[8,32]{1,0:T(8,128)}', space=vmem, size = 0x1000, scoped, tag = 'scratch operand']
  #allocation3 [shape = 'f32[8,32]{1,0:T(8,128)}', space=vmem, size = 0x1000, scoped, tag = 'scratch operand']
  #allocation4 [shape = 'f32[8,32]{1,0:T(8,128)}', space=vmem, size = 0x1000, scoped, tag = 'scratch operand']
  #allocation5 [shape = 'f32[8,32]{1,0:T(8,128)}', space=vmem, size = 0x1000, scoped, tag = 'scratch operand']
  #allocation6 [shape = 'f32[4,8,32]{2,1,0:T(8,128)}', space=vmem, size = 0x4000, scoped, tag = 'scratch operand']
  %s0 = inlined_call_operand.vmem [shape: f32[4,96,32], index: 0, kind: input, shape index: {}]
  %s1 = inlined_call_operand.vmem [shape: f32[8,32], index: 1, kind: input, shape index: {}]
  %s2 = inlined_call_operand.vmem [shape: bf16[4,32,32], index: 2, kind: input, shape index: {}]
  %s3 = inlined_call_operand.vmem [shape: bf16[4,32,32], index: 3, kind: input, shape index: {}]
  %s4 = inlined_call_operand.vmem [shape: bf16[4,32,32], index: 4, kind: input, shape index: {}]
  %s5 = inlined_call_operand.vmem [shape: bf16[4,32,32], index: 5, kind: input, shape index: {}]
  %s6 = inlined_call_operand.vmem [shape: f32[4,1,32], index: 6, kind: input, shape index: {}]
  %s7 = inlined_call_operand.vmem [shape: f32[12,8,32], index: 7, kind: output, shape index: {}]
  %s8 = sld [smem:[#allocation0]]
  $region103: #{captions_lstm2_forward.6} parent=0
    _
  %s10 = ssub.s32 1, %s8
  %s11 = scalar_select 0, %s10, %s8
  $region1: #{captions_lstm2_forward.6} parent=0
    #allocation7 [shape = 'u8[131072]{0}', space=vmem, size = 0x20000, scoped, tag = 'input window, operand 0']
    loop: start=0, step=1, limit=5
    $region2: #{captions_lstm2_forward.6} parent=1 // loop_pre_header
      _
    $region3: #{captions_lstm2_forward.6} parent=1 // loop_header
      %s13 = sphi 0, %s17
      %p14 = scmp.ge.s32.totalorder %s13, 5
      %s23 = sphi 0, %s25
      %s26 = sphi 0, %s23
      %s27 = sphi 0, %s26
      %s43 = sphi 0, %s27
      %s47 = sphi 0, %s47
      %s49 = sphi 0, %s47
      %s50 = sphi 0, %s49
      %s64 = sphi 0, %s50
      %s68 = sphi 0, %s68
      %s70 = sphi 0, %s68
      %s71 = sphi 0, %s70
      %s85 = sphi 0, %s71
      %s89 = sphi 0, %s89
      %s91 = sphi 0, %s89
      %s92 = sphi 0, %s91
      %s106 = sphi 0, %s92
      %s110 = sphi 0, %s110
      %s112 = sphi 0, %s110
      %s113 = sphi 0, %s112
      %s127 = sphi 0, %s113
      %s131 = sphi 0, %s131
      %s133 = sphi 0, %s131
      %s134 = sphi 0, %s133
      %s148 = sphi 0, %s134
      %s152 = sphi 0, %s152
      %s154 = sphi 0, %s152
      %s155 = sphi 0, %s154
      %s169 = sphi 0, %s155
      %s175 = sphi 0, %s177
      %s178 = sphi 0, %s175
      %s179 = sphi 0, %s178
      %s195 = sphi 0, %s179
    $region4: #{captions_lstm2_forward.6} parent=1 // loop_header_branch
      %16 = sbr.rel (%p14) target = $region8
    $region5: #{captions_lstm2_forward.6} parent=1 // loop_body
      %s18 = ssub.s32 %s13, 1
      %s19 = ssub.s32 %s13, 2
      %s20 = sadd.s32 %s13, 1
      %s21 = ssub.s32 %s13, %s20
      %p22 = scmp.eq.s32.totalorder %s21, 0
      %s24 = sadd.s32 %s23, 1
      %s25 = scalar_select %p22, %s23, %s24
      %p28 = pneg %p22
      %p29 = scmp.eq.s32.totalorder %s13, 2
      %p30 = por %p28, %p29
      %p31 = scmp.ne.s32.totalorder %s23, %s26
      %p32 = scmp.eq.s32.totalorder %s13, 0
      %p33 = por %p31, %p32
      %p34 = scmp.ne.s32.totalorder %s23, %s26
      %p35 = scmp.eq.s32.totalorder %s18, 2
      %p36 = por %p34, %p35
      %p37 = scmp.ne.s32.totalorder %s26, %s27
      %p38 = scmp.eq.s32.totalorder %s18, 0
      %p39 = por %p37, %p38
      %p40 = scmp.ne.s32.totalorder %s26, %s27
      %p41 = scmp.eq.s32.totalorder %s19, 2
      %p42 = por %p40, %p41
      %p44 = scmp.ne.s32.totalorder %s27, %s43
      %p45 = scmp.eq.s32.totalorder %s19, 0
      %p46 = por %p44, %p45
      %s48 = sadd.s32 %s47, 1
      %p51 = scmp.eq.s32.totalorder %s13, 2
      %p52 = scmp.ne.s32.totalorder %s47, %s49
      %p53 = scmp.eq.s32.totalorder %s13, 0
      %p54 = por %p52, %p53
      %p55 = scmp.ne.s32.totalorder %s47, %s49
      %p56 = scmp.eq.s32.totalorder %s18, 2
      %p57 = por %p55, %p56
      %p58 = scmp.ne.s32.totalorder %s49, %s50
      %p59 = scmp.eq.s32.totalorder %s18, 0
      %p60 = por %p58, %p59
      %p61 = scmp.ne.s32.totalorder %s49, %s50
      %p62 = scmp.eq.s32.totalorder %s19, 2
      %p63 = por %p61, %p62
      %p65 = scmp.ne.s32.totalorder %s50, %s64
      %p66 = scmp.eq.s32.totalorder %s19, 0
      %p67 = por %p65, %p66
      %s69 = sadd.s32 %s68, 1
      %p72 = scmp.eq.s32.totalorder %s13, 2
      %p73 = scmp.ne.s32.totalorder %s68, %s70
      %p74 = scmp.eq.s32.totalorder %s13, 0
      %p75 = por %p73, %p74
      %p76 = scmp.ne.s32.totalorder %s68, %s70
      %p77 = scmp.eq.s32.totalorder %s18, 2
      %p78 = por %p76, %p77
      %p79 = scmp.ne.s32.totalorder %s70, %s71
      %p80 = scmp.eq.s32.totalorder %s18, 0
      %p81 = por %p79, %p80
      %p82 = scmp.ne.s32.totalorder %s70, %s71
      %p83 = scmp.eq.s32.totalorder %s19, 2
      %p84 = por %p82, %p83
      %p86 = scmp.ne.s32.totalorder %s71, %s85
      %p87 = scmp.eq.s32.totalorder %s19, 0
      %p88 = por %p86, %p87
      %s90 = sadd.s32 %s89, 1
      %p93 = scmp.eq.s32.totalorder %s13, 2
      %p94 = scmp.ne.s32.totalorder %s89, %s91
      %p95 = scmp.eq.s32.totalorder %s13, 0
      %p96 = por %p94, %p95
      %p97 = scmp.ne.s32.totalorder %s89, %s91
      %p98 = scmp.eq.s32.totalorder %s18, 2
      %p99 = por %p97, %p98
      %p100 = scmp.ne.s32.totalorder %s91, %s92
      %p101 = scmp.eq.s32.totalorder %s18, 0
      %p102 = por %p100, %p101
      %p103 = scmp.ne.s32.totalorder %s91, %s92
      %p104 = scmp.eq.s32.totalorder %s19, 2
      %p105 = por %p103, %p104
      %p107 = scmp.ne.s32.totalorder %s92, %s106
      %p108 = scmp.eq.s32.totalorder %s19, 0
      %p109 = por %p107, %p108
      %s111 = sadd.s32 %s110, 1
      %p114 = scmp.eq.s32.totalorder %s13, 2
      %p115 = scmp.ne.s32.totalorder %s110, %s112
      %p116 = scmp.eq.s32.totalorder %s13, 0
      %p117 = por %p115, %p116
      %p118 = scmp.ne.s32.totalorder %s110, %s112
      %p119 = scmp.eq.s32.totalorder %s18, 2
      %p120 = por %p118, %p119
      %p121 = scmp.ne.s32.totalorder %s112, %s113
      %p122 = scmp.eq.s32.totalorder %s18, 0
      %p123 = por %p121, %p122
      %p124 = scmp.ne.s32.totalorder %s112, %s113
      %p125 = scmp.eq.s32.totalorder %s19, 2
      %p126 = por %p124, %p125
      %p128 = scmp.ne.s32.totalorder %s113, %s127
      %p129 = scmp.eq.s32.totalorder %s19, 0
      %p130 = por %p128, %p129
      %s132 = sadd.s32 %s131, 1
      %p135 = scmp.eq.s32.totalorder %s13, 2
      %p136 = scmp.ne.s32.totalorder %s131, %s133
      %p137 = scmp.eq.s32.totalorder %s13, 0
      %p138 = por %p136, %p137
      %p139 = scmp.ne.s32.totalorder %s131, %s133
      %p140 = scmp.eq.s32.totalorder %s18, 2
      %p141 = por %p139, %p140
      %p142 = scmp.ne.s32.totalorder %s133, %s134
      %p143 = scmp.eq.s32.totalorder %s18, 0
      %p144 = por %p142, %p143
      %p145 = scmp.ne.s32.totalorder %s133, %s134
      %p146 = scmp.eq.s32.totalorder %s19, 2
      %p147 = por %p145, %p146
      %p149 = scmp.ne.s32.totalorder %s134, %s148
      %p150 = scmp.eq.s32.totalorder %s19, 0
      %p151 = por %p149, %p150
      %s153 = sadd.s32 %s152, 1
      %p156 = scmp.eq.s32.totalorder %s13, 2
      %p157 = scmp.ne.s32.totalorder %s152, %s154
      %p158 = scmp.eq.s32.totalorder %s13, 0
      %p159 = por %p157, %p158
      %p160 = scmp.ne.s32.totalorder %s152, %s154
      %p161 = scmp.eq.s32.totalorder %s18, 2
      %p162 = por %p160, %p161
      %p163 = scmp.ne.s32.totalorder %s154, %s155
      %p164 = scmp.eq.s32.totalorder %s18, 0
      %p165 = por %p163, %p164
      %p166 = scmp.ne.s32.totalorder %s154, %s155
      %p167 = scmp.eq.s32.totalorder %s19, 2
      %p168 = por %p166, %p167
      %p170 = scmp.ne.s32.totalorder %s155, %s169
      %p171 = scmp.eq.s32.totalorder %s19, 0
      %p172 = por %p170, %p171
      %s173 = ssub.s32 %s13, %s20
      %p174 = scmp.eq.s32.totalorder %s173, 0
      %s176 = sadd.s32 %s175, 1
      %s177 = scalar_select %p174, %s175, %s176
      %p180 = pneg %p174
      %p181 = scmp.eq.s32.totalorder %s13, 2
      %p182 = por %p180, %p181
      %p183 = scmp.ne.s32.totalorder %s175, %s178
      %p184 = scmp.eq.s32.totalorder %s13, 0
      %p185 = por %p183, %p184
      %p186 = scmp.ne.s32.totalorder %s175, %s178
      %p187 = scmp.eq.s32.totalorder %s18, 2
      %p188 = por %p186, %p187
      %p189 = scmp.ne.s32.totalorder %s178, %s179
      %p190 = scmp.eq.s32.totalorder %s18, 0
      %p191 = por %p189, %p190
      %p192 = scmp.ne.s32.totalorder %s178, %s179
      %p193 = scmp.eq.s32.totalorder %s19, 2
      %p194 = por %p192, %p193
      %p196 = scmp.ne.s32.totalorder %s179, %s195
      %p197 = scmp.eq.s32.totalorder %s19, 0
      %p198 = por %p196, %p197
      %p199 = scmp.le.s32.totalorder 1, %s13
      %p200 = scmp.lt.s32.totalorder %s13, 4
      %p201 = pnand %p199, %p200
      %p202 = pneg %p201
      // Predicated region
      $region9: #{captions_lstm2_forward.6} parent=5 // pred_check
        _
      $region10: #{captions_lstm2_forward.6} parent=5 // pred_check_branch
        %204 = sbr.rel (%p201) target = $region12
      $region11: #{captions_lstm2_forward.6} parent=5 // pred_region
        %s205 = ssub.s32 %s13, 1
        // Predicated region
        $region13: #{captions_lstm2_forward.6} parent=11 // pred_check
          %p206 = pneg %p60
        $region14: #{captions_lstm2_forward.6} parent=11 // pred_check_branch
          %208 = sbr.rel (%p206) target = $region16
        $region15: #{captions_lstm2_forward.6} parent=11 // pred_region
          _
        $region16: #{captions_lstm2_forward.6} parent=11 // pred_fallthru
          _
        // Predicated region
        $region17: #{captions_lstm2_forward.6} parent=11 // pred_check
          %p209 = pneg %p81
        $region18: #{captions_lstm2_forward.6} parent=11 // pred_check_branch
          %211 = sbr.rel (%p209) target = $region20
        $region19: #{captions_lstm2_forward.6} parent=11 // pred_region
          _
        $region20: #{captions_lstm2_forward.6} parent=11 // pred_fallthru
          _
        // Predicated region
        $region21: #{captions_lstm2_forward.6} parent=11 // pred_check
          %p212 = pneg %p102
        $region22: #{captions_lstm2_forward.6} parent=11 // pred_check_branch
          %214 = sbr.rel (%p212) target = $region24
        $region23: #{captions_lstm2_forward.6} parent=11 // pred_region
          _
        $region24: #{captions_lstm2_forward.6} parent=11 // pred_fallthru
          _
        // Predicated region
        $region25: #{captions_lstm2_forward.6} parent=11 // pred_check
          %p215 = pneg %p123
        $region26: #{captions_lstm2_forward.6} parent=11 // pred_check_branch
          %217 = sbr.rel (%p215) target = $region28
        $region27: #{captions_lstm2_forward.6} parent=11 // pred_region
          _
        $region28: #{captions_lstm2_forward.6} parent=11 // pred_fallthru
          _
        // Predicated region
        $region29: #{captions_lstm2_forward.6} parent=11 // pred_check
          %p218 = pneg %p144
        $region30: #{captions_lstm2_forward.6} parent=11 // pred_check_branch
          %220 = sbr.rel (%p218) target = $region32
        $region31: #{captions_lstm2_forward.6} parent=11 // pred_region
          _
        $region32: #{captions_lstm2_forward.6} parent=11 // pred_fallthru
          _
        // Predicated region
        $region33: #{captions_lstm2_forward.6} parent=11 // pred_check
          %p221 = pneg %p165
        $region34: #{captions_lstm2_forward.6} parent=11 // pred_check_branch
          %223 = sbr.rel (%p221) target = $region36
        $region35: #{captions_lstm2_forward.6} parent=11 // pred_region
          _
        $region36: #{captions_lstm2_forward.6} parent=11 // pred_fallthru
          _
      $region12: #{captions_lstm2_forward.6} parent=5 // pred_fallthru
        _
      %p224 = scmp.lt.s32.totalorder %s13, 3
      // Predicated region
      $region37: #{captions_lstm2_forward.6} parent=5 // pred_check
        %p225 = pneg %p224
      $region38: #{captions_lstm2_forward.6} parent=5 // pred_check_branch
        %227 = sbr.rel (%p225) target = $region40
      $region39: #{captions_lstm2_forward.6} parent=5 // pred_region
        // Predicated region
        $region41: #{captions_lstm2_forward.6} parent=39 // pred_check
          %p228 = pneg %p33
        $region42: #{captions_lstm2_forward.6} parent=39 // pred_check_branch
          %230 = sbr.rel (%p228) target = $region44
        $region43: #{captions_lstm2_forward.6} parent=39 // pred_region
          %s231 = sand.u32 %s23, 1
          %s232 = sand.u32 %s23, 1
          %s233 = smul.addr %s232, 128
          %s234 = scalar_lea.vmem [#allocation7], %s233
          %s235 = smul.u32 4, %s13
          %s236 = smul.addr %s235, 8
          %s237 = scalar_lea.vmem %s0, %s236
          // Predicated region
          $region45: #{captions_lstm2_forward.6} parent=43 // pred_check
            _
          $region46: #{captions_lstm2_forward.6} parent=43 // pred_check_branch
            %239 = sbr.rel (0) target = $region48
          $region47: #{captions_lstm2_forward.6} parent=43 // pred_region
            // Predicated region
            $region49: #{captions_lstm2_forward.6} parent=47 // pred_check
              _
            $region50: #{captions_lstm2_forward.6} parent=47 // pred_check_branch
              %241 = sbr.rel (0) target = $region52
            $region51: #{captions_lstm2_forward.6} parent=47 // pred_region
              // Predicated region
              $region64: #{captions_lstm2_forward.6} parent=51 // pred_check
                _
              $region65: #{captions_lstm2_forward.6} parent=51 // pred_check_branch
                %286 = sbr.rel (0) target = $region67
              $region66: #{captions_lstm2_forward.6} parent=51 // pred_region
                loop: start=0, step=1, limit=1
                $region68: #{captions_lstm2_forward.6} parent=66 // loop_pre_header
                  _
                $region69: #{captions_lstm2_forward.6} parent=66 // loop_header
                  %s288 = sphi 0, %s292
                  %p289 = scmp.ge.s32.totalorder %s288, 1
                  %s293 = sphi %s237, %s237
                  %s294 = sphi %s234, %s234
                $region70: #{captions_lstm2_forward.6} parent=66 // loop_header_branch
                  %291 = sbr.rel (%p289) target = $region74
                $region71: #{captions_lstm2_forward.6} parent=66 // loop_body
                  %v295 = vld [vmem:[%s293] sm:$0xff]
                  %296 = vst [vmem:[%s294] sm:$0xff] %v295
                  %v297 = vld [vmem:[%s293 + $0x8] sm:$0xff]
                  %298 = vst [vmem:[%s294 + $0x8] sm:$0xff] %v297
                  %v299 = vld [vmem:[%s293 + $0x10] sm:$0xff]
                  %300 = vst [vmem:[%s294 + $0x10] sm:$0xff] %v299
                  %v301 = vld [vmem:[%s293 + $0x18] sm:$0xff]
                  %302 = vst [vmem:[%s294 + $0x18] sm:$0xff] %v301
                  %v303 = vld [vmem:[%s293 + $0x60] sm:$0xff]
                  %304 = vst [vmem:[%s294 + $0x20] sm:$0xff] %v303
                  %v305 = vld [vmem:[%s293 + $0x68] sm:$0xff]
                  %306 = vst [vmem:[%s294 + $0x28] sm:$0xff] %v305
                  %v307 = vld [vmem:[%s293 + $0x70] sm:$0xff]
                  %308 = vst [vmem:[%s294 + $0x30] sm:$0xff] %v307
                  %v309 = vld [vmem:[%s293 + $0x78] sm:$0xff]
                  %310 = vst [vmem:[%s294 + $0x38] sm:$0xff] %v309
                  %v311 = vld [vmem:[%s293 + $0xc0] sm:$0xff]
                  %312 = vst [vmem:[%s294 + $0x40] sm:$0xff] %v311
                  %v313 = vld [vmem:[%s293 + $0xc8] sm:$0xff]
                  %314 = vst [vmem:[%s294 + $0x48] sm:$0xff] %v313
                  %v315 = vld [vmem:[%s293 + $0xd0] sm:$0xff]
                  %316 = vst [vmem:[%s294 + $0x50] sm:$0xff] %v315
                  %v317 = vld [vmem:[%s293 + $0xd8] sm:$0xff]
                  %318 = vst [vmem:[%s294 + $0x58] sm:$0xff] %v317
                  %v319 = vld [vmem:[%s293 + $0x120] sm:$0xff]
                  %320 = vst [vmem:[%s294 + $0x60] sm:$0xff] %v319
                  %v321 = vld [vmem:[%s293 + $0x128] sm:$0xff]
                  %322 = vst [vmem:[%s294 + $0x68] sm:$0xff] %v321
                  %v323 = vld [vmem:[%s293 + $0x130] sm:$0xff]
                  %324 = vst [vmem:[%s294 + $0x70] sm:$0xff] %v323
                  %v325 = vld [vmem:[%s293 + $0x138] sm:$0xff]
                  %326 = vst [vmem:[%s294 + $0x78] sm:$0xff] %v325
                $region72: #{captions_lstm2_forward.6} parent=66 // loop_footer
                  %s292 = sadd.s32 1, %s288
                $region73: #{captions_lstm2_forward.6} parent=66 // loop_footer_branch
                  %287 = sbr.rel target = $region69
                $region74: #{captions_lstm2_forward.6} parent=66 // loop_exit
                  _
              $region67: #{captions_lstm2_forward.6} parent=51 // pred_fallthru
                _
              // Predicated region
              $region75: #{captions_lstm2_forward.6} parent=51 // pred_check
                _
              $region76: #{captions_lstm2_forward.6} parent=51 // pred_check_branch
                %328 = sbr.rel target = $region78
              $region77: #{captions_lstm2_forward.6} parent=51 // pred_region
                _
              $region78: #{captions_lstm2_forward.6} parent=51 // pred_fallthru
                _
            $region52: #{captions_lstm2_forward.6} parent=47 // pred_fallthru
              _
            // Predicated region
            $region53: #{captions_lstm2_forward.6} parent=47 // pred_check
              _
            $region54: #{captions_lstm2_forward.6} parent=47 // pred_check_branch
              %243 = sbr.rel target = $region56
            $region55: #{captions_lstm2_forward.6} parent=47 // pred_region
              loop: start=0, step=1, limit=1
              $region57: #{captions_lstm2_forward.6} parent=55 // loop_pre_header
                _
              $region58: #{captions_lstm2_forward.6} parent=55 // loop_header
                %s246 = sphi 0, %s250
                %p247 = scmp.ge.s32.totalorder %s246, 1
                %s251 = sphi %s237, %s237
                %s252 = sphi %s234, %s234
              $region59: #{captions_lstm2_forward.6} parent=55 // loop_header_branch
                %249 = sbr.rel (%p247) target = $region63
              $region60: #{captions_lstm2_forward.6} parent=55 // loop_body
                %v253 = vld [vmem:[%s251] sm:$0xff]
                %254 = vst [vmem:[%s252] sm:$0xff] %v253
                %v255 = vld [vmem:[%s251 + $0x8] sm:$0xff]
                %256 = vst [vmem:[%s252 + $0x8] sm:$0xff] %v255
                %v257 = vld [vmem:[%s251 + $0x10] sm:$0xff]
                %258 = vst [vmem:[%s252 + $0x10] sm:$0xff] %v257
                %v259 = vld [vmem:[%s251 + $0x18] sm:$0xff]
                %260 = vst [vmem:[%s252 + $0x18] sm:$0xff] %v259
                %v261 = vld [vmem:[%s251 + $0x60] sm:$0xff]
                %262 = vst [vmem:[%s252 + $0x20] sm:$0xff] %v261
                %v263 = vld [vmem:[%s251 + $0x68] sm:$0xff]
                %264 = vst [vmem:[%s252 + $0x28] sm:$0xff] %v263
                %v265 = vld [vmem:[%s251 + $0x70] sm:$0xff]
                %266 = vst [vmem:[%s252 + $0x30] sm:$0xff] %v265
                %v267 = vld [vmem:[%s251 + $0x78] sm:$0xff]
                %268 = vst [vmem:[%s252 + $0x38] sm:$0xff] %v267
                %v269 = vld [vmem:[%s251 + $0xc0] sm:$0xff]
                %270 = vst [vmem:[%s252 + $0x40] sm:$0xff] %v269
                %v271 = vld [vmem:[%s251 + $0xc8] sm:$0xff]
                %272 = vst [vmem:[%s252 + $0x48] sm:$0xff] %v271
                %v273 = vld [vmem:[%s251 + $0xd0] sm:$0xff]
                %274 = vst [vmem:[%s252 + $0x50] sm:$0xff] %v273
                %v275 = vld [vmem:[%s251 + $0xd8] sm:$0xff]
                %276 = vst [vmem:[%s252 + $0x58] sm:$0xff] %v275
                %v277 = vld [vmem:[%s251 + $0x120] sm:$0xff]
                %278 = vst [vmem:[%s252 + $0x60] sm:$0xff] %v277
                %v279 = vld [vmem:[%s251 + $0x128] sm:$0xff]
                %280 = vst [vmem:[%s252 + $0x68] sm:$0xff] %v279
                %v281 = vld [vmem:[%s251 + $0x130] sm:$0xff]
                %282 = vst [vmem:[%s252 + $0x70] sm:$0xff] %v281
                %v283 = vld [vmem:[%s251 + $0x138] sm:$0xff]
                %284 = vst [vmem:[%s252 + $0x78] sm:$0xff] %v283
              $region61: #{captions_lstm2_forward.6} parent=55 // loop_footer
                %s250 = sadd.s32 1, %s246
              $region62: #{captions_lstm2_forward.6} parent=55 // loop_footer_branch
                %245 = sbr.rel target = $region58
              $region63: #{captions_lstm2_forward.6} parent=55 // loop_exit
                _
            $region56: #{captions_lstm2_forward.6} parent=47 // pred_fallthru
              _
          $region48: #{captions_lstm2_forward.6} parent=43 // pred_fallthru
            _
          %329 = vnop
        $region44: #{captions_lstm2_forward.6} parent=39 // pred_fallthru
          _
      $region40: #{captions_lstm2_forward.6} parent=5 // pred_fallthru
        _
      %p330 = scmp.le.s32.totalorder 1, %s13
      %p331 = scmp.lt.s32.totalorder %s13, 4
      %p332 = pnand %p330, %p331
      %p333 = pneg %p332
      // Predicated region
      $region79: #{captions_lstm2_forward.6} parent=5 // pred_check
        _
      $region80: #{captions_lstm2_forward.6} parent=5 // pred_check_branch
        %335 = sbr.rel (%p332) target = $region82
      $region81: #{captions_lstm2_forward.6} parent=5 // pred_region
        %s336 = ssub.s32 %s13, 1
        %s337 = sand.u32 %s26, 1
        %s338 = sand.u32 %s26, 1
        %s339 = smul.addr %s338, 128
        %s340 = scalar_lea.vmem [#allocation7], %s339
        // Predicated region
        $region83: #{captions_lstm2_forward.6} parent=81 // pred_check
          %p341 = pneg %p39
        $region84: #{captions_lstm2_forward.6} parent=81 // pred_check_branch
          %343 = sbr.rel (%p341) target = $region86
        $region85: #{captions_lstm2_forward.6} parent=81 // pred_region
          _
        $region86: #{captions_lstm2_forward.6} parent=81 // pred_fallthru
          _
        %s344 = sand.u32 %s26, 1
        %s345 = sand.u32 %s26, 1
        %s346 = smul.addr %s345, 128
        %s347 = scalar_lea.vmem [#allocation7], %s346
        %p348 = pneg %p39
        %p349 = pneg %p36
        %p350 = pneg %p60
        %p351 = pneg %p57
        %p352 = pneg %p81
        %p353 = pneg %p78
        %p354 = pneg %p102
        %p355 = pneg %p99
        %p356 = pneg %p123
        %p357 = pneg %p120
        %p358 = pneg %p144
        %p359 = pneg %p141
        %p360 = pneg %p165
        %p361 = pneg %p162
        %p362 = pneg %p191
        %p363 = pneg %p188
        %s364 = smul.u32 4, %s18
        %p365 = scmp.lt.s32.totalorder %s364, 11
        %s366 = scalar_select %p365, %s364, 11
        %s367 = smul.addr %s366, 8
        %s368 = scalar_lea.vmem %s7, %s367
        %s369 = smul.u32 4, %s18
        %s370 = smul.u32 4, %s18
        %p371 = scmp.lt.s32.totalorder %s370, 11
        %s372 = scalar_select %p371, %s370, 11
        %s373 = smul.addr %s372, 8
        %s374 = scalar_lea.vmem %s7, %s373
        %s375 = smul.u32 4, %s18
        %p377 = scmp.eq.s32.totalorder %s18, 0
        // Predicated region
        $region87: #{captions_lstm2_forward.6} parent=81 // pred_check
          %p378 = pneg %p377
        $region88: #{captions_lstm2_forward.6} parent=81 // pred_check_branch
          %380 = sbr.rel (%p378) target = $region90
        $region89: #{captions_lstm2_forward.6} parent=81 // pred_region
          %vm381 = vcmask 261120
          %382 = vst.msk [vmem:[#allocation2] sm:$0xff] %vm381, 0.0
          %383 = vst.msk [vmem:[#allocation3] sm:$0xff] %vm381, 0.0
          %384 = vst.msk [vmem:[#allocation4] sm:$0xff] %vm381, 0.0
          %385 = vst.msk [vmem:[#allocation5] sm:$0xff] %vm381, 0.0
          %v386 = vld [vmem:[%s1] sm:$0xff]
          %v387 = vpack.c.bf16 %v386, %v386
          %v388 = vld [vmem:[%s2] sm:$0xf]
          %v389 = vld [vmem:[%s2 + $0x4] sm:$0xf]
          %v390 = vld [vmem:[%s2 + $0x8] sm:$0xf]
          %v391 = vld [vmem:[%s2 + $0xc] sm:$0xf]
          %v396 = vunpack.c.l.b16 %v388
          %v397 = vunpack.c.l.b16 %v389
          %v398 = vunpack.c.l.b16 %v390
          %v399 = vunpack.c.l.b16 %v391
          %v400 = vpack.c.b16 %v397, %v396
          %v401 = vpack.c.b16 %v399, %v398
          %v405 = vsel %vm381, %v387, 0
          %407 = vmatprep.subr.bf16.mxu0 0
          %408 = vmatpush1.bf16.msra.mxu0 %v400
          %409 = vmatprep.subr.bf16.mxu0 0
          %410 = vmatpush1.bf16.msra.mxu0 %v401
          %411 = vmatprep.subr.bf16.mxu0 0
          %412 = vmatpush1.bf16.msra.mxu0 0
          %413 = vmatprep.subr.bf16.mxu0 0
          %414 = vmatpush1.bf16.msra.mxu0 0
          %415 = vmatprep.subr.bf16.mxu0 0
          %416 = vmatpush1.bf16.msra.mxu0 0
          %417 = vmatprep.subr.bf16.mxu0 0
          %418 = vmatpush1.bf16.msra.mxu0 0
          %419 = vmatprep.subr.bf16.mxu0 0
          %420 = vmatpush1.bf16.msra.mxu0 0
          %421 = vmatprep.subr.bf16.mxu0 0
          %422 = vmatpush1.bf16.msra.mxu0 0
          %423 = vmatprep.subr.bf16.mxu0 0
          %424 = vmatpush1.bf16.msra.mxu0 0
          %425 = vmatprep.subr.bf16.mxu0 0
          %426 = vmatpush1.bf16.msra.mxu0 0
          %427 = vmatprep.subr.bf16.mxu0 0
          %428 = vmatpush1.bf16.msra.mxu0 0
          %429 = vmatprep.subr.bf16.mxu0 0
          %430 = vmatpush1.bf16.msra.mxu0 0
          %431 = vmatprep.subr.bf16.mxu0 0
          %432 = vmatpush1.bf16.msra.mxu0 0
          %433 = vmatprep.subr.bf16.mxu0 0
          %434 = vmatpush1.bf16.msra.mxu0 0
          %435 = vmatprep.subr.bf16.mxu0 0
          %436 = vmatpush1.bf16.msra.mxu0 0
          %437 = vmatprep.subr.bf16.mxu0 0
          %438 = vmatpush1.bf16.msra.mxu0 0
          %439 = vmatprep.mubr.bf16.mxu0 0
          %440 = vmatmul.mubr.bf16.gmra.mrb[0].mxu0 %v405
          %v441 = vpop.f32.mrb[0].mxu0
          %v442 = vadd.f32 0.0, %v441
          %v443 = vpop.f32.mrb[0].mxu0
          %v444 = vpop.f32.mrb[0].mxu0
          %v445 = vpop.f32.mrb[0].mxu0
          %446 = vdwg.mxu0
          %447 = vst.msk [vmem:[#allocation6] sm:$0xff] %vm381, %v442
          %s448 = scalar_lea.vmem %s2, 16
          %v449 = vld [vmem:[%s448] sm:$0xf]
          %v450 = vld [vmem:[%s448 + $0x4] sm:$0xf]
          %v451 = vld [vmem:[%s448 + $0x8] sm:$0xf]
          %v452 = vld [vmem:[%s448 + $0xc] sm:$0xf]
          %v457 = vunpack.c.l.b16 %v449
          %v458 = vunpack.c.l.b16 %v450
          %v459 = vunpack.c.l.b16 %v451
          %v460 = vunpack.c.l.b16 %v452
          %v461 = vpack.c.b16 %v458, %v457
          %v462 = vpack.c.b16 %v460, %v459
          %465 = vmatprep.subr.bf16.mxu0 0
          %466 = vmatpush1.bf16.msra.mxu0 %v461
          %467 = vmatprep.subr.bf16.mxu0 0
          %468 = vmatpush1.bf16.msra.mxu0 %v462
          %469 = vmatprep.subr.bf16.mxu0 0
          %470 = vmatpush1.bf16.msra.mxu0 0
          %471 = vmatprep.subr.bf16.mxu0 0
          %472 = vmatpush1.bf16.msra.mxu0 0
          %473 = vmatprep.subr.bf16.mxu0 0
          %474 = vmatpush1.bf16.msra.mxu0 0
          %475 = vmatprep.subr.bf16.mxu0 0
          %476 = vmatpush1.bf16.msra.mxu0 0
          %477 = vmatprep.subr.bf16.mxu0 0
          %478 = vmatpush1.bf16.msra.mxu0 0
          %479 = vmatprep.subr.bf16.mxu0 0
          %480 = vmatpush1.bf16.msra.mxu0 0
          %481 = vmatprep.subr.bf16.mxu0 0
          %482 = vmatpush1.bf16.msra.mxu0 0
          %483 = vmatprep.subr.bf16.mxu0 0
          %484 = vmatpush1.bf16.msra.mxu0 0
          %485 = vmatprep.subr.bf16.mxu0 0
          %486 = vmatpush1.bf16.msra.mxu0 0
          %487 = vmatprep.subr.bf16.mxu0 0
          %488 = vmatpush1.bf16.msra.mxu0 0
          %489 = vmatprep.subr.bf16.mxu0 0
          %490 = vmatpush1.bf16.msra.mxu0 0
          %491 = vmatprep.subr.bf16.mxu0 0
          %492 = vmatpush1.bf16.msra.mxu0 0
          %493 = vmatprep.subr.bf16.mxu0 0
          %494 = vmatpush1.bf16.msra.mxu0 0
          %495 = vmatprep.subr.bf16.mxu0 0
          %496 = vmatpush1.bf16.msra.mxu0 0
          %497 = vmatprep.mubr.bf16.mxu0 0
          %498 = vmatmul.mubr.bf16.gmra.mrb[0].mxu0 %v405
          %v499 = vpop.f32.mrb[0].mxu0
          %v500 = vadd.f32 0.0, %v499
          %v501 = vpop.f32.mrb[0].mxu0
          %v502 = vpop.f32.mrb[0].mxu0
          %v503 = vpop.f32.mrb[0].mxu0
          %504 = vdwg.mxu0
          %s505 = scalar_lea.vmem [#allocation6], 8
          %506 = vst.msk [vmem:[%s505] sm:$0xff] %vm381, %v500
          %s507 = scalar_lea.vmem %s2, 32
          %v508 = vld [vmem:[%s507] sm:$0xf]
          %v509 = vld [vmem:[%s507 + $0x4] sm:$0xf]
          %v510 = vld [vmem:[%s507 + $0x8] sm:$0xf]
          %v511 = vld [vmem:[%s507 + $0xc] sm:$0xf]
          %v516 = vunpack.c.l.b16 %v508
          %v517 = vunpack.c.l.b16 %v509
          %v518 = vunpack.c.l.b16 %v510
          %v519 = vunpack.c.l.b16 %v511
          %v520 = vpack.c.b16 %v517, %v516
          %v521 = vpack.c.b16 %v519, %v518
          %524 = vmatprep.subr.bf16.mxu0 0
          %525 = vmatpush1.bf16.msra.mxu0 %v520
          %526 = vmatprep.subr.bf16.mxu0 0
          %527 = vmatpush1.bf16.msra.mxu0 %v521
          %528 = vmatprep.subr.bf16.mxu0 0
          %529 = vmatpush1.bf16.msra.mxu0 0
          %530 = vmatprep.subr.bf16.mxu0 0
          %531 = vmatpush1.bf16.msra.mxu0 0
          %532 = vmatprep.subr.bf16.mxu0 0
          %533 = vmatpush1.bf16.msra.mxu0 0
          %534 = vmatprep.subr.bf16.mxu0 0
          %535 = vmatpush1.bf16.msra.mxu0 0
          %536 = vmatprep.subr.bf16.mxu0 0
          %537 = vmatpush1.bf16.msra.mxu0 0
          %538 = vmatprep.subr.bf16.mxu0 0
          %539 = vmatpush1.bf16.msra.mxu0 0
          %540 = vmatprep.subr.bf16.mxu0 0
          %541 = vmatpush1.bf16.msra.mxu0 0
          %542 = vmatprep.subr.bf16.mxu0 0
          %543 = vmatpush1.bf16.msra.mxu0 0
          %544 = vmatprep.subr.bf16.mxu0 0
          %545 = vmatpush1.bf16.msra.mxu0 0
          %546 = vmatprep.subr.bf16.mxu0 0
          %547 = vmatpush1.bf16.msra.mxu0 0
          %548 = vmatprep.subr.bf16.mxu0 0
          %549 = vmatpush1.bf16.msra.mxu0 0
          %550 = vmatprep.subr.bf16.mxu0 0
          %551 = vmatpush1.bf16.msra.mxu0 0
          %552 = vmatprep.subr.bf16.mxu0 0
          %553 = vmatpush1.bf16.msra.mxu0 0
          %554 = vmatprep.subr.bf16.mxu0 0
          %555 = vmatpush1.bf16.msra.mxu0 0
          %556 = vmatprep.mubr.bf16.mxu0 0
          %557 = vmatmul.mubr.bf16.gmra.mrb[0].mxu0 %v405
          %v558 = vpop.f32.mrb[0].mxu0
          %v559 = vadd.f32 0.0, %v558
          %v560 = vpop.f32.mrb[0].mxu0
          %v561 = vpop.f32.mrb[0].mxu0
          %v562 = vpop.f32.mrb[0].mxu0
          %563 = vdwg.mxu0
          %s564 = scalar_lea.vmem [#allocation6], 16
          %565 = vst.msk [vmem:[%s564] sm:$0xff] %vm381, %v559
          %s566 = scalar_lea.vmem %s2, 48
          %v567 = vld [vmem:[%s566] sm:$0xf]
          %v568 = vld [vmem:[%s566 + $0x4] sm:$0xf]
          %v569 = vld [vmem:[%s566 + $0x8] sm:$0xf]
          %v570 = vld [vmem:[%s566 + $0xc] sm:$0xf]
          %v575 = vunpack.c.l.b16 %v567
          %v576 = vunpack.c.l.b16 %v568
          %v577 = vunpack.c.l.b16 %v569
          %v578 = vunpack.c.l.b16 %v570
          %v579 = vpack.c.b16 %v576, %v575
          %v580 = vpack.c.b16 %v578, %v577
          %583 = vmatprep.subr.bf16.mxu0 0
          %584 = vmatpush1.bf16.msra.mxu0 %v579
          %585 = vmatprep.subr.bf16.mxu0 0
          %586 = vmatpush1.bf16.msra.mxu0 %v580
          %587 = vmatprep.subr.bf16.mxu0 0
          %588 = vmatpush1.bf16.msra.mxu0 0
          %589 = vmatprep.subr.bf16.mxu0 0
          %590 = vmatpush1.bf16.msra.mxu0 0
          %591 = vmatprep.subr.bf16.mxu0 0
          %592 = vmatpush1.bf16.msra.mxu0 0
          %593 = vmatprep.subr.bf16.mxu0 0
          %594 = vmatpush1.bf16.msra.mxu0 0
          %595 = vmatprep.subr.bf16.mxu0 0
          %596 = vmatpush1.bf16.msra.mxu0 0
          %597 = vmatprep.subr.bf16.mxu0 0
          %598 = vmatpush1.bf16.msra.mxu0 0
          %599 = vmatprep.subr.bf16.mxu0 0
          %600 = vmatpush1.bf16.msra.mxu0 0
          %601 = vmatprep.subr.bf16.mxu0 0
          %602 = vmatpush1.bf16.msra.mxu0 0
          %603 = vmatprep.subr.bf16.mxu0 0
          %604 = vmatpush1.bf16.msra.mxu0 0
          %605 = vmatprep.subr.bf16.mxu0 0
          %606 = vmatpush1.bf16.msra.mxu0 0
          %607 = vmatprep.subr.bf16.mxu0 0
          %608 = vmatpush1.bf16.msra.mxu0 0
          %609 = vmatprep.subr.bf16.mxu0 0
          %610 = vmatpush1.bf16.msra.mxu0 0
          %611 = vmatprep.subr.bf16.mxu0 0
          %612 = vmatpush1.bf16.msra.mxu0 0
          %613 = vmatprep.subr.bf16.mxu0 0
          %614 = vmatpush1.bf16.msra.mxu0 0
          %615 = vmatprep.mubr.bf16.mxu0 0
          %616 = vmatmul.mubr.bf16.gmra.mrb[0].mxu0 %v405
          %v617 = vpop.f32.mrb[0].mxu0
          %v618 = vadd.f32 0.0, %v617
          %v619 = vpop.f32.mrb[0].mxu0
          %v620 = vpop.f32.mrb[0].mxu0
          %v621 = vpop.f32.mrb[0].mxu0
          %622 = vdwg.mxu0
          %s623 = scalar_lea.vmem [#allocation6], 24
          %624 = vst.msk [vmem:[%s623] sm:$0xff] %vm381, %v618
        $region90: #{captions_lstm2_forward.6} parent=81 // pred_fallthru
          _
        %v625 = vld [vmem:[#allocation2] sm:$0xff]
        %v626 = vld [vmem:[#allocation3] sm:$0xff]
        %v627 = vpack.c.bf16 %v625, %v625
        %v628 = vld [vmem:[%s340] sm:$0xff]
        %v629 = vld [vmem:[#allocation6] sm:$0xff]
        %v630 = vadd.f32 %v628, %v629
        %v631 = vld [vmem:[%s3] sm:$0xf]
        %v632 = vld [vmem:[%s3 + $0x4] sm:$0xf]
        %v633 = vld [vmem:[%s3 + $0x8] sm:$0xf]
        %v634 = vld [vmem:[%s3 + $0xc] sm:$0xf]
        %v639 = vunpack.c.l.b16 %v631
        %v640 = vunpack.c.l.b16 %v632
        %v641 = vunpack.c.l.b16 %v633
        %v642 = vunpack.c.l.b16 %v634
        %v643 = vpack.c.b16 %v640, %v639
        %v644 = vpack.c.b16 %v642, %v641
        %vm647 = vcmask 261120
        %v649 = vsel %vm647, %v627, 0
        %651 = vmatprep.subr.bf16.mxu0 0
        %652 = vmatpush1.bf16.msra.mxu0 %v643
        %653 = vmatprep.subr.bf16.mxu0 0
        %654 = vmatpush1.bf16.msra.mxu0 %v644
        %655 = vmatprep.subr.bf16.mxu0 0
        %656 = vmatpush1.bf16.msra.mxu0 0
        %657 = vmatprep.subr.bf16.mxu0 0
        %658 = vmatpush1.bf16.msra.mxu0 0
        %659 = vmatprep.subr.bf16.mxu0 0
        %660 = vmatpush1.bf16.msra.mxu0 0
        %661 = vmatprep.subr.bf16.mxu0 0
        %662 = vmatpush1.bf16.msra.mxu0 0
        %663 = vmatprep.subr.bf16.mxu0 0
        %664 = vmatpush1.bf16.msra.mxu0 0
        %665 = vmatprep.subr.bf16.mxu0 0
        %666 = vmatpush1.bf16.msra.mxu0 0
        %667 = vmatprep.subr.bf16.mxu0 0
        %668 = vmatpush1.bf16.msra.mxu0 0
        %669 = vmatprep.subr.bf16.mxu0 0
        %670 = vmatpush1.bf16.msra.mxu0 0
        %671 = vmatprep.subr.bf16.mxu0 0
        %672 = vmatpush1.bf16.msra.mxu0 0
        %673 = vmatprep.subr.bf16.mxu0 0
        %674 = vmatpush1.bf16.msra.mxu0 0
        %675 = vmatprep.subr.bf16.mxu0 0
        %676 = vmatpush1.bf16.msra.mxu0 0
        %677 = vmatprep.subr.bf16.mxu0 0
        %678 = vmatpush1.bf16.msra.mxu0 0
        %679 = vmatprep.subr.bf16.mxu0 0
        %680 = vmatpush1.bf16.msra.mxu0 0
        %681 = vmatprep.subr.bf16.mxu0 0
        %682 = vmatpush1.bf16.msra.mxu0 0
        %683 = vmatprep.mubr.bf16.mxu0 0
        %684 = vmatmul.mubr.bf16.gmra.mrb[0].mxu0 %v649
        %v685 = vpop.f32.mrb[0].mxu0
        %v686 = vadd.f32 0.0, %v685
        %v687 = vpop.f32.mrb[0].mxu0
        %v688 = vpop.f32.mrb[0].mxu0
        %v689 = vpop.f32.mrb[0].mxu0
        %690 = vdwg.mxu0
        %v691 = vadd.f32 %v630, %v686
        %v692 = vxor.u32 %v691, 2147483648
        %v693 = vmul.f32 %v692, 1.442695
        %v694 = vpow.pop %v693
        %v695 = vadd.f32 %v694, 1.0
        %v696 = vrcp.pop %v695
        %v697 = vmul.f32 1.0, %v696
        %s698 = sadd.s32 0, 32
        %s699 = scalar_lea.vmem %s340, %s698 [#allocation7]
        %v700 = vld [vmem:[%s699] sm:$0xff]
        %s701 = scalar_lea.vmem [#allocation6], 8
        %v702 = vld [vmem:[%s701] sm:$0xff]
        %v703 = vadd.f32 %v700, %v702
        %s704 = scalar_lea.vmem %s3, 16
        %v705 = vld [vmem:[%s704] sm:$0xf]
        %v706 = vld [vmem:[%s704 + $0x4] sm:$0xf]
        %v707 = vld [vmem:[%s704 + $0x8] sm:$0xf]
        %v708 = vld [vmem:[%s704 + $0xc] sm:$0xf]
        %v713 = vunpack.c.l.b16 %v705
        %v714 = vunpack.c.l.b16 %v706
        %v715 = vunpack.c.l.b16 %v707
        %v716 = vunpack.c.l.b16 %v708
        %v717 = vpack.c.b16 %v714, %v713
        %v718 = vpack.c.b16 %v716, %v715
        %721 = vmatprep.subr.bf16.mxu0 0
        %722 = vmatpush1.bf16.msra.mxu0 %v717
        %723 = vmatprep.subr.bf16.mxu0 0
        %724 = vmatpush1.bf16.msra.mxu0 %v718
        %725 = vmatprep.subr.bf16.mxu0 0
        %726 = vmatpush1.bf16.msra.mxu0 0
        %727 = vmatprep.subr.bf16.mxu0 0
        %728 = vmatpush1.bf16.msra.mxu0 0
        %729 = vmatprep.subr.bf16.mxu0 0
        %730 = vmatpush1.bf16.msra.mxu0 0
        %731 = vmatprep.subr.bf16.mxu0 0
        %732 = vmatpush1.bf16.msra.mxu0 0
        %733 = vmatprep.subr.bf16.mxu0 0
        %734 = vmatpush1.bf16.msra.mxu0 0
        %735 = vmatprep.subr.bf16.mxu0 0
        %736 = vmatpush1.bf16.msra.mxu0 0
        %737 = vmatprep.subr.bf16.mxu0 0
        %738 = vmatpush1.bf16.msra.mxu0 0
        %739 = vmatprep.subr.bf16.mxu0 0
        %740 = vmatpush1.bf16.msra.mxu0 0
        %741 = vmatprep.subr.bf16.mxu0 0
        %742 = vmatpush1.bf16.msra.mxu0 0
        %743 = vmatprep.subr.bf16.mxu0 0
        %744 = vmatpush1.bf16.msra.mxu0 0
        %745 = vmatprep.subr.bf16.mxu0 0
        %746 = vmatpush1.bf16.msra.mxu0 0
        %747 = vmatprep.subr.bf16.mxu0 0
        %748 = vmatpush1.bf16.msra.mxu0 0
        %749 = vmatprep.subr.bf16.mxu0 0
        %750 = vmatpush1.bf16.msra.mxu0 0
        %751 = vmatprep.subr.bf16.mxu0 0
        %752 = vmatpush1.bf16.msra.mxu0 0
        %753 = vmatprep.mubr.bf16.mxu0 0
        %754 = vmatmul.mubr.bf16.gmra.mrb[0].mxu0 %v649
        %v755 = vpop.f32.mrb[0].mxu0
        %v756 = vadd.f32 0.0, %v755
        %v757 = vpop.f32.mrb[0].mxu0
        %v758 = vpop.f32.mrb[0].mxu0
        %v759 = vpop.f32.mrb[0].mxu0
        %760 = vdwg.mxu0
        %v761 = vadd.f32 %v703, %v756
        %v762 = vxor.u32 %v761, 2147483648
        %v763 = vmul.f32 %v762, 1.442695
        %v764 = vpow.pop %v763
        %v765 = vadd.f32 %v764, 1.0
        %v766 = vrcp.pop %v765
        %v767 = vmul.f32 1.0, %v766
        %s768 = sadd.s32 0, 64
        %s769 = scalar_lea.vmem %s340, %s768 [#allocation7]
        %v770 = vld [vmem:[%s769] sm:$0xff]
        %s771 = scalar_lea.vmem [#allocation6], 16
        %v772 = vld [vmem:[%s771] sm:$0xff]
        %v773 = vadd.f32 %v770, %v772
        %s774 = scalar_lea.vmem %s3, 32
        %v775 = vld [vmem:[%s774] sm:$0xf]
        %v776 = vld [vmem:[%s774 + $0x4] sm:$0xf]
        %v777 = vld [vmem:[%s774 + $0x8] sm:$0xf]
        %v778 = vld [vmem:[%s774 + $0xc] sm:$0xf]
        %v783 = vunpack.c.l.b16 %v775
        %v784 = vunpack.c.l.b16 %v776
        %v785 = vunpack.c.l.b16 %v777
        %v786 = vunpack.c.l.b16 %v778
        %v787 = vpack.c.b16 %v784, %v783
        %v788 = vpack.c.b16 %v786, %v785
        %791 = vmatprep.subr.bf16.mxu0 0
        %792 = vmatpush1.bf16.msra.mxu0 %v787
        %793 = vmatprep.subr.bf16.mxu0 0
        %794 = vmatpush1.bf16.msra.mxu0 %v788
        %795 = vmatprep.subr.bf16.mxu0 0
        %796 = vmatpush1.bf16.msra.mxu0 0
        %797 = vmatprep.subr.bf16.mxu0 0
        %798 = vmatpush1.bf16.msra.mxu0 0
        %799 = vmatprep.subr.bf16.mxu0 0
        %800 = vmatpush1.bf16.msra.mxu0 0
        %801 = vmatprep.subr.bf16.mxu0 0
        %802 = vmatpush1.bf16.msra.mxu0 0
        %803 = vmatprep.subr.bf16.mxu0 0
        %804 = vmatpush1.bf16.msra.mxu0 0
        %805 = vmatprep.subr.bf16.mxu0 0
        %806 = vmatpush1.bf16.msra.mxu0 0
        %807 = vmatprep.subr.bf16.mxu0 0
        %808 = vmatpush1.bf16.msra.mxu0 0
        %809 = vmatprep.subr.bf16.mxu0 0
        %810 = vmatpush1.bf16.msra.mxu0 0
        %811 = vmatprep.subr.bf16.mxu0 0
        %812 = vmatpush1.bf16.msra.mxu0 0
        %813 = vmatprep.subr.bf16.mxu0 0
        %814 = vmatpush1.bf16.msra.mxu0 0
        %815 = vmatprep.subr.bf16.mxu0 0
        %816 = vmatpush1.bf16.msra.mxu0 0
        %817 = vmatprep.subr.bf16.mxu0 0
        %818 = vmatpush1.bf16.msra.mxu0 0
        %819 = vmatprep.subr.bf16.mxu0 0
        %820 = vmatpush1.bf16.msra.mxu0 0
        %821 = vmatprep.subr.bf16.mxu0 0
        %822 = vmatpush1.bf16.msra.mxu0 0
        %823 = vmatprep.mubr.bf16.mxu0 0
        %824 = vmatmul.mubr.bf16.gmra.mrb[0].mxu0 %v649
        %v825 = vpop.f32.mrb[0].mxu0
        %v826 = vadd.f32 0.0, %v825
        %v827 = vpop.f32.mrb[0].mxu0
        %v828 = vpop.f32.mrb[0].mxu0
        %v829 = vpop.f32.mrb[0].mxu0
        %830 = vdwg.mxu0
        %v831 = vadd.f32 %v773, %v826
        %v832 = vtanh.pop %v831
        %s833 = sadd.s32 0, 96
        %s834 = scalar_lea.vmem %s340, %s833 [#allocation7]
        %v835 = vld [vmem:[%s834] sm:$0xff]
        %s836 = scalar_lea.vmem [#allocation6], 24
        %v837 = vld [vmem:[%s836] sm:$0xff]
        %v838 = vadd.f32 %v835, %v837
        %s839 = scalar_lea.vmem %s3, 48
        %v840 = vld [vmem:[%s839] sm:$0xf]
        %v841 = vld [vmem:[%s839 + $0x4] sm:$0xf]
        %v842 = vld [vmem:[%s839 + $0x8] sm:$0xf]
        %v843 = vld [vmem:[%s839 + $0xc] sm:$0xf]
        %v848 = vunpack.c.l.b16 %v840
        %v849 = vunpack.c.l.b16 %v841
        %v850 = vunpack.c.l.b16 %v842
        %v851 = vunpack.c.l.b16 %v843
        %v852 = vpack.c.b16 %v849, %v848
        %v853 = vpack.c.b16 %v851, %v850
        %856 = vmatprep.subr.bf16.mxu0 0
        %857 = vmatpush1.bf16.msra.mxu0 %v852
        %858 = vmatprep.subr.bf16.mxu0 0
        %859 = vmatpush1.bf16.msra.mxu0 %v853
        %860 = vmatprep.subr.bf16.mxu0 0
        %861 = vmatpush1.bf16.msra.mxu0 0
        %862 = vmatprep.subr.bf16.mxu0 0
        %863 = vmatpush1.bf16.msra.mxu0 0
        %864 = vmatprep.subr.bf16.mxu0 0
        %865 = vmatpush1.bf16.msra.mxu0 0
        %866 = vmatprep.subr.bf16.mxu0 0
        %867 = vmatpush1.bf16.msra.mxu0 0
        %868 = vmatprep.subr.bf16.mxu0 0
        %869 = vmatpush1.bf16.msra.mxu0 0
        %870 = vmatprep.subr.bf16.mxu0 0
        %871 = vmatpush1.bf16.msra.mxu0 0
        %872 = vmatprep.subr.bf16.mxu0 0
        %873 = vmatpush1.bf16.msra.mxu0 0
        %874 = vmatprep.subr.bf16.mxu0 0
        %875 = vmatpush1.bf16.msra.mxu0 0
        %876 = vmatprep.subr.bf16.mxu0 0
        %877 = vmatpush1.bf16.msra.mxu0 0
        %878 = vmatprep.subr.bf16.mxu0 0
        %879 = vmatpush1.bf16.msra.mxu0 0
        %880 = vmatprep.subr.bf16.mxu0 0
        %881 = vmatpush1.bf16.msra.mxu0 0
        %882 = vmatprep.subr.bf16.mxu0 0
        %883 = vmatpush1.bf16.msra.mxu0 0
        %884 = vmatprep.subr.bf16.mxu0 0
        %885 = vmatpush1.bf16.msra.mxu0 0
        %886 = vmatprep.subr.bf16.mxu0 0
        %887 = vmatpush1.bf16.msra.mxu0 0
        %888 = vmatprep.mubr.bf16.mxu0 0
        %889 = vmatmul.mubr.bf16.gmra.mrb[0].mxu0 %v649
        %v890 = vpop.f32.mrb[0].mxu0
        %v891 = vadd.f32 0.0, %v890
        %v892 = vpop.f32.mrb[0].mxu0
        %v893 = vpop.f32.mrb[0].mxu0
        %v894 = vpop.f32.mrb[0].mxu0
        %895 = vdwg.mxu0
        %v896 = vadd.f32 %v838, %v891
        %v897 = vxor.u32 %v896, 2147483648
        %v898 = vmul.f32 %v897, 1.442695
        %v899 = vpow.pop %v898
        %v900 = vadd.f32 %v899, 1.0
        %v901 = vrcp.pop %v900
        %v902 = vmul.f32 1.0, %v901
        %v903 = vmul.f32 %v767, %v626
        %v904 = vmul.f32 %v697, %v832
        %v905 = vadd.f32 %v903, %v904
        %v906 = vtanh.pop %v905
        %v907 = vmul.f32 %v902, %v906
        %908 = vst.msk [vmem:[#allocation3] sm:$0xff] %vm647, %v905
        %909 = vst.msk [vmem:[#allocation2] sm:$0xff] %vm647, %v907
        %v910 = vld [vmem:[#allocation4] sm:$0xff]
        %v911 = vld [vmem:[#allocation5] sm:$0xff]
        %v912 = vpack.c.bf16 %v907, %v907
        %v913 = vpack.c.bf16 %v910, %v910
        %v914 = vld [vmem:[%s4] sm:$0xf]
        %v915 = vld [vmem:[%s4 + $0x4] sm:$0xf]
        %v916 = vld [vmem:[%s4 + $0x8] sm:$0xf]
        %v917 = vld [vmem:[%s4 + $0xc] sm:$0xf]
        %v918 = vld [vmem:[%s5] sm:$0xf]
        %v919 = vld [vmem:[%s5 + $0x4] sm:$0xf]
        %v920 = vld [vmem:[%s5 + $0x8] sm:$0xf]
        %v921 = vld [vmem:[%s5 + $0xc] sm:$0xf]
        %v926 = vunpack.c.l.b16 %v918
        %v927 = vunpack.c.l.b16 %v919
        %v928 = vunpack.c.l.b16 %v920
        %v929 = vunpack.c.l.b16 %v921
        %v930 = vpack.c.b16 %v927, %v926
        %v931 = vpack.c.b16 %v929, %v928
        %v935 = vsel %vm647, %v913, 0
        %937 = vmatprep.subr.bf16.mxu0 0
        %938 = vmatpush1.bf16.msra.mxu0 %v930
        %939 = vmatprep.subr.bf16.mxu0 0
        %940 = vmatpush1.bf16.msra.mxu0 %v931
        %941 = vmatprep.subr.bf16.mxu0 0
        %942 = vmatpush1.bf16.msra.mxu0 0
        %943 = vmatprep.subr.bf16.mxu0 0
        %944 = vmatpush1.bf16.msra.mxu0 0
        %945 = vmatprep.subr.bf16.mxu0 0
        %946 = vmatpush1.bf16.msra.mxu0 0
        %947 = vmatprep.subr.bf16.mxu0 0
        %948 = vmatpush1.bf16.msra.mxu0 0
        %949 = vmatprep.subr.bf16.mxu0 0
        %950 = vmatpush1.bf16.msra.mxu0 0
        %951 = vmatprep.subr.bf16.mxu0 0
        %952 = vmatpush1.bf16.msra.mxu0 0
        %953 = vmatprep.subr.bf16.mxu0 0
        %954 = vmatpush1.bf16.msra.mxu0 0
        %955 = vmatprep.subr.bf16.mxu0 0
        %956 = vmatpush1.bf16.msra.mxu0 0
        %957 = vmatprep.subr.bf16.mxu0 0
        %958 = vmatpush1.bf16.msra.mxu0 0
        %959 = vmatprep.subr.bf16.mxu0 0
        %960 = vmatpush1.bf16.msra.mxu0 0
        %961 = vmatprep.subr.bf16.mxu0 0
        %962 = vmatpush1.bf16.msra.mxu0 0
        %963 = vmatprep.subr.bf16.mxu0 0
        %964 = vmatpush1.bf16.msra.mxu0 0
        %965 = vmatprep.subr.bf16.mxu0 0
        %966 = vmatpush1.bf16.msra.mxu0 0
        %967 = vmatprep.subr.bf16.mxu0 0
        %968 = vmatpush1.bf16.msra.mxu0 0
        %969 = vmatprep.mubr.bf16.mxu0 0
        %970 = vmatmul.mubr.bf16.gmra.mrb[0].mxu0 %v935
        %v971 = vpop.f32.mrb[0].mxu0
        %v972 = vadd.f32 0.0, %v971
        %v973 = vpop.f32.mrb[0].mxu0
        %v974 = vpop.f32.mrb[0].mxu0
        %v975 = vpop.f32.mrb[0].mxu0
        %976 = vdwg.mxu0
        %v981 = vunpack.c.l.b16 %v914
        %v982 = vunpack.c.l.b16 %v915
        %v983 = vunpack.c.l.b16 %v916
        %v984 = vunpack.c.l.b16 %v917
        %v985 = vpack.c.b16 %v982, %v981
        %v986 = vpack.c.b16 %v984, %v983
        %v990 = vsel %vm647, %v912, 0
        %992 = vmatprep.subr.bf16.mxu0 0
        %993 = vmatpush1.bf16.msra.mxu0 %v985
        %994 = vmatprep.subr.bf16.mxu0 0
        %995 = vmatpush1.bf16.msra.mxu0 %v986
        %996 = vmatprep.subr.bf16.mxu0 0
        %997 = vmatpush1.bf16.msra.mxu0 0
        %998 = vmatprep.subr.bf16.mxu0 0
        %999 = vmatpush1.bf16.msra.mxu0 0
        %1000 = vmatprep.subr.bf16.mxu0 0
        %1001 = vmatpush1.bf16.msra.mxu0 0
        %1002 = vmatprep.subr.bf16.mxu0 0
        %1003 = vmatpush1.bf16.msra.mxu0 0
        %1004 = vmatprep.subr.bf16.mxu0 0
        %1005 = vmatpush1.bf16.msra.mxu0 0
        %1006 = vmatprep.subr.bf16.mxu0 0
        %1007 = vmatpush1.bf16.msra.mxu0 0
        %1008 = vmatprep.subr.bf16.mxu0 0
        %1009 = vmatpush1.bf16.msra.mxu0 0
        %1010 = vmatprep.subr.bf16.mxu0 0
        %1011 = vmatpush1.bf16.msra.mxu0 0
        %1012 = vmatprep.subr.bf16.mxu0 0
        %1013 = vmatpush1.bf16.msra.mxu0 0
        %1014 = vmatprep.subr.bf16.mxu0 0
        %1015 = vmatpush1.bf16.msra.mxu0 0
        %1016 = vmatprep.subr.bf16.mxu0 0
        %1017 = vmatpush1.bf16.msra.mxu0 0
        %1018 = vmatprep.subr.bf16.mxu0 0
        %1019 = vmatpush1.bf16.msra.mxu0 0
        %1020 = vmatprep.subr.bf16.mxu0 0
        %1021 = vmatpush1.bf16.msra.mxu0 0
        %1022 = vmatprep.subr.bf16.mxu0 0
        %1023 = vmatpush1.bf16.msra.mxu0 0
        %1024 = vmatprep.mubr.bf16.mxu0 0
        %1025 = vmatmul.mubr.bf16.gmra.mrb[0].mxu0 %v990
        %v1026 = vpop.f32.mrb[0].mxu0
        %v1027 = vadd.f32 %v972, %v1026
        %v1028 = vpop.f32.mrb[0].mxu0
        %v1029 = vpop.f32.mrb[0].mxu0
        %v1030 = vpop.f32.mrb[0].mxu0
        %1031 = vdwg.mxu0
        %v1032 = vld [vmem:[%s6] sm:$0x1]
        %v1034 = vlaneseq
        %v1035 = vshrl.u32 %v1034, 7
        %v1036 = vsub.s32 0, %v1035
        %v1037 = vrot.slane %v1032, %v1036
        %v1039 = vadd.f32 %v1027, %v1037
        %v1040 = vxor.u32 %v1039, 2147483648
        %v1041 = vmul.f32 %v1040, 1.442695
        %v1042 = vpow.pop %v1041
        %v1043 = vadd.f32 %v1042, 1.0
        %v1044 = vrcp.pop %v1043
        %v1045 = vmul.f32 1.0, %v1044
        %s1046 = scalar_lea.vmem %s4, 16
        %v1047 = vld [vmem:[%s1046] sm:$0xf]
        %v1048 = vld [vmem:[%s1046 + $0x4] sm:$0xf]
        %v1049 = vld [vmem:[%s1046 + $0x8] sm:$0xf]
        %v1050 = vld [vmem:[%s1046 + $0xc] sm:$0xf]
        %s1051 = scalar_lea.vmem %s5, 16
        %v1052 = vld [vmem:[%s1051] sm:$0xf]
        %v1053 = vld [vmem:[%s1051 + $0x4] sm:$0xf]
        %v1054 = vld [vmem:[%s1051 + $0x8] sm:$0xf]
        %v1055 = vld [vmem:[%s1051 + $0xc] sm:$0xf]
        %v1060 = vunpack.c.l.b16 %v1052
        %v1061 = vunpack.c.l.b16 %v1053
        %v1062 = vunpack.c.l.b16 %v1054
        %v1063 = vunpack.c.l.b16 %v1055
        %v1064 = vpack.c.b16 %v1061, %v1060
        %v1065 = vpack.c.b16 %v1063, %v1062
        %1068 = vmatprep.subr.bf16.mxu0 0
        %1069 = vmatpush1.bf16.msra.mxu0 %v1064
        %1070 = vmatprep.subr.bf16.mxu0 0
        %1071 = vmatpush1.bf16.msra.mxu0 %v1065
        %1072 = vmatprep.subr.bf16.mxu0 0
        %1073 = vmatpush1.bf16.msra.mxu0 0
        %1074 = vmatprep.subr.bf16.mxu0 0
        %1075 = vmatpush1.bf16.msra.mxu0 0
        %1076 = vmatprep.subr.bf16.mxu0 0
        %1077 = vmatpush1.bf16.msra.mxu0 0
        %1078 = vmatprep.subr.bf16.mxu0 0
        %1079 = vmatpush1.bf16.msra.mxu0 0
        %1080 = vmatprep.subr.bf16.mxu0 0
        %1081 = vmatpush1.bf16.msra.mxu0 0
        %1082 = vmatprep.subr.bf16.mxu0 0
        %1083 = vmatpush1.bf16.msra.mxu0 0
        %1084 = vmatprep.subr.bf16.mxu0 0
        %1085 = vmatpush1.bf16.msra.mxu0 0
        %1086 = vmatprep.subr.bf16.mxu0 0
        %1087 = vmatpush1.bf16.msra.mxu0 0
        %1088 = vmatprep.subr.bf16.mxu0 0
        %1089 = vmatpush1.bf16.msra.mxu0 0
        %1090 = vmatprep.subr.bf16.mxu0 0
        %1091 = vmatpush1.bf16.msra.mxu0 0
        %1092 = vmatprep.subr.bf16.mxu0 0
        %1093 = vmatpush1.bf16.msra.mxu0 0
        %1094 = vmatprep.subr.bf16.mxu0 0
        %1095 = vmatpush1.bf16.msra.mxu0 0
        %1096 = vmatprep.subr.bf16.mxu0 0
        %1097 = vmatpush1.bf16.msra.mxu0 0
        %1098 = vmatprep.subr.bf16.mxu0 0
        %1099 = vmatpush1.bf16.msra.mxu0 0
        %1100 = vmatprep.mubr.bf16.mxu0 0
        %1101 = vmatmul.mubr.bf16.gmra.mrb[0].mxu0 %v935
        %v1102 = vpop.f32.mrb[0].mxu0
        %v1103 = vadd.f32 0.0, %v1102
        %v1104 = vpop.f32.mrb[0].mxu0
        %v1105 = vpop.f32.mrb[0].mxu0
        %v1106 = vpop.f32.mrb[0].mxu0
        %1107 = vdwg.mxu0
        %v1112 = vunpack.c.l.b16 %v1047
        %v1113 = vunpack.c.l.b16 %v1048
        %v1114 = vunpack.c.l.b16 %v1049
        %v1115 = vunpack.c.l.b16 %v1050
        %v1116 = vpack.c.b16 %v1113, %v1112
        %v1117 = vpack.c.b16 %v1115, %v1114
        %1120 = vmatprep.subr.bf16.mxu0 0
        %1121 = vmatpush1.bf16.msra.mxu0 %v1116
        %1122 = vmatprep.subr.bf16.mxu0 0
        %1123 = vmatpush1.bf16.msra.mxu0 %v1117
        %1124 = vmatprep.subr.bf16.mxu0 0
        %1125 = vmatpush1.bf16.msra.mxu0 0
        %1126 = vmatprep.subr.bf16.mxu0 0
        %1127 = vmatpush1.bf16.msra.mxu0 0
        %1128 = vmatprep.subr.bf16.mxu0 0
        %1129 = vmatpush1.bf16.msra.mxu0 0
        %1130 = vmatprep.subr.bf16.mxu0 0
        %1131 = vmatpush1.bf16.msra.mxu0 0
        %1132 = vmatprep.subr.bf16.mxu0 0
        %1133 = vmatpush1.bf16.msra.mxu0 0
        %1134 = vmatprep.subr.bf16.mxu0 0
        %1135 = vmatpush1.bf16.msra.mxu0 0
        %1136 = vmatprep.subr.bf16.mxu0 0
        %1137 = vmatpush1.bf16.msra.mxu0 0
        %1138 = vmatprep.subr.bf16.mxu0 0
        %1139 = vmatpush1.bf16.msra.mxu0 0
        %1140 = vmatprep.subr.bf16.mxu0 0
        %1141 = vmatpush1.bf16.msra.mxu0 0
        %1142 = vmatprep.subr.bf16.mxu0 0
        %1143 = vmatpush1.bf16.msra.mxu0 0
        %1144 = vmatprep.subr.bf16.mxu0 0
        %1145 = vmatpush1.bf16.msra.mxu0 0
        %1146 = vmatprep.subr.bf16.mxu0 0
        %1147 = vmatpush1.bf16.msra.mxu0 0
        %1148 = vmatprep.subr.bf16.mxu0 0
        %1149 = vmatpush1.bf16.msra.mxu0 0
        %1150 = vmatprep.subr.bf16.mxu0 0
        %1151 = vmatpush1.bf16.msra.mxu0 0
        %1152 = vmatprep.mubr.bf16.mxu0 0
        %1153 = vmatmul.mubr.bf16.gmra.mrb[0].mxu0 %v990
        %v1154 = vpop.f32.mrb[0].mxu0
        %v1155 = vadd.f32 %v1103, %v1154
        %v1156 = vpop.f32.mrb[0].mxu0
        %v1157 = vpop.f32.mrb[0].mxu0
        %v1158 = vpop.f32.mrb[0].mxu0
        %1159 = vdwg.mxu0
        %s1160 = scalar_lea.vmem %s6, 1
        %v1161 = vld [vmem:[%s1160] sm:$0x1]
        %v1163 = vlaneseq
        %v1164 = vshrl.u32 %v1163, 7
        %v1165 = vsub.s32 0, %v1164
        %v1166 = vrot.slane %v1161, %v1165
        %v1168 = vadd.f32 %v1155, %v1166
        %v1169 = vxor.u32 %v1168, 2147483648
        %v1170 = vmul.f32 %v1169, 1.442695
        %v1171 = vpow.pop %v1170
        %v1172 = vadd.f32 %v1171, 1.0
        %v1173 = vrcp.pop %v1172
        %v1174 = vmul.f32 1.0, %v1173
        %s1175 = scalar_lea.vmem %s4, 32
        %v1176 = vld [vmem:[%s1175] sm:$0xf]
        %v1177 = vld [vmem:[%s1175 + $0x4] sm:$0xf]
        %v1178 = vld [vmem:[%s1175 + $0x8] sm:$0xf]
        %v1179 = vld [vmem:[%s1175 + $0xc] sm:$0xf]
        %s1180 = scalar_lea.vmem %s5, 32
        %v1181 = vld [vmem:[%s1180] sm:$0xf]
        %v1182 = vld [vmem:[%s1180 + $0x4] sm:$0xf]
        %v1183 = vld [vmem:[%s1180 + $0x8] sm:$0xf]
        %v1184 = vld [vmem:[%s1180 + $0xc] sm:$0xf]
        %v1189 = vunpack.c.l.b16 %v1181
        %v1190 = vunpack.c.l.b16 %v1182
        %v1191 = vunpack.c.l.b16 %v1183
        %v1192 = vunpack.c.l.b16 %v1184
        %v1193 = vpack.c.b16 %v1190, %v1189
        %v1194 = vpack.c.b16 %v1192, %v1191
        %1197 = vmatprep.subr.bf16.mxu0 0
        %1198 = vmatpush1.bf16.msra.mxu0 %v1193
        %1199 = vmatprep.subr.bf16.mxu0 0
        %1200 = vmatpush1.bf16.msra.mxu0 %v1194
        %1201 = vmatprep.subr.bf16.mxu0 0
        %1202 = vmatpush1.bf16.msra.mxu0 0
        %1203 = vmatprep.subr.bf16.mxu0 0
        %1204 = vmatpush1.bf16.msra.mxu0 0
        %1205 = vmatprep.subr.bf16.mxu0 0
        %1206 = vmatpush1.bf16.msra.mxu0 0
        %1207 = vmatprep.subr.bf16.mxu0 0
        %1208 = vmatpush1.bf16.msra.mxu0 0
        %1209 = vmatprep.subr.bf16.mxu0 0
        %1210 = vmatpush1.bf16.msra.mxu0 0
        %1211 = vmatprep.subr.bf16.mxu0 0
        %1212 = vmatpush1.bf16.msra.mxu0 0
        %1213 = vmatprep.subr.bf16.mxu0 0
        %1214 = vmatpush1.bf16.msra.mxu0 0
        %1215 = vmatprep.subr.bf16.mxu0 0
        %1216 = vmatpush1.bf16.msra.mxu0 0
        %1217 = vmatprep.subr.bf16.mxu0 0
        %1218 = vmatpush1.bf16.msra.mxu0 0
        %1219 = vmatprep.subr.bf16.mxu0 0
        %1220 = vmatpush1.bf16.msra.mxu0 0
        %1221 = vmatprep.subr.bf16.mxu0 0
        %1222 = vmatpush1.bf16.msra.mxu0 0
        %1223 = vmatprep.subr.bf16.mxu0 0
        %1224 = vmatpush1.bf16.msra.mxu0 0
        %1225 = vmatprep.subr.bf16.mxu0 0
        %1226 = vmatpush1.bf16.msra.mxu0 0
        %1227 = vmatprep.subr.bf16.mxu0 0
        %1228 = vmatpush1.bf16.msra.mxu0 0
        %1229 = vmatprep.mubr.bf16.mxu0 0
        %1230 = vmatmul.mubr.bf16.gmra.mrb[0].mxu0 %v935
        %v1231 = vpop.f32.mrb[0].mxu0
        %v1232 = vadd.f32 0.0, %v1231
        %v1233 = vpop.f32.mrb[0].mxu0
        %v1234 = vpop.f32.mrb[0].mxu0
        %v1235 = vpop.f32.mrb[0].mxu0
        %1236 = vdwg.mxu0
        %v1241 = vunpack.c.l.b16 %v1176
        %v1242 = vunpack.c.l.b16 %v1177
        %v1243 = vunpack.c.l.b16 %v1178
        %v1244 = vunpack.c.l.b16 %v1179
        %v1245 = vpack.c.b16 %v1242, %v1241
        %v1246 = vpack.c.b16 %v1244, %v1243
        %1249 = vmatprep.subr.bf16.mxu0 0
        %1250 = vmatpush1.bf16.msra.mxu0 %v1245
        %1251 = vmatprep.subr.bf16.mxu0 0
        %1252 = vmatpush1.bf16.msra.mxu0 %v1246
        %1253 = vmatprep.subr.bf16.mxu0 0
        %1254 = vmatpush1.bf16.msra.mxu0 0
        %1255 = vmatprep.subr.bf16.mxu0 0
        %1256 = vmatpush1.bf16.msra.mxu0 0
        %1257 = vmatprep.subr.bf16.mxu0 0
        %1258 = vmatpush1.bf16.msra.mxu0 0
        %1259 = vmatprep.subr.bf16.mxu0 0
        %1260 = vmatpush1.bf16.msra.mxu0 0
        %1261 = vmatprep.subr.bf16.mxu0 0
        %1262 = vmatpush1.bf16.msra.mxu0 0
        %1263 = vmatprep.subr.bf16.mxu0 0
        %1264 = vmatpush1.bf16.msra.mxu0 0
        %1265 = vmatprep.subr.bf16.mxu0 0
        %1266 = vmatpush1.bf16.msra.mxu0 0
        %1267 = vmatprep.subr.bf16.mxu0 0
        %1268 = vmatpush1.bf16.msra.mxu0 0
        %1269 = vmatprep.subr.bf16.mxu0 0
        %1270 = vmatpush1.bf16.msra.mxu0 0
        %1271 = vmatprep.subr.bf16.mxu0 0
        %1272 = vmatpush1.bf16.msra.mxu0 0
        %1273 = vmatprep.subr.bf16.mxu0 0
        %1274 = vmatpush1.bf16.msra.mxu0 0
        %1275 = vmatprep.subr.bf16.mxu0 0
        %1276 = vmatpush1.bf16.msra.mxu0 0
        %1277 = vmatprep.subr.bf16.mxu0 0
        %1278 = vmatpush1.bf16.msra.mxu0 0
        %1279 = vmatprep.subr.bf16.mxu0 0
        %1280 = vmatpush1.bf16.msra.mxu0 0
        %1281 = vmatprep.mubr.bf16.mxu0 0
        %1282 = vmatmul.mubr.bf16.gmra.mrb[0].mxu0 %v990
        %v1283 = vpop.f32.mrb[0].mxu0
        %v1284 = vadd.f32 %v1232, %v1283
        %v1285 = vpop.f32.mrb[0].mxu0
        %v1286 = vpop.f32.mrb[0].mxu0
        %v1287 = vpop.f32.mrb[0].mxu0
        %1288 = vdwg.mxu0
        %s1289 = scalar_lea.vmem %s6, 2
        %v1290 = vld [vmem:[%s1289] sm:$0x1]
        %v1292 = vlaneseq
        %v1293 = vshrl.u32 %v1292, 7
        %v1294 = vsub.s32 0, %v1293
        %v1295 = vrot.slane %v1290, %v1294
        %v1297 = vadd.f32 %v1284, %v1295
        %v1298 = vtanh.pop %v1297
        %s1299 = scalar_lea.vmem %s4, 48
        %v1300 = vld [vmem:[%s1299] sm:$0xf]
        %v1301 = vld [vmem:[%s1299 + $0x4] sm:$0xf]
        %v1302 = vld [vmem:[%s1299 + $0x8] sm:$0xf]
        %v1303 = vld [vmem:[%s1299 + $0xc] sm:$0xf]
        %s1304 = scalar_lea.vmem %s5, 48
        %v1305 = vld [vmem:[%s1304] sm:$0xf]
        %v1306 = vld [vmem:[%s1304 + $0x4] sm:$0xf]
        %v1307 = vld [vmem:[%s1304 + $0x8] sm:$0xf]
        %v1308 = vld [vmem:[%s1304 + $0xc] sm:$0xf]
        %v1313 = vunpack.c.l.b16 %v1305
        %v1314 = vunpack.c.l.b16 %v1306
        %v1315 = vunpack.c.l.b16 %v1307
        %v1316 = vunpack.c.l.b16 %v1308
        %v1317 = vpack.c.b16 %v1314, %v1313
        %v1318 = vpack.c.b16 %v1316, %v1315
        %1321 = vmatprep.subr.bf16.mxu0 0
        %1322 = vmatpush1.bf16.msra.mxu0 %v1317
        %1323 = vmatprep.subr.bf16.mxu0 0
        %1324 = vmatpush1.bf16.msra.mxu0 %v1318
        %1325 = vmatprep.subr.bf16.mxu0 0
        %1326 = vmatpush1.bf16.msra.mxu0 0
        %1327 = vmatprep.subr.bf16.mxu0 0
        %1328 = vmatpush1.bf16.msra.mxu0 0
        %1329 = vmatprep.subr.bf16.mxu0 0
        %1330 = vmatpush1.bf16.msra.mxu0 0
        %1331 = vmatprep.subr.bf16.mxu0 0
        %1332 = vmatpush1.bf16.msra.mxu0 0
        %1333 = vmatprep.subr.bf16.mxu0 0
        %1334 = vmatpush1.bf16.msra.mxu0 0
        %1335 = vmatprep.subr.bf16.mxu0 0
        %1336 = vmatpush1.bf16.msra.mxu0 0
        %1337 = vmatprep.subr.bf16.mxu0 0
        %1338 = vmatpush1.bf16.msra.mxu0 0
        %1339 = vmatprep.subr.bf16.mxu0 0
        %1340 = vmatpush1.bf16.msra.mxu0 0
        %1341 = vmatprep.subr.bf16.mxu0 0
        %1342 = vmatpush1.bf16.msra.mxu0 0
        %1343 = vmatprep.subr.bf16.mxu0 0
        %1344 = vmatpush1.bf16.msra.mxu0 0
        %1345 = vmatprep.subr.bf16.mxu0 0
        %1346 = vmatpush1.bf16.msra.mxu0 0
        %1347 = vmatprep.subr.bf16.mxu0 0
        %1348 = vmatpush1.bf16.msra.mxu0 0
        %1349 = vmatprep.subr.bf16.mxu0 0
        %1350 = vmatpush1.bf16.msra.mxu0 0
        %1351 = vmatprep.subr.bf16.mxu0 0
        %1352 = vmatpush1.bf16.msra.mxu0 0
        %1353 = vmatprep.mubr.bf16.mxu0 0
        %1354 = vmatmul.mubr.bf16.gmra.mrb[0].mxu0 %v935
        %v1355 = vpop.f32.mrb[0].mxu0
        %v1356 = vadd.f32 0.0, %v1355
        %v1357 = vpop.f32.mrb[0].mxu0
        %v1358 = vpop.f32.mrb[0].mxu0
        %v1359 = vpop.f32.mrb[0].mxu0
        %1360 = vdwg.mxu0
        %v1365 = vunpack.c.l.b16 %v1300
        %v1366 = vunpack.c.l.b16 %v1301
        %v1367 = vunpack.c.l.b16 %v1302
        %v1368 = vunpack.c.l.b16 %v1303
        %v1369 = vpack.c.b16 %v1366, %v1365
        %v1370 = vpack.c.b16 %v1368, %v1367
        %1373 = vmatprep.subr.bf16.mxu0 0
        %1374 = vmatpush1.bf16.msra.mxu0 %v1369
        %1375 = vmatprep.subr.bf16.mxu0 0
        %1376 = vmatpush1.bf16.msra.mxu0 %v1370
        %1377 = vmatprep.subr.bf16.mxu0 0
        %1378 = vmatpush1.bf16.msra.mxu0 0
        %1379 = vmatprep.subr.bf16.mxu0 0
        %1380 = vmatpush1.bf16.msra.mxu0 0
        %1381 = vmatprep.subr.bf16.mxu0 0
        %1382 = vmatpush1.bf16.msra.mxu0 0
        %1383 = vmatprep.subr.bf16.mxu0 0
        %1384 = vmatpush1.bf16.msra.mxu0 0
        %1385 = vmatprep.subr.bf16.mxu0 0
        %1386 = vmatpush1.bf16.msra.mxu0 0
        %1387 = vmatprep.subr.bf16.mxu0 0
        %1388 = vmatpush1.bf16.msra.mxu0 0
        %1389 = vmatprep.subr.bf16.mxu0 0
        %1390 = vmatpush1.bf16.msra.mxu0 0
        %1391 = vmatprep.subr.bf16.mxu0 0
        %1392 = vmatpush1.bf16.msra.mxu0 0
        %1393 = vmatprep.subr.bf16.mxu0 0
        %1394 = vmatpush1.bf16.msra.mxu0 0
        %1395 = vmatprep.subr.bf16.mxu0 0
        %1396 = vmatpush1.bf16.msra.mxu0 0
        %1397 = vmatprep.subr.bf16.mxu0 0
        %1398 = vmatpush1.bf16.msra.mxu0 0
        %1399 = vmatprep.subr.bf16.mxu0 0
        %1400 = vmatpush1.bf16.msra.mxu0 0
        %1401 = vmatprep.subr.bf16.mxu0 0
        %1402 = vmatpush1.bf16.msra.mxu0 0
        %1403 = vmatprep.subr.bf16.mxu0 0
        %1404 = vmatpush1.bf16.msra.mxu0 0
        %1405 = vmatprep.mubr.bf16.mxu0 0
        %1406 = vmatmul.mubr.bf16.gmra.mrb[0].mxu0 %v990
        %v1407 = vpop.f32.mrb[0].mxu0
        %v1408 = vadd.f32 %v1356, %v1407
        %v1409 = vpop.f32.mrb[0].mxu0
        %v1410 = vpop.f32.mrb[0].mxu0
        %v1411 = vpop.f32.mrb[0].mxu0
        %1412 = vdwg.mxu0
        %s1413 = scalar_lea.vmem %s6, 3
        %v1414 = vld [vmem:[%s1413] sm:$0x1]
        %v1416 = vlaneseq
        %v1417 = vshrl.u32 %v1416, 7
        %v1418 = vsub.s32 0, %v1417
        %v1419 = vrot.slane %v1414, %v1418
        %v1421 = vadd.f32 %v1408, %v1419
        %v1422 = vxor.u32 %v1421, 2147483648
        %v1423 = vmul.f32 %v1422, 1.442695
        %v1424 = vpow.pop %v1423
        %v1425 = vadd.f32 %v1424, 1.0
        %v1426 = vrcp.pop %v1425
        %v1427 = vmul.f32 1.0, %v1426
        %v1428 = vmul.f32 %v1174, %v911
        %v1429 = vmul.f32 %v1045, %v1298
        %v1430 = vadd.f32 %v1428, %v1429
        %v1431 = vtanh.pop %v1430
        %v1432 = vmul.f32 %v1427, %v1431
        %1433 = vst.msk [vmem:[#allocation5] sm:$0xff] %vm647, %v1430
        %1434 = vst.msk [vmem:[#allocation4] sm:$0xff] %vm647, %v1432
        %1435 = vst.msk [vmem:[%s374] sm:$0xff] %vm647, %v1432
        %v1436 = vld [vmem:[#allocation2] sm:$0xff]
        %v1437 = vld [vmem:[#allocation3] sm:$0xff]
        %v1438 = vpack.c.bf16 %v1436, %v1436
        %s1439 = scalar_lea.vmem %s340, 8 [#allocation7]
        %v1440 = vld [vmem:[%s1439] sm:$0xff]
        %v1441 = vld [vmem:[#allocation6] sm:$0xff]
        %v1442 = vadd.f32 %v1440, %v1441
        %v1443 = vld [vmem:[%s3] sm:$0xf]
        %v1444 = vld [vmem:[%s3 + $0x4] sm:$0xf]
        %v1445 = vld [vmem:[%s3 + $0x8] sm:$0xf]
        %v1446 = vld [vmem:[%s3 + $0xc] sm:$0xf]
        %v1451 = vunpack.c.l.b16 %v1443
        %v1452 = vunpack.c.l.b16 %v1444
        %v1453 = vunpack.c.l.b16 %v1445
        %v1454 = vunpack.c.l.b16 %v1446
        %v1455 = vpack.c.b16 %v1452, %v1451
        %v1456 = vpack.c.b16 %v1454, %v1453
        %v1460 = vsel %vm647, %v1438, 0
        %1462 = vmatprep.subr.bf16.mxu0 0
        %1463 = vmatpush1.bf16.msra.mxu0 %v1455
        %1464 = vmatprep.subr.bf16.mxu0 0
        %1465 = vmatpush1.bf16.msra.mxu0 %v1456
        %1466 = vmatprep.subr.bf16.mxu0 0
        %1467 = vmatpush1.bf16.msra.mxu0 0
        %1468 = vmatprep.subr.bf16.mxu0 0
        %1469 = vmatpush1.bf16.msra.mxu0 0
        %1470 = vmatprep.subr.bf16.mxu0 0
        %1471 = vmatpush1.bf16.msra.mxu0 0
        %1472 = vmatprep.subr.bf16.mxu0 0
        %1473 = vmatpush1.bf16.msra.mxu0 0
        %1474 = vmatprep.subr.bf16.mxu0 0
        %1475 = vmatpush1.bf16.msra.mxu0 0
        %1476 = vmatprep.subr.bf16.mxu0 0
        %1477 = vmatpush1.bf16.msra.mxu0 0
        %1478 = vmatprep.subr.bf16.mxu0 0
        %1479 = vmatpush1.bf16.msra.mxu0 0
        %1480 = vmatprep.subr.bf16.mxu0 0
        %1481 = vmatpush1.bf16.msra.mxu0 0
        %1482 = vmatprep.subr.bf16.mxu0 0
        %1483 = vmatpush1.bf16.msra.mxu0 0
        %1484 = vmatprep.subr.bf16.mxu0 0
        %1485 = vmatpush1.bf16.msra.mxu0 0
        %1486 = vmatprep.subr.bf16.mxu0 0
        %1487 = vmatpush1.bf16.msra.mxu0 0
        %1488 = vmatprep.subr.bf16.mxu0 0
        %1489 = vmatpush1.bf16.msra.mxu0 0
        %1490 = vmatprep.subr.bf16.mxu0 0
        %1491 = vmatpush1.bf16.msra.mxu0 0
        %1492 = vmatprep.subr.bf16.mxu0 0
        %1493 = vmatpush1.bf16.msra.mxu0 0
        %1494 = vmatprep.mubr.bf16.mxu0 0
        %1495 = vmatmul.mubr.bf16.gmra.mrb[0].mxu0 %v1460
        %v1496 = vpop.f32.mrb[0].mxu0
        %v1497 = vadd.f32 0.0, %v1496
        %v1498 = vpop.f32.mrb[0].mxu0
        %v1499 = vpop.f32.mrb[0].mxu0
        %v1500 = vpop.f32.mrb[0].mxu0
        %1501 = vdwg.mxu0
        %v1502 = vadd.f32 %v1442, %v1497
        %v1503 = vxor.u32 %v1502, 2147483648
        %v1504 = vmul.f32 %v1503, 1.442695
        %v1505 = vpow.pop %v1504
        %v1506 = vadd.f32 %v1505, 1.0
        %v1507 = vrcp.pop %v1506
        %v1508 = vmul.f32 1.0, %v1507
        %s1509 = sadd.s32 8, 32
        %s1510 = scalar_lea.vmem %s340, %s1509 [#allocation7]
        %v1511 = vld [vmem:[%s1510] sm:$0xff]
        %v1512 = vld [vmem:[%s701] sm:$0xff]
        %v1513 = vadd.f32 %v1511, %v1512
        %v1514 = vld [vmem:[%s704] sm:$0xf]
        %v1515 = vld [vmem:[%s704 + $0x4] sm:$0xf]
        %v1516 = vld [vmem:[%s704 + $0x8] sm:$0xf]
        %v1517 = vld [vmem:[%s704 + $0xc] sm:$0xf]
        %v1522 = vunpack.c.l.b16 %v1514
        %v1523 = vunpack.c.l.b16 %v1515
        %v1524 = vunpack.c.l.b16 %v1516
        %v1525 = vunpack.c.l.b16 %v1517
        %v1526 = vpack.c.b16 %v1523, %v1522
        %v1527 = vpack.c.b16 %v1525, %v1524
        %1530 = vmatprep.subr.bf16.mxu0 0
        %1531 = vmatpush1.bf16.msra.mxu0 %v1526
        %1532 = vmatprep.subr.bf16.mxu0 0
        %1533 = vmatpush1.bf16.msra.mxu0 %v1527
        %1534 = vmatprep.subr.bf16.mxu0 0
        %1535 = vmatpush1.bf16.msra.mxu0 0
        %1536 = vmatprep.subr.bf16.mxu0 0
        %1537 = vmatpush1.bf16.msra.mxu0 0
        %1538 = vmatprep.subr.bf16.mxu0 0
        %1539 = vmatpush1.bf16.msra.mxu0 0
        %1540 = vmatprep.subr.bf16.mxu0 0
        %1541 = vmatpush1.bf16.msra.mxu0 0
        %1542 = vmatprep.subr.bf16.mxu0 0
        %1543 = vmatpush1.bf16.msra.mxu0 0
        %1544 = vmatprep.subr.bf16.mxu0 0
        %1545 = vmatpush1.bf16.msra.mxu0 0
        %1546 = vmatprep.subr.bf16.mxu0 0
        %1547 = vmatpush1.bf16.msra.mxu0 0
        %1548 = vmatprep.subr.bf16.mxu0 0
        %1549 = vmatpush1.bf16.msra.mxu0 0
        %1550 = vmatprep.subr.bf16.mxu0 0
        %1551 = vmatpush1.bf16.msra.mxu0 0
        %1552 = vmatprep.subr.bf16.mxu0 0
        %1553 = vmatpush1.bf16.msra.mxu0 0
        %1554 = vmatprep.subr.bf16.mxu0 0
        %1555 = vmatpush1.bf16.msra.mxu0 0
        %1556 = vmatprep.subr.bf16.mxu0 0
        %1557 = vmatpush1.bf16.msra.mxu0 0
        %1558 = vmatprep.subr.bf16.mxu0 0
        %1559 = vmatpush1.bf16.msra.mxu0 0
        %1560 = vmatprep.subr.bf16.mxu0 0
        %1561 = vmatpush1.bf16.msra.mxu0 0
        %1562 = vmatprep.mubr.bf16.mxu0 0
        %1563 = vmatmul.mubr.bf16.gmra.mrb[0].mxu0 %v1460
        %v1564 = vpop.f32.mrb[0].mxu0
        %v1565 = vadd.f32 0.0, %v1564
        %v1566 = vpop.f32.mrb[0].mxu0
        %v1567 = vpop.f32.mrb[0].mxu0
        %v1568 = vpop.f32.mrb[0].mxu0
        %1569 = vdwg.mxu0
        %v1570 = vadd.f32 %v1513, %v1565
        %v1571 = vxor.u32 %v1570, 2147483648
        %v1572 = vmul.f32 %v1571, 1.442695
        %v1573 = vpow.pop %v1572
        %v1574 = vadd.f32 %v1573, 1.0
        %v1575 = vrcp.pop %v1574
        %v1576 = vmul.f32 1.0, %v1575
        %s1577 = sadd.s32 8, 64
        %s1578 = scalar_lea.vmem %s340, %s1577 [#allocation7]
        %v1579 = vld [vmem:[%s1578] sm:$0xff]
        %v1580 = vld [vmem:[%s771] sm:$0xff]
        %v1581 = vadd.f32 %v1579, %v1580
        %v1582 = vld [vmem:[%s774] sm:$0xf]
        %v1583 = vld [vmem:[%s774 + $0x4] sm:$0xf]
        %v1584 = vld [vmem:[%s774 + $0x8] sm:$0xf]
        %v1585 = vld [vmem:[%s774 + $0xc] sm:$0xf]
        %v1590 = vunpack.c.l.b16 %v1582
        %v1591 = vunpack.c.l.b16 %v1583
        %v1592 = vunpack.c.l.b16 %v1584
        %v1593 = vunpack.c.l.b16 %v1585
        %v1594 = vpack.c.b16 %v1591, %v1590
        %v1595 = vpack.c.b16 %v1593, %v1592
        %1598 = vmatprep.subr.bf16.mxu0 0
        %1599 = vmatpush1.bf16.msra.mxu0 %v1594
        %1600 = vmatprep.subr.bf16.mxu0 0
        %1601 = vmatpush1.bf16.msra.mxu0 %v1595
        %1602 = vmatprep.subr.bf16.mxu0 0
        %1603 = vmatpush1.bf16.msra.mxu0 0
        %1604 = vmatprep.subr.bf16.mxu0 0
        %1605 = vmatpush1.bf16.msra.mxu0 0
        %1606 = vmatprep.subr.bf16.mxu0 0
        %1607 = vmatpush1.bf16.msra.mxu0 0
        %1608 = vmatprep.subr.bf16.mxu0 0
        %1609 = vmatpush1.bf16.msra.mxu0 0
        %1610 = vmatprep.subr.bf16.mxu0 0
        %1611 = vmatpush1.bf16.msra.mxu0 0
        %1612 = vmatprep.subr.bf16.mxu0 0
        %1613 = vmatpush1.bf16.msra.mxu0 0
        %1614 = vmatprep.subr.bf16.mxu0 0
        %1615 = vmatpush1.bf16.msra.mxu0 0
        %1616 = vmatprep.subr.bf16.mxu0 0
        %1617 = vmatpush1.bf16.msra.mxu0 0
        %1618 = vmatprep.subr.bf16.mxu0 0
        %1619 = vmatpush1.bf16.msra.mxu0 0
        %1620 = vmatprep.subr.bf16.mxu0 0
        %1621 = vmatpush1.bf16.msra.mxu0 0
        %1622 = vmatprep.subr.bf16.mxu0 0
        %1623 = vmatpush1.bf16.msra.mxu0 0
        %1624 = vmatprep.subr.bf16.mxu0 0
        %1625 = vmatpush1.bf16.msra.mxu0 0
        %1626 = vmatprep.subr.bf16.mxu0 0
        %1627 = vmatpush1.bf16.msra.mxu0 0
        %1628 = vmatprep.subr.bf16.mxu0 0
        %1629 = vmatpush1.bf16.msra.mxu0 0
        %1630 = vmatprep.mubr.bf16.mxu0 0
        %1631 = vmatmul.mubr.bf16.gmra.mrb[0].mxu0 %v1460
        %v1632 = vpop.f32.mrb[0].mxu0
        %v1633 = vadd.f32 0.0, %v1632
        %v1634 = vpop.f32.mrb[0].mxu0
        %v1635 = vpop.f32.mrb[0].mxu0
        %v1636 = vpop.f32.mrb[0].mxu0
        %1637 = vdwg.mxu0
        %v1638 = vadd.f32 %v1581, %v1633
        %v1639 = vtanh.pop %v1638
        %s1640 = sadd.s32 8, 96
        %s1641 = scalar_lea.vmem %s340, %s1640 [#allocation7]
        %v1642 = vld [vmem:[%s1641] sm:$0xff]
        %v1643 = vld [vmem:[%s836] sm:$0xff]
        %v1644 = vadd.f32 %v1642, %v1643
        %v1645 = vld [vmem:[%s839] sm:$0xf]
        %v1646 = vld [vmem:[%s839 + $0x4] sm:$0xf]
        %v1647 = vld [vmem:[%s839 + $0x8] sm:$0xf]
        %v1648 = vld [vmem:[%s839 + $0xc] sm:$0xf]
        %v1653 = vunpack.c.l.b16 %v1645
        %v1654 = vunpack.c.l.b16 %v1646
        %v1655 = vunpack.c.l.b16 %v1647
        %v1656 = vunpack.c.l.b16 %v1648
        %v1657 = vpack.c.b16 %v1654, %v1653
        %v1658 = vpack.c.b16 %v1656, %v1655
        %1661 = vmatprep.subr.bf16.mxu0 0
        %1662 = vmatpush1.bf16.msra.mxu0 %v1657
        %1663 = vmatprep.subr.bf16.mxu0 0
        %1664 = vmatpush1.bf16.msra.mxu0 %v1658
        %1665 = vmatprep.subr.bf16.mxu0 0
        %1666 = vmatpush1.bf16.msra.mxu0 0
        %1667 = vmatprep.subr.bf16.mxu0 0
        %1668 = vmatpush1.bf16.msra.mxu0 0
        %1669 = vmatprep.subr.bf16.mxu0 0
        %1670 = vmatpush1.bf16.msra.mxu0 0
        %1671 = vmatprep.subr.bf16.mxu0 0
        %1672 = vmatpush1.bf16.msra.mxu0 0
        %1673 = vmatprep.subr.bf16.mxu0 0
        %1674 = vmatpush1.bf16.msra.mxu0 0
        %1675 = vmatprep.subr.bf16.mxu0 0
        %1676 = vmatpush1.bf16.msra.mxu0 0
        %1677 = vmatprep.subr.bf16.mxu0 0
        %1678 = vmatpush1.bf16.msra.mxu0 0
        %1679 = vmatprep.subr.bf16.mxu0 0
        %1680 = vmatpush1.bf16.msra.mxu0 0
        %1681 = vmatprep.subr.bf16.mxu0 0
        %1682 = vmatpush1.bf16.msra.mxu0 0
        %1683 = vmatprep.subr.bf16.mxu0 0
        %1684 = vmatpush1.bf16.msra.mxu0 0
        %1685 = vmatprep.subr.bf16.mxu0 0
        %1686 = vmatpush1.bf16.msra.mxu0 0
        %1687 = vmatprep.subr.bf16.mxu0 0
        %1688 = vmatpush1.bf16.msra.mxu0 0
        %1689 = vmatprep.subr.bf16.mxu0 0
        %1690 = vmatpush1.bf16.msra.mxu0 0
        %1691 = vmatprep.subr.bf16.mxu0 0
        %1692 = vmatpush1.bf16.msra.mxu0 0
        %1693 = vmatprep.mubr.bf16.mxu0 0
        %1694 = vmatmul.mubr.bf16.gmra.mrb[0].mxu0 %v1460
        %v1695 = vpop.f32.mrb[0].mxu0
        %v1696 = vadd.f32 0.0, %v1695
        %v1697 = vpop.f32.mrb[0].mxu0
        %v1698 = vpop.f32.mrb[0].mxu0
        %v1699 = vpop.f32.mrb[0].mxu0
        %1700 = vdwg.mxu0
        %v1701 = vadd.f32 %v1644, %v1696
        %v1702 = vxor.u32 %v1701, 2147483648
        %v1703 = vmul.f32 %v1702, 1.442695
        %v1704 = vpow.pop %v1703
        %v1705 = vadd.f32 %v1704, 1.0
        %v1706 = vrcp.pop %v1705
        %v1707 = vmul.f32 1.0, %v1706
        %v1708 = vmul.f32 %v1576, %v1437
        %v1709 = vmul.f32 %v1508, %v1639
        %v1710 = vadd.f32 %v1708, %v1709
        %v1711 = vtanh.pop %v1710
        %v1712 = vmul.f32 %v1707, %v1711
        %1713 = vst.msk [vmem:[#allocation3] sm:$0xff] %vm647, %v1710
        %1714 = vst.msk [vmem:[#allocation2] sm:$0xff] %vm647, %v1712
        %v1715 = vld [vmem:[#allocation4] sm:$0xff]
        %v1716 = vld [vmem:[#allocation5] sm:$0xff]
        %v1717 = vpack.c.bf16 %v1712, %v1712
        %v1718 = vpack.c.bf16 %v1715, %v1715
        %v1719 = vld [vmem:[%s4] sm:$0xf]
        %v1720 = vld [vmem:[%s4 + $0x4] sm:$0xf]
        %v1721 = vld [vmem:[%s4 + $0x8] sm:$0xf]
        %v1722 = vld [vmem:[%s4 + $0xc] sm:$0xf]
        %v1723 = vld [vmem:[%s5] sm:$0xf]
        %v1724 = vld [vmem:[%s5 + $0x4] sm:$0xf]
        %v1725 = vld [vmem:[%s5 + $0x8] sm:$0xf]
        %v1726 = vld [vmem:[%s5 + $0xc] sm:$0xf]
        %v1731 = vunpack.c.l.b16 %v1723
        %v1732 = vunpack.c.l.b16 %v1724
        %v1733 = vunpack.c.l.b16 %v1725
        %v1734 = vunpack.c.l.b16 %v1726
        %v1735 = vpack.c.b16 %v1732, %v1731
        %v1736 = vpack.c.b16 %v1734, %v1733
        %v1740 = vsel %vm647, %v1718, 0
        %1742 = vmatprep.subr.bf16.mxu0 0
        %1743 = vmatpush1.bf16.msra.mxu0 %v1735
        %1744 = vmatprep.subr.bf16.mxu0 0
        %1745 = vmatpush1.bf16.msra.mxu0 %v1736
        %1746 = vmatprep.subr.bf16.mxu0 0
        %1747 = vmatpush1.bf16.msra.mxu0 0
        %1748 = vmatprep.subr.bf16.mxu0 0
        %1749 = vmatpush1.bf16.msra.mxu0 0
        %1750 = vmatprep.subr.bf16.mxu0 0
        %1751 = vmatpush1.bf16.msra.mxu0 0
        %1752 = vmatprep.subr.bf16.mxu0 0
        %1753 = vmatpush1.bf16.msra.mxu0 0
        %1754 = vmatprep.subr.bf16.mxu0 0
        %1755 = vmatpush1.bf16.msra.mxu0 0
        %1756 = vmatprep.subr.bf16.mxu0 0
        %1757 = vmatpush1.bf16.msra.mxu0 0
        %1758 = vmatprep.subr.bf16.mxu0 0
        %1759 = vmatpush1.bf16.msra.mxu0 0
        %1760 = vmatprep.subr.bf16.mxu0 0
        %1761 = vmatpush1.bf16.msra.mxu0 0
        %1762 = vmatprep.subr.bf16.mxu0 0
        %1763 = vmatpush1.bf16.msra.mxu0 0
        %1764 = vmatprep.subr.bf16.mxu0 0
        %1765 = vmatpush1.bf16.msra.mxu0 0
        %1766 = vmatprep.subr.bf16.mxu0 0
        %1767 = vmatpush1.bf16.msra.mxu0 0
        %1768 = vmatprep.subr.bf16.mxu0 0
        %1769 = vmatpush1.bf16.msra.mxu0 0
        %1770 = vmatprep.subr.bf16.mxu0 0
        %1771 = vmatpush1.bf16.msra.mxu0 0
        %1772 = vmatprep.subr.bf16.mxu0 0
        %1773 = vmatpush1.bf16.msra.mxu0 0
        %1774 = vmatprep.mubr.bf16.mxu0 0
        %1775 = vmatmul.mubr.bf16.gmra.mrb[0].mxu0 %v1740
        %v1776 = vpop.f32.mrb[0].mxu0
        %v1777 = vadd.f32 0.0, %v1776
        %v1778 = vpop.f32.mrb[0].mxu0
        %v1779 = vpop.f32.mrb[0].mxu0
        %v1780 = vpop.f32.mrb[0].mxu0
        %1781 = vdwg.mxu0
        %v1786 = vunpack.c.l.b16 %v1719
        %v1787 = vunpack.c.l.b16 %v1720
        %v1788 = vunpack.c.l.b16 %v1721
        %v1789 = vunpack.c.l.b16 %v1722
        %v1790 = vpack.c.b16 %v1787, %v1786
        %v1791 = vpack.c.b16 %v1789, %v1788
        %v1795 = vsel %vm647, %v1717, 0
        %1797 = vmatprep.subr.bf16.mxu0 0
        %1798 = vmatpush1.bf16.msra.mxu0 %v1790
        %1799 = vmatprep.subr.bf16.mxu0 0
        %1800 = vmatpush1.bf16.msra.mxu0 %v1791
        %1801 = vmatprep.subr.bf16.mxu0 0
        %1802 = vmatpush1.bf16.msra.mxu0 0
        %1803 = vmatprep.subr.bf16.mxu0 0
        %1804 = vmatpush1.bf16.msra.mxu0 0
        %1805 = vmatprep.subr.bf16.mxu0 0
        %1806 = vmatpush1.bf16.msra.mxu0 0
        %1807 = vmatprep.subr.bf16.mxu0 0
        %1808 = vmatpush1.bf16.msra.mxu0 0
        %1809 = vmatprep.subr.bf16.mxu0 0
        %1810 = vmatpush1.bf16.msra.mxu0 0
        %1811 = vmatprep.subr.bf16.mxu0 0
        %1812 = vmatpush1.bf16.msra.mxu0 0
        %1813 = vmatprep.subr.bf16.mxu0 0
        %1814 = vmatpush1.bf16.msra.mxu0 0
        %1815 = vmatprep.subr.bf16.mxu0 0
        %1816 = vmatpush1.bf16.msra.mxu0 0
        %1817 = vmatprep.subr.bf16.mxu0 0
        %1818 = vmatpush1.bf16.msra.mxu0 0
        %1819 = vmatprep.subr.bf16.mxu0 0
        %1820 = vmatpush1.bf16.msra.mxu0 0
        %1821 = vmatprep.subr.bf16.mxu0 0
        %1822 = vmatpush1.bf16.msra.mxu0 0
        %1823 = vmatprep.subr.bf16.mxu0 0
        %1824 = vmatpush1.bf16.msra.mxu0 0
        %1825 = vmatprep.subr.bf16.mxu0 0
        %1826 = vmatpush1.bf16.msra.mxu0 0
        %1827 = vmatprep.subr.bf16.mxu0 0
        %1828 = vmatpush1.bf16.msra.mxu0 0
        %1829 = vmatprep.mubr.bf16.mxu0 0
        %1830 = vmatmul.mubr.bf16.gmra.mrb[0].mxu0 %v1795
        %v1831 = vpop.f32.mrb[0].mxu0
        %v1832 = vadd.f32 %v1777, %v1831
        %v1833 = vpop.f32.mrb[0].mxu0
        %v1834 = vpop.f32.mrb[0].mxu0
        %v1835 = vpop.f32.mrb[0].mxu0
        %1836 = vdwg.mxu0
        %v1837 = vld [vmem:[%s6] sm:$0x1]
        %v1839 = vlaneseq
        %v1840 = vshrl.u32 %v1839, 7
        %v1841 = vsub.s32 0, %v1840
        %v1842 = vrot.slane %v1837, %v1841
        %v1844 = vadd.f32 %v1832, %v1842
        %v1845 = vxor.u32 %v1844, 2147483648
        %v1846 = vmul.f32 %v1845, 1.442695
        %v1847 = vpow.pop %v1846
        %v1848 = vadd.f32 %v1847, 1.0
        %v1849 = vrcp.pop %v1848
        %v1850 = vmul.f32 1.0, %v1849
        %v1851 = vld [vmem:[%s1046] sm:$0xf]
        %v1852 = vld [vmem:[%s1046 + $0x4] sm:$0xf]
        %v1853 = vld [vmem:[%s1046 + $0x8] sm:$0xf]
        %v1854 = vld [vmem:[%s1046 + $0xc] sm:$0xf]
        %v1855 = vld [vmem:[%s1051] sm:$0xf]
        %v1856 = vld [vmem:[%s1051 + $0x4] sm:$0xf]
        %v1857 = vld [vmem:[%s1051 + $0x8] sm:$0xf]
        %v1858 = vld [vmem:[%s1051 + $0xc] sm:$0xf]
        %v1863 = vunpack.c.l.b16 %v1855
        %v1864 = vunpack.c.l.b16 %v1856
        %v1865 = vunpack.c.l.b16 %v1857
        %v1866 = vunpack.c.l.b16 %v1858
        %v1867 = vpack.c.b16 %v1864, %v1863
        %v1868 = vpack.c.b16 %v1866, %v1865
        %1871 = vmatprep.subr.bf16.mxu0 0
        %1872 = vmatpush1.bf16.msra.mxu0 %v1867
        %1873 = vmatprep.subr.bf16.mxu0 0
        %1874 = vmatpush1.bf16.msra.mxu0 %v1868
        %1875 = vmatprep.subr.bf16.mxu0 0
        %1876 = vmatpush1.bf16.msra.mxu0 0
        %1877 = vmatprep.subr.bf16.mxu0 0
        %1878 = vmatpush1.bf16.msra.mxu0 0
        %1879 = vmatprep.subr.bf16.mxu0 0
        %1880 = vmatpush1.bf16.msra.mxu0 0
        %1881 = vmatprep.subr.bf16.mxu0 0
        %1882 = vmatpush1.bf16.msra.mxu0 0
        %1883 = vmatprep.subr.bf16.mxu0 0
        %1884 = vmatpush1.bf16.msra.mxu0 0
        %1885 = vmatprep.subr.bf16.mxu0 0
        %1886 = vmatpush1.bf16.msra.mxu0 0
        %1887 = vmatprep.subr.bf16.mxu0 0
        %1888 = vmatpush1.bf16.msra.mxu0 0
        %1889 = vmatprep.subr.bf16.mxu0 0
        %1890 = vmatpush1.bf16.msra.mxu0 0
        %1891 = vmatprep.subr.bf16.mxu0 0
        %1892 = vmatpush1.bf16.msra.mxu0 0
        %1893 = vmatprep.subr.bf16.mxu0 0
        %1894 = vmatpush1.bf16.msra.mxu0 0
        %1895 = vmatprep.subr.bf16.mxu0 0
        %1896 = vmatpush1.bf16.msra.mxu0 0
        %1897 = vmatprep.subr.bf16.mxu0 0
        %1898 = vmatpush1.bf16.msra.mxu0 0
        %1899 = vmatprep.subr.bf16.mxu0 0
        %1900 = vmatpush1.bf16.msra.mxu0 0
        %1901 = vmatprep.subr.bf16.mxu0 0
        %1902 = vmatpush1.bf16.msra.mxu0 0
        %1903 = vmatprep.mubr.bf16.mxu0 0
        %1904 = vmatmul.mubr.bf16.gmra.mrb[0].mxu0 %v1740
        %v1905 = vpop.f32.mrb[0].mxu0
        %v1906 = vadd.f32 0.0, %v1905
        %v1907 = vpop.f32.mrb[0].mxu0
        %v1908 = vpop.f32.mrb[0].mxu0
        %v1909 = vpop.f32.mrb[0].mxu0
        %1910 = vdwg.mxu0
        %v1915 = vunpack.c.l.b16 %v1851
        %v1916 = vunpack.c.l.b16 %v1852
        %v1917 = vunpack.c.l.b16 %v1853
        %v1918 = vunpack.c.l.b16 %v1854
        %v1919 = vpack.c.b16 %v1916, %v1915
        %v1920 = vpack.c.b16 %v1918, %v1917
        %1923 = vmatprep.subr.bf16.mxu0 0
        %1924 = vmatpush1.bf16.msra.mxu0 %v1919
        %1925 = vmatprep.subr.bf16.mxu0 0
        %1926 = vmatpush1.bf16.msra.mxu0 %v1920
        %1927 = vmatprep.subr.bf16.mxu0 0
        %1928 = vmatpush1.bf16.msra.mxu0 0
        %1929 = vmatprep.subr.bf16.mxu0 0
        %1930 = vmatpush1.bf16.msra.mxu0 0
        %1931 = vmatprep.subr.bf16.mxu0 0
        %1932 = vmatpush1.bf16.msra.mxu0 0
        %1933 = vmatprep.subr.bf16.mxu0 0
        %1934 = vmatpush1.bf16.msra.mxu0 0
        %1935 = vmatprep.subr.bf16.mxu0 0
        %1936 = vmatpush1.bf16.msra.mxu0 0
        %1937 = vmatprep.subr.bf16.mxu0 0
        %1938 = vmatpush1.bf16.msra.mxu0 0
        %1939 = vmatprep.subr.bf16.mxu0 0
        %1940 = vmatpush1.bf16.msra.mxu0 0
        %1941 = vmatprep.subr.bf16.mxu0 0
        %1942 = vmatpush1.bf16.msra.mxu0 0
        %1943 = vmatprep.subr.bf16.mxu0 0
        %1944 = vmatpush1.bf16.msra.mxu0 0
        %1945 = vmatprep.subr.bf16.mxu0 0
        %1946 = vmatpush1.bf16.msra.mxu0 0
        %1947 = vmatprep.subr.bf16.mxu0 0
        %1948 = vmatpush1.bf16.msra.mxu0 0
        %1949 = vmatprep.subr.bf16.mxu0 0
        %1950 = vmatpush1.bf16.msra.mxu0 0
        %1951 = vmatprep.subr.bf16.mxu0 0
        %1952 = vmatpush1.bf16.msra.mxu0 0
        %1953 = vmatprep.subr.bf16.mxu0 0
        %1954 = vmatpush1.bf16.msra.mxu0 0
        %1955 = vmatprep.mubr.bf16.mxu0 0
        %1956 = vmatmul.mubr.bf16.gmra.mrb[0].mxu0 %v1795
        %v1957 = vpop.f32.mrb[0].mxu0
        %v1958 = vadd.f32 %v1906, %v1957
        %v1959 = vpop.f32.mrb[0].mxu0
        %v1960 = vpop.f32.mrb[0].mxu0
        %v1961 = vpop.f32.mrb[0].mxu0
        %1962 = vdwg.mxu0
        %v1963 = vld [vmem:[%s1160] sm:$0x1]
        %v1965 = vlaneseq
        %v1966 = vshrl.u32 %v1965, 7
        %v1967 = vsub.s32 0, %v1966
        %v1968 = vrot.slane %v1963, %v1967
        %v1970 = vadd.f32 %v1958, %v1968
        %v1971 = vxor.u32 %v1970, 2147483648
        %v1972 = vmul.f32 %v1971, 1.442695
        %v1973 = vpow.pop %v1972
        %v1974 = vadd.f32 %v1973, 1.0
        %v1975 = vrcp.pop %v1974
        %v1976 = vmul.f32 1.0, %v1975
        %v1977 = vld [vmem:[%s1175] sm:$0xf]
        %v1978 = vld [vmem:[%s1175 + $0x4] sm:$0xf]
        %v1979 = vld [vmem:[%s1175 + $0x8] sm:$0xf]
        %v1980 = vld [vmem:[%s1175 + $0xc] sm:$0xf]
        %v1981 = vld [vmem:[%s1180] sm:$0xf]
        %v1982 = vld [vmem:[%s1180 + $0x4] sm:$0xf]
        %v1983 = vld [vmem:[%s1180 + $0x8] sm:$0xf]
        %v1984 = vld [vmem:[%s1180 + $0xc] sm:$0xf]
        %v1989 = vunpack.c.l.b16 %v1981
        %v1990 = vunpack.c.l.b16 %v1982
        %v1991 = vunpack.c.l.b16 %v1983
        %v1992 = vunpack.c.l.b16 %v1984
        %v1993 = vpack.c.b16 %v1990, %v1989
        %v1994 = vpack.c.b16 %v1992, %v1991
        %1997 = vmatprep.subr.bf16.mxu0 0
        %1998 = vmatpush1.bf16.msra.mxu0 %v1993
        %1999 = vmatprep.subr.bf16.mxu0 0
        %2000 = vmatpush1.bf16.msra.mxu0 %v1994
        %2001 = vmatprep.subr.bf16.mxu0 0
        %2002 = vmatpush1.bf16.msra.mxu0 0
        %2003 = vmatprep.subr.bf16.mxu0 0
        %2004 = vmatpush1.bf16.msra.mxu0 0
        %2005 = vmatprep.subr.bf16.mxu0 0
        %2006 = vmatpush1.bf16.msra.mxu0 0
        %2007 = vmatprep.subr.bf16.mxu0 0
        %2008 = vmatpush1.bf16.msra.mxu0 0
        %2009 = vmatprep.subr.bf16.mxu0 0
        %2010 = vmatpush1.bf16.msra.mxu0 0
        %2011 = vmatprep.subr.bf16.mxu0 0
        %2012 = vmatpush1.bf16.msra.mxu0 0
        %2013 = vmatprep.subr.bf16.mxu0 0
        %2014 = vmatpush1.bf16.msra.mxu0 0
        %2015 = vmatprep.subr.bf16.mxu0 0
        %2016 = vmatpush1.bf16.msra.mxu0 0
        %2017 = vmatprep.subr.bf16.mxu0 0
        %2018 = vmatpush1.bf16.msra.mxu0 0
        %2019 = vmatprep.subr.bf16.mxu0 0
        %2020 = vmatpush1.bf16.msra.mxu0 0
        %2021 = vmatprep.subr.bf16.mxu0 0
        %2022 = vmatpush1.bf16.msra.mxu0 0
        %2023 = vmatprep.subr.bf16.mxu0 0
        %2024 = vmatpush1.bf16.msra.mxu0 0
        %2025 = vmatprep.subr.bf16.mxu0 0
        %2026 = vmatpush1.bf16.msra.mxu0 0
        %2027 = vmatprep.subr.bf16.mxu0 0
        %2028 = vmatpush1.bf16.msra.mxu0 0
        %2029 = vmatprep.mubr.bf16.mxu0 0
        %2030 = vmatmul.mubr.bf16.gmra.mrb[0].mxu0 %v1740
        %v2031 = vpop.f32.mrb[0].mxu0
        %v2032 = vadd.f32 0.0, %v2031
        %v2033 = vpop.f32.mrb[0].mxu0
        %v2034 = vpop.f32.mrb[0].mxu0
        %v2035 = vpop.f32.mrb[0].mxu0
        %2036 = vdwg.mxu0
        %v2041 = vunpack.c.l.b16 %v1977
        %v2042 = vunpack.c.l.b16 %v1978
        %v2043 = vunpack.c.l.b16 %v1979
        %v2044 = vunpack.c.l.b16 %v1980
        %v2045 = vpack.c.b16 %v2042, %v2041
        %v2046 = vpack.c.b16 %v2044, %v2043
        %2049 = vmatprep.subr.bf16.mxu0 0
        %2050 = vmatpush1.bf16.msra.mxu0 %v2045
        %2051 = vmatprep.subr.bf16.mxu0 0
        %2052 = vmatpush1.bf16.msra.mxu0 %v2046
        %2053 = vmatprep.subr.bf16.mxu0 0
        %2054 = vmatpush1.bf16.msra.mxu0 0
        %2055 = vmatprep.subr.bf16.mxu0 0
        %2056 = vmatpush1.bf16.msra.mxu0 0
        %2057 = vmatprep.subr.bf16.mxu0 0
        %2058 = vmatpush1.bf16.msra.mxu0 0
        %2059 = vmatprep.subr.bf16.mxu0 0
        %2060 = vmatpush1.bf16.msra.mxu0 0
        %2061 = vmatprep.subr.bf16.mxu0 0
        %2062 = vmatpush1.bf16.msra.mxu0 0
        %2063 = vmatprep.subr.bf16.mxu0 0
        %2064 = vmatpush1.bf16.msra.mxu0 0
        %2065 = vmatprep.subr.bf16.mxu0 0
        %2066 = vmatpush1.bf16.msra.mxu0 0
        %2067 = vmatprep.subr.bf16.mxu0 0
        %2068 = vmatpush1.bf16.msra.mxu0 0
        %2069 = vmatprep.subr.bf16.mxu0 0
        %2070 = vmatpush1.bf16.msra.mxu0 0
        %2071 = vmatprep.subr.bf16.mxu0 0
        %2072 = vmatpush1.bf16.msra.mxu0 0
        %2073 = vmatprep.subr.bf16.mxu0 0
        %2074 = vmatpush1.bf16.msra.mxu0 0
        %2075 = vmatprep.subr.bf16.mxu0 0
        %2076 = vmatpush1.bf16.msra.mxu0 0
        %2077 = vmatprep.subr.bf16.mxu0 0
        %2078 = vmatpush1.bf16.msra.mxu0 0
        %2079 = vmatprep.subr.bf16.mxu0 0
        %2080 = vmatpush1.bf16.msra.mxu0 0
        %2081 = vmatprep.mubr.bf16.mxu0 0
        %2082 = vmatmul.mubr.bf16.gmra.mrb[0].mxu0 %v1795
        %v2083 = vpop.f32.mrb[0].mxu0
        %v2084 = vadd.f32 %v2032, %v2083
        %v2085 = vpop.f32.mrb[0].mxu0
        %v2086 = vpop.f32.mrb[0].mxu0
        %v2087 = vpop.f32.mrb[0].mxu0
        %2088 = vdwg.mxu0
        %v2089 = vld [vmem:[%s1289] sm:$0x1]
        %v2091 = vlaneseq
        %v2092 = vshrl.u32 %v2091, 7
        %v2093 = vsub.s32 0, %v2092
        %v2094 = vrot.slane %v2089, %v2093
        %v2096 = vadd.f32 %v2084, %v2094
        %v2097 = vtanh.pop %v2096
        %v2098 = vld [vmem:[%s1299] sm:$0xf]
        %v2099 = vld [vmem:[%s1299 + $0x4] sm:$0xf]
        %v2100 = vld [vmem:[%s1299 + $0x8] sm:$0xf]
        %v2101 = vld [vmem:[%s1299 + $0xc] sm:$0xf]
        %v2102 = vld [vmem:[%s1304] sm:$0xf]
        %v2103 = vld [vmem:[%s1304 + $0x4] sm:$0xf]
        %v2104 = vld [vmem:[%s1304 + $0x8] sm:$0xf]
        %v2105 = vld [vmem:[%s1304 + $0xc] sm:$0xf]
        %v2110 = vunpack.c.l.b16 %v2102
        %v2111 = vunpack.c.l.b16 %v2103
        %v2112 = vunpack.c.l.b16 %v2104
        %v2113 = vunpack.c.l.b16 %v2105
        %v2114 = vpack.c.b16 %v2111, %v2110
        %v2115 = vpack.c.b16 %v2113, %v2112
        %2118 = vmatprep.subr.bf16.mxu0 0
        %2119 = vmatpush1.bf16.msra.mxu0 %v2114
        %2120 = vmatprep.subr.bf16.mxu0 0
        %2121 = vmatpush1.bf16.msra.mxu0 %v2115
        %2122 = vmatprep.subr.bf16.mxu0 0
        %2123 = vmatpush1.bf16.msra.mxu0 0
        %2124 = vmatprep.subr.bf16.mxu0 0
        %2125 = vmatpush1.bf16.msra.mxu0 0
        %2126 = vmatprep.subr.bf16.mxu0 0
        %2127 = vmatpush1.bf16.msra.mxu0 0
        %2128 = vmatprep.subr.bf16.mxu0 0
        %2129 = vmatpush1.bf16.msra.mxu0 0
        %2130 = vmatprep.subr.bf16.mxu0 0
        %2131 = vmatpush1.bf16.msra.mxu0 0
        %2132 = vmatprep.subr.bf16.mxu0 0
        %2133 = vmatpush1.bf16.msra.mxu0 0
        %2134 = vmatprep.subr.bf16.mxu0 0
        %2135 = vmatpush1.bf16.msra.mxu0 0
        %2136 = vmatprep.subr.bf16.mxu0 0
        %2137 = vmatpush1.bf16.msra.mxu0 0
        %2138 = vmatprep.subr.bf16.mxu0 0
        %2139 = vmatpush1.bf16.msra.mxu0 0
        %2140 = vmatprep.subr.bf16.mxu0 0
        %2141 = vmatpush1.bf16.msra.mxu0 0
        %2142 = vmatprep.subr.bf16.mxu0 0
        %2143 = vmatpush1.bf16.msra.mxu0 0
        %2144 = vmatprep.subr.bf16.mxu0 0
        %2145 = vmatpush1.bf16.msra.mxu0 0
        %2146 = vmatprep.subr.bf16.mxu0 0
        %2147 = vmatpush1.bf16.msra.mxu0 0
        %2148 = vmatprep.subr.bf16.mxu0 0
        %2149 = vmatpush1.bf16.msra.mxu0 0
        %2150 = vmatprep.mubr.bf16.mxu0 0
        %2151 = vmatmul.mubr.bf16.gmra.mrb[0].mxu0 %v1740
        %v2152 = vpop.f32.mrb[0].mxu0
        %v2153 = vadd.f32 0.0, %v2152
        %v2154 = vpop.f32.mrb[0].mxu0
        %v2155 = vpop.f32.mrb[0].mxu0
        %v2156 = vpop.f32.mrb[0].mxu0
        %2157 = vdwg.mxu0
        %v2162 = vunpack.c.l.b16 %v2098
        %v2163 = vunpack.c.l.b16 %v2099
        %v2164 = vunpack.c.l.b16 %v2100
        %v2165 = vunpack.c.l.b16 %v2101
        %v2166 = vpack.c.b16 %v2163, %v2162
        %v2167 = vpack.c.b16 %v2165, %v2164
        %2170 = vmatprep.subr.bf16.mxu0 0
        %2171 = vmatpush1.bf16.msra.mxu0 %v2166
        %2172 = vmatprep.subr.bf16.mxu0 0
        %2173 = vmatpush1.bf16.msra.mxu0 %v2167
        %2174 = vmatprep.subr.bf16.mxu0 0
        %2175 = vmatpush1.bf16.msra.mxu0 0
        %2176 = vmatprep.subr.bf16.mxu0 0
        %2177 = vmatpush1.bf16.msra.mxu0 0
        %2178 = vmatprep.subr.bf16.mxu0 0
        %2179 = vmatpush1.bf16.msra.mxu0 0
        %2180 = vmatprep.subr.bf16.mxu0 0
        %2181 = vmatpush1.bf16.msra.mxu0 0
        %2182 = vmatprep.subr.bf16.mxu0 0
        %2183 = vmatpush1.bf16.msra.mxu0 0
        %2184 = vmatprep.subr.bf16.mxu0 0
        %2185 = vmatpush1.bf16.msra.mxu0 0
        %2186 = vmatprep.subr.bf16.mxu0 0
        %2187 = vmatpush1.bf16.msra.mxu0 0
        %2188 = vmatprep.subr.bf16.mxu0 0
        %2189 = vmatpush1.bf16.msra.mxu0 0
        %2190 = vmatprep.subr.bf16.mxu0 0
        %2191 = vmatpush1.bf16.msra.mxu0 0
        %2192 = vmatprep.subr.bf16.mxu0 0
        %2193 = vmatpush1.bf16.msra.mxu0 0
        %2194 = vmatprep.subr.bf16.mxu0 0
        %2195 = vmatpush1.bf16.msra.mxu0 0
        %2196 = vmatprep.subr.bf16.mxu0 0
        %2197 = vmatpush1.bf16.msra.mxu0 0
        %2198 = vmatprep.subr.bf16.mxu0 0
        %2199 = vmatpush1.bf16.msra.mxu0 0
        %2200 = vmatprep.subr.bf16.mxu0 0
        %2201 = vmatpush1.bf16.msra.mxu0 0
        %2202 = vmatprep.mubr.bf16.mxu0 0
        %2203 = vmatmul.mubr.bf16.gmra.mrb[0].mxu0 %v1795
        %v2204 = vpop.f32.mrb[0].mxu0
        %v2205 = vadd.f32 %v2153, %v2204
        %v2206 = vpop.f32.mrb[0].mxu0
        %v2207 = vpop.f32.mrb[0].mxu0
        %v2208 = vpop.f32.mrb[0].mxu0
        %2209 = vdwg.mxu0
        %v2210 = vld [vmem:[%s1413] sm:$0x1]
        %v2212 = vlaneseq
        %v2213 = vshrl.u32 %v2212, 7
        %v2214 = vsub.s32 0, %v2213
        %v2215 = vrot.slane %v2210, %v2214
        %v2217 = vadd.f32 %v2205, %v2215
        %v2218 = vxor.u32 %v2217, 2147483648
        %v2219 = vmul.f32 %v2218, 1.442695
        %v2220 = vpow.pop %v2219
        %v2221 = vadd.f32 %v2220, 1.0
        %v2222 = vrcp.pop %v2221
        %v2223 = vmul.f32 1.0, %v2222
        %v2224 = vmul.f32 %v1976, %v1716
        %v2225 = vmul.f32 %v1850, %v2097
        %v2226 = vadd.f32 %v2224, %v2225
        %v2227 = vtanh.pop %v2226
        %v2228 = vmul.f32 %v2223, %v2227
        %2229 = vst.msk [vmem:[#allocation5] sm:$0xff] %vm647, %v2226
        %2230 = vst.msk [vmem:[#allocation4] sm:$0xff] %vm647, %v2228
        %s2231 = scalar_lea.vmem %s374, 8
        %2232 = vst.msk [vmem:[%s2231] sm:$0xff] %vm647, %v2228
        %v2233 = vld [vmem:[#allocation2] sm:$0xff]
        %v2234 = vld [vmem:[#allocation3] sm:$0xff]
        %v2235 = vpack.c.bf16 %v2233, %v2233
        %s2236 = scalar_lea.vmem %s340, 16 [#allocation7]
        %v2237 = vld [vmem:[%s2236] sm:$0xff]
        %v2238 = vld [vmem:[#allocation6] sm:$0xff]
        %v2239 = vadd.f32 %v2237, %v2238
        %v2240 = vld [vmem:[%s3] sm:$0xf]
        %v2241 = vld [vmem:[%s3 + $0x4] sm:$0xf]
        %v2242 = vld [vmem:[%s3 + $0x8] sm:$0xf]
        %v2243 = vld [vmem:[%s3 + $0xc] sm:$0xf]
        %v2248 = vunpack.c.l.b16 %v2240
        %v2249 = vunpack.c.l.b16 %v2241
        %v2250 = vunpack.c.l.b16 %v2242
        %v2251 = vunpack.c.l.b16 %v2243
        %v2252 = vpack.c.b16 %v2249, %v2248
        %v2253 = vpack.c.b16 %v2251, %v2250
        %v2257 = vsel %vm647, %v2235, 0
        %2259 = vmatprep.subr.bf16.mxu0 0
        %2260 = vmatpush1.bf16.msra.mxu0 %v2252
        %2261 = vmatprep.subr.bf16.mxu0 0
        %2262 = vmatpush1.bf16.msra.mxu0 %v2253
        %2263 = vmatprep.subr.bf16.mxu0 0
        %2264 = vmatpush1.bf16.msra.mxu0 0
        %2265 = vmatprep.subr.bf16.mxu0 0
        %2266 = vmatpush1.bf16.msra.mxu0 0
        %2267 = vmatprep.subr.bf16.mxu0 0
        %2268 = vmatpush1.bf16.msra.mxu0 0
        %2269 = vmatprep.subr.bf16.mxu0 0
        %2270 = vmatpush1.bf16.msra.mxu0 0
        %2271 = vmatprep.subr.bf16.mxu0 0
        %2272 = vmatpush1.bf16.msra.mxu0 0
        %2273 = vmatprep.subr.bf16.mxu0 0
        %2274 = vmatpush1.bf16.msra.mxu0 0
        %2275 = vmatprep.subr.bf16.mxu0 0
        %2276 = vmatpush1.bf16.msra.mxu0 0
        %2277 = vmatprep.subr.bf16.mxu0 0
        %2278 = vmatpush1.bf16.msra.mxu0 0
        %2279 = vmatprep.subr.bf16.mxu0 0
        %2280 = vmatpush1.bf16.msra.mxu0 0
        %2281 = vmatprep.subr.bf16.mxu0 0
        %2282 = vmatpush1.bf16.msra.mxu0 0
        %2283 = vmatprep.subr.bf16.mxu0 0
        %2284 = vmatpush1.bf16.msra.mxu0 0
        %2285 = vmatprep.subr.bf16.mxu0 0
        %2286 = vmatpush1.bf16.msra.mxu0 0
        %2287 = vmatprep.subr.bf16.mxu0 0
        %2288 = vmatpush1.bf16.msra.mxu0 0
        %2289 = vmatprep.subr.bf16.mxu0 0
        %2290 = vmatpush1.bf16.msra.mxu0 0
        %2291 = vmatprep.mubr.bf16.mxu0 0
        %2292 = vmatmul.mubr.bf16.gmra.mrb[0].mxu0 %v2257
        %v2293 = vpop.f32.mrb[0].mxu0
        %v2294 = vadd.f32 0.0, %v2293
        %v2295 = vpop.f32.mrb[0].mxu0
        %v2296 = vpop.f32.mrb[0].mxu0
        %v2297 = vpop.f32.mrb[0].mxu0
        %2298 = vdwg.mxu0
        %v2299 = vadd.f32 %v2239, %v2294
        %v2300 = vxor.u32 %v2299, 2147483648
        %v2301 = vmul.f32 %v2300, 1.442695
        %v2302 = vpow.pop %v2301
        %v2303 = vadd.f32 %v2302, 1.0
        %v2304 = vrcp.pop %v2303
        %v2305 = vmul.f32 1.0, %v2304
        %s2306 = sadd.s32 16, 32
        %s2307 = scalar_lea.vmem %s340, %s2306 [#allocation7]
        %v2308 = vld [vmem:[%s2307] sm:$0xff]
        %v2309 = vld [vmem:[%s701] sm:$0xff]
        %v2310 = vadd.f32 %v2308, %v2309
        %v2311 = vld [vmem:[%s704] sm:$0xf]
        %v2312 = vld [vmem:[%s704 + $0x4] sm:$0xf]
        %v2313 = vld [vmem:[%s704 + $0x8] sm:$0xf]
        %v2314 = vld [vmem:[%s704 + $0xc] sm:$0xf]
        %v2319 = vunpack.c.l.b16 %v2311
        %v2320 = vunpack.c.l.b16 %v2312
        %v2321 = vunpack.c.l.b16 %v2313
        %v2322 = vunpack.c.l.b16 %v2314
        %v2323 = vpack.c.b16 %v2320, %v2319
        %v2324 = vpack.c.b16 %v2322, %v2321
        %2327 = vmatprep.subr.bf16.mxu0 0
        %2328 = vmatpush1.bf16.msra.mxu0 %v2323
        %2329 = vmatprep.subr.bf16.mxu0 0
        %2330 = vmatpush1.bf16.msra.mxu0 %v2324
        %2331 = vmatprep.subr.bf16.mxu0 0
        %2332 = vmatpush1.bf16.msra.mxu0 0
        %2333 = vmatprep.subr.bf16.mxu0 0
        %2334 = vmatpush1.bf16.msra.mxu0 0
        %2335 = vmatprep.subr.bf16.mxu0 0
        %2336 = vmatpush1.bf16.msra.mxu0 0
        %2337 = vmatprep.subr.bf16.mxu0 0
        %2338 = vmatpush1.bf16.msra.mxu0 0
        %2339 = vmatprep.subr.bf16.mxu0 0
        %2340 = vmatpush1.bf16.msra.mxu0 0
        %2341 = vmatprep.subr.bf16.mxu0 0
        %2342 = vmatpush1.bf16.msra.mxu0 0
        %2343 = vmatprep.subr.bf16.mxu0 0
        %2344 = vmatpush1.bf16.msra.mxu0 0
        %2345 = vmatprep.subr.bf16.mxu0 0
        %2346 = vmatpush1.bf16.msra.mxu0 0
        %2347 = vmatprep.subr.bf16.mxu0 0
        %2348 = vmatpush1.bf16.msra.mxu0 0
        %2349 = vmatprep.subr.bf16.mxu0 0
        %2350 = vmatpush1.bf16.msra.mxu0 0
        %2351 = vmatprep.subr.bf16.mxu0 0
        %2352 = vmatpush1.bf16.msra.mxu0 0
        %2353 = vmatprep.subr.bf16.mxu0 0
        %2354 = vmatpush1.bf16.msra.mxu0 0
        %2355 = vmatprep.subr.bf16.mxu0 0
        %2356 = vmatpush1.bf16.msra.mxu0 0
        %2357 = vmatprep.subr.bf16.mxu0 0
        %2358 = vmatpush1.bf16.msra.mxu0 0
        %2359 = vmatprep.mubr.bf16.mxu0 0
        %2360 = vmatmul.mubr.bf16.gmra.mrb[0].mxu0 %v2257
        %v2361 = vpop.f32.mrb[0].mxu0
        %v2362 = vadd.f32 0.0, %v2361
        %v2363 = vpop.f32.mrb[0].mxu0
        %v2364 = vpop.f32.mrb[0].mxu0
        %v2365 = vpop.f32.mrb[0].mxu0
        %2366 = vdwg.mxu0
        %v2367 = vadd.f32 %v2310, %v2362
        %v2368 = vxor.u32 %v2367, 2147483648
        %v2369 = vmul.f32 %v2368, 1.442695
        %v2370 = vpow.pop %v2369
        %v2371 = vadd.f32 %v2370, 1.0
        %v2372 = vrcp.pop %v2371
        %v2373 = vmul.f32 1.0, %v2372
        %s2374 = sadd.s32 16, 64
        %s2375 = scalar_lea.vmem %s340, %s2374 [#allocation7]
        %v2376 = vld [vmem:[%s2375] sm:$0xff]
        %v2377 = vld [vmem:[%s771] sm:$0xff]
        %v2378 = vadd.f32 %v2376, %v2377
        %v2379 = vld [vmem:[%s774] sm:$0xf]
        %v2380 = vld [vmem:[%s774 + $0x4] sm:$0xf]
        %v2381 = vld [vmem:[%s774 + $0x8] sm:$0xf]
        %v2382 = vld [vmem:[%s774 + $0xc] sm:$0xf]
        %v2387 = vunpack.c.l.b16 %v2379
        %v2388 = vunpack.c.l.b16 %v2380
        %v2389 = vunpack.c.l.b16 %v2381
        %v2390 = vunpack.c.l.b16 %v2382
        %v2391 = vpack.c.b16 %v2388, %v2387
        %v2392 = vpack.c.b16 %v2390, %v2389
        %2395 = vmatprep.subr.bf16.mxu0 0
        %2396 = vmatpush1.bf16.msra.mxu0 %v2391
        %2397 = vmatprep.subr.bf16.mxu0 0
        %2398 = vmatpush1.bf16.msra.mxu0 %v2392
        %2399 = vmatprep.subr.bf16.mxu0 0
        %2400 = vmatpush1.bf16.msra.mxu0 0
        %2401 = vmatprep.subr.bf16.mxu0 0
        %2402 = vmatpush1.bf16.msra.mxu0 0
        %2403 = vmatprep.subr.bf16.mxu0 0
        %2404 = vmatpush1.bf16.msra.mxu0 0
        %2405 = vmatprep.subr.bf16.mxu0 0
        %2406 = vmatpush1.bf16.msra.mxu0 0
        %2407 = vmatprep.subr.bf16.mxu0 0
        %2408 = vmatpush1.bf16.msra.mxu0 0
        %2409 = vmatprep.subr.bf16.mxu0 0
        %2410 = vmatpush1.bf16.msra.mxu0 0
        %2411 = vmatprep.subr.bf16.mxu0 0
        %2412 = vmatpush1.bf16.msra.mxu0 0
        %2413 = vmatprep.subr.bf16.mxu0 0
        %2414 = vmatpush1.bf16.msra.mxu0 0
        %2415 = vmatprep.subr.bf16.mxu0 0
        %2416 = vmatpush1.bf16.msra.mxu0 0
        %2417 = vmatprep.subr.bf16.mxu0 0
        %2418 = vmatpush1.bf16.msra.mxu0 0
        %2419 = vmatprep.subr.bf16.mxu0 0
        %2420 = vmatpush1.bf16.msra.mxu0 0
        %2421 = vmatprep.subr.bf16.mxu0 0
        %2422 = vmatpush1.bf16.msra.mxu0 0
        %2423 = vmatprep.subr.bf16.mxu0 0
        %2424 = vmatpush1.bf16.msra.mxu0 0
        %2425 = vmatprep.subr.bf16.mxu0 0
        %2426 = vmatpush1.bf16.msra.mxu0 0
        %2427 = vmatprep.mubr.bf16.mxu0 0
        %2428 = vmatmul.mubr.bf16.gmra.mrb[0].mxu0 %v2257
        %v2429 = vpop.f32.mrb[0].mxu0
        %v2430 = vadd.f32 0.0, %v2429
        %v2431 = vpop.f32.mrb[0].mxu0
        %v2432 = vpop.f32.mrb[0].mxu0
        %v2433 = vpop.f32.mrb[0].mxu0
        %2434 = vdwg.mxu0
        %v2435 = vadd.f32 %v2378, %v2430
        %v2436 = vtanh.pop %v2435
        %s2437 = sadd.s32 16, 96
        %s2438 = scalar_lea.vmem %s340, %s2437 [#allocation7]
        %v2439 = vld [vmem:[%s2438] sm:$0xff]
        %v2440 = vld [vmem:[%s836] sm:$0xff]
        %v2441 = vadd.f32 %v2439, %v2440
        %v2442 = vld [vmem:[%s839] sm:$0xf]
        %v2443 = vld [vmem:[%s839 + $0x4] sm:$0xf]
        %v2444 = vld [vmem:[%s839 + $0x8] sm:$0xf]
        %v2445 = vld [vmem:[%s839 + $0xc] sm:$0xf]
        %v2450 = vunpack.c.l.b16 %v2442
        %v2451 = vunpack.c.l.b16 %v2443
        %v2452 = vunpack.c.l.b16 %v2444
        %v2453 = vunpack.c.l.b16 %v2445
        %v2454 = vpack.c.b16 %v2451, %v2450
        %v2455 = vpack.c.b16 %v2453, %v2452
        %2458 = vmatprep.subr.bf16.mxu0 0
        %2459 = vmatpush1.bf16.msra.mxu0 %v2454
        %2460 = vmatprep.subr.bf16.mxu0 0
        %2461 = vmatpush1.bf16.msra.mxu0 %v2455
        %2462 = vmatprep.subr.bf16.mxu0 0
        %2463 = vmatpush1.bf16.msra.mxu0 0
        %2464 = vmatprep.subr.bf16.mxu0 0
        %2465 = vmatpush1.bf16.msra.mxu0 0
        %2466 = vmatprep.subr.bf16.mxu0 0
        %2467 = vmatpush1.bf16.msra.mxu0 0
        %2468 = vmatprep.subr.bf16.mxu0 0
        %2469 = vmatpush1.bf16.msra.mxu0 0
        %2470 = vmatprep.subr.bf16.mxu0 0
        %2471 = vmatpush1.bf16.msra.mxu0 0
        %2472 = vmatprep.subr.bf16.mxu0 0
        %2473 = vmatpush1.bf16.msra.mxu0 0
        %2474 = vmatprep.subr.bf16.mxu0 0
        %2475 = vmatpush1.bf16.msra.mxu0 0
        %2476 = vmatprep.subr.bf16.mxu0 0
        %2477 = vmatpush1.bf16.msra.mxu0 0
        %2478 = vmatprep.subr.bf16.mxu0 0
        %2479 = vmatpush1.bf16.msra.mxu0 0
        %2480 = vmatprep.subr.bf16.mxu0 0
        %2481 = vmatpush1.bf16.msra.mxu0 0
        %2482 = vmatprep.subr.bf16.mxu0 0
        %2483 = vmatpush1.bf16.msra.mxu0 0
        %2484 = vmatprep.subr.bf16.mxu0 0
        %2485 = vmatpush1.bf16.msra.mxu0 0
        %2486 = vmatprep.subr.bf16.mxu0 0
        %2487 = vmatpush1.bf16.msra.mxu0 0
        %2488 = vmatprep.subr.bf16.mxu0 0
        %2489 = vmatpush1.bf16.msra.mxu0 0
        %2490 = vmatprep.mubr.bf16.mxu0 0
        %2491 = vmatmul.mubr.bf16.gmra.mrb[0].mxu0 %v2257
        %v2492 = vpop.f32.mrb[0].mxu0
        %v2493 = vadd.f32 0.0, %v2492
        %v2494 = vpop.f32.mrb[0].mxu0
        %v2495 = vpop.f32.mrb[0].mxu0
        %v2496 = vpop.f32.mrb[0].mxu0
        %2497 = vdwg.mxu0
        %v2498 = vadd.f32 %v2441, %v2493
        %v2499 = vxor.u32 %v2498, 2147483648
        %v2500 = vmul.f32 %v2499, 1.442695
        %v2501 = vpow.pop %v2500
        %v2502 = vadd.f32 %v2501, 1.0
        %v2503 = vrcp.pop %v2502
        %v2504 = vmul.f32 1.0, %v2503
        %v2505 = vmul.f32 %v2373, %v2234
        %v2506 = vmul.f32 %v2305, %v2436
        %v2507 = vadd.f32 %v2505, %v2506
        %v2508 = vtanh.pop %v2507
        %v2509 = vmul.f32 %v2504, %v2508
        %2510 = vst.msk [vmem:[#allocation3] sm:$0xff] %vm647, %v2507
        %2511 = vst.msk [vmem:[#allocation2] sm:$0xff] %vm647, %v2509
        %v2512 = vld [vmem:[#allocation4] sm:$0xff]
        %v2513 = vld [vmem:[#allocation5] sm:$0xff]
        %v2514 = vpack.c.bf16 %v2509, %v2509
        %v2515 = vpack.c.bf16 %v2512, %v2512
        %v2516 = vld [vmem:[%s4] sm:$0xf]
        %v2517 = vld [vmem:[%s4 + $0x4] sm:$0xf]
        %v2518 = vld [vmem:[%s4 + $0x8] sm:$0xf]
        %v2519 = vld [vmem:[%s4 + $0xc] sm:$0xf]
        %v2520 = vld [vmem:[%s5] sm:$0xf]
        %v2521 = vld [vmem:[%s5 + $0x4] sm:$0xf]
        %v2522 = vld [vmem:[%s5 + $0x8] sm:$0xf]
        %v2523 = vld [vmem:[%s5 + $0xc] sm:$0xf]
        %v2528 = vunpack.c.l.b16 %v2520
        %v2529 = vunpack.c.l.b16 %v2521
        %v2530 = vunpack.c.l.b16 %v2522
        %v2531 = vunpack.c.l.b16 %v2523
        %v2532 = vpack.c.b16 %v2529, %v2528
        %v2533 = vpack.c.b16 %v2531, %v2530
        %v2537 = vsel %vm647, %v2515, 0
        %2539 = vmatprep.subr.bf16.mxu0 0
        %2540 = vmatpush1.bf16.msra.mxu0 %v2532
        %2541 = vmatprep.subr.bf16.mxu0 0
        %2542 = vmatpush1.bf16.msra.mxu0 %v2533
        %2543 = vmatprep.subr.bf16.mxu0 0
        %2544 = vmatpush1.bf16.msra.mxu0 0
        %2545 = vmatprep.subr.bf16.mxu0 0
        %2546 = vmatpush1.bf16.msra.mxu0 0
        %2547 = vmatprep.subr.bf16.mxu0 0
        %2548 = vmatpush1.bf16.msra.mxu0 0
        %2549 = vmatprep.subr.bf16.mxu0 0
        %2550 = vmatpush1.bf16.msra.mxu0 0
        %2551 = vmatprep.subr.bf16.mxu0 0
        %2552 = vmatpush1.bf16.msra.mxu0 0
        %2553 = vmatprep.subr.bf16.mxu0 0
        %2554 = vmatpush1.bf16.msra.mxu0 0
        %2555 = vmatprep.subr.bf16.mxu0 0
        %2556 = vmatpush1.bf16.msra.mxu0 0
        %2557 = vmatprep.subr.bf16.mxu0 0
        %2558 = vmatpush1.bf16.msra.mxu0 0
        %2559 = vmatprep.subr.bf16.mxu0 0
        %2560 = vmatpush1.bf16.msra.mxu0 0
        %2561 = vmatprep.subr.bf16.mxu0 0
        %2562 = vmatpush1.bf16.msra.mxu0 0
        %2563 = vmatprep.subr.bf16.mxu0 0
        %2564 = vmatpush1.bf16.msra.mxu0 0
        %2565 = vmatprep.subr.bf16.mxu0 0
        %2566 = vmatpush1.bf16.msra.mxu0 0
        %2567 = vmatprep.subr.bf16.mxu0 0
        %2568 = vmatpush1.bf16.msra.mxu0 0
        %2569 = vmatprep.subr.bf16.mxu0 0
        %2570 = vmatpush1.bf16.msra.mxu0 0
        %2571 = vmatprep.mubr.bf16.mxu0 0
        %2572 = vmatmul.mubr.bf16.gmra.mrb[0].mxu0 %v2537
        %v2573 = vpop.f32.mrb[0].mxu0
        %v2574 = vadd.f32 0.0, %v2573
        %v2575 = vpop.f32.mrb[0].mxu0
        %v2576 = vpop.f32.mrb[0].mxu0
        %v2577 = vpop.f32.mrb[0].mxu0
        %2578 = vdwg.mxu0
        %v2583 = vunpack.c.l.b16 %v2516
        %v2584 = vunpack.c.l.b16 %v2517
        %v2585 = vunpack.c.l.b16 %v2518
        %v2586 = vunpack.c.l.b16 %v2519
        %v2587 = vpack.c.b16 %v2584, %v2583
        %v2588 = vpack.c.b16 %v2586, %v2585
        %v2592 = vsel %vm647, %v2514, 0
        %2594 = vmatprep.subr.bf16.mxu0 0
        %2595 = vmatpush1.bf16.msra.mxu0 %v2587
        %2596 = vmatprep.subr.bf16.mxu0 0
        %2597 = vmatpush1.bf16.msra.mxu0 %v2588
        %2598 = vmatprep.subr.bf16.mxu0 0
        %2599 = vmatpush1.bf16.msra.mxu0 0
        %2600 = vmatprep.subr.bf16.mxu0 0
        %2601 = vmatpush1.bf16.msra.mxu0 0
        %2602 = vmatprep.subr.bf16.mxu0 0
        %2603 = vmatpush1.bf16.msra.mxu0 0
        %2604 = vmatprep.subr.bf16.mxu0 0
        %2605 = vmatpush1.bf16.msra.mxu0 0
        %2606 = vmatprep.subr.bf16.mxu0 0
        %2607 = vmatpush1.bf16.msra.mxu0 0
        %2608 = vmatprep.subr.bf16.mxu0 0
        %2609 = vmatpush1.bf16.msra.mxu0 0
        %2610 = vmatprep.subr.bf16.mxu0 0
        %2611 = vmatpush1.bf16.msra.mxu0 0
        %2612 = vmatprep.subr.bf16.mxu0 0
        %2613 = vmatpush1.bf16.msra.mxu0 0
        %2614 = vmatprep.subr.bf16.mxu0 0
        %2615 = vmatpush1.bf16.msra.mxu0 0
        %2616 = vmatprep.subr.bf16.mxu0 0
        %2617 = vmatpush1.bf16.msra.mxu0 0
        %2618 = vmatprep.subr.bf16.mxu0 0
        %2619 = vmatpush1.bf16.msra.mxu0 0
        %2620 = vmatprep.subr.bf16.mxu0 0
        %2621 = vmatpush1.bf16.msra.mxu0 0
        %2622 = vmatprep.subr.bf16.mxu0 0
        %2623 = vmatpush1.bf16.msra.mxu0 0
        %2624 = vmatprep.subr.bf16.mxu0 0
        %2625 = vmatpush1.bf16.msra.mxu0 0
        %2626 = vmatprep.mubr.bf16.mxu0 0
        %2627 = vmatmul.mubr.bf16.gmra.mrb[0].mxu0 %v2592
        %v2628 = vpop.f32.mrb[0].mxu0
        %v2629 = vadd.f32 %v2574, %v2628
        %v2630 = vpop.f32.mrb[0].mxu0
        %v2631 = vpop.f32.mrb[0].mxu0
        %v2632 = vpop.f32.mrb[0].mxu0
        %2633 = vdwg.mxu0
        %v2634 = vld [vmem:[%s6] sm:$0x1]
        %v2636 = vlaneseq
        %v2637 = vshrl.u32 %v2636, 7
        %v2638 = vsub.s32 0, %v2637
        %v2639 = vrot.slane %v2634, %v2638
        %v2641 = vadd.f32 %v2629, %v2639
        %v2642 = vxor.u32 %v2641, 2147483648
        %v2643 = vmul.f32 %v2642, 1.442695
        %v2644 = vpow.pop %v2643
        %v2645 = vadd.f32 %v2644, 1.0
        %v2646 = vrcp.pop %v2645
        %v2647 = vmul.f32 1.0, %v2646
        %v2648 = vld [vmem:[%s1046] sm:$0xf]
        %v2649 = vld [vmem:[%s1046 + $0x4] sm:$0xf]
        %v2650 = vld [vmem:[%s1046 + $0x8] sm:$0xf]
        %v2651 = vld [vmem:[%s1046 + $0xc] sm:$0xf]
        %v2652 = vld [vmem:[%s1051] sm:$0xf]
        %v2653 = vld [vmem:[%s1051 + $0x4] sm:$0xf]
        %v2654 = vld [vmem:[%s1051 + $0x8] sm:$0xf]
        %v2655 = vld [vmem:[%s1051 + $0xc] sm:$0xf]
        %v2660 = vunpack.c.l.b16 %v2652
        %v2661 = vunpack.c.l.b16 %v2653
        %v2662 = vunpack.c.l.b16 %v2654
        %v2663 = vunpack.c.l.b16 %v2655
        %v2664 = vpack.c.b16 %v2661, %v2660
        %v2665 = vpack.c.b16 %v2663, %v2662
        %2668 = vmatprep.subr.bf16.mxu0 0
        %2669 = vmatpush1.bf16.msra.mxu0 %v2664
        %2670 = vmatprep.subr.bf16.mxu0 0
        %2671 = vmatpush1.bf16.msra.mxu0 %v2665
        %2672 = vmatprep.subr.bf16.mxu0 0
        %2673 = vmatpush1.bf16.msra.mxu0 0
        %2674 = vmatprep.subr.bf16.mxu0 0
        %2675 = vmatpush1.bf16.msra.mxu0 0
        %2676 = vmatprep.subr.bf16.mxu0 0
        %2677 = vmatpush1.bf16.msra.mxu0 0
        %2678 = vmatprep.subr.bf16.mxu0 0
        %2679 = vmatpush1.bf16.msra.mxu0 0
        %2680 = vmatprep.subr.bf16.mxu0 0
        %2681 = vmatpush1.bf16.msra.mxu0 0
        %2682 = vmatprep.subr.bf16.mxu0 0
        %2683 = vmatpush1.bf16.msra.mxu0 0
        %2684 = vmatprep.subr.bf16.mxu0 0
        %2685 = vmatpush1.bf16.msra.mxu0 0
        %2686 = vmatprep.subr.bf16.mxu0 0
        %2687 = vmatpush1.bf16.msra.mxu0 0
        %2688 = vmatprep.subr.bf16.mxu0 0
        %2689 = vmatpush1.bf16.msra.mxu0 0
        %2690 = vmatprep.subr.bf16.mxu0 0
        %2691 = vmatpush1.bf16.msra.mxu0 0
        %2692 = vmatprep.subr.bf16.mxu0 0
        %2693 = vmatpush1.bf16.msra.mxu0 0
        %2694 = vmatprep.subr.bf16.mxu0 0
        %2695 = vmatpush1.bf16.msra.mxu0 0
        %2696 = vmatprep.subr.bf16.mxu0 0
        %2697 = vmatpush1.bf16.msra.mxu0 0
        %2698 = vmatprep.subr.bf16.mxu0 0
        %2699 = vmatpush1.bf16.msra.mxu0 0
        %2700 = vmatprep.mubr.bf16.mxu0 0
        %2701 = vmatmul.mubr.bf16.gmra.mrb[0].mxu0 %v2537
        %v2702 = vpop.f32.mrb[0].mxu0
        %v2703 = vadd.f32 0.0, %v2702
        %v2704 = vpop.f32.mrb[0].mxu0
        %v2705 = vpop.f32.mrb[0].mxu0
        %v2706 = vpop.f32.mrb[0].mxu0
        %2707 = vdwg.mxu0
        %v2712 = vunpack.c.l.b16 %v2648
        %v2713 = vunpack.c.l.b16 %v2649
        %v2714 = vunpack.c.l.b16 %v2650
        %v2715 = vunpack.c.l.b16 %v2651
        %v2716 = vpack.c.b16 %v2713, %v2712
        %v2717 = vpack.c.b16 %v2715, %v2714
        %2720 = vmatprep.subr.bf16.mxu0 0
        %2721 = vmatpush1.bf16.msra.mxu0 %v2716
        %2722 = vmatprep.subr.bf16.mxu0 0
        %2723 = vmatpush1.bf16.msra.mxu0 %v2717
        %2724 = vmatprep.subr.bf16.mxu0 0
        %2725 = vmatpush1.bf16.msra.mxu0 0
        %2726 = vmatprep.subr.bf16.mxu0 0
        %2727 = vmatpush1.bf16.msra.mxu0 0
        %2728 = vmatprep.subr.bf16.mxu0 0
        %2729 = vmatpush1.bf16.msra.mxu0 0
        %2730 = vmatprep.subr.bf16.mxu0 0
        %2731 = vmatpush1.bf16.msra.mxu0 0
        %2732 = vmatprep.subr.bf16.mxu0 0
        %2733 = vmatpush1.bf16.msra.mxu0 0
        %2734 = vmatprep.subr.bf16.mxu0 0
        %2735 = vmatpush1.bf16.msra.mxu0 0
        %2736 = vmatprep.subr.bf16.mxu0 0
        %2737 = vmatpush1.bf16.msra.mxu0 0
        %2738 = vmatprep.subr.bf16.mxu0 0
        %2739 = vmatpush1.bf16.msra.mxu0 0
        %2740 = vmatprep.subr.bf16.mxu0 0
        %2741 = vmatpush1.bf16.msra.mxu0 0
        %2742 = vmatprep.subr.bf16.mxu0 0
        %2743 = vmatpush1.bf16.msra.mxu0 0
        %2744 = vmatprep.subr.bf16.mxu0 0
        %2745 = vmatpush1.bf16.msra.mxu0 0
        %2746 = vmatprep.subr.bf16.mxu0 0
        %2747 = vmatpush1.bf16.msra.mxu0 0
        %2748 = vmatprep.subr.bf16.mxu0 0
        %2749 = vmatpush1.bf16.msra.mxu0 0
        %2750 = vmatprep.subr.bf16.mxu0 0
        %2751 = vmatpush1.bf16.msra.mxu0 0
        %2752 = vmatprep.mubr.bf16.mxu0 0
        %2753 = vmatmul.mubr.bf16.gmra.mrb[0].mxu0 %v2592
        %v2754 = vpop.f32.mrb[0].mxu0
        %v2755 = vadd.f32 %v2703, %v2754
        %v2756 = vpop.f32.mrb[0].mxu0
        %v2757 = vpop.f32.mrb[0].mxu0
        %v2758 = vpop.f32.mrb[0].mxu0
        %2759 = vdwg.mxu0
        %v2760 = vld [vmem:[%s1160] sm:$0x1]
        %v2762 = vlaneseq
        %v2763 = vshrl.u32 %v2762, 7
        %v2764 = vsub.s32 0, %v2763
        %v2765 = vrot.slane %v2760, %v2764
        %v2767 = vadd.f32 %v2755, %v2765
        %v2768 = vxor.u32 %v2767, 2147483648
        %v2769 = vmul.f32 %v2768, 1.442695
        %v2770 = vpow.pop %v2769
        %v2771 = vadd.f32 %v2770, 1.0
        %v2772 = vrcp.pop %v2771
        %v2773 = vmul.f32 1.0, %v2772
        %v2774 = vld [vmem:[%s1175] sm:$0xf]
        %v2775 = vld [vmem:[%s1175 + $0x4] sm:$0xf]
        %v2776 = vld [vmem:[%s1175 + $0x8] sm:$0xf]
        %v2777 = vld [vmem:[%s1175 + $0xc] sm:$0xf]
        %v2778 = vld [vmem:[%s1180] sm:$0xf]
        %v2779 = vld [vmem:[%s1180 + $0x4] sm:$0xf]
        %v2780 = vld [vmem:[%s1180 + $0x8] sm:$0xf]
        %v2781 = vld [vmem:[%s1180 + $0xc] sm:$0xf]
        %v2786 = vunpack.c.l.b16 %v2778
        %v2787 = vunpack.c.l.b16 %v2779
        %v2788 = vunpack.c.l.b16 %v2780
        %v2789 = vunpack.c.l.b16 %v2781
        %v2790 = vpack.c.b16 %v2787, %v2786
        %v2791 = vpack.c.b16 %v2789, %v2788
        %2794 = vmatprep.subr.bf16.mxu0 0
        %2795 = vmatpush1.bf16.msra.mxu0 %v2790
        %2796 = vmatprep.subr.bf16.mxu0 0
        %2797 = vmatpush1.bf16.msra.mxu0 %v2791
        %2798 = vmatprep.subr.bf16.mxu0 0
        %2799 = vmatpush1.bf16.msra.mxu0 0
        %2800 = vmatprep.subr.bf16.mxu0 0
        %2801 = vmatpush1.bf16.msra.mxu0 0
        %2802 = vmatprep.subr.bf16.mxu0 0
        %2803 = vmatpush1.bf16.msra.mxu0 0
        %2804 = vmatprep.subr.bf16.mxu0 0
        %2805 = vmatpush1.bf16.msra.mxu0 0
        %2806 = vmatprep.subr.bf16.mxu0 0
        %2807 = vmatpush1.bf16.msra.mxu0 0
        %2808 = vmatprep.subr.bf16.mxu0 0
        %2809 = vmatpush1.bf16.msra.mxu0 0
        %2810 = vmatprep.subr.bf16.mxu0 0
        %2811 = vmatpush1.bf16.msra.mxu0 0
        %2812 = vmatprep.subr.bf16.mxu0 0
        %2813 = vmatpush1.bf16.msra.mxu0 0
        %2814 = vmatprep.subr.bf16.mxu0 0
        %2815 = vmatpush1.bf16.msra.mxu0 0
        %2816 = vmatprep.subr.bf16.mxu0 0
        %2817 = vmatpush1.bf16.msra.mxu0 0
        %2818 = vmatprep.subr.bf16.mxu0 0
        %2819 = vmatpush1.bf16.msra.mxu0 0
        %2820 = vmatprep.subr.bf16.mxu0 0
        %2821 = vmatpush1.bf16.msra.mxu0 0
        %2822 = vmatprep.subr.bf16.mxu0 0
        %2823 = vmatpush1.bf16.msra.mxu0 0
        %2824 = vmatprep.subr.bf16.mxu0 0
        %2825 = vmatpush1.bf16.msra.mxu0 0
        %2826 = vmatprep.mubr.bf16.mxu0 0
        %2827 = vmatmul.mubr.bf16.gmra.mrb[0].mxu0 %v2537
        %v2828 = vpop.f32.mrb[0].mxu0
        %v2829 = vadd.f32 0.0, %v2828
        %v2830 = vpop.f32.mrb[0].mxu0
        %v2831 = vpop.f32.mrb[0].mxu0
        %v2832 = vpop.f32.mrb[0].mxu0
        %2833 = vdwg.mxu0
        %v2838 = vunpack.c.l.b16 %v2774
        %v2839 = vunpack.c.l.b16 %v2775
        %v2840 = vunpack.c.l.b16 %v2776
        %v2841 = vunpack.c.l.b16 %v2777
        %v2842 = vpack.c.b16 %v2839, %v2838
        %v2843 = vpack.c.b16 %v2841, %v2840
        %2846 = vmatprep.subr.bf16.mxu0 0
        %2847 = vmatpush1.bf16.msra.mxu0 %v2842
        %2848 = vmatprep.subr.bf16.mxu0 0
        %2849 = vmatpush1.bf16.msra.mxu0 %v2843
        %2850 = vmatprep.subr.bf16.mxu0 0
        %2851 = vmatpush1.bf16.msra.mxu0 0
        %2852 = vmatprep.subr.bf16.mxu0 0
        %2853 = vmatpush1.bf16.msra.mxu0 0
        %2854 = vmatprep.subr.bf16.mxu0 0
        %2855 = vmatpush1.bf16.msra.mxu0 0
        %2856 = vmatprep.subr.bf16.mxu0 0
        %2857 = vmatpush1.bf16.msra.mxu0 0
        %2858 = vmatprep.subr.bf16.mxu0 0
        %2859 = vmatpush1.bf16.msra.mxu0 0
        %2860 = vmatprep.subr.bf16.mxu0 0
        %2861 = vmatpush1.bf16.msra.mxu0 0
        %2862 = vmatprep.subr.bf16.mxu0 0
        %2863 = vmatpush1.bf16.msra.mxu0 0
        %2864 = vmatprep.subr.bf16.mxu0 0
        %2865 = vmatpush1.bf16.msra.mxu0 0
        %2866 = vmatprep.subr.bf16.mxu0 0
        %2867 = vmatpush1.bf16.msra.mxu0 0
        %2868 = vmatprep.subr.bf16.mxu0 0
        %2869 = vmatpush1.bf16.msra.mxu0 0
        %2870 = vmatprep.subr.bf16.mxu0 0
        %2871 = vmatpush1.bf16.msra.mxu0 0
        %2872 = vmatprep.subr.bf16.mxu0 0
        %2873 = vmatpush1.bf16.msra.mxu0 0
        %2874 = vmatprep.subr.bf16.mxu0 0
        %2875 = vmatpush1.bf16.msra.mxu0 0
        %2876 = vmatprep.subr.bf16.mxu0 0
        %2877 = vmatpush1.bf16.msra.mxu0 0
        %2878 = vmatprep.mubr.bf16.mxu0 0
        %2879 = vmatmul.mubr.bf16.gmra.mrb[0].mxu0 %v2592
        %v2880 = vpop.f32.mrb[0].mxu0
        %v2881 = vadd.f32 %v2829, %v2880
        %v2882 = vpop.f32.mrb[0].mxu0
        %v2883 = vpop.f32.mrb[0].mxu0
        %v2884 = vpop.f32.mrb[0].mxu0
        %2885 = vdwg.mxu0
        %v2886 = vld [vmem:[%s1289] sm:$0x1]
        %v2888 = vlaneseq
        %v2889 = vshrl.u32 %v2888, 7
        %v2890 = vsub.s32 0, %v2889
        %v2891 = vrot.slane %v2886, %v2890
        %v2893 = vadd.f32 %v2881, %v2891
        %v2894 = vtanh.pop %v2893
        %v2895 = vld [vmem:[%s1299] sm:$0xf]
        %v2896 = vld [vmem:[%s1299 + $0x4] sm:$0xf]
        %v2897 = vld [vmem:[%s1299 + $0x8] sm:$0xf]
        %v2898 = vld [vmem:[%s1299 + $0xc] sm:$0xf]
        %v2899 = vld [vmem:[%s1304] sm:$0xf]
        %v2900 = vld [vmem:[%s1304 + $0x4] sm:$0xf]
        %v2901 = vld [vmem:[%s1304 + $0x8] sm:$0xf]
        %v2902 = vld [vmem:[%s1304 + $0xc] sm:$0xf]
        %v2907 = vunpack.c.l.b16 %v2899
        %v2908 = vunpack.c.l.b16 %v2900
        %v2909 = vunpack.c.l.b16 %v2901
        %v2910 = vunpack.c.l.b16 %v2902
        %v2911 = vpack.c.b16 %v2908, %v2907
        %v2912 = vpack.c.b16 %v2910, %v2909
        %2915 = vmatprep.subr.bf16.mxu0 0
        %2916 = vmatpush1.bf16.msra.mxu0 %v2911
        %2917 = vmatprep.subr.bf16.mxu0 0
        %2918 = vmatpush1.bf16.msra.mxu0 %v2912
        %2919 = vmatprep.subr.bf16.mxu0 0
        %2920 = vmatpush1.bf16.msra.mxu0 0
        %2921 = vmatprep.subr.bf16.mxu0 0
        %2922 = vmatpush1.bf16.msra.mxu0 0
        %2923 = vmatprep.subr.bf16.mxu0 0
        %2924 = vmatpush1.bf16.msra.mxu0 0
        %2925 = vmatprep.subr.bf16.mxu0 0
        %2926 = vmatpush1.bf16.msra.mxu0 0
        %2927 = vmatprep.subr.bf16.mxu0 0
        %2928 = vmatpush1.bf16.msra.mxu0 0
        %2929 = vmatprep.subr.bf16.mxu0 0
        %2930 = vmatpush1.bf16.msra.mxu0 0
        %2931 = vmatprep.subr.bf16.mxu0 0
        %2932 = vmatpush1.bf16.msra.mxu0 0
        %2933 = vmatprep.subr.bf16.mxu0 0
        %2934 = vmatpush1.bf16.msra.mxu0 0
        %2935 = vmatprep.subr.bf16.mxu0 0
        %2936 = vmatpush1.bf16.msra.mxu0 0
        %2937 = vmatprep.subr.bf16.mxu0 0
        %2938 = vmatpush1.bf16.msra.mxu0 0
        %2939 = vmatprep.subr.bf16.mxu0 0
        %2940 = vmatpush1.bf16.msra.mxu0 0
        %2941 = vmatprep.subr.bf16.mxu0 0
        %2942 = vmatpush1.bf16.msra.mxu0 0
        %2943 = vmatprep.subr.bf16.mxu0 0
        %2944 = vmatpush1.bf16.msra.mxu0 0
        %2945 = vmatprep.subr.bf16.mxu0 0
        %2946 = vmatpush1.bf16.msra.mxu0 0
        %2947 = vmatprep.mubr.bf16.mxu0 0
        %2948 = vmatmul.mubr.bf16.gmra.mrb[0].mxu0 %v2537
        %v2949 = vpop.f32.mrb[0].mxu0
        %v2950 = vadd.f32 0.0, %v2949
        %v2951 = vpop.f32.mrb[0].mxu0
        %v2952 = vpop.f32.mrb[0].mxu0
        %v2953 = vpop.f32.mrb[0].mxu0
        %2954 = vdwg.mxu0
        %v2959 = vunpack.c.l.b16 %v2895
        %v2960 = vunpack.c.l.b16 %v2896
        %v2961 = vunpack.c.l.b16 %v2897
        %v2962 = vunpack.c.l.b16 %v2898
        %v2963 = vpack.c.b16 %v2960, %v2959
        %v2964 = vpack.c.b16 %v2962, %v2961
        %2967 = vmatprep.subr.bf16.mxu0 0
        %2968 = vmatpush1.bf16.msra.mxu0 %v2963
        %2969 = vmatprep.subr.bf16.mxu0 0
        %2970 = vmatpush1.bf16.msra.mxu0 %v2964
        %2971 = vmatprep.subr.bf16.mxu0 0
        %2972 = vmatpush1.bf16.msra.mxu0 0
        %2973 = vmatprep.subr.bf16.mxu0 0
        %2974 = vmatpush1.bf16.msra.mxu0 0
        %2975 = vmatprep.subr.bf16.mxu0 0
        %2976 = vmatpush1.bf16.msra.mxu0 0
        %2977 = vmatprep.subr.bf16.mxu0 0
        %2978 = vmatpush1.bf16.msra.mxu0 0
        %2979 = vmatprep.subr.bf16.mxu0 0
        %2980 = vmatpush1.bf16.msra.mxu0 0
        %2981 = vmatprep.subr.bf16.mxu0 0
        %2982 = vmatpush1.bf16.msra.mxu0 0
        %2983 = vmatprep.subr.bf16.mxu0 0
        %2984 = vmatpush1.bf16.msra.mxu0 0
        %2985 = vmatprep.subr.bf16.mxu0 0
        %2986 = vmatpush1.bf16.msra.mxu0 0
        %2987 = vmatprep.subr.bf16.mxu0 0
        %2988 = vmatpush1.bf16.msra.mxu0 0
        %2989 = vmatprep.subr.bf16.mxu0 0
        %2990 = vmatpush1.bf16.msra.mxu0 0
        %2991 = vmatprep.subr.bf16.mxu0 0
        %2992 = vmatpush1.bf16.msra.mxu0 0
        %2993 = vmatprep.subr.bf16.mxu0 0
        %2994 = vmatpush1.bf16.msra.mxu0 0
        %2995 = vmatprep.subr.bf16.mxu0 0
        %2996 = vmatpush1.bf16.msra.mxu0 0
        %2997 = vmatprep.subr.bf16.mxu0 0
        %2998 = vmatpush1.bf16.msra.mxu0 0
        %2999 = vmatprep.mubr.bf16.mxu0 0
        %3000 = vmatmul.mubr.bf16.gmra.mrb[0].mxu0 %v2592
        %v3001 = vpop.f32.mrb[0].mxu0
        %v3002 = vadd.f32 %v2950, %v3001
        %v3003 = vpop.f32.mrb[0].mxu0
        %v3004 = vpop.f32.mrb[0].mxu0
        %v3005 = vpop.f32.mrb[0].mxu0
        %3006 = vdwg.mxu0
        %v3007 = vld [vmem:[%s1413] sm:$0x1]
        %v3009 = vlaneseq
        %v3010 = vshrl.u32 %v3009, 7
        %v3011 = vsub.s32 0, %v3010
        %v3012 = vrot.slane %v3007, %v3011
        %v3014 = vadd.f32 %v3002, %v3012
        %v3015 = vxor.u32 %v3014, 2147483648
        %v3016 = vmul.f32 %v3015, 1.442695
        %v3017 = vpow.pop %v3016
        %v3018 = vadd.f32 %v3017, 1.0
        %v3019 = vrcp.pop %v3018
        %v3020 = vmul.f32 1.0, %v3019
        %v3021 = vmul.f32 %v2773, %v2513
        %v3022 = vmul.f32 %v2647, %v2894
        %v3023 = vadd.f32 %v3021, %v3022
        %v3024 = vtanh.pop %v3023
        %v3025 = vmul.f32 %v3020, %v3024
        %3026 = vst.msk [vmem:[#allocation5] sm:$0xff] %vm647, %v3023
        %3027 = vst.msk [vmem:[#allocation4] sm:$0xff] %vm647, %v3025
        %s3028 = scalar_lea.vmem %s374, 16
        %3029 = vst.msk [vmem:[%s3028] sm:$0xff] %vm647, %v3025
        %v3030 = vld [vmem:[#allocation2] sm:$0xff]
        %v3031 = vld [vmem:[#allocation3] sm:$0xff]
        %v3032 = vpack.c.bf16 %v3030, %v3030
        %s3033 = scalar_lea.vmem %s340, 24 [#allocation7]
        %v3034 = vld [vmem:[%s3033] sm:$0xff]
        %v3035 = vld [vmem:[#allocation6] sm:$0xff]
        %v3036 = vadd.f32 %v3034, %v3035
        %v3037 = vld [vmem:[%s3] sm:$0xf]
        %v3038 = vld [vmem:[%s3 + $0x4] sm:$0xf]
        %v3039 = vld [vmem:[%s3 + $0x8] sm:$0xf]
        %v3040 = vld [vmem:[%s3 + $0xc] sm:$0xf]
        %v3045 = vunpack.c.l.b16 %v3037
        %v3046 = vunpack.c.l.b16 %v3038
        %v3047 = vunpack.c.l.b16 %v3039
        %v3048 = vunpack.c.l.b16 %v3040
        %v3049 = vpack.c.b16 %v3046, %v3045
        %v3050 = vpack.c.b16 %v3048, %v3047
        %v3054 = vsel %vm647, %v3032, 0
        %3056 = vmatprep.subr.bf16.mxu0 0
        %3057 = vmatpush1.bf16.msra.mxu0 %v3049
        %3058 = vmatprep.subr.bf16.mxu0 0
        %3059 = vmatpush1.bf16.msra.mxu0 %v3050
        %3060 = vmatprep.subr.bf16.mxu0 0
        %3061 = vmatpush1.bf16.msra.mxu0 0
        %3062 = vmatprep.subr.bf16.mxu0 0
        %3063 = vmatpush1.bf16.msra.mxu0 0
        %3064 = vmatprep.subr.bf16.mxu0 0
        %3065 = vmatpush1.bf16.msra.mxu0 0
        %3066 = vmatprep.subr.bf16.mxu0 0
        %3067 = vmatpush1.bf16.msra.mxu0 0
        %3068 = vmatprep.subr.bf16.mxu0 0
        %3069 = vmatpush1.bf16.msra.mxu0 0
        %3070 = vmatprep.subr.bf16.mxu0 0
        %3071 = vmatpush1.bf16.msra.mxu0 0
        %3072 = vmatprep.subr.bf16.mxu0 0
        %3073 = vmatpush1.bf16.msra.mxu0 0
        %3074 = vmatprep.subr.bf16.mxu0 0
        %3075 = vmatpush1.bf16.msra.mxu0 0
        %3076 = vmatprep.subr.bf16.mxu0 0
        %3077 = vmatpush1.bf16.msra.mxu0 0
        %3078 = vmatprep.subr.bf16.mxu0 0
        %3079 = vmatpush1.bf16.msra.mxu0 0
        %3080 = vmatprep.subr.bf16.mxu0 0
        %3081 = vmatpush1.bf16.msra.mxu0 0
        %3082 = vmatprep.subr.bf16.mxu0 0
        %3083 = vmatpush1.bf16.msra.mxu0 0
        %3084 = vmatprep.subr.bf16.mxu0 0
        %3085 = vmatpush1.bf16.msra.mxu0 0
        %3086 = vmatprep.subr.bf16.mxu0 0
        %3087 = vmatpush1.bf16.msra.mxu0 0
        %3088 = vmatprep.mubr.bf16.mxu0 0
        %3089 = vmatmul.mubr.bf16.gmra.mrb[0].mxu0 %v3054
        %v3090 = vpop.f32.mrb[0].mxu0
        %v3091 = vadd.f32 0.0, %v3090
        %v3092 = vpop.f32.mrb[0].mxu0
        %v3093 = vpop.f32.mrb[0].mxu0
        %v3094 = vpop.f32.mrb[0].mxu0
        %3095 = vdwg.mxu0
        %v3096 = vadd.f32 %v3036, %v3091
        %v3097 = vxor.u32 %v3096, 2147483648
        %v3098 = vmul.f32 %v3097, 1.442695
        %v3099 = vpow.pop %v3098
        %v3100 = vadd.f32 %v3099, 1.0
        %v3101 = vrcp.pop %v3100
        %v3102 = vmul.f32 1.0, %v3101
        %s3103 = sadd.s32 24, 32
        %s3104 = scalar_lea.vmem %s340, %s3103 [#allocation7]
        %v3105 = vld [vmem:[%s3104] sm:$0xff]
        %v3106 = vld [vmem:[%s701] sm:$0xff]
        %v3107 = vadd.f32 %v3105, %v3106
        %v3108 = vld [vmem:[%s704] sm:$0xf]
        %v3109 = vld [vmem:[%s704 + $0x4] sm:$0xf]
        %v3110 = vld [vmem:[%s704 + $0x8] sm:$0xf]
        %v3111 = vld [vmem:[%s704 + $0xc] sm:$0xf]
        %v3116 = vunpack.c.l.b16 %v3108
        %v3117 = vunpack.c.l.b16 %v3109
        %v3118 = vunpack.c.l.b16 %v3110
        %v3119 = vunpack.c.l.b16 %v3111
        %v3120 = vpack.c.b16 %v3117, %v3116
        %v3121 = vpack.c.b16 %v3119, %v3118
        %3124 = vmatprep.subr.bf16.mxu0 0
        %3125 = vmatpush1.bf16.msra.mxu0 %v3120
        %3126 = vmatprep.subr.bf16.mxu0 0
        %3127 = vmatpush1.bf16.msra.mxu0 %v3121
        %3128 = vmatprep.subr.bf16.mxu0 0
        %3129 = vmatpush1.bf16.msra.mxu0 0
        %3130 = vmatprep.subr.bf16.mxu0 0
        %3131 = vmatpush1.bf16.msra.mxu0 0
        %3132 = vmatprep.subr.bf16.mxu0 0
        %3133 = vmatpush1.bf16.msra.mxu0 0
        %3134 = vmatprep.subr.bf16.mxu0 0
        %3135 = vmatpush1.bf16.msra.mxu0 0
        %3136 = vmatprep.subr.bf16.mxu0 0
        %3137 = vmatpush1.bf16.msra.mxu0 0
        %3138 = vmatprep.subr.bf16.mxu0 0
        %3139 = vmatpush1.bf16.msra.mxu0 0
        %3140 = vmatprep.subr.bf16.mxu0 0
        %3141 = vmatpush1.bf16.msra.mxu0 0
        %3142 = vmatprep.subr.bf16.mxu0 0
        %3143 = vmatpush1.bf16.msra.mxu0 0
        %3144 = vmatprep.subr.bf16.mxu0 0
        %3145 = vmatpush1.bf16.msra.mxu0 0
        %3146 = vmatprep.subr.bf16.mxu0 0
        %3147 = vmatpush1.bf16.msra.mxu0 0
        %3148 = vmatprep.subr.bf16.mxu0 0
        %3149 = vmatpush1.bf16.msra.mxu0 0
        %3150 = vmatprep.subr.bf16.mxu0 0
        %3151 = vmatpush1.bf16.msra.mxu0 0
        %3152 = vmatprep.subr.bf16.mxu0 0
        %3153 = vmatpush1.bf16.msra.mxu0 0
        %3154 = vmatprep.subr.bf16.mxu0 0
        %3155 = vmatpush1.bf16.msra.mxu0 0
        %3156 = vmatprep.mubr.bf16.mxu0 0
        %3157 = vmatmul.mubr.bf16.gmra.mrb[0].mxu0 %v3054
        %v3158 = vpop.f32.mrb[0].mxu0
        %v3159 = vadd.f32 0.0, %v3158
        %v3160 = vpop.f32.mrb[0].mxu0
        %v3161 = vpop.f32.mrb[0].mxu0
        %v3162 = vpop.f32.mrb[0].mxu0
        %3163 = vdwg.mxu0
        %v3164 = vadd.f32 %v3107, %v3159
        %v3165 = vxor.u32 %v3164, 2147483648
        %v3166 = vmul.f32 %v3165, 1.442695
        %v3167 = vpow.pop %v3166
        %v3168 = vadd.f32 %v3167, 1.0
        %v3169 = vrcp.pop %v3168
        %v3170 = vmul.f32 1.0, %v3169
        %s3171 = sadd.s32 24, 64
        %s3172 = scalar_lea.vmem %s340, %s3171 [#allocation7]
        %v3173 = vld [vmem:[%s3172] sm:$0xff]
        %v3174 = vld [vmem:[%s771] sm:$0xff]
        %v3175 = vadd.f32 %v3173, %v3174
        %v3176 = vld [vmem:[%s774] sm:$0xf]
        %v3177 = vld [vmem:[%s774 + $0x4] sm:$0xf]
        %v3178 = vld [vmem:[%s774 + $0x8] sm:$0xf]
        %v3179 = vld [vmem:[%s774 + $0xc] sm:$0xf]
        %v3184 = vunpack.c.l.b16 %v3176
        %v3185 = vunpack.c.l.b16 %v3177
        %v3186 = vunpack.c.l.b16 %v3178
        %v3187 = vunpack.c.l.b16 %v3179
        %v3188 = vpack.c.b16 %v3185, %v3184
        %v3189 = vpack.c.b16 %v3187, %v3186
        %3192 = vmatprep.subr.bf16.mxu0 0
        %3193 = vmatpush1.bf16.msra.mxu0 %v3188
        %3194 = vmatprep.subr.bf16.mxu0 0
        %3195 = vmatpush1.bf16.msra.mxu0 %v3189
        %3196 = vmatprep.subr.bf16.mxu0 0
        %3197 = vmatpush1.bf16.msra.mxu0 0
        %3198 = vmatprep.subr.bf16.mxu0 0
        %3199 = vmatpush1.bf16.msra.mxu0 0
        %3200 = vmatprep.subr.bf16.mxu0 0
        %3201 = vmatpush1.bf16.msra.mxu0 0
        %3202 = vmatprep.subr.bf16.mxu0 0
        %3203 = vmatpush1.bf16.msra.mxu0 0
        %3204 = vmatprep.subr.bf16.mxu0 0
        %3205 = vmatpush1.bf16.msra.mxu0 0
        %3206 = vmatprep.subr.bf16.mxu0 0
        %3207 = vmatpush1.bf16.msra.mxu0 0
        %3208 = vmatprep.subr.bf16.mxu0 0
        %3209 = vmatpush1.bf16.msra.mxu0 0
        %3210 = vmatprep.subr.bf16.mxu0 0
        %3211 = vmatpush1.bf16.msra.mxu0 0
        %3212 = vmatprep.subr.bf16.mxu0 0
        %3213 = vmatpush1.bf16.msra.mxu0 0
        %3214 = vmatprep.subr.bf16.mxu0 0
        %3215 = vmatpush1.bf16.msra.mxu0 0
        %3216 = vmatprep.subr.bf16.mxu0 0
        %3217 = vmatpush1.bf16.msra.mxu0 0
        %3218 = vmatprep.subr.bf16.mxu0 0
        %3219 = vmatpush1.bf16.msra.mxu0 0
        %3220 = vmatprep.subr.bf16.mxu0 0
        %3221 = vmatpush1.bf16.msra.mxu0 0
        %3222 = vmatprep.subr.bf16.mxu0 0
        %3223 = vmatpush1.bf16.msra.mxu0 0
        %3224 = vmatprep.mubr.bf16.mxu0 0
        %3225 = vmatmul.mubr.bf16.gmra.mrb[0].mxu0 %v3054
        %v3226 = vpop.f32.mrb[0].mxu0
        %v3227 = vadd.f32 0.0, %v3226
        %v3228 = vpop.f32.mrb[0].mxu0
        %v3229 = vpop.f32.mrb[0].mxu0
        %v3230 = vpop.f32.mrb[0].mxu0
        %3231 = vdwg.mxu0
        %v3232 = vadd.f32 %v3175, %v3227
        %v3233 = vtanh.pop %v3232
        %s3234 = sadd.s32 24, 96
        %s3235 = scalar_lea.vmem %s340, %s3234 [#allocation7]
        %v3236 = vld [vmem:[%s3235] sm:$0xff]
        %v3237 = vld [vmem:[%s836] sm:$0xff]
        %v3238 = vadd.f32 %v3236, %v3237
        %v3239 = vld [vmem:[%s839] sm:$0xf]
        %v3240 = vld [vmem:[%s839 + $0x4] sm:$0xf]
        %v3241 = vld [vmem:[%s839 + $0x8] sm:$0xf]
        %v3242 = vld [vmem:[%s839 + $0xc] sm:$0xf]
        %v3247 = vunpack.c.l.b16 %v3239
        %v3248 = vunpack.c.l.b16 %v3240
        %v3249 = vunpack.c.l.b16 %v3241
        %v3250 = vunpack.c.l.b16 %v3242
        %v3251 = vpack.c.b16 %v3248, %v3247
        %v3252 = vpack.c.b16 %v3250, %v3249
        %3255 = vmatprep.subr.bf16.mxu0 0
        %3256 = vmatpush1.bf16.msra.mxu0 %v3251
        %3257 = vmatprep.subr.bf16.mxu0 0
        %3258 = vmatpush1.bf16.msra.mxu0 %v3252
        %3259 = vmatprep.subr.bf16.mxu0 0
        %3260 = vmatpush1.bf16.msra.mxu0 0
        %3261 = vmatprep.subr.bf16.mxu0 0
        %3262 = vmatpush1.bf16.msra.mxu0 0
        %3263 = vmatprep.subr.bf16.mxu0 0
        %3264 = vmatpush1.bf16.msra.mxu0 0
        %3265 = vmatprep.subr.bf16.mxu0 0
        %3266 = vmatpush1.bf16.msra.mxu0 0
        %3267 = vmatprep.subr.bf16.mxu0 0
        %3268 = vmatpush1.bf16.msra.mxu0 0
        %3269 = vmatprep.subr.bf16.mxu0 0
        %3270 = vmatpush1.bf16.msra.mxu0 0
        %3271 = vmatprep.subr.bf16.mxu0 0
        %3272 = vmatpush1.bf16.msra.mxu0 0
        %3273 = vmatprep.subr.bf16.mxu0 0
        %3274 = vmatpush1.bf16.msra.mxu0 0
        %3275 = vmatprep.subr.bf16.mxu0 0
        %3276 = vmatpush1.bf16.msra.mxu0 0
        %3277 = vmatprep.subr.bf16.mxu0 0
        %3278 = vmatpush1.bf16.msra.mxu0 0
        %3279 = vmatprep.subr.bf16.mxu0 0
        %3280 = vmatpush1.bf16.msra.mxu0 0
        %3281 = vmatprep.subr.bf16.mxu0 0
        %3282 = vmatpush1.bf16.msra.mxu0 0
        %3283 = vmatprep.subr.bf16.mxu0 0
        %3284 = vmatpush1.bf16.msra.mxu0 0
        %3285 = vmatprep.subr.bf16.mxu0 0
        %3286 = vmatpush1.bf16.msra.mxu0 0
        %3287 = vmatprep.mubr.bf16.mxu0 0
        %3288 = vmatmul.mubr.bf16.gmra.mrb[0].mxu0 %v3054
        %v3289 = vpop.f32.mrb[0].mxu0
        %v3290 = vadd.f32 0.0, %v3289
        %v3291 = vpop.f32.mrb[0].mxu0
        %v3292 = vpop.f32.mrb[0].mxu0
        %v3293 = vpop.f32.mrb[0].mxu0
        %3294 = vdwg.mxu0
        %v3295 = vadd.f32 %v3238, %v3290
        %v3296 = vxor.u32 %v3295, 2147483648
        %v3297 = vmul.f32 %v3296, 1.442695
        %v3298 = vpow.pop %v3297
        %v3299 = vadd.f32 %v3298, 1.0
        %v3300 = vrcp.pop %v3299
        %v3301 = vmul.f32 1.0, %v3300
        %v3302 = vmul.f32 %v3170, %v3031
        %v3303 = vmul.f32 %v3102, %v3233
        %v3304 = vadd.f32 %v3302, %v3303
        %v3305 = vtanh.pop %v3304
        %v3306 = vmul.f32 %v3301, %v3305
        %3307 = vst.msk [vmem:[#allocation3] sm:$0xff] %vm647, %v3304
        %3308 = vst.msk [vmem:[#allocation2] sm:$0xff] %vm647, %v3306
        %v3309 = vld [vmem:[#allocation4] sm:$0xff]
        %v3310 = vld [vmem:[#allocation5] sm:$0xff]
        %v3311 = vpack.c.bf16 %v3306, %v3306
        %v3312 = vpack.c.bf16 %v3309, %v3309
        %v3313 = vld [vmem:[%s4] sm:$0xf]
        %v3314 = vld [vmem:[%s4 + $0x4] sm:$0xf]
        %v3315 = vld [vmem:[%s4 + $0x8] sm:$0xf]
        %v3316 = vld [vmem:[%s4 + $0xc] sm:$0xf]
        %v3317 = vld [vmem:[%s5] sm:$0xf]
        %v3318 = vld [vmem:[%s5 + $0x4] sm:$0xf]
        %v3319 = vld [vmem:[%s5 + $0x8] sm:$0xf]
        %v3320 = vld [vmem:[%s5 + $0xc] sm:$0xf]
        %v3325 = vunpack.c.l.b16 %v3317
        %v3326 = vunpack.c.l.b16 %v3318
        %v3327 = vunpack.c.l.b16 %v3319
        %v3328 = vunpack.c.l.b16 %v3320
        %v3329 = vpack.c.b16 %v3326, %v3325
        %v3330 = vpack.c.b16 %v3328, %v3327
        %v3334 = vsel %vm647, %v3312, 0
        %3336 = vmatprep.subr.bf16.mxu0 0
        %3337 = vmatpush1.bf16.msra.mxu0 %v3329
        %3338 = vmatprep.subr.bf16.mxu0 0
        %3339 = vmatpush1.bf16.msra.mxu0 %v3330
        %3340 = vmatprep.subr.bf16.mxu0 0
        %3341 = vmatpush1.bf16.msra.mxu0 0
        %3342 = vmatprep.subr.bf16.mxu0 0
        %3343 = vmatpush1.bf16.msra.mxu0 0
        %3344 = vmatprep.subr.bf16.mxu0 0
        %3345 = vmatpush1.bf16.msra.mxu0 0
        %3346 = vmatprep.subr.bf16.mxu0 0
        %3347 = vmatpush1.bf16.msra.mxu0 0
        %3348 = vmatprep.subr.bf16.mxu0 0
        %3349 = vmatpush1.bf16.msra.mxu0 0
        %3350 = vmatprep.subr.bf16.mxu0 0
        %3351 = vmatpush1.bf16.msra.mxu0 0
        %3352 = vmatprep.subr.bf16.mxu0 0
        %3353 = vmatpush1.bf16.msra.mxu0 0
        %3354 = vmatprep.subr.bf16.mxu0 0
        %3355 = vmatpush1.bf16.msra.mxu0 0
        %3356 = vmatprep.subr.bf16.mxu0 0
        %3357 = vmatpush1.bf16.msra.mxu0 0
        %3358 = vmatprep.subr.bf16.mxu0 0
        %3359 = vmatpush1.bf16.msra.mxu0 0
        %3360 = vmatprep.subr.bf16.mxu0 0
        %3361 = vmatpush1.bf16.msra.mxu0 0
        %3362 = vmatprep.subr.bf16.mxu0 0
        %3363 = vmatpush1.bf16.msra.mxu0 0
        %3364 = vmatprep.subr.bf16.mxu0 0
        %3365 = vmatpush1.bf16.msra.mxu0 0
        %3366 = vmatprep.subr.bf16.mxu0 0
        %3367 = vmatpush1.bf16.msra.mxu0 0
        %3368 = vmatprep.mubr.bf16.mxu0 0
        %3369 = vmatmul.mubr.bf16.gmra.mrb[0].mxu0 %v3334
        %v3370 = vpop.f32.mrb[0].mxu0
        %v3371 = vadd.f32 0.0, %v3370
        %v3372 = vpop.f32.mrb[0].mxu0
        %v3373 = vpop.f32.mrb[0].mxu0
        %v3374 = vpop.f32.mrb[0].mxu0
        %3375 = vdwg.mxu0
        %v3380 = vunpack.c.l.b16 %v3313
        %v3381 = vunpack.c.l.b16 %v3314
        %v3382 = vunpack.c.l.b16 %v3315
        %v3383 = vunpack.c.l.b16 %v3316
        %v3384 = vpack.c.b16 %v3381, %v3380
        %v3385 = vpack.c.b16 %v3383, %v3382
        %v3389 = vsel %vm647, %v3311, 0
        %3391 = vmatprep.subr.bf16.mxu0 0
        %3392 = vmatpush1.bf16.msra.mxu0 %v3384
        %3393 = vmatprep.subr.bf16.mxu0 0
        %3394 = vmatpush1.bf16.msra.mxu0 %v3385
        %3395 = vmatprep.subr.bf16.mxu0 0
        %3396 = vmatpush1.bf16.msra.mxu0 0
        %3397 = vmatprep.subr.bf16.mxu0 0
        %3398 = vmatpush1.bf16.msra.mxu0 0
        %3399 = vmatprep.subr.bf16.mxu0 0
        %3400 = vmatpush1.bf16.msra.mxu0 0
        %3401 = vmatprep.subr.bf16.mxu0 0
        %3402 = vmatpush1.bf16.msra.mxu0 0
        %3403 = vmatprep.subr.bf16.mxu0 0
        %3404 = vmatpush1.bf16.msra.mxu0 0
        %3405 = vmatprep.subr.bf16.mxu0 0
        %3406 = vmatpush1.bf16.msra.mxu0 0
        %3407 = vmatprep.subr.bf16.mxu0 0
        %3408 = vmatpush1.bf16.msra.mxu0 0
        %3409 = vmatprep.subr.bf16.mxu0 0
        %3410 = vmatpush1.bf16.msra.mxu0 0
        %3411 = vmatprep.subr.bf16.mxu0 0
        %3412 = vmatpush1.bf16.msra.mxu0 0
        %3413 = vmatprep.subr.bf16.mxu0 0
        %3414 = vmatpush1.bf16.msra.mxu0 0
        %3415 = vmatprep.subr.bf16.mxu0 0
        %3416 = vmatpush1.bf16.msra.mxu0 0
        %3417 = vmatprep.subr.bf16.mxu0 0
        %3418 = vmatpush1.bf16.msra.mxu0 0
        %3419 = vmatprep.subr.bf16.mxu0 0
        %3420 = vmatpush1.bf16.msra.mxu0 0
        %3421 = vmatprep.subr.bf16.mxu0 0
        %3422 = vmatpush1.bf16.msra.mxu0 0
        %3423 = vmatprep.mubr.bf16.mxu0 0
        %3424 = vmatmul.mubr.bf16.gmra.mrb[0].mxu0 %v3389
        %v3425 = vpop.f32.mrb[0].mxu0
        %v3426 = vadd.f32 %v3371, %v3425
        %v3427 = vpop.f32.mrb[0].mxu0
        %v3428 = vpop.f32.mrb[0].mxu0
        %v3429 = vpop.f32.mrb[0].mxu0
        %3430 = vdwg.mxu0
        %v3431 = vld [vmem:[%s6] sm:$0x1]
        %v3433 = vlaneseq
        %v3434 = vshrl.u32 %v3433, 7
        %v3435 = vsub.s32 0, %v3434
        %v3436 = vrot.slane %v3431, %v3435
        %v3438 = vadd.f32 %v3426, %v3436
        %v3439 = vxor.u32 %v3438, 2147483648
        %v3440 = vmul.f32 %v3439, 1.442695
        %v3441 = vpow.pop %v3440
        %v3442 = vadd.f32 %v3441, 1.0
        %v3443 = vrcp.pop %v3442
        %v3444 = vmul.f32 1.0, %v3443
        %v3445 = vld [vmem:[%s1046] sm:$0xf]
        %v3446 = vld [vmem:[%s1046 + $0x4] sm:$0xf]
        %v3447 = vld [vmem:[%s1046 + $0x8] sm:$0xf]
        %v3448 = vld [vmem:[%s1046 + $0xc] sm:$0xf]
        %v3449 = vld [vmem:[%s1051] sm:$0xf]
        %v3450 = vld [vmem:[%s1051 + $0x4] sm:$0xf]
        %v3451 = vld [vmem:[%s1051 + $0x8] sm:$0xf]
        %v3452 = vld [vmem:[%s1051 + $0xc] sm:$0xf]
        %v3457 = vunpack.c.l.b16 %v3449
        %v3458 = vunpack.c.l.b16 %v3450
        %v3459 = vunpack.c.l.b16 %v3451
        %v3460 = vunpack.c.l.b16 %v3452
        %v3461 = vpack.c.b16 %v3458, %v3457
        %v3462 = vpack.c.b16 %v3460, %v3459
        %3465 = vmatprep.subr.bf16.mxu0 0
        %3466 = vmatpush1.bf16.msra.mxu0 %v3461
        %3467 = vmatprep.subr.bf16.mxu0 0
        %3468 = vmatpush1.bf16.msra.mxu0 %v3462
        %3469 = vmatprep.subr.bf16.mxu0 0
        %3470 = vmatpush1.bf16.msra.mxu0 0
        %3471 = vmatprep.subr.bf16.mxu0 0
        %3472 = vmatpush1.bf16.msra.mxu0 0
        %3473 = vmatprep.subr.bf16.mxu0 0
        %3474 = vmatpush1.bf16.msra.mxu0 0
        %3475 = vmatprep.subr.bf16.mxu0 0
        %3476 = vmatpush1.bf16.msra.mxu0 0
        %3477 = vmatprep.subr.bf16.mxu0 0
        %3478 = vmatpush1.bf16.msra.mxu0 0
        %3479 = vmatprep.subr.bf16.mxu0 0
        %3480 = vmatpush1.bf16.msra.mxu0 0
        %3481 = vmatprep.subr.bf16.mxu0 0
        %3482 = vmatpush1.bf16.msra.mxu0 0
        %3483 = vmatprep.subr.bf16.mxu0 0
        %3484 = vmatpush1.bf16.msra.mxu0 0
        %3485 = vmatprep.subr.bf16.mxu0 0
        %3486 = vmatpush1.bf16.msra.mxu0 0
        %3487 = vmatprep.subr.bf16.mxu0 0
        %3488 = vmatpush1.bf16.msra.mxu0 0
        %3489 = vmatprep.subr.bf16.mxu0 0
        %3490 = vmatpush1.bf16.msra.mxu0 0
        %3491 = vmatprep.subr.bf16.mxu0 0
        %3492 = vmatpush1.bf16.msra.mxu0 0
        %3493 = vmatprep.subr.bf16.mxu0 0
        %3494 = vmatpush1.bf16.msra.mxu0 0
        %3495 = vmatprep.subr.bf16.mxu0 0
        %3496 = vmatpush1.bf16.msra.mxu0 0
        %3497 = vmatprep.mubr.bf16.mxu0 0
        %3498 = vmatmul.mubr.bf16.gmra.mrb[0].mxu0 %v3334
        %v3499 = vpop.f32.mrb[0].mxu0
        %v3500 = vadd.f32 0.0, %v3499
        %v3501 = vpop.f32.mrb[0].mxu0
        %v3502 = vpop.f32.mrb[0].mxu0
        %v3503 = vpop.f32.mrb[0].mxu0
        %3504 = vdwg.mxu0
        %v3509 = vunpack.c.l.b16 %v3445
        %v3510 = vunpack.c.l.b16 %v3446
        %v3511 = vunpack.c.l.b16 %v3447
        %v3512 = vunpack.c.l.b16 %v3448
        %v3513 = vpack.c.b16 %v3510, %v3509
        %v3514 = vpack.c.b16 %v3512, %v3511
        %3517 = vmatprep.subr.bf16.mxu0 0
        %3518 = vmatpush1.bf16.msra.mxu0 %v3513
        %3519 = vmatprep.subr.bf16.mxu0 0
        %3520 = vmatpush1.bf16.msra.mxu0 %v3514
        %3521 = vmatprep.subr.bf16.mxu0 0
        %3522 = vmatpush1.bf16.msra.mxu0 0
        %3523 = vmatprep.subr.bf16.mxu0 0
        %3524 = vmatpush1.bf16.msra.mxu0 0
        %3525 = vmatprep.subr.bf16.mxu0 0
        %3526 = vmatpush1.bf16.msra.mxu0 0
        %3527 = vmatprep.subr.bf16.mxu0 0
        %3528 = vmatpush1.bf16.msra.mxu0 0
        %3529 = vmatprep.subr.bf16.mxu0 0
        %3530 = vmatpush1.bf16.msra.mxu0 0
        %3531 = vmatprep.subr.bf16.mxu0 0
        %3532 = vmatpush1.bf16.msra.mxu0 0
        %3533 = vmatprep.subr.bf16.mxu0 0
        %3534 = vmatpush1.bf16.msra.mxu0 0
        %3535 = vmatprep.subr.bf16.mxu0 0
        %3536 = vmatpush1.bf16.msra.mxu0 0
        %3537 = vmatprep.subr.bf16.mxu0 0
        %3538 = vmatpush1.bf16.msra.mxu0 0
        %3539 = vmatprep.subr.bf16.mxu0 0
        %3540 = vmatpush1.bf16.msra.mxu0 0
        %3541 = vmatprep.subr.bf16.mxu0 0
        %3542 = vmatpush1.bf16.msra.mxu0 0
        %3543 = vmatprep.subr.bf16.mxu0 0
        %3544 = vmatpush1.bf16.msra.mxu0 0
        %3545 = vmatprep.subr.bf16.mxu0 0
        %3546 = vmatpush1.bf16.msra.mxu0 0
        %3547 = vmatprep.subr.bf16.mxu0 0
        %3548 = vmatpush1.bf16.msra.mxu0 0
        %3549 = vmatprep.mubr.bf16.mxu0 0
        %3550 = vmatmul.mubr.bf16.gmra.mrb[0].mxu0 %v3389
        %v3551 = vpop.f32.mrb[0].mxu0
        %v3552 = vadd.f32 %v3500, %v3551
        %v3553 = vpop.f32.mrb[0].mxu0
        %v3554 = vpop.f32.mrb[0].mxu0
        %v3555 = vpop.f32.mrb[0].mxu0
        %3556 = vdwg.mxu0
        %v3557 = vld [vmem:[%s1160] sm:$0x1]
        %v3559 = vlaneseq
        %v3560 = vshrl.u32 %v3559, 7
        %v3561 = vsub.s32 0, %v3560
        %v3562 = vrot.slane %v3557, %v3561
        %v3564 = vadd.f32 %v3552, %v3562
        %v3565 = vxor.u32 %v3564, 2147483648
        %v3566 = vmul.f32 %v3565, 1.442695
        %v3567 = vpow.pop %v3566
        %v3568 = vadd.f32 %v3567, 1.0
        %v3569 = vrcp.pop %v3568
        %v3570 = vmul.f32 1.0, %v3569
        %v3571 = vld [vmem:[%s1175] sm:$0xf]
        %v3572 = vld [vmem:[%s1175 + $0x4] sm:$0xf]
        %v3573 = vld [vmem:[%s1175 + $0x8] sm:$0xf]
        %v3574 = vld [vmem:[%s1175 + $0xc] sm:$0xf]
        %v3575 = vld [vmem:[%s1180] sm:$0xf]
        %v3576 = vld [vmem:[%s1180 + $0x4] sm:$0xf]
        %v3577 = vld [vmem:[%s1180 + $0x8] sm:$0xf]
        %v3578 = vld [vmem:[%s1180 + $0xc] sm:$0xf]
        %v3583 = vunpack.c.l.b16 %v3575
        %v3584 = vunpack.c.l.b16 %v3576
        %v3585 = vunpack.c.l.b16 %v3577
        %v3586 = vunpack.c.l.b16 %v3578
        %v3587 = vpack.c.b16 %v3584, %v3583
        %v3588 = vpack.c.b16 %v3586, %v3585
        %3591 = vmatprep.subr.bf16.mxu0 0
        %3592 = vmatpush1.bf16.msra.mxu0 %v3587
        %3593 = vmatprep.subr.bf16.mxu0 0
        %3594 = vmatpush1.bf16.msra.mxu0 %v3588
        %3595 = vmatprep.subr.bf16.mxu0 0
        %3596 = vmatpush1.bf16.msra.mxu0 0
        %3597 = vmatprep.subr.bf16.mxu0 0
        %3598 = vmatpush1.bf16.msra.mxu0 0
        %3599 = vmatprep.subr.bf16.mxu0 0
        %3600 = vmatpush1.bf16.msra.mxu0 0
        %3601 = vmatprep.subr.bf16.mxu0 0
        %3602 = vmatpush1.bf16.msra.mxu0 0
        %3603 = vmatprep.subr.bf16.mxu0 0
        %3604 = vmatpush1.bf16.msra.mxu0 0
        %3605 = vmatprep.subr.bf16.mxu0 0
        %3606 = vmatpush1.bf16.msra.mxu0 0
        %3607 = vmatprep.subr.bf16.mxu0 0
        %3608 = vmatpush1.bf16.msra.mxu0 0
        %3609 = vmatprep.subr.bf16.mxu0 0
        %3610 = vmatpush1.bf16.msra.mxu0 0
        %3611 = vmatprep.subr.bf16.mxu0 0
        %3612 = vmatpush1.bf16.msra.mxu0 0
        %3613 = vmatprep.subr.bf16.mxu0 0
        %3614 = vmatpush1.bf16.msra.mxu0 0
        %3615 = vmatprep.subr.bf16.mxu0 0
        %3616 = vmatpush1.bf16.msra.mxu0 0
        %3617 = vmatprep.subr.bf16.mxu0 0
        %3618 = vmatpush1.bf16.msra.mxu0 0
        %3619 = vmatprep.subr.bf16.mxu0 0
        %3620 = vmatpush1.bf16.msra.mxu0 0
        %3621 = vmatprep.subr.bf16.mxu0 0
        %3622 = vmatpush1.bf16.msra.mxu0 0
        %3623 = vmatprep.mubr.bf16.mxu0 0
        %3624 = vmatmul.mubr.bf16.gmra.mrb[0].mxu0 %v3334
        %v3625 = vpop.f32.mrb[0].mxu0
        %v3626 = vadd.f32 0.0, %v3625
        %v3627 = vpop.f32.mrb[0].mxu0
        %v3628 = vpop.f32.mrb[0].mxu0
        %v3629 = vpop.f32.mrb[0].mxu0
        %3630 = vdwg.mxu0
        %v3635 = vunpack.c.l.b16 %v3571
        %v3636 = vunpack.c.l.b16 %v3572
        %v3637 = vunpack.c.l.b16 %v3573
        %v3638 = vunpack.c.l.b16 %v3574
        %v3639 = vpack.c.b16 %v3636, %v3635
        %v3640 = vpack.c.b16 %v3638, %v3637
        %3643 = vmatprep.subr.bf16.mxu0 0
        %3644 = vmatpush1.bf16.msra.mxu0 %v3639
        %3645 = vmatprep.subr.bf16.mxu0 0
        %3646 = vmatpush1.bf16.msra.mxu0 %v3640
        %3647 = vmatprep.subr.bf16.mxu0 0
        %3648 = vmatpush1.bf16.msra.mxu0 0
        %3649 = vmatprep.subr.bf16.mxu0 0
        %3650 = vmatpush1.bf16.msra.mxu0 0
        %3651 = vmatprep.subr.bf16.mxu0 0
        %3652 = vmatpush1.bf16.msra.mxu0 0
        %3653 = vmatprep.subr.bf16.mxu0 0
        %3654 = vmatpush1.bf16.msra.mxu0 0
        %3655 = vmatprep.subr.bf16.mxu0 0
        %3656 = vmatpush1.bf16.msra.mxu0 0
        %3657 = vmatprep.subr.bf16.mxu0 0
        %3658 = vmatpush1.bf16.msra.mxu0 0
        %3659 = vmatprep.subr.bf16.mxu0 0
        %3660 = vmatpush1.bf16.msra.mxu0 0
        %3661 = vmatprep.subr.bf16.mxu0 0
        %3662 = vmatpush1.bf16.msra.mxu0 0
        %3663 = vmatprep.subr.bf16.mxu0 0
        %3664 = vmatpush1.bf16.msra.mxu0 0
        %3665 = vmatprep.subr.bf16.mxu0 0
        %3666 = vmatpush1.bf16.msra.mxu0 0
        %3667 = vmatprep.subr.bf16.mxu0 0
        %3668 = vmatpush1.bf16.msra.mxu0 0
        %3669 = vmatprep.subr.bf16.mxu0 0
        %3670 = vmatpush1.bf16.msra.mxu0 0
        %3671 = vmatprep.subr.bf16.mxu0 0
        %3672 = vmatpush1.bf16.msra.mxu0 0
        %3673 = vmatprep.subr.bf16.mxu0 0
        %3674 = vmatpush1.bf16.msra.mxu0 0
        %3675 = vmatprep.mubr.bf16.mxu0 0
        %3676 = vmatmul.mubr.bf16.gmra.mrb[0].mxu0 %v3389
        %v3677 = vpop.f32.mrb[0].mxu0
        %v3678 = vadd.f32 %v3626, %v3677
        %v3679 = vpop.f32.mrb[0].mxu0
        %v3680 = vpop.f32.mrb[0].mxu0
        %v3681 = vpop.f32.mrb[0].mxu0
        %3682 = vdwg.mxu0
        %v3683 = vld [vmem:[%s1289] sm:$0x1]
        %v3685 = vlaneseq
        %v3686 = vshrl.u32 %v3685, 7
        %v3687 = vsub.s32 0, %v3686
        %v3688 = vrot.slane %v3683, %v3687
        %v3690 = vadd.f32 %v3678, %v3688
        %v3691 = vtanh.pop %v3690
        %v3692 = vld [vmem:[%s1299] sm:$0xf]
        %v3693 = vld [vmem:[%s1299 + $0x4] sm:$0xf]
        %v3694 = vld [vmem:[%s1299 + $0x8] sm:$0xf]
        %v3695 = vld [vmem:[%s1299 + $0xc] sm:$0xf]
        %v3696 = vld [vmem:[%s1304] sm:$0xf]
        %v3697 = vld [vmem:[%s1304 + $0x4] sm:$0xf]
        %v3698 = vld [vmem:[%s1304 + $0x8] sm:$0xf]
        %v3699 = vld [vmem:[%s1304 + $0xc] sm:$0xf]
        %v3704 = vunpack.c.l.b16 %v3696
        %v3705 = vunpack.c.l.b16 %v3697
        %v3706 = vunpack.c.l.b16 %v3698
        %v3707 = vunpack.c.l.b16 %v3699
        %v3708 = vpack.c.b16 %v3705, %v3704
        %v3709 = vpack.c.b16 %v3707, %v3706
        %3712 = vmatprep.subr.bf16.mxu0 0
        %3713 = vmatpush1.bf16.msra.mxu0 %v3708
        %3714 = vmatprep.subr.bf16.mxu0 0
        %3715 = vmatpush1.bf16.msra.mxu0 %v3709
        %3716 = vmatprep.subr.bf16.mxu0 0
        %3717 = vmatpush1.bf16.msra.mxu0 0
        %3718 = vmatprep.subr.bf16.mxu0 0
        %3719 = vmatpush1.bf16.msra.mxu0 0
        %3720 = vmatprep.subr.bf16.mxu0 0
        %3721 = vmatpush1.bf16.msra.mxu0 0
        %3722 = vmatprep.subr.bf16.mxu0 0
        %3723 = vmatpush1.bf16.msra.mxu0 0
        %3724 = vmatprep.subr.bf16.mxu0 0
        %3725 = vmatpush1.bf16.msra.mxu0 0
        %3726 = vmatprep.subr.bf16.mxu0 0
        %3727 = vmatpush1.bf16.msra.mxu0 0
        %3728 = vmatprep.subr.bf16.mxu0 0
        %3729 = vmatpush1.bf16.msra.mxu0 0
        %3730 = vmatprep.subr.bf16.mxu0 0
        %3731 = vmatpush1.bf16.msra.mxu0 0
        %3732 = vmatprep.subr.bf16.mxu0 0
        %3733 = vmatpush1.bf16.msra.mxu0 0
        %3734 = vmatprep.subr.bf16.mxu0 0
        %3735 = vmatpush1.bf16.msra.mxu0 0
        %3736 = vmatprep.subr.bf16.mxu0 0
        %3737 = vmatpush1.bf16.msra.mxu0 0
        %3738 = vmatprep.subr.bf16.mxu0 0
        %3739 = vmatpush1.bf16.msra.mxu0 0
        %3740 = vmatprep.subr.bf16.mxu0 0
        %3741 = vmatpush1.bf16.msra.mxu0 0
        %3742 = vmatprep.subr.bf16.mxu0 0
        %3743 = vmatpush1.bf16.msra.mxu0 0
        %3744 = vmatprep.mubr.bf16.mxu0 0
        %3745 = vmatmul.mubr.bf16.gmra.mrb[0].mxu0 %v3334
        %v3746 = vpop.f32.mrb[0].mxu0
        %v3747 = vadd.f32 0.0, %v3746
        %v3748 = vpop.f32.mrb[0].mxu0
        %v3749 = vpop.f32.mrb[0].mxu0
        %v3750 = vpop.f32.mrb[0].mxu0
        %3751 = vdwg.mxu0
        %v3756 = vunpack.c.l.b16 %v3692
        %v3757 = vunpack.c.l.b16 %v3693
        %v3758 = vunpack.c.l.b16 %v3694
        %v3759 = vunpack.c.l.b16 %v3695
        %v3760 = vpack.c.b16 %v3757, %v3756
        %v3761 = vpack.c.b16 %v3759, %v3758
        %3764 = vmatprep.subr.bf16.mxu0 0
        %3765 = vmatpush1.bf16.msra.mxu0 %v3760
        %3766 = vmatprep.subr.bf16.mxu0 0
        %3767 = vmatpush1.bf16.msra.mxu0 %v3761
        %3768 = vmatprep.subr.bf16.mxu0 0
        %3769 = vmatpush1.bf16.msra.mxu0 0
        %3770 = vmatprep.subr.bf16.mxu0 0
        %3771 = vmatpush1.bf16.msra.mxu0 0
        %3772 = vmatprep.subr.bf16.mxu0 0
        %3773 = vmatpush1.bf16.msra.mxu0 0
        %3774 = vmatprep.subr.bf16.mxu0 0
        %3775 = vmatpush1.bf16.msra.mxu0 0
        %3776 = vmatprep.subr.bf16.mxu0 0
        %3777 = vmatpush1.bf16.msra.mxu0 0
        %3778 = vmatprep.subr.bf16.mxu0 0
        %3779 = vmatpush1.bf16.msra.mxu0 0
        %3780 = vmatprep.subr.bf16.mxu0 0
        %3781 = vmatpush1.bf16.msra.mxu0 0
        %3782 = vmatprep.subr.bf16.mxu0 0
        %3783 = vmatpush1.bf16.msra.mxu0 0
        %3784 = vmatprep.subr.bf16.mxu0 0
        %3785 = vmatpush1.bf16.msra.mxu0 0
        %3786 = vmatprep.subr.bf16.mxu0 0
        %3787 = vmatpush1.bf16.msra.mxu0 0
        %3788 = vmatprep.subr.bf16.mxu0 0
        %3789 = vmatpush1.bf16.msra.mxu0 0
        %3790 = vmatprep.subr.bf16.mxu0 0
        %3791 = vmatpush1.bf16.msra.mxu0 0
        %3792 = vmatprep.subr.bf16.mxu0 0
        %3793 = vmatpush1.bf16.msra.mxu0 0
        %3794 = vmatprep.subr.bf16.mxu0 0
        %3795 = vmatpush1.bf16.msra.mxu0 0
        %3796 = vmatprep.mubr.bf16.mxu0 0
        %3797 = vmatmul.mubr.bf16.gmra.mrb[0].mxu0 %v3389
        %v3798 = vpop.f32.mrb[0].mxu0
        %v3799 = vadd.f32 %v3747, %v3798
        %v3800 = vpop.f32.mrb[0].mxu0
        %v3801 = vpop.f32.mrb[0].mxu0
        %v3802 = vpop.f32.mrb[0].mxu0
        %3803 = vdwg.mxu0
        %v3804 = vld [vmem:[%s1413] sm:$0x1]
        %v3806 = vlaneseq
        %v3807 = vshrl.u32 %v3806, 7
        %v3808 = vsub.s32 0, %v3807
        %v3809 = vrot.slane %v3804, %v3808
        %v3811 = vadd.f32 %v3799, %v3809
        %v3812 = vxor.u32 %v3811, 2147483648
        %v3813 = vmul.f32 %v3812, 1.442695
        %v3814 = vpow.pop %v3813
        %v3815 = vadd.f32 %v3814, 1.0
        %v3816 = vrcp.pop %v3815
        %v3817 = vmul.f32 1.0, %v3816
        %v3818 = vmul.f32 %v3570, %v3310
        %v3819 = vmul.f32 %v3444, %v3691
        %v3820 = vadd.f32 %v3818, %v3819
        %v3821 = vtanh.pop %v3820
        %v3822 = vmul.f32 %v3817, %v3821
        %3823 = vst.msk [vmem:[#allocation5] sm:$0xff] %vm647, %v3820
        %3824 = vst.msk [vmem:[#allocation4] sm:$0xff] %vm647, %v3822
        %s3825 = scalar_lea.vmem %s374, 24
        %3826 = vst.msk [vmem:[%s3825] sm:$0xff] %vm647, %v3822
        %s3827 = smul.u32 4, %s18
        %p3828 = scmp.lt.s32.totalorder %s3827, 11
        %s3829 = scalar_select %p3828, %s3827, 11
        %s3830 = smul.addr %s3829, 8
        %s3831 = scalar_lea.vmem %s7, %s3830
        // Predicated region
        $region91: #{captions_lstm2_forward.6} parent=81 // pred_check
          %p3832 = pneg %p188
        $region92: #{captions_lstm2_forward.6} parent=81 // pred_check_branch
          %3834 = sbr.rel (%p3832) target = $region94
        $region93: #{captions_lstm2_forward.6} parent=81 // pred_region
          %s3835 = smul.u32 4, %s18
        $region94: #{captions_lstm2_forward.6} parent=81 // pred_fallthru
          _
      $region82: #{captions_lstm2_forward.6} parent=5 // pred_fallthru
        _
      %p3836 = scmp.le.s32.totalorder 2, %s13
      // Predicated region
      $region95: #{captions_lstm2_forward.6} parent=5 // pred_check
        %p3837 = pneg %p3836
      $region96: #{captions_lstm2_forward.6} parent=5 // pred_check_branch
        %3839 = sbr.rel (%p3837) target = $region98
      $region97: #{captions_lstm2_forward.6} parent=5 // pred_region
        %s3840 = ssub.s32 %s13, 2
        // Predicated region
        $region99: #{captions_lstm2_forward.6} parent=97 // pred_check
          %p3841 = pneg %p194
        $region100: #{captions_lstm2_forward.6} parent=97 // pred_check_branch
          %3843 = sbr.rel (%p3841) target = $region102
        $region101: #{captions_lstm2_forward.6} parent=97 // pred_region
          %s3844 = smul.u32 4, %s19
          %p3845 = scmp.lt.s32.totalorder %s3844, 11
          %s3846 = scalar_select %p3845, %s3844, 11
          %s3847 = smul.addr %s3846, 8
          %s3848 = scalar_lea.vmem %s7, %s3847
        $region102: #{captions_lstm2_forward.6} parent=97 // pred_fallthru
          _
      $region98: #{captions_lstm2_forward.6} parent=5 // pred_fallthru
        _
    $region6: #{captions_lstm2_forward.6} parent=1 // loop_footer
      %s17 = sadd.s32 1, %s13
    $region7: #{captions_lstm2_forward.6} parent=1 // loop_footer_branch
      %12 = sbr.rel target = $region3
    $region8: #{captions_lstm2_forward.6} parent=1 // loop_exit
      _

</llo_original>
